<compile_context>
chip_gen: v7x
topology: tpu7x:2x2x1
jax: 0.10.0
libtpu: 0.0.40
codegen_flags: <defaults>
</compile_context>

<pallas_src>
import math

import jax
import jax.numpy as jnp
from jax.experimental import pallas as pl
from jax.experimental.pallas import tpu as pltpu

# ---------------- model config (small, consistent with the module) ----------------
NUM_ENC = 2
NUM_DEC = 2
EMB = 32
NHEAD = 4
HEAD_DIM = EMB // NHEAD
SRC_VOCAB = 50
TGT_VOCAB = 50
DFF = 64
PAD_IDX = 2
MAXLEN = 128
LN_EPS = 1e-5
ATTN_SCALE = 1.0 / math.sqrt(HEAD_DIM)
NEG_INF = -1e9          # large finite negative (guards against all-masked NaN)
LANE = 128              # lane width; also padded vocab width for the generator
VOCAB_PAD = LANE

B = 2   # batch
S = 8   # src seq len
T = 8   # tgt seq len


# ---------------------------------- packed-slab layout ----------------------------------
def _build_layout():
    """Static layout of the two packed slabs (shared by wrapper packing and kernel)."""
    mats = []   # (name, nrows, ncols)   -> stacked along rows in the weight slab
    vecs = []   # (name, width)          -> one 128-lane row each in the vector slab
    for l in range(NUM_ENC):
        p = f"e{l}_"
        mats += [(p + "wqkv", EMB, 3 * EMB), (p + "wo", EMB, EMB),
                 (p + "w1", EMB, DFF), (p + "w2", DFF, EMB)]
        vecs += [(p + "bqkv", 3 * EMB), (p + "bo", EMB), (p + "b1", DFF), (p + "b2", EMB),
                 (p + "ln1g", EMB), (p + "ln1b", EMB), (p + "ln2g", EMB), (p + "ln2b", EMB)]
    for l in range(NUM_DEC):
        p = f"d{l}_"
        mats += [(p + "sawqkv", EMB, 3 * EMB), (p + "sawo", EMB, EMB),
                 (p + "cawq", EMB, EMB), (p + "cawkv", EMB, 2 * EMB), (p + "cawo", EMB, EMB),
                 (p + "w1", EMB, DFF), (p + "w2", DFF, EMB)]
        vecs += [(p + "sabqkv", 3 * EMB), (p + "sabo", EMB),
                 (p + "cabq", EMB), (p + "cabkv", 2 * EMB), (p + "cabo", EMB),
                 (p + "b1", DFF), (p + "b2", EMB),
                 (p + "ln1g", EMB), (p + "ln1b", EMB),
                 (p + "ln2g", EMB), (p + "ln2b", EMB),
                 (p + "ln3g", EMB), (p + "ln3b", EMB)]
    mats += [("gen_w", EMB, VOCAB_PAD)]                       # zero-padded 50 -> 128 lanes
    vecs += [("enc_ng", EMB), ("enc_nb", EMB), ("dec_ng", EMB), ("dec_nb", EMB),
             ("gen_b", VOCAB_PAD)]

    mat_off, row = {}, 0
    for n, r, c in mats:
        mat_off[n] = (row, r, c)
        row += r
    vec_off = {}
    for i, (n, w) in enumerate(vecs):
        vec_off[n] = (i, w)
    return mats, mat_off, row, vecs, vec_off, len(vecs)


(MAT_LIST, MAT_OFF, W_ROWS, VEC_LIST, VEC_OFF, NUM_VEC) = _build_layout()


def pack_params(params):
    """Pack the flat param dict into one weight slab and one vector slab."""
    mrows = []
    for n, nr, nc in MAT_LIST:
        m = params[n]
        mrows.append(jnp.pad(m, ((0, 0), (0, LANE - m.shape[1]))))
    w_slab = jnp.concatenate(mrows, axis=0)                   # [W_ROWS, 128]
    vrows = []
    for n, w in VEC_LIST:
        v = params[n]
        vrows.append(jnp.pad(v, ((0, 0), (0, LANE - v.shape[1]))))
    v_slab = jnp.concatenate(vrows, axis=0)                   # [NUM_VEC, 128]
    return w_slab, v_slab


# ---------------------------------- in-kernel helpers ----------------------------------
def _mat(w_ref, name):
    """Static (sublane-aligned) slice of the packed weight slab."""
    r0, nr, nc = MAT_OFF[name]
    return w_ref[r0:r0 + nr, :nc]


def _vec(v_ref, name):
    """One bias / LN row of the packed vector slab."""
    r, w = VEC_OFF[name]
    return v_ref[r:r + 1, :w]


def _ln(x, v_ref, prefix):
    """LayerNorm over the feature dim; params prefix+'g' / prefix+'b'."""
    g = _vec(v_ref, prefix + "g")
    b = _vec(v_ref, prefix + "b")
    mu = jnp.mean(x, axis=-1, keepdims=True)
    xc = x - mu
    var = jnp.mean(xc * xc, axis=-1, keepdims=True)
    return xc * jax.lax.rsqrt(var + LN_EPS) * g + b


def _mha(q, k, v, wo, bo, mask):
    """q:[Rq,E]  k,v:[Rk,E]  wo:[E,E]  bo:[1,E]  mask additive [Rq,Rk].

    Per-head softmax attention; head outputs are lane-concatenated so the output
    projection is a single [Rq,E]@[E,E] matmul (one MXU push per block).
    """
    heads = []
    for h in range(NHEAD):
        sl = slice(h * HEAD_DIM, (h + 1) * HEAD_DIM)
        qh, kh, vh = q[:, sl], k[:, sl], v[:, sl]
        s = jax.lax.dot_general(qh, kh, (((1,), (1,)), ((), ())),
                                preferred_element_type=jnp.float32)
        s = s * ATTN_SCALE + mask
        m = jnp.max(s, axis=-1, keepdims=True)
        p = jnp.exp(s - m)
        denom = jnp.sum(p, axis=-1, keepdims=True)
        oh = jnp.dot(p, vh, preferred_element_type=jnp.float32)
        heads.append(oh * pl.reciprocal(denom, approx=True))
    o = jnp.concatenate(heads, axis=-1)                       # [Rq, E]  static lane concat
    return jnp.dot(o, wo, preferred_element_type=jnp.float32) + bo


def _ffn(x, w1, b1, w2, b2):
    h = jnp.dot(x, w1, preferred_element_type=jnp.float32) + b1
    h = jnp.maximum(h, 0.0)                                   # ReLU
    return jnp.dot(h, w2, preferred_element_type=jnp.float32) + b2


# ---------------------------------- fused kernel ----------------------------------
def fused_transformer_kernel(src_ref, tgt_ref, smask_ref, tmask_ref, mmask_ref,
                             w_ref, vec_ref, out_ref):
    src = src_ref[...]            # [B*S, E]   token emb + PE (added in wrapper)
    tgt = tgt_ref[...]            # [B*T, E]
    smask = smask_ref[...]        # [B*S, B*S] additive (block-diag + key padding)
    tmask = tmask_ref[...]        # [B*T, B*T] additive (causal + block-diag + key padding)
    mmask = mmask_ref[...]        # [B*T, B*S] additive (block-diag + memory key padding)

    # ---------------- encoder stack (post-LN) ----------------
    mem = src
    for l in range(NUM_ENC):
        p = f"e{l}_"
        qkv = (jnp.dot(mem, _mat(w_ref, p + "wqkv"), preferred_element_type=jnp.float32)
               + _vec(vec_ref, p + "bqkv"))
        a = _mha(qkv[:, :EMB], qkv[:, EMB:2 * EMB], qkv[:, 2 * EMB:],
                 _mat(w_ref, p + "wo"), _vec(vec_ref, p + "bo"), smask)
        mem = _ln(mem + a, vec_ref, p + "ln1")
        h = _ffn(mem, _mat(w_ref, p + "w1"), _vec(vec_ref, p + "b1"),
                 _mat(w_ref, p + "w2"), _vec(vec_ref, p + "b2"))
        mem = _ln(mem + h, vec_ref, p + "ln2")
    mem = _ln(mem, vec_ref, "enc_n")                          # final encoder norm

    # ---------------- decoder stack (post-LN) ----------------
    x = tgt
    for l in range(NUM_DEC):
        p = f"d{l}_"
        qkv = (jnp.dot(x, _mat(w_ref, p + "sawqkv"), preferred_element_type=jnp.float32)
               + _vec(vec_ref, p + "sabqkv"))
        a = _mha(qkv[:, :EMB], qkv[:, EMB:2 * EMB], qkv[:, 2 * EMB:],
                 _mat(w_ref, p + "sawo"), _vec(vec_ref, p + "sabo"), tmask)
        x = _ln(x + a, vec_ref, p + "ln1")

        q = (jnp.dot(x, _mat(w_ref, p + "cawq"), preferred_element_type=jnp.float32)
             + _vec(vec_ref, p + "cabq"))
        kv = (jnp.dot(mem, _mat(w_ref, p + "cawkv"), preferred_element_type=jnp.float32)
              + _vec(vec_ref, p + "cabkv"))
        a = _mha(q, kv[:, :EMB], kv[:, EMB:],
                 _mat(w_ref, p + "cawo"), _vec(vec_ref, p + "cabo"), mmask)
        x = _ln(x + a, vec_ref, p + "ln2")

        h = _ffn(x, _mat(w_ref, p + "w1"), _vec(vec_ref, p + "b1"),
                 _mat(w_ref, p + "w2"), _vec(vec_ref, p + "b2"))
        x = _ln(x + h, vec_ref, p + "ln3")
    x = _ln(x, vec_ref, "dec_n")                              # final decoder norm

    # ---------------- generator (lane-dense 128-wide store) ----------------
    logits = (jnp.dot(x, _mat(w_ref, "gen_w"), preferred_element_type=jnp.float32)
              + _vec(vec_ref, "gen_b"))                       # [B*T, 128]
    out_ref[...] = logits.astype(out_ref.dtype)


# ---------------------------------- forward wrapper ----------------------------------
@jax.jit
def seq2seq_forward(params, src, trg, src_mask, tgt_mask,
                    src_padding_mask, tgt_padding_mask, memory_key_padding_mask):
    Bb, Ss = src.shape
    _, Tt = trg.shape

    # glue: embedding gather + PE add, flattened to [B*S, E] / [B*T, E]
    src_x = (jnp.take(params["src_tok_emb"], src.reshape(-1), axis=0)
             + jnp.tile(params["pe"][:Ss], (Bb, 1)))
    tgt_x = (jnp.take(params["tgt_tok_emb"], trg.reshape(-1), axis=0)
             + jnp.tile(params["pe"][:Tt], (Bb, 1)))

    def to_add(m):
        if m.dtype == jnp.bool_:
            return jnp.where(m, NEG_INF, 0.0).astype(jnp.float32)
        return m.astype(jnp.float32)

    def block_diag(rq, rk):
        bi = jnp.repeat(jnp.arange(Bb), rq)
        bj = jnp.repeat(jnp.arange(Bb), rk)
        return jnp.where(bi[:, None] == bj[None, :], 0.0, NEG_INF).astype(jnp.float32)

    src_kp = jnp.where(src_padding_mask.reshape(-1), NEG_INF, 0.0).astype(jnp.float32)
    tgt_kp = jnp.where(tgt_padding_mask.reshape(-1), NEG_INF, 0.0).astype(jnp.float32)
    mem_kp = jnp.where(memory_key_padding_mask.reshape(-1), NEG_INF, 0.0).astype(jnp.float32)

    # combined additive masks (causal / user mask + key padding + cross-batch blocking)
    smask = jnp.tile(to_add(src_mask), (Bb, Bb)) + block_diag(Ss, Ss) + src_kp[None, :]
    tmask = jnp.tile(to_add(tgt_mask), (Bb, Bb)) + block_diag(Tt, Tt) + tgt_kp[None, :]
    mmask = block_diag(Tt, Ss) + mem_kp[None, :]

    w_slab, v_slab = pack_params(params)

    vmem_spec = pl.BlockSpec(memory_space=pltpu.MemorySpace.VMEM)
    out = pl.pallas_call(
        fused_transformer_kernel,
        out_shape=jax.ShapeDtypeStruct((Bb * Tt, VOCAB_PAD), jnp.float32),
        in_specs=[vmem_spec] * 7,
        out_specs=vmem_spec,
    )(src_x, tgt_x, smask, tmask, mmask, w_slab, v_slab)

    return out[:, :TGT_VOCAB].reshape(Bb, Tt, TGT_VOCAB)


# ---------------------------------- parameter init ----------------------------------
def init_params(key):
    keys = iter(jax.random.split(key, 512))

    def nrm(shape, scale=0.02):
        return (scale * jax.random.normal(next(keys), shape)).astype(jnp.float32)

    def zeros(shape):
        return jnp.zeros(shape, jnp.float32)

    def ones(shape):
        return jnp.ones(shape, jnp.float32)

    params = {}
    for l in range(NUM_ENC):
        p = f"e{l}_"
        params[p + "wqkv"] = nrm((EMB, 3 * EMB)); params[p + "bqkv"] = zeros((1, 3 * EMB))
        params[p + "wo"] = nrm((EMB, EMB));       params[p + "bo"] = zeros((1, EMB))
        params[p + "w1"] = nrm((EMB, DFF));       params[p + "b1"] = zeros((1, DFF))
        params[p + "w2"] = nrm((DFF, EMB));       params[p + "b2"] = zeros((1, EMB))
        for nm in ("ln1", "ln2"):
            params[p + nm + "g"] = ones((1, EMB)); params[p + nm + "b"] = zeros((1, EMB))
    for l in range(NUM_DEC):
        p = f"d{l}_"
        params[p + "sawqkv"] = nrm((EMB, 3 * EMB)); params[p + "sabqkv"] = zeros((1, 3 * EMB))
        params[p + "sawo"] = nrm((EMB, EMB));       params[p + "sabo"] = zeros((1, EMB))
        params[p + "cawq"] = nrm((EMB, EMB));       params[p + "cabq"] = zeros((1, EMB))
        params[p + "cawkv"] = nrm((EMB, 2 * EMB));  params[p + "cabkv"] = zeros((1, 2 * EMB))
        params[p + "cawo"] = nrm((EMB, EMB));       params[p + "cabo"] = zeros((1, EMB))
        params[p + "w1"] = nrm((EMB, DFF));         params[p + "b1"] = zeros((1, DFF))
        params[p + "w2"] = nrm((DFF, EMB));         params[p + "b2"] = zeros((1, EMB))
        for nm in ("ln1", "ln2", "ln3"):
            params[p + nm + "g"] = ones((1, EMB)); params[p + nm + "b"] = zeros((1, EMB))
    params["enc_ng"] = ones((1, EMB)); params["enc_nb"] = zeros((1, EMB))
    params["dec_ng"] = ones((1, EMB)); params["dec_nb"] = zeros((1, EMB))
    params["gen_w"] = nrm((EMB, TGT_VOCAB)); params["gen_b"] = zeros((1, TGT_VOCAB))

    # sinusoidal positional encoding (same construction as PositionalEncoding)
    den = jnp.exp(-jnp.arange(0, EMB, 2, dtype=jnp.float32) * math.log(10000.0) / EMB)
    pos = jnp.arange(0, MAXLEN, dtype=jnp.float32).reshape(MAXLEN, 1)
    pe = jnp.zeros((MAXLEN, EMB), jnp.float32)
    pe = pe.at[:, 0::2].set(jnp.sin(pos * den))
    pe = pe.at[:, 1::2].set(jnp.cos(pos * den))
    params["pe"] = pe

    # token embeddings with padding_idx row zeroed
    params["src_tok_emb"] = nrm((SRC_VOCAB, EMB), 1.0).at[PAD_IDX].set(0.0)
    params["tgt_tok_emb"] = nrm((TGT_VOCAB, EMB), 1.0).at[PAD_IDX].set(0.0)
    return params


# ---------------------------------- main ----------------------------------
if __name__ == "__main__":
    key = jax.random.PRNGKey(0)
    pkey, skey, tkey = jax.random.split(key, 3)
    params = init_params(pkey)

    src = jax.random.randint(skey, (B, S), 0, SRC_VOCAB, dtype=jnp.int32)
    trg = jax.random.randint(tkey, (B, T), 0, TGT_VOCAB, dtype=jnp.int32)
    # make the tail of batch element 1 padding tokens
    src = src.at[1, S - 2:].set(PAD_IDX)
    trg = trg.at[1, T - 2:].set(PAD_IDX)

    src_mask = jnp.zeros((S, S), jnp.float32)                            # no encoder self-attn mask
    tgt_mask = jnp.triu(jnp.full((T, T), NEG_INF, jnp.float32), k=1)     # causal additive mask
    src_padding_mask = (src == PAD_IDX)
    tgt_padding_mask = (trg == PAD_IDX)
    memory_key_padding_mask = src_padding_mask

    out = seq2seq_forward(params, src, trg, src_mask, tgt_mask,
                          src_padding_mask, tgt_padding_mask, memory_key_padding_mask)
    out = jax.block_until_ready(out)

    assert out.shape == (B, T, TGT_VOCAB), out.shape
    assert bool(jnp.all(jnp.isfinite(out)))
    print("KERNEL_OK")
</pallas_src>

<mosaic_0001>
module attributes {stable_mosaic.version = 11 : i64} {
  func.func @fused_transformer_kernel(%arg0: memref<16x32xf32, #tpu.memory_space<vmem>>, %arg1: memref<16x32xf32, #tpu.memory_space<vmem>>, %arg2: memref<16x16xf32, #tpu.memory_space<vmem>>, %arg3: memref<16x16xf32, #tpu.memory_space<vmem>>, %arg4: memref<16x16xf32, #tpu.memory_space<vmem>>, %arg5: memref<864x128xf32, #tpu.memory_space<vmem>>, %arg6: memref<47x128xf32, #tpu.memory_space<vmem>>, %arg7: memref<16x128xf32, #tpu.memory_space<vmem>>) attributes {dimension_semantics = [], scalar_prefetch = 0 : i64, scratch_operands = 0 : i64, tpu.core_type = #tpu.core_type<tc>} {
    %c0 = arith.constant 0 : index
    %c0_0 = arith.constant 0 : index
    %0 = vector.load %arg0[%c0, %c0_0] : memref<16x32xf32, #tpu.memory_space<vmem>>, vector<16x32xf32>
    %c0_1 = arith.constant 0 : index
    %c0_2 = arith.constant 0 : index
    %1 = vector.load %arg1[%c0_1, %c0_2] : memref<16x32xf32, #tpu.memory_space<vmem>>, vector<16x32xf32>
    %c0_3 = arith.constant 0 : index
    %c0_4 = arith.constant 0 : index
    %2 = vector.load %arg2[%c0_3, %c0_4] : memref<16x16xf32, #tpu.memory_space<vmem>>, vector<16x16xf32>
    %c0_5 = arith.constant 0 : index
    %c0_6 = arith.constant 0 : index
    %3 = vector.load %arg3[%c0_5, %c0_6] : memref<16x16xf32, #tpu.memory_space<vmem>>, vector<16x16xf32>
    %c0_7 = arith.constant 0 : index
    %c0_8 = arith.constant 0 : index
    %4 = vector.load %arg4[%c0_7, %c0_8] : memref<16x16xf32, #tpu.memory_space<vmem>>, vector<16x16xf32>
    %c0_9 = arith.constant 0 : index
    %c0_10 = arith.constant 0 : index
    %5 = vector.load %arg5[%c0_9, %c0_10] : memref<864x128xf32, #tpu.memory_space<vmem>>, vector<32x96xf32>
    %cst = arith.constant dense<0.000000e+00> : vector<16x96xf32>
    %6 = tpu.matmul %0, %5, %cst {dimension_numbers = #tpu.dot_dimension_numbers<[1], [0], [0], [1], [0, 0, 1, 1], [], []>} : vector<16x32xf32>, vector<32x96xf32>, vector<16x96xf32> -> vector<16x96xf32>
    %c0_11 = arith.constant 0 : index
    %c0_12 = arith.constant 0 : index
    %7 = vector.load %arg6[%c0_11, %c0_12] : memref<47x128xf32, #tpu.memory_space<vmem>>, vector<1x96xf32>
    %8 = vector.broadcast %7 : vector<1x96xf32> to vector<16x96xf32>
    %9 = arith.addf %6, %8 : vector<16x96xf32>
    %10 = vector.extract_strided_slice %9 {offsets = [0, 0], sizes = [16, 32], strides = [1, 1]} : vector<16x96xf32> to vector<16x32xf32>
    %11 = vector.extract_strided_slice %9 {offsets = [0, 32], sizes = [16, 32], strides = [1, 1]} : vector<16x96xf32> to vector<16x32xf32>
    %12 = vector.extract_strided_slice %9 {offsets = [0, 64], sizes = [16, 32], strides = [1, 1]} : vector<16x96xf32> to vector<16x32xf32>
    %c32 = arith.constant 32 : index
    %c0_13 = arith.constant 0 : index
    %13 = vector.load %arg5[%c32, %c0_13] : memref<864x128xf32, #tpu.memory_space<vmem>>, vector<32x32xf32>
    %c1 = arith.constant 1 : index
    %c0_14 = arith.constant 0 : index
    %14 = vector.load %arg6[%c1, %c0_14] : memref<47x128xf32, #tpu.memory_space<vmem>>, vector<1x32xf32>
    %15 = vector.extract_strided_slice %10 {offsets = [0, 0], sizes = [16, 8], strides = [1, 1]} : vector<16x32xf32> to vector<16x8xf32>
    %16 = vector.extract_strided_slice %11 {offsets = [0, 0], sizes = [16, 8], strides = [1, 1]} : vector<16x32xf32> to vector<16x8xf32>
    %17 = vector.extract_strided_slice %12 {offsets = [0, 0], sizes = [16, 8], strides = [1, 1]} : vector<16x32xf32> to vector<16x8xf32>
    %cst_15 = arith.constant dense<0.000000e+00> : vector<16x16xf32>
    %18 = tpu.matmul %15, %16, %cst_15 {dimension_numbers = #tpu.dot_dimension_numbers<[1], [1], [0], [0], [0, 0, 1, 0], [], []>} : vector<16x8xf32>, vector<16x8xf32>, vector<16x16xf32> -> vector<16x16xf32>
    %cst_16 = arith.constant 0.353553385 : f32
    %19 = vector.broadcast %cst_16 : f32 to vector<16x16xf32>
    %20 = arith.mulf %18, %19 : vector<16x16xf32>
    %21 = arith.addf %20, %2 : vector<16x16xf32>
    %cst_17 = arith.constant dense<0xFF800000> : vector<16xf32>
    %22 = vector.multi_reduction <maximumf>, %21, %cst_17 [1] : vector<16x16xf32> to vector<16xf32>
    %23 = vector.shape_cast %22 : vector<16xf32> to vector<16x1xf32>
    %24 = vector.broadcast %23 : vector<16x1xf32> to vector<16x16xf32>
    %25 = arith.subf %21, %24 : vector<16x16xf32>
    %26 = math.exp %25 : vector<16x16xf32>
    %cst_18 = arith.constant dense<0.000000e+00> : vector<16xf32>
    %27 = vector.multi_reduction <add>, %26, %cst_18 [1] : vector<16x16xf32> to vector<16xf32>
    %28 = vector.shape_cast %27 : vector<16xf32> to vector<16x1xf32>
    %cst_19 = arith.constant dense<0.000000e+00> : vector<16x8xf32>
    %29 = tpu.matmul %26, %17, %cst_19 {dimension_numbers = #tpu.dot_dimension_numbers<[1], [0], [0], [1], [0, 0, 1, 1], [], []>} : vector<16x16xf32>, vector<16x8xf32>, vector<16x8xf32> -> vector<16x8xf32>
    %30 = tpu.reciprocal %28 {approx = true} : vector<16x1xf32> -> vector<16x1xf32>
    %31 = vector.broadcast %30 : vector<16x1xf32> to vector<16x8xf32>
    %32 = arith.mulf %29, %31 : vector<16x8xf32>
    %33 = vector.extract_strided_slice %10 {offsets = [0, 8], sizes = [16, 8], strides = [1, 1]} : vector<16x32xf32> to vector<16x8xf32>
    %34 = vector.extract_strided_slice %11 {offsets = [0, 8], sizes = [16, 8], strides = [1, 1]} : vector<16x32xf32> to vector<16x8xf32>
    %35 = vector.extract_strided_slice %12 {offsets = [0, 8], sizes = [16, 8], strides = [1, 1]} : vector<16x32xf32> to vector<16x8xf32>
    %cst_20 = arith.constant dense<0.000000e+00> : vector<16x16xf32>
    %36 = tpu.matmul %33, %34, %cst_20 {dimension_numbers = #tpu.dot_dimension_numbers<[1], [1], [0], [0], [0, 0, 1, 0], [], []>} : vector<16x8xf32>, vector<16x8xf32>, vector<16x16xf32> -> vector<16x16xf32>
    %cst_21 = arith.constant 0.353553385 : f32
    %37 = vector.broadcast %cst_21 : f32 to vector<16x16xf32>
    %38 = arith.mulf %36, %37 : vector<16x16xf32>
    %39 = arith.addf %38, %2 : vector<16x16xf32>
    %cst_22 = arith.constant dense<0xFF800000> : vector<16xf32>
    %40 = vector.multi_reduction <maximumf>, %39, %cst_22 [1] : vector<16x16xf32> to vector<16xf32>
    %41 = vector.shape_cast %40 : vector<16xf32> to vector<16x1xf32>
    %42 = vector.broadcast %41 : vector<16x1xf32> to vector<16x16xf32>
    %43 = arith.subf %39, %42 : vector<16x16xf32>
    %44 = math.exp %43 : vector<16x16xf32>
    %cst_23 = arith.constant dense<0.000000e+00> : vector<16xf32>
    %45 = vector.multi_reduction <add>, %44, %cst_23 [1] : vector<16x16xf32> to vector<16xf32>
    %46 = vector.shape_cast %45 : vector<16xf32> to vector<16x1xf32>
    %cst_24 = arith.constant dense<0.000000e+00> : vector<16x8xf32>
    %47 = tpu.matmul %44, %35, %cst_24 {dimension_numbers = #tpu.dot_dimension_numbers<[1], [0], [0], [1], [0, 0, 1, 1], [], []>} : vector<16x16xf32>, vector<16x8xf32>, vector<16x8xf32> -> vector<16x8xf32>
    %48 = tpu.reciprocal %46 {approx = true} : vector<16x1xf32> -> vector<16x1xf32>
    %49 = vector.broadcast %48 : vector<16x1xf32> to vector<16x8xf32>
    %50 = arith.mulf %47, %49 : vector<16x8xf32>
    %51 = vector.extract_strided_slice %10 {offsets = [0, 16], sizes = [16, 8], strides = [1, 1]} : vector<16x32xf32> to vector<16x8xf32>
    %52 = vector.extract_strided_slice %11 {offsets = [0, 16], sizes = [16, 8], strides = [1, 1]} : vector<16x32xf32> to vector<16x8xf32>
    %53 = vector.extract_strided_slice %12 {offsets = [0, 16], sizes = [16, 8], strides = [1, 1]} : vector<16x32xf32> to vector<16x8xf32>
    %cst_25 = arith.constant dense<0.000000e+00> : vector<16x16xf32>
    %54 = tpu.matmul %51, %52, %cst_25 {dimension_numbers = #tpu.dot_dimension_numbers<[1], [1], [0], [0], [0, 0, 1, 0], [], []>} : vector<16x8xf32>, vector<16x8xf32>, vector<16x16xf32> -> vector<16x16xf32>
    %cst_26 = arith.constant 0.353553385 : f32
    %55 = vector.broadcast %cst_26 : f32 to vector<16x16xf32>
    %56 = arith.mulf %54, %55 : vector<16x16xf32>
    %57 = arith.addf %56, %2 : vector<16x16xf32>
    %cst_27 = arith.constant dense<0xFF800000> : vector<16xf32>
    %58 = vector.multi_reduction <maximumf>, %57, %cst_27 [1] : vector<16x16xf32> to vector<16xf32>
    %59 = vector.shape_cast %58 : vector<16xf32> to vector<16x1xf32>
    %60 = vector.broadcast %59 : vector<16x1xf32> to vector<16x16xf32>
    %61 = arith.subf %57, %60 : vector<16x16xf32>
    %62 = math.exp %61 : vector<16x16xf32>
    %cst_28 = arith.constant dense<0.000000e+00> : vector<16xf32>
    %63 = vector.multi_reduction <add>, %62, %cst_28 [1] : vector<16x16xf32> to vector<16xf32>
    %64 = vector.shape_cast %63 : vector<16xf32> to vector<16x1xf32>
    %cst_29 = arith.constant dense<0.000000e+00> : vector<16x8xf32>
    %65 = tpu.matmul %62, %53, %cst_29 {dimension_numbers = #tpu.dot_dimension_numbers<[1], [0], [0], [1], [0, 0, 1, 1], [], []>} : vector<16x16xf32>, vector<16x8xf32>, vector<16x8xf32> -> vector<16x8xf32>
    %66 = tpu.reciprocal %64 {approx = true} : vector<16x1xf32> -> vector<16x1xf32>
    %67 = vector.broadcast %66 : vector<16x1xf32> to vector<16x8xf32>
    %68 = arith.mulf %65, %67 : vector<16x8xf32>
    %69 = vector.extract_strided_slice %10 {offsets = [0, 24], sizes = [16, 8], strides = [1, 1]} : vector<16x32xf32> to vector<16x8xf32>
    %70 = vector.extract_strided_slice %11 {offsets = [0, 24], sizes = [16, 8], strides = [1, 1]} : vector<16x32xf32> to vector<16x8xf32>
    %71 = vector.extract_strided_slice %12 {offsets = [0, 24], sizes = [16, 8], strides = [1, 1]} : vector<16x32xf32> to vector<16x8xf32>
    %cst_30 = arith.constant dense<0.000000e+00> : vector<16x16xf32>
    %72 = tpu.matmul %69, %70, %cst_30 {dimension_numbers = #tpu.dot_dimension_numbers<[1], [1], [0], [0], [0, 0, 1, 0], [], []>} : vector<16x8xf32>, vector<16x8xf32>, vector<16x16xf32> -> vector<16x16xf32>
    %cst_31 = arith.constant 0.353553385 : f32
    %73 = vector.broadcast %cst_31 : f32 to vector<16x16xf32>
    %74 = arith.mulf %72, %73 : vector<16x16xf32>
    %75 = arith.addf %74, %2 : vector<16x16xf32>
    %cst_32 = arith.constant dense<0xFF800000> : vector<16xf32>
    %76 = vector.multi_reduction <maximumf>, %75, %cst_32 [1] : vector<16x16xf32> to vector<16xf32>
    %77 = vector.shape_cast %76 : vector<16xf32> to vector<16x1xf32>
    %78 = vector.broadcast %77 : vector<16x1xf32> to vector<16x16xf32>
    %79 = arith.subf %75, %78 : vector<16x16xf32>
    %80 = math.exp %79 : vector<16x16xf32>
    %cst_33 = arith.constant dense<0.000000e+00> : vector<16xf32>
    %81 = vector.multi_reduction <add>, %80, %cst_33 [1] : vector<16x16xf32> to vector<16xf32>
    %82 = vector.shape_cast %81 : vector<16xf32> to vector<16x1xf32>
    %cst_34 = arith.constant dense<0.000000e+00> : vector<16x8xf32>
    %83 = tpu.matmul %80, %71, %cst_34 {dimension_numbers = #tpu.dot_dimension_numbers<[1], [0], [0], [1], [0, 0, 1, 1], [], []>} : vector<16x16xf32>, vector<16x8xf32>, vector<16x8xf32> -> vector<16x8xf32>
    %84 = tpu.reciprocal %82 {approx = true} : vector<16x1xf32> -> vector<16x1xf32>
    %85 = vector.broadcast %84 : vector<16x1xf32> to vector<16x8xf32>
    %86 = arith.mulf %83, %85 : vector<16x8xf32>
    %87 = tpu.concatenate %32, %50, %68, %86 in 1 : vector<16x8xf32>, vector<16x8xf32>, vector<16x8xf32>, vector<16x8xf32> -> vector<16x32xf32>
    %cst_35 = arith.constant dense<0.000000e+00> : vector<16x32xf32>
    %88 = tpu.matmul %87, %13, %cst_35 {dimension_numbers = #tpu.dot_dimension_numbers<[1], [0], [0], [1], [0, 0, 1, 1], [], []>} : vector<16x32xf32>, vector<32x32xf32>, vector<16x32xf32> -> vector<16x32xf32>
    %89 = vector.broadcast %14 : vector<1x32xf32> to vector<16x32xf32>
    %90 = arith.addf %88, %89 : vector<16x32xf32>
    %91 = arith.addf %0, %90 : vector<16x32xf32>
    %c4 = arith.constant 4 : index
    %c0_36 = arith.constant 0 : index
    %92 = vector.load %arg6[%c4, %c0_36] : memref<47x128xf32, #tpu.memory_space<vmem>>, vector<1x32xf32>
    %c5 = arith.constant 5 : index
    %c0_37 = arith.constant 0 : index
    %93 = vector.load %arg6[%c5, %c0_37] : memref<47x128xf32, #tpu.memory_space<vmem>>, vector<1x32xf32>
    %cst_38 = arith.constant dense<0.000000e+00> : vector<16xf32>
    %94 = vector.multi_reduction <add>, %91, %cst_38 [1] : vector<16x32xf32> to vector<16xf32>
    %95 = vector.shape_cast %94 : vector<16xf32> to vector<16x1xf32>
    %cst_39 = arith.constant 3.200000e+01 : f32
    %96 = vector.broadcast %cst_39 : f32 to vector<16x1xf32>
    %97 = arith.divf %95, %96 : vector<16x1xf32>
    %98 = vector.broadcast %97 : vector<16x1xf32> to vector<16x32xf32>
    %99 = arith.subf %91, %98 : vector<16x32xf32>
    %100 = arith.mulf %99, %99 : vector<16x32xf32>
    %cst_40 = arith.constant dense<0.000000e+00> : vector<16xf32>
    %101 = vector.multi_reduction <add>, %100, %cst_40 [1] : vector<16x32xf32> to vector<16xf32>
    %102 = vector.shape_cast %101 : vector<16xf32> to vector<16x1xf32>
    %cst_41 = arith.constant 3.200000e+01 : f32
    %103 = vector.broadcast %cst_41 : f32 to vector<16x1xf32>
    %104 = arith.divf %102, %103 : vector<16x1xf32>
    %cst_42 = arith.constant 9.99999974E-6 : f32
    %105 = vector.broadcast %cst_42 : f32 to vector<16x1xf32>
    %106 = arith.addf %104, %105 : vector<16x1xf32>
    %107 = math.rsqrt %106 : vector<16x1xf32>
    %108 = vector.broadcast %107 : vector<16x1xf32> to vector<16x32xf32>
    %109 = arith.mulf %99, %108 : vector<16x32xf32>
    %110 = vector.broadcast %92 : vector<1x32xf32> to vector<16x32xf32>
    %111 = arith.mulf %109, %110 : vector<16x32xf32>
    %112 = vector.broadcast %93 : vector<1x32xf32> to vector<16x32xf32>
    %113 = arith.addf %111, %112 : vector<16x32xf32>
    %c64 = arith.constant 64 : index
    %c0_43 = arith.constant 0 : index
    %114 = vector.load %arg5[%c64, %c0_43] : memref<864x128xf32, #tpu.memory_space<vmem>>, vector<32x64xf32>
    %c2 = arith.constant 2 : index
    %c0_44 = arith.constant 0 : index
    %115 = vector.load %arg6[%c2, %c0_44] : memref<47x128xf32, #tpu.memory_space<vmem>>, vector<1x64xf32>
    %c96 = arith.constant 96 : index
    %c0_45 = arith.constant 0 : index
    %116 = vector.load %arg5[%c96, %c0_45] : memref<864x128xf32, #tpu.memory_space<vmem>>, vector<64x32xf32>
    %c3 = arith.constant 3 : index
    %c0_46 = arith.constant 0 : index
    %117 = vector.load %arg6[%c3, %c0_46] : memref<47x128xf32, #tpu.memory_space<vmem>>, vector<1x32xf32>
    %cst_47 = arith.constant dense<0.000000e+00> : vector<16x64xf32>
    %118 = tpu.matmul %113, %114, %cst_47 {dimension_numbers = #tpu.dot_dimension_numbers<[1], [0], [0], [1], [0, 0, 1, 1], [], []>} : vector<16x32xf32>, vector<32x64xf32>, vector<16x64xf32> -> vector<16x64xf32>
    %119 = vector.broadcast %115 : vector<1x64xf32> to vector<16x64xf32>
    %120 = arith.addf %118, %119 : vector<16x64xf32>
    %cst_48 = arith.constant 0.000000e+00 : f32
    %121 = vector.broadcast %cst_48 : f32 to vector<16x64xf32>
    %122 = arith.maximumf %120, %121 : vector<16x64xf32>
    %cst_49 = arith.constant dense<0.000000e+00> : vector<16x32xf32>
    %123 = tpu.matmul %122, %116, %cst_49 {dimension_numbers = #tpu.dot_dimension_numbers<[1], [0], [0], [1], [0, 0, 1, 1], [], []>} : vector<16x64xf32>, vector<64x32xf32>, vector<16x32xf32> -> vector<16x32xf32>
    %124 = vector.broadcast %117 : vector<1x32xf32> to vector<16x32xf32>
    %125 = arith.addf %123, %124 : vector<16x32xf32>
    %126 = arith.addf %113, %125 : vector<16x32xf32>
    %c6 = arith.constant 6 : index
    %c0_50 = arith.constant 0 : index
    %127 = vector.load %arg6[%c6, %c0_50] : memref<47x128xf32, #tpu.memory_space<vmem>>, vector<1x32xf32>
    %c7 = arith.constant 7 : index
    %c0_51 = arith.constant 0 : index
    %128 = vector.load %arg6[%c7, %c0_51] : memref<47x128xf32, #tpu.memory_space<vmem>>, vector<1x32xf32>
    %cst_52 = arith.constant dense<0.000000e+00> : vector<16xf32>
    %129 = vector.multi_reduction <add>, %126, %cst_52 [1] : vector<16x32xf32> to vector<16xf32>
    %130 = vector.shape_cast %129 : vector<16xf32> to vector<16x1xf32>
    %cst_53 = arith.constant 3.200000e+01 : f32
    %131 = vector.broadcast %cst_53 : f32 to vector<16x1xf32>
    %132 = arith.divf %130, %131 : vector<16x1xf32>
    %133 = vector.broadcast %132 : vector<16x1xf32> to vector<16x32xf32>
    %134 = arith.subf %126, %133 : vector<16x32xf32>
    %135 = arith.mulf %134, %134 : vector<16x32xf32>
    %cst_54 = arith.constant dense<0.000000e+00> : vector<16xf32>
    %136 = vector.multi_reduction <add>, %135, %cst_54 [1] : vector<16x32xf32> to vector<16xf32>
    %137 = vector.shape_cast %136 : vector<16xf32> to vector<16x1xf32>
    %cst_55 = arith.constant 3.200000e+01 : f32
    %138 = vector.broadcast %cst_55 : f32 to vector<16x1xf32>
    %139 = arith.divf %137, %138 : vector<16x1xf32>
    %cst_56 = arith.constant 9.99999974E-6 : f32
    %140 = vector.broadcast %cst_56 : f32 to vector<16x1xf32>
    %141 = arith.addf %139, %140 : vector<16x1xf32>
    %142 = math.rsqrt %141 : vector<16x1xf32>
    %143 = vector.broadcast %142 : vector<16x1xf32> to vector<16x32xf32>
    %144 = arith.mulf %134, %143 : vector<16x32xf32>
    %145 = vector.broadcast %127 : vector<1x32xf32> to vector<16x32xf32>
    %146 = arith.mulf %144, %145 : vector<16x32xf32>
    %147 = vector.broadcast %128 : vector<1x32xf32> to vector<16x32xf32>
    %148 = arith.addf %146, %147 : vector<16x32xf32>
    %c160 = arith.constant 160 : index
    %c0_57 = arith.constant 0 : index
    %149 = vector.load %arg5[%c160, %c0_57] : memref<864x128xf32, #tpu.memory_space<vmem>>, vector<32x96xf32>
    %cst_58 = arith.constant dense<0.000000e+00> : vector<16x96xf32>
    %150 = tpu.matmul %148, %149, %cst_58 {dimension_numbers = #tpu.dot_dimension_numbers<[1], [0], [0], [1], [0, 0, 1, 1], [], []>} : vector<16x32xf32>, vector<32x96xf32>, vector<16x96xf32> -> vector<16x96xf32>
    %c8 = arith.constant 8 : index
    %c0_59 = arith.constant 0 : index
    %151 = vector.load %arg6[%c8, %c0_59] : memref<47x128xf32, #tpu.memory_space<vmem>>, vector<1x96xf32>
    %152 = vector.broadcast %151 : vector<1x96xf32> to vector<16x96xf32>
    %153 = arith.addf %150, %152 : vector<16x96xf32>
    %154 = vector.extract_strided_slice %153 {offsets = [0, 0], sizes = [16, 32], strides = [1, 1]} : vector<16x96xf32> to vector<16x32xf32>
    %155 = vector.extract_strided_slice %153 {offsets = [0, 32], sizes = [16, 32], strides = [1, 1]} : vector<16x96xf32> to vector<16x32xf32>
    %156 = vector.extract_strided_slice %153 {offsets = [0, 64], sizes = [16, 32], strides = [1, 1]} : vector<16x96xf32> to vector<16x32xf32>
    %c192 = arith.constant 192 : index
    %c0_60 = arith.constant 0 : index
    %157 = vector.load %arg5[%c192, %c0_60] : memref<864x128xf32, #tpu.memory_space<vmem>>, vector<32x32xf32>
    %c9 = arith.constant 9 : index
    %c0_61 = arith.constant 0 : index
    %158 = vector.load %arg6[%c9, %c0_61] : memref<47x128xf32, #tpu.memory_space<vmem>>, vector<1x32xf32>
    %159 = vector.extract_strided_slice %154 {offsets = [0, 0], sizes = [16, 8], strides = [1, 1]} : vector<16x32xf32> to vector<16x8xf32>
    %160 = vector.extract_strided_slice %155 {offsets = [0, 0], sizes = [16, 8], strides = [1, 1]} : vector<16x32xf32> to vector<16x8xf32>
    %161 = vector.extract_strided_slice %156 {offsets = [0, 0], sizes = [16, 8], strides = [1, 1]} : vector<16x32xf32> to vector<16x8xf32>
    %cst_62 = arith.constant dense<0.000000e+00> : vector<16x16xf32>
    %162 = tpu.matmul %159, %160, %cst_62 {dimension_numbers = #tpu.dot_dimension_numbers<[1], [1], [0], [0], [0, 0, 1, 0], [], []>} : vector<16x8xf32>, vector<16x8xf32>, vector<16x16xf32> -> vector<16x16xf32>
    %cst_63 = arith.constant 0.353553385 : f32
    %163 = vector.broadcast %cst_63 : f32 to vector<16x16xf32>
    %164 = arith.mulf %162, %163 : vector<16x16xf32>
    %165 = arith.addf %164, %2 : vector<16x16xf32>
    %cst_64 = arith.constant dense<0xFF800000> : vector<16xf32>
    %166 = vector.multi_reduction <maximumf>, %165, %cst_64 [1] : vector<16x16xf32> to vector<16xf32>
    %167 = vector.shape_cast %166 : vector<16xf32> to vector<16x1xf32>
    %168 = vector.broadcast %167 : vector<16x1xf32> to vector<16x16xf32>
    %169 = arith.subf %165, %168 : vector<16x16xf32>
    %170 = math.exp %169 : vector<16x16xf32>
    %cst_65 = arith.constant dense<0.000000e+00> : vector<16xf32>
    %171 = vector.multi_reduction <add>, %170, %cst_65 [1] : vector<16x16xf32> to vector<16xf32>
    %172 = vector.shape_cast %171 : vector<16xf32> to vector<16x1xf32>
    %cst_66 = arith.constant dense<0.000000e+00> : vector<16x8xf32>
    %173 = tpu.matmul %170, %161, %cst_66 {dimension_numbers = #tpu.dot_dimension_numbers<[1], [0], [0], [1], [0, 0, 1, 1], [], []>} : vector<16x16xf32>, vector<16x8xf32>, vector<16x8xf32> -> vector<16x8xf32>
    %174 = tpu.reciprocal %172 {approx = true} : vector<16x1xf32> -> vector<16x1xf32>
    %175 = vector.broadcast %174 : vector<16x1xf32> to vector<16x8xf32>
    %176 = arith.mulf %173, %175 : vector<16x8xf32>
    %177 = vector.extract_strided_slice %154 {offsets = [0, 8], sizes = [16, 8], strides = [1, 1]} : vector<16x32xf32> to vector<16x8xf32>
    %178 = vector.extract_strided_slice %155 {offsets = [0, 8], sizes = [16, 8], strides = [1, 1]} : vector<16x32xf32> to vector<16x8xf32>
    %179 = vector.extract_strided_slice %156 {offsets = [0, 8], sizes = [16, 8], strides = [1, 1]} : vector<16x32xf32> to vector<16x8xf32>
    %cst_67 = arith.constant dense<0.000000e+00> : vector<16x16xf32>
    %180 = tpu.matmul %177, %178, %cst_67 {dimension_numbers = #tpu.dot_dimension_numbers<[1], [1], [0], [0], [0, 0, 1, 0], [], []>} : vector<16x8xf32>, vector<16x8xf32>, vector<16x16xf32> -> vector<16x16xf32>
    %cst_68 = arith.constant 0.353553385 : f32
    %181 = vector.broadcast %cst_68 : f32 to vector<16x16xf32>
    %182 = arith.mulf %180, %181 : vector<16x16xf32>
    %183 = arith.addf %182, %2 : vector<16x16xf32>
    %cst_69 = arith.constant dense<0xFF800000> : vector<16xf32>
    %184 = vector.multi_reduction <maximumf>, %183, %cst_69 [1] : vector<16x16xf32> to vector<16xf32>
    %185 = vector.shape_cast %184 : vector<16xf32> to vector<16x1xf32>
    %186 = vector.broadcast %185 : vector<16x1xf32> to vector<16x16xf32>
    %187 = arith.subf %183, %186 : vector<16x16xf32>
    %188 = math.exp %187 : vector<16x16xf32>
    %cst_70 = arith.constant dense<0.000000e+00> : vector<16xf32>
    %189 = vector.multi_reduction <add>, %188, %cst_70 [1] : vector<16x16xf32> to vector<16xf32>
    %190 = vector.shape_cast %189 : vector<16xf32> to vector<16x1xf32>
    %cst_71 = arith.constant dense<0.000000e+00> : vector<16x8xf32>
    %191 = tpu.matmul %188, %179, %cst_71 {dimension_numbers = #tpu.dot_dimension_numbers<[1], [0], [0], [1], [0, 0, 1, 1], [], []>} : vector<16x16xf32>, vector<16x8xf32>, vector<16x8xf32> -> vector<16x8xf32>
    %192 = tpu.reciprocal %190 {approx = true} : vector<16x1xf32> -> vector<16x1xf32>
    %193 = vector.broadcast %192 : vector<16x1xf32> to vector<16x8xf32>
    %194 = arith.mulf %191, %193 : vector<16x8xf32>
    %195 = vector.extract_strided_slice %154 {offsets = [0, 16], sizes = [16, 8], strides = [1, 1]} : vector<16x32xf32> to vector<16x8xf32>
    %196 = vector.extract_strided_slice %155 {offsets = [0, 16], sizes = [16, 8], strides = [1, 1]} : vector<16x32xf32> to vector<16x8xf32>
    %197 = vector.extract_strided_slice %156 {offsets = [0, 16], sizes = [16, 8], strides = [1, 1]} : vector<16x32xf32> to vector<16x8xf32>
    %cst_72 = arith.constant dense<0.000000e+00> : vector<16x16xf32>
    %198 = tpu.matmul %195, %196, %cst_72 {dimension_numbers = #tpu.dot_dimension_numbers<[1], [1], [0], [0], [0, 0, 1, 0], [], []>} : vector<16x8xf32>, vector<16x8xf32>, vector<16x16xf32> -> vector<16x16xf32>
    %cst_73 = arith.constant 0.353553385 : f32
    %199 = vector.broadcast %cst_73 : f32 to vector<16x16xf32>
    %200 = arith.mulf %198, %199 : vector<16x16xf32>
    %201 = arith.addf %200, %2 : vector<16x16xf32>
    %cst_74 = arith.constant dense<0xFF800000> : vector<16xf32>
    %202 = vector.multi_reduction <maximumf>, %201, %cst_74 [1] : vector<16x16xf32> to vector<16xf32>
    %203 = vector.shape_cast %202 : vector<16xf32> to vector<16x1xf32>
    %204 = vector.broadcast %203 : vector<16x1xf32> to vector<16x16xf32>
    %205 = arith.subf %201, %204 : vector<16x16xf32>
    %206 = math.exp %205 : vector<16x16xf32>
    %cst_75 = arith.constant dense<0.000000e+00> : vector<16xf32>
    %207 = vector.multi_reduction <add>, %206, %cst_75 [1] : vector<16x16xf32> to vector<16xf32>
    %208 = vector.shape_cast %207 : vector<16xf32> to vector<16x1xf32>
    %cst_76 = arith.constant dense<0.000000e+00> : vector<16x8xf32>
    %209 = tpu.matmul %206, %197, %cst_76 {dimension_numbers = #tpu.dot_dimension_numbers<[1], [0], [0], [1], [0, 0, 1, 1], [], []>} : vector<16x16xf32>, vector<16x8xf32>, vector<16x8xf32> -> vector<16x8xf32>
    %210 = tpu.reciprocal %208 {approx = true} : vector<16x1xf32> -> vector<16x1xf32>
    %211 = vector.broadcast %210 : vector<16x1xf32> to vector<16x8xf32>
    %212 = arith.mulf %209, %211 : vector<16x8xf32>
    %213 = vector.extract_strided_slice %154 {offsets = [0, 24], sizes = [16, 8], strides = [1, 1]} : vector<16x32xf32> to vector<16x8xf32>
    %214 = vector.extract_strided_slice %155 {offsets = [0, 24], sizes = [16, 8], strides = [1, 1]} : vector<16x32xf32> to vector<16x8xf32>
    %215 = vector.extract_strided_slice %156 {offsets = [0, 24], sizes = [16, 8], strides = [1, 1]} : vector<16x32xf32> to vector<16x8xf32>
    %cst_77 = arith.constant dense<0.000000e+00> : vector<16x16xf32>
    %216 = tpu.matmul %213, %214, %cst_77 {dimension_numbers = #tpu.dot_dimension_numbers<[1], [1], [0], [0], [0, 0, 1, 0], [], []>} : vector<16x8xf32>, vector<16x8xf32>, vector<16x16xf32> -> vector<16x16xf32>
    %cst_78 = arith.constant 0.353553385 : f32
    %217 = vector.broadcast %cst_78 : f32 to vector<16x16xf32>
    %218 = arith.mulf %216, %217 : vector<16x16xf32>
    %219 = arith.addf %218, %2 : vector<16x16xf32>
    %cst_79 = arith.constant dense<0xFF800000> : vector<16xf32>
    %220 = vector.multi_reduction <maximumf>, %219, %cst_79 [1] : vector<16x16xf32> to vector<16xf32>
    %221 = vector.shape_cast %220 : vector<16xf32> to vector<16x1xf32>
    %222 = vector.broadcast %221 : vector<16x1xf32> to vector<16x16xf32>
    %223 = arith.subf %219, %222 : vector<16x16xf32>
    %224 = math.exp %223 : vector<16x16xf32>
    %cst_80 = arith.constant dense<0.000000e+00> : vector<16xf32>
    %225 = vector.multi_reduction <add>, %224, %cst_80 [1] : vector<16x16xf32> to vector<16xf32>
    %226 = vector.shape_cast %225 : vector<16xf32> to vector<16x1xf32>
    %cst_81 = arith.constant dense<0.000000e+00> : vector<16x8xf32>
    %227 = tpu.matmul %224, %215, %cst_81 {dimension_numbers = #tpu.dot_dimension_numbers<[1], [0], [0], [1], [0, 0, 1, 1], [], []>} : vector<16x16xf32>, vector<16x8xf32>, vector<16x8xf32> -> vector<16x8xf32>
    %228 = tpu.reciprocal %226 {approx = true} : vector<16x1xf32> -> vector<16x1xf32>
    %229 = vector.broadcast %228 : vector<16x1xf32> to vector<16x8xf32>
    %230 = arith.mulf %227, %229 : vector<16x8xf32>
    %231 = tpu.concatenate %176, %194, %212, %230 in 1 : vector<16x8xf32>, vector<16x8xf32>, vector<16x8xf32>, vector<16x8xf32> -> vector<16x32xf32>
    %cst_82 = arith.constant dense<0.000000e+00> : vector<16x32xf32>
    %232 = tpu.matmul %231, %157, %cst_82 {dimension_numbers = #tpu.dot_dimension_numbers<[1], [0], [0], [1], [0, 0, 1, 1], [], []>} : vector<16x32xf32>, vector<32x32xf32>, vector<16x32xf32> -> vector<16x32xf32>
    %233 = vector.broadcast %158 : vector<1x32xf32> to vector<16x32xf32>
    %234 = arith.addf %232, %233 : vector<16x32xf32>
    %235 = arith.addf %148, %234 : vector<16x32xf32>
    %c12 = arith.constant 12 : index
    %c0_83 = arith.constant 0 : index
    %236 = vector.load %arg6[%c12, %c0_83] : memref<47x128xf32, #tpu.memory_space<vmem>>, vector<1x32xf32>
    %c13 = arith.constant 13 : index
    %c0_84 = arith.constant 0 : index
    %237 = vector.load %arg6[%c13, %c0_84] : memref<47x128xf32, #tpu.memory_space<vmem>>, vector<1x32xf32>
    %cst_85 = arith.constant dense<0.000000e+00> : vector<16xf32>
    %238 = vector.multi_reduction <add>, %235, %cst_85 [1] : vector<16x32xf32> to vector<16xf32>
    %239 = vector.shape_cast %238 : vector<16xf32> to vector<16x1xf32>
    %cst_86 = arith.constant 3.200000e+01 : f32
    %240 = vector.broadcast %cst_86 : f32 to vector<16x1xf32>
    %241 = arith.divf %239, %240 : vector<16x1xf32>
    %242 = vector.broadcast %241 : vector<16x1xf32> to vector<16x32xf32>
    %243 = arith.subf %235, %242 : vector<16x32xf32>
    %244 = arith.mulf %243, %243 : vector<16x32xf32>
    %cst_87 = arith.constant dense<0.000000e+00> : vector<16xf32>
    %245 = vector.multi_reduction <add>, %244, %cst_87 [1] : vector<16x32xf32> to vector<16xf32>
    %246 = vector.shape_cast %245 : vector<16xf32> to vector<16x1xf32>
    %cst_88 = arith.constant 3.200000e+01 : f32
    %247 = vector.broadcast %cst_88 : f32 to vector<16x1xf32>
    %248 = arith.divf %246, %247 : vector<16x1xf32>
    %cst_89 = arith.constant 9.99999974E-6 : f32
    %249 = vector.broadcast %cst_89 : f32 to vector<16x1xf32>
    %250 = arith.addf %248, %249 : vector<16x1xf32>
    %251 = math.rsqrt %250 : vector<16x1xf32>
    %252 = vector.broadcast %251 : vector<16x1xf32> to vector<16x32xf32>
    %253 = arith.mulf %243, %252 : vector<16x32xf32>
    %254 = vector.broadcast %236 : vector<1x32xf32> to vector<16x32xf32>
    %255 = arith.mulf %253, %254 : vector<16x32xf32>
    %256 = vector.broadcast %237 : vector<1x32xf32> to vector<16x32xf32>
    %257 = arith.addf %255, %256 : vector<16x32xf32>
    %c224 = arith.constant 224 : index
    %c0_90 = arith.constant 0 : index
    %258 = vector.load %arg5[%c224, %c0_90] : memref<864x128xf32, #tpu.memory_space<vmem>>, vector<32x64xf32>
    %c10 = arith.constant 10 : index
    %c0_91 = arith.constant 0 : index
    %259 = vector.load %arg6[%c10, %c0_91] : memref<47x128xf32, #tpu.memory_space<vmem>>, vector<1x64xf32>
    %c256 = arith.constant 256 : index
    %c0_92 = arith.constant 0 : index
    %260 = vector.load %arg5[%c256, %c0_92] : memref<864x128xf32, #tpu.memory_space<vmem>>, vector<64x32xf32>
    %c11 = arith.constant 11 : index
    %c0_93 = arith.constant 0 : index
    %261 = vector.load %arg6[%c11, %c0_93] : memref<47x128xf32, #tpu.memory_space<vmem>>, vector<1x32xf32>
    %cst_94 = arith.constant dense<0.000000e+00> : vector<16x64xf32>
    %262 = tpu.matmul %257, %258, %cst_94 {dimension_numbers = #tpu.dot_dimension_numbers<[1], [0], [0], [1], [0, 0, 1, 1], [], []>} : vector<16x32xf32>, vector<32x64xf32>, vector<16x64xf32> -> vector<16x64xf32>
    %263 = vector.broadcast %259 : vector<1x64xf32> to vector<16x64xf32>
    %264 = arith.addf %262, %263 : vector<16x64xf32>
    %cst_95 = arith.constant 0.000000e+00 : f32
    %265 = vector.broadcast %cst_95 : f32 to vector<16x64xf32>
    %266 = arith.maximumf %264, %265 : vector<16x64xf32>
    %cst_96 = arith.constant dense<0.000000e+00> : vector<16x32xf32>
    %267 = tpu.matmul %266, %260, %cst_96 {dimension_numbers = #tpu.dot_dimension_numbers<[1], [0], [0], [1], [0, 0, 1, 1], [], []>} : vector<16x64xf32>, vector<64x32xf32>, vector<16x32xf32> -> vector<16x32xf32>
    %268 = vector.broadcast %261 : vector<1x32xf32> to vector<16x32xf32>
    %269 = arith.addf %267, %268 : vector<16x32xf32>
    %270 = arith.addf %257, %269 : vector<16x32xf32>
    %c14 = arith.constant 14 : index
    %c0_97 = arith.constant 0 : index
    %271 = vector.load %arg6[%c14, %c0_97] : memref<47x128xf32, #tpu.memory_space<vmem>>, vector<1x32xf32>
    %c15 = arith.constant 15 : index
    %c0_98 = arith.constant 0 : index
    %272 = vector.load %arg6[%c15, %c0_98] : memref<47x128xf32, #tpu.memory_space<vmem>>, vector<1x32xf32>
    %cst_99 = arith.constant dense<0.000000e+00> : vector<16xf32>
    %273 = vector.multi_reduction <add>, %270, %cst_99 [1] : vector<16x32xf32> to vector<16xf32>
    %274 = vector.shape_cast %273 : vector<16xf32> to vector<16x1xf32>
    %cst_100 = arith.constant 3.200000e+01 : f32
    %275 = vector.broadcast %cst_100 : f32 to vector<16x1xf32>
    %276 = arith.divf %274, %275 : vector<16x1xf32>
    %277 = vector.broadcast %276 : vector<16x1xf32> to vector<16x32xf32>
    %278 = arith.subf %270, %277 : vector<16x32xf32>
    %279 = arith.mulf %278, %278 : vector<16x32xf32>
    %cst_101 = arith.constant dense<0.000000e+00> : vector<16xf32>
    %280 = vector.multi_reduction <add>, %279, %cst_101 [1] : vector<16x32xf32> to vector<16xf32>
    %281 = vector.shape_cast %280 : vector<16xf32> to vector<16x1xf32>
    %cst_102 = arith.constant 3.200000e+01 : f32
    %282 = vector.broadcast %cst_102 : f32 to vector<16x1xf32>
    %283 = arith.divf %281, %282 : vector<16x1xf32>
    %cst_103 = arith.constant 9.99999974E-6 : f32
    %284 = vector.broadcast %cst_103 : f32 to vector<16x1xf32>
    %285 = arith.addf %283, %284 : vector<16x1xf32>
    %286 = math.rsqrt %285 : vector<16x1xf32>
    %287 = vector.broadcast %286 : vector<16x1xf32> to vector<16x32xf32>
    %288 = arith.mulf %278, %287 : vector<16x32xf32>
    %289 = vector.broadcast %271 : vector<1x32xf32> to vector<16x32xf32>
    %290 = arith.mulf %288, %289 : vector<16x32xf32>
    %291 = vector.broadcast %272 : vector<1x32xf32> to vector<16x32xf32>
    %292 = arith.addf %290, %291 : vector<16x32xf32>
    %c42 = arith.constant 42 : index
    %c0_104 = arith.constant 0 : index
    %293 = vector.load %arg6[%c42, %c0_104] : memref<47x128xf32, #tpu.memory_space<vmem>>, vector<1x32xf32>
    %c43 = arith.constant 43 : index
    %c0_105 = arith.constant 0 : index
    %294 = vector.load %arg6[%c43, %c0_105] : memref<47x128xf32, #tpu.memory_space<vmem>>, vector<1x32xf32>
    %cst_106 = arith.constant dense<0.000000e+00> : vector<16xf32>
    %295 = vector.multi_reduction <add>, %292, %cst_106 [1] : vector<16x32xf32> to vector<16xf32>
    %296 = vector.shape_cast %295 : vector<16xf32> to vector<16x1xf32>
    %cst_107 = arith.constant 3.200000e+01 : f32
    %297 = vector.broadcast %cst_107 : f32 to vector<16x1xf32>
    %298 = arith.divf %296, %297 : vector<16x1xf32>
    %299 = vector.broadcast %298 : vector<16x1xf32> to vector<16x32xf32>
    %300 = arith.subf %292, %299 : vector<16x32xf32>
    %301 = arith.mulf %300, %300 : vector<16x32xf32>
    %cst_108 = arith.constant dense<0.000000e+00> : vector<16xf32>
    %302 = vector.multi_reduction <add>, %301, %cst_108 [1] : vector<16x32xf32> to vector<16xf32>
    %303 = vector.shape_cast %302 : vector<16xf32> to vector<16x1xf32>
    %cst_109 = arith.constant 3.200000e+01 : f32
    %304 = vector.broadcast %cst_109 : f32 to vector<16x1xf32>
    %305 = arith.divf %303, %304 : vector<16x1xf32>
    %cst_110 = arith.constant 9.99999974E-6 : f32
    %306 = vector.broadcast %cst_110 : f32 to vector<16x1xf32>
    %307 = arith.addf %305, %306 : vector<16x1xf32>
    %308 = math.rsqrt %307 : vector<16x1xf32>
    %309 = vector.broadcast %308 : vector<16x1xf32> to vector<16x32xf32>
    %310 = arith.mulf %300, %309 : vector<16x32xf32>
    %311 = vector.broadcast %293 : vector<1x32xf32> to vector<16x32xf32>
    %312 = arith.mulf %310, %311 : vector<16x32xf32>
    %313 = vector.broadcast %294 : vector<1x32xf32> to vector<16x32xf32>
    %314 = arith.addf %312, %313 : vector<16x32xf32>
    %c320 = arith.constant 320 : index
    %c0_111 = arith.constant 0 : index
    %315 = vector.load %arg5[%c320, %c0_111] : memref<864x128xf32, #tpu.memory_space<vmem>>, vector<32x96xf32>
    %cst_112 = arith.constant dense<0.000000e+00> : vector<16x96xf32>
    %316 = tpu.matmul %1, %315, %cst_112 {dimension_numbers = #tpu.dot_dimension_numbers<[1], [0], [0], [1], [0, 0, 1, 1], [], []>} : vector<16x32xf32>, vector<32x96xf32>, vector<16x96xf32> -> vector<16x96xf32>
    %c16 = arith.constant 16 : index
    %c0_113 = arith.constant 0 : index
    %317 = vector.load %arg6[%c16, %c0_113] : memref<47x128xf32, #tpu.memory_space<vmem>>, vector<1x96xf32>
    %318 = vector.broadcast %317 : vector<1x96xf32> to vector<16x96xf32>
    %319 = arith.addf %316, %318 : vector<16x96xf32>
    %320 = vector.extract_strided_slice %319 {offsets = [0, 0], sizes = [16, 32], strides = [1, 1]} : vector<16x96xf32> to vector<16x32xf32>
    %321 = vector.extract_strided_slice %319 {offsets = [0, 32], sizes = [16, 32], strides = [1, 1]} : vector<16x96xf32> to vector<16x32xf32>
    %322 = vector.extract_strided_slice %319 {offsets = [0, 64], sizes = [16, 32], strides = [1, 1]} : vector<16x96xf32> to vector<16x32xf32>
    %c352 = arith.constant 352 : index
    %c0_114 = arith.constant 0 : index
    %323 = vector.load %arg5[%c352, %c0_114] : memref<864x128xf32, #tpu.memory_space<vmem>>, vector<32x32xf32>
    %c17 = arith.constant 17 : index
    %c0_115 = arith.constant 0 : index
    %324 = vector.load %arg6[%c17, %c0_115] : memref<47x128xf32, #tpu.memory_space<vmem>>, vector<1x32xf32>
    %325 = vector.extract_strided_slice %320 {offsets = [0, 0], sizes = [16, 8], strides = [1, 1]} : vector<16x32xf32> to vector<16x8xf32>
    %326 = vector.extract_strided_slice %321 {offsets = [0, 0], sizes = [16, 8], strides = [1, 1]} : vector<16x32xf32> to vector<16x8xf32>
    %327 = vector.extract_strided_slice %322 {offsets = [0, 0], sizes = [16, 8], strides = [1, 1]} : vector<16x32xf32> to vector<16x8xf32>
    %cst_116 = arith.constant dense<0.000000e+00> : vector<16x16xf32>
    %328 = tpu.matmul %325, %326, %cst_116 {dimension_numbers = #tpu.dot_dimension_numbers<[1], [1], [0], [0], [0, 0, 1, 0], [], []>} : vector<16x8xf32>, vector<16x8xf32>, vector<16x16xf32> -> vector<16x16xf32>
    %cst_117 = arith.constant 0.353553385 : f32
    %329 = vector.broadcast %cst_117 : f32 to vector<16x16xf32>
    %330 = arith.mulf %328, %329 : vector<16x16xf32>
    %331 = arith.addf %330, %3 : vector<16x16xf32>
    %cst_118 = arith.constant dense<0xFF800000> : vector<16xf32>
    %332 = vector.multi_reduction <maximumf>, %331, %cst_118 [1] : vector<16x16xf32> to vector<16xf32>
    %333 = vector.shape_cast %332 : vector<16xf32> to vector<16x1xf32>
    %334 = vector.broadcast %333 : vector<16x1xf32> to vector<16x16xf32>
    %335 = arith.subf %331, %334 : vector<16x16xf32>
    %336 = math.exp %335 : vector<16x16xf32>
    %cst_119 = arith.constant dense<0.000000e+00> : vector<16xf32>
    %337 = vector.multi_reduction <add>, %336, %cst_119 [1] : vector<16x16xf32> to vector<16xf32>
    %338 = vector.shape_cast %337 : vector<16xf32> to vector<16x1xf32>
    %cst_120 = arith.constant dense<0.000000e+00> : vector<16x8xf32>
    %339 = tpu.matmul %336, %327, %cst_120 {dimension_numbers = #tpu.dot_dimension_numbers<[1], [0], [0], [1], [0, 0, 1, 1], [], []>} : vector<16x16xf32>, vector<16x8xf32>, vector<16x8xf32> -> vector<16x8xf32>
    %340 = tpu.reciprocal %338 {approx = true} : vector<16x1xf32> -> vector<16x1xf32>
    %341 = vector.broadcast %340 : vector<16x1xf32> to vector<16x8xf32>
    %342 = arith.mulf %339, %341 : vector<16x8xf32>
    %343 = vector.extract_strided_slice %320 {offsets = [0, 8], sizes = [16, 8], strides = [1, 1]} : vector<16x32xf32> to vector<16x8xf32>
    %344 = vector.extract_strided_slice %321 {offsets = [0, 8], sizes = [16, 8], strides = [1, 1]} : vector<16x32xf32> to vector<16x8xf32>
    %345 = vector.extract_strided_slice %322 {offsets = [0, 8], sizes = [16, 8], strides = [1, 1]} : vector<16x32xf32> to vector<16x8xf32>
    %cst_121 = arith.constant dense<0.000000e+00> : vector<16x16xf32>
    %346 = tpu.matmul %343, %344, %cst_121 {dimension_numbers = #tpu.dot_dimension_numbers<[1], [1], [0], [0], [0, 0, 1, 0], [], []>} : vector<16x8xf32>, vector<16x8xf32>, vector<16x16xf32> -> vector<16x16xf32>
    %cst_122 = arith.constant 0.353553385 : f32
    %347 = vector.broadcast %cst_122 : f32 to vector<16x16xf32>
    %348 = arith.mulf %346, %347 : vector<16x16xf32>
    %349 = arith.addf %348, %3 : vector<16x16xf32>
    %cst_123 = arith.constant dense<0xFF800000> : vector<16xf32>
    %350 = vector.multi_reduction <maximumf>, %349, %cst_123 [1] : vector<16x16xf32> to vector<16xf32>
    %351 = vector.shape_cast %350 : vector<16xf32> to vector<16x1xf32>
    %352 = vector.broadcast %351 : vector<16x1xf32> to vector<16x16xf32>
    %353 = arith.subf %349, %352 : vector<16x16xf32>
    %354 = math.exp %353 : vector<16x16xf32>
    %cst_124 = arith.constant dense<0.000000e+00> : vector<16xf32>
    %355 = vector.multi_reduction <add>, %354, %cst_124 [1] : vector<16x16xf32> to vector<16xf32>
    %356 = vector.shape_cast %355 : vector<16xf32> to vector<16x1xf32>
    %cst_125 = arith.constant dense<0.000000e+00> : vector<16x8xf32>
    %357 = tpu.matmul %354, %345, %cst_125 {dimension_numbers = #tpu.dot_dimension_numbers<[1], [0], [0], [1], [0, 0, 1, 1], [], []>} : vector<16x16xf32>, vector<16x8xf32>, vector<16x8xf32> -> vector<16x8xf32>
    %358 = tpu.reciprocal %356 {approx = true} : vector<16x1xf32> -> vector<16x1xf32>
    %359 = vector.broadcast %358 : vector<16x1xf32> to vector<16x8xf32>
    %360 = arith.mulf %357, %359 : vector<16x8xf32>
    %361 = vector.extract_strided_slice %320 {offsets = [0, 16], sizes = [16, 8], strides = [1, 1]} : vector<16x32xf32> to vector<16x8xf32>
    %362 = vector.extract_strided_slice %321 {offsets = [0, 16], sizes = [16, 8], strides = [1, 1]} : vector<16x32xf32> to vector<16x8xf32>
    %363 = vector.extract_strided_slice %322 {offsets = [0, 16], sizes = [16, 8], strides = [1, 1]} : vector<16x32xf32> to vector<16x8xf32>
    %cst_126 = arith.constant dense<0.000000e+00> : vector<16x16xf32>
    %364 = tpu.matmul %361, %362, %cst_126 {dimension_numbers = #tpu.dot_dimension_numbers<[1], [1], [0], [0], [0, 0, 1, 0], [], []>} : vector<16x8xf32>, vector<16x8xf32>, vector<16x16xf32> -> vector<16x16xf32>
    %cst_127 = arith.constant 0.353553385 : f32
    %365 = vector.broadcast %cst_127 : f32 to vector<16x16xf32>
    %366 = arith.mulf %364, %365 : vector<16x16xf32>
    %367 = arith.addf %366, %3 : vector<16x16xf32>
    %cst_128 = arith.constant dense<0xFF800000> : vector<16xf32>
    %368 = vector.multi_reduction <maximumf>, %367, %cst_128 [1] : vector<16x16xf32> to vector<16xf32>
    %369 = vector.shape_cast %368 : vector<16xf32> to vector<16x1xf32>
    %370 = vector.broadcast %369 : vector<16x1xf32> to vector<16x16xf32>
    %371 = arith.subf %367, %370 : vector<16x16xf32>
    %372 = math.exp %371 : vector<16x16xf32>
    %cst_129 = arith.constant dense<0.000000e+00> : vector<16xf32>
    %373 = vector.multi_reduction <add>, %372, %cst_129 [1] : vector<16x16xf32> to vector<16xf32>
    %374 = vector.shape_cast %373 : vector<16xf32> to vector<16x1xf32>
    %cst_130 = arith.constant dense<0.000000e+00> : vector<16x8xf32>
    %375 = tpu.matmul %372, %363, %cst_130 {dimension_numbers = #tpu.dot_dimension_numbers<[1], [0], [0], [1], [0, 0, 1, 1], [], []>} : vector<16x16xf32>, vector<16x8xf32>, vector<16x8xf32> -> vector<16x8xf32>
    %376 = tpu.reciprocal %374 {approx = true} : vector<16x1xf32> -> vector<16x1xf32>
    %377 = vector.broadcast %376 : vector<16x1xf32> to vector<16x8xf32>
    %378 = arith.mulf %375, %377 : vector<16x8xf32>
    %379 = vector.extract_strided_slice %320 {offsets = [0, 24], sizes = [16, 8], strides = [1, 1]} : vector<16x32xf32> to vector<16x8xf32>
    %380 = vector.extract_strided_slice %321 {offsets = [0, 24], sizes = [16, 8], strides = [1, 1]} : vector<16x32xf32> to vector<16x8xf32>
    %381 = vector.extract_strided_slice %322 {offsets = [0, 24], sizes = [16, 8], strides = [1, 1]} : vector<16x32xf32> to vector<16x8xf32>
    %cst_131 = arith.constant dense<0.000000e+00> : vector<16x16xf32>
    %382 = tpu.matmul %379, %380, %cst_131 {dimension_numbers = #tpu.dot_dimension_numbers<[1], [1], [0], [0], [0, 0, 1, 0], [], []>} : vector<16x8xf32>, vector<16x8xf32>, vector<16x16xf32> -> vector<16x16xf32>
    %cst_132 = arith.constant 0.353553385 : f32
    %383 = vector.broadcast %cst_132 : f32 to vector<16x16xf32>
    %384 = arith.mulf %382, %383 : vector<16x16xf32>
    %385 = arith.addf %384, %3 : vector<16x16xf32>
    %cst_133 = arith.constant dense<0xFF800000> : vector<16xf32>
    %386 = vector.multi_reduction <maximumf>, %385, %cst_133 [1] : vector<16x16xf32> to vector<16xf32>
    %387 = vector.shape_cast %386 : vector<16xf32> to vector<16x1xf32>
    %388 = vector.broadcast %387 : vector<16x1xf32> to vector<16x16xf32>
    %389 = arith.subf %385, %388 : vector<16x16xf32>
    %390 = math.exp %389 : vector<16x16xf32>
    %cst_134 = arith.constant dense<0.000000e+00> : vector<16xf32>
    %391 = vector.multi_reduction <add>, %390, %cst_134 [1] : vector<16x16xf32> to vector<16xf32>
    %392 = vector.shape_cast %391 : vector<16xf32> to vector<16x1xf32>
    %cst_135 = arith.constant dense<0.000000e+00> : vector<16x8xf32>
    %393 = tpu.matmul %390, %381, %cst_135 {dimension_numbers = #tpu.dot_dimension_numbers<[1], [0], [0], [1], [0, 0, 1, 1], [], []>} : vector<16x16xf32>, vector<16x8xf32>, vector<16x8xf32> -> vector<16x8xf32>
    %394 = tpu.reciprocal %392 {approx = true} : vector<16x1xf32> -> vector<16x1xf32>
    %395 = vector.broadcast %394 : vector<16x1xf32> to vector<16x8xf32>
    %396 = arith.mulf %393, %395 : vector<16x8xf32>
    %397 = tpu.concatenate %342, %360, %378, %396 in 1 : vector<16x8xf32>, vector<16x8xf32>, vector<16x8xf32>, vector<16x8xf32> -> vector<16x32xf32>
    %cst_136 = arith.constant dense<0.000000e+00> : vector<16x32xf32>
    %398 = tpu.matmul %397, %323, %cst_136 {dimension_numbers = #tpu.dot_dimension_numbers<[1], [0], [0], [1], [0, 0, 1, 1], [], []>} : vector<16x32xf32>, vector<32x32xf32>, vector<16x32xf32> -> vector<16x32xf32>
    %399 = vector.broadcast %324 : vector<1x32xf32> to vector<16x32xf32>
    %400 = arith.addf %398, %399 : vector<16x32xf32>
    %401 = arith.addf %1, %400 : vector<16x32xf32>
    %c23 = arith.constant 23 : index
    %c0_137 = arith.constant 0 : index
    %402 = vector.load %arg6[%c23, %c0_137] : memref<47x128xf32, #tpu.memory_space<vmem>>, vector<1x32xf32>
    %c24 = arith.constant 24 : index
    %c0_138 = arith.constant 0 : index
    %403 = vector.load %arg6[%c24, %c0_138] : memref<47x128xf32, #tpu.memory_space<vmem>>, vector<1x32xf32>
    %cst_139 = arith.constant dense<0.000000e+00> : vector<16xf32>
    %404 = vector.multi_reduction <add>, %401, %cst_139 [1] : vector<16x32xf32> to vector<16xf32>
    %405 = vector.shape_cast %404 : vector<16xf32> to vector<16x1xf32>
    %cst_140 = arith.constant 3.200000e+01 : f32
    %406 = vector.broadcast %cst_140 : f32 to vector<16x1xf32>
    %407 = arith.divf %405, %406 : vector<16x1xf32>
    %408 = vector.broadcast %407 : vector<16x1xf32> to vector<16x32xf32>
    %409 = arith.subf %401, %408 : vector<16x32xf32>
    %410 = arith.mulf %409, %409 : vector<16x32xf32>
    %cst_141 = arith.constant dense<0.000000e+00> : vector<16xf32>
    %411 = vector.multi_reduction <add>, %410, %cst_141 [1] : vector<16x32xf32> to vector<16xf32>
    %412 = vector.shape_cast %411 : vector<16xf32> to vector<16x1xf32>
    %cst_142 = arith.constant 3.200000e+01 : f32
    %413 = vector.broadcast %cst_142 : f32 to vector<16x1xf32>
    %414 = arith.divf %412, %413 : vector<16x1xf32>
    %cst_143 = arith.constant 9.99999974E-6 : f32
    %415 = vector.broadcast %cst_143 : f32 to vector<16x1xf32>
    %416 = arith.addf %414, %415 : vector<16x1xf32>
    %417 = math.rsqrt %416 : vector<16x1xf32>
    %418 = vector.broadcast %417 : vector<16x1xf32> to vector<16x32xf32>
    %419 = arith.mulf %409, %418 : vector<16x32xf32>
    %420 = vector.broadcast %402 : vector<1x32xf32> to vector<16x32xf32>
    %421 = arith.mulf %419, %420 : vector<16x32xf32>
    %422 = vector.broadcast %403 : vector<1x32xf32> to vector<16x32xf32>
    %423 = arith.addf %421, %422 : vector<16x32xf32>
    %c384 = arith.constant 384 : index
    %c0_144 = arith.constant 0 : index
    %424 = vector.load %arg5[%c384, %c0_144] : memref<864x128xf32, #tpu.memory_space<vmem>>, vector<32x32xf32>
    %cst_145 = arith.constant dense<0.000000e+00> : vector<16x32xf32>
    %425 = tpu.matmul %423, %424, %cst_145 {dimension_numbers = #tpu.dot_dimension_numbers<[1], [0], [0], [1], [0, 0, 1, 1], [], []>} : vector<16x32xf32>, vector<32x32xf32>, vector<16x32xf32> -> vector<16x32xf32>
    %c18 = arith.constant 18 : index
    %c0_146 = arith.constant 0 : index
    %426 = vector.load %arg6[%c18, %c0_146] : memref<47x128xf32, #tpu.memory_space<vmem>>, vector<1x32xf32>
    %427 = vector.broadcast %426 : vector<1x32xf32> to vector<16x32xf32>
    %428 = arith.addf %425, %427 : vector<16x32xf32>
    %c416 = arith.constant 416 : index
    %c0_147 = arith.constant 0 : index
    %429 = vector.load %arg5[%c416, %c0_147] : memref<864x128xf32, #tpu.memory_space<vmem>>, vector<32x64xf32>
    %cst_148 = arith.constant dense<0.000000e+00> : vector<16x64xf32>
    %430 = tpu.matmul %314, %429, %cst_148 {dimension_numbers = #tpu.dot_dimension_numbers<[1], [0], [0], [1], [0, 0, 1, 1], [], []>} : vector<16x32xf32>, vector<32x64xf32>, vector<16x64xf32> -> vector<16x64xf32>
    %c19 = arith.constant 19 : index
    %c0_149 = arith.constant 0 : index
    %431 = vector.load %arg6[%c19, %c0_149] : memref<47x128xf32, #tpu.memory_space<vmem>>, vector<1x64xf32>
    %432 = vector.broadcast %431 : vector<1x64xf32> to vector<16x64xf32>
    %433 = arith.addf %430, %432 : vector<16x64xf32>
    %434 = vector.extract_strided_slice %433 {offsets = [0, 0], sizes = [16, 32], strides = [1, 1]} : vector<16x64xf32> to vector<16x32xf32>
    %435 = vector.extract_strided_slice %433 {offsets = [0, 32], sizes = [16, 32], strides = [1, 1]} : vector<16x64xf32> to vector<16x32xf32>
    %c448 = arith.constant 448 : index
    %c0_150 = arith.constant 0 : index
    %436 = vector.load %arg5[%c448, %c0_150] : memref<864x128xf32, #tpu.memory_space<vmem>>, vector<32x32xf32>
    %c20 = arith.constant 20 : index
    %c0_151 = arith.constant 0 : index
    %437 = vector.load %arg6[%c20, %c0_151] : memref<47x128xf32, #tpu.memory_space<vmem>>, vector<1x32xf32>
    %438 = vector.extract_strided_slice %428 {offsets = [0, 0], sizes = [16, 8], strides = [1, 1]} : vector<16x32xf32> to vector<16x8xf32>
    %439 = vector.extract_strided_slice %434 {offsets = [0, 0], sizes = [16, 8], strides = [1, 1]} : vector<16x32xf32> to vector<16x8xf32>
    %440 = vector.extract_strided_slice %435 {offsets = [0, 0], sizes = [16, 8], strides = [1, 1]} : vector<16x32xf32> to vector<16x8xf32>
    %cst_152 = arith.constant dense<0.000000e+00> : vector<16x16xf32>
    %441 = tpu.matmul %438, %439, %cst_152 {dimension_numbers = #tpu.dot_dimension_numbers<[1], [1], [0], [0], [0, 0, 1, 0], [], []>} : vector<16x8xf32>, vector<16x8xf32>, vector<16x16xf32> -> vector<16x16xf32>
    %cst_153 = arith.constant 0.353553385 : f32
    %442 = vector.broadcast %cst_153 : f32 to vector<16x16xf32>
    %443 = arith.mulf %441, %442 : vector<16x16xf32>
    %444 = arith.addf %443, %4 : vector<16x16xf32>
    %cst_154 = arith.constant dense<0xFF800000> : vector<16xf32>
    %445 = vector.multi_reduction <maximumf>, %444, %cst_154 [1] : vector<16x16xf32> to vector<16xf32>
    %446 = vector.shape_cast %445 : vector<16xf32> to vector<16x1xf32>
    %447 = vector.broadcast %446 : vector<16x1xf32> to vector<16x16xf32>
    %448 = arith.subf %444, %447 : vector<16x16xf32>
    %449 = math.exp %448 : vector<16x16xf32>
    %cst_155 = arith.constant dense<0.000000e+00> : vector<16xf32>
    %450 = vector.multi_reduction <add>, %449, %cst_155 [1] : vector<16x16xf32> to vector<16xf32>
    %451 = vector.shape_cast %450 : vector<16xf32> to vector<16x1xf32>
    %cst_156 = arith.constant dense<0.000000e+00> : vector<16x8xf32>
    %452 = tpu.matmul %449, %440, %cst_156 {dimension_numbers = #tpu.dot_dimension_numbers<[1], [0], [0], [1], [0, 0, 1, 1], [], []>} : vector<16x16xf32>, vector<16x8xf32>, vector<16x8xf32> -> vector<16x8xf32>
    %453 = tpu.reciprocal %451 {approx = true} : vector<16x1xf32> -> vector<16x1xf32>
    %454 = vector.broadcast %453 : vector<16x1xf32> to vector<16x8xf32>
    %455 = arith.mulf %452, %454 : vector<16x8xf32>
    %456 = vector.extract_strided_slice %428 {offsets = [0, 8], sizes = [16, 8], strides = [1, 1]} : vector<16x32xf32> to vector<16x8xf32>
    %457 = vector.extract_strided_slice %434 {offsets = [0, 8], sizes = [16, 8], strides = [1, 1]} : vector<16x32xf32> to vector<16x8xf32>
    %458 = vector.extract_strided_slice %435 {offsets = [0, 8], sizes = [16, 8], strides = [1, 1]} : vector<16x32xf32> to vector<16x8xf32>
    %cst_157 = arith.constant dense<0.000000e+00> : vector<16x16xf32>
    %459 = tpu.matmul %456, %457, %cst_157 {dimension_numbers = #tpu.dot_dimension_numbers<[1], [1], [0], [0], [0, 0, 1, 0], [], []>} : vector<16x8xf32>, vector<16x8xf32>, vector<16x16xf32> -> vector<16x16xf32>
    %cst_158 = arith.constant 0.353553385 : f32
    %460 = vector.broadcast %cst_158 : f32 to vector<16x16xf32>
    %461 = arith.mulf %459, %460 : vector<16x16xf32>
    %462 = arith.addf %461, %4 : vector<16x16xf32>
    %cst_159 = arith.constant dense<0xFF800000> : vector<16xf32>
    %463 = vector.multi_reduction <maximumf>, %462, %cst_159 [1] : vector<16x16xf32> to vector<16xf32>
    %464 = vector.shape_cast %463 : vector<16xf32> to vector<16x1xf32>
    %465 = vector.broadcast %464 : vector<16x1xf32> to vector<16x16xf32>
    %466 = arith.subf %462, %465 : vector<16x16xf32>
    %467 = math.exp %466 : vector<16x16xf32>
    %cst_160 = arith.constant dense<0.000000e+00> : vector<16xf32>
    %468 = vector.multi_reduction <add>, %467, %cst_160 [1] : vector<16x16xf32> to vector<16xf32>
    %469 = vector.shape_cast %468 : vector<16xf32> to vector<16x1xf32>
    %cst_161 = arith.constant dense<0.000000e+00> : vector<16x8xf32>
    %470 = tpu.matmul %467, %458, %cst_161 {dimension_numbers = #tpu.dot_dimension_numbers<[1], [0], [0], [1], [0, 0, 1, 1], [], []>} : vector<16x16xf32>, vector<16x8xf32>, vector<16x8xf32> -> vector<16x8xf32>
    %471 = tpu.reciprocal %469 {approx = true} : vector<16x1xf32> -> vector<16x1xf32>
    %472 = vector.broadcast %471 : vector<16x1xf32> to vector<16x8xf32>
    %473 = arith.mulf %470, %472 : vector<16x8xf32>
    %474 = vector.extract_strided_slice %428 {offsets = [0, 16], sizes = [16, 8], strides = [1, 1]} : vector<16x32xf32> to vector<16x8xf32>
    %475 = vector.extract_strided_slice %434 {offsets = [0, 16], sizes = [16, 8], strides = [1, 1]} : vector<16x32xf32> to vector<16x8xf32>
    %476 = vector.extract_strided_slice %435 {offsets = [0, 16], sizes = [16, 8], strides = [1, 1]} : vector<16x32xf32> to vector<16x8xf32>
    %cst_162 = arith.constant dense<0.000000e+00> : vector<16x16xf32>
    %477 = tpu.matmul %474, %475, %cst_162 {dimension_numbers = #tpu.dot_dimension_numbers<[1], [1], [0], [0], [0, 0, 1, 0], [], []>} : vector<16x8xf32>, vector<16x8xf32>, vector<16x16xf32> -> vector<16x16xf32>
    %cst_163 = arith.constant 0.353553385 : f32
    %478 = vector.broadcast %cst_163 : f32 to vector<16x16xf32>
    %479 = arith.mulf %477, %478 : vector<16x16xf32>
    %480 = arith.addf %479, %4 : vector<16x16xf32>
    %cst_164 = arith.constant dense<0xFF800000> : vector<16xf32>
    %481 = vector.multi_reduction <maximumf>, %480, %cst_164 [1] : vector<16x16xf32> to vector<16xf32>
    %482 = vector.shape_cast %481 : vector<16xf32> to vector<16x1xf32>
    %483 = vector.broadcast %482 : vector<16x1xf32> to vector<16x16xf32>
    %484 = arith.subf %480, %483 : vector<16x16xf32>
    %485 = math.exp %484 : vector<16x16xf32>
    %cst_165 = arith.constant dense<0.000000e+00> : vector<16xf32>
    %486 = vector.multi_reduction <add>, %485, %cst_165 [1] : vector<16x16xf32> to vector<16xf32>
    %487 = vector.shape_cast %486 : vector<16xf32> to vector<16x1xf32>
    %cst_166 = arith.constant dense<0.000000e+00> : vector<16x8xf32>
    %488 = tpu.matmul %485, %476, %cst_166 {dimension_numbers = #tpu.dot_dimension_numbers<[1], [0], [0], [1], [0, 0, 1, 1], [], []>} : vector<16x16xf32>, vector<16x8xf32>, vector<16x8xf32> -> vector<16x8xf32>
    %489 = tpu.reciprocal %487 {approx = true} : vector<16x1xf32> -> vector<16x1xf32>
    %490 = vector.broadcast %489 : vector<16x1xf32> to vector<16x8xf32>
    %491 = arith.mulf %488, %490 : vector<16x8xf32>
    %492 = vector.extract_strided_slice %428 {offsets = [0, 24], sizes = [16, 8], strides = [1, 1]} : vector<16x32xf32> to vector<16x8xf32>
    %493 = vector.extract_strided_slice %434 {offsets = [0, 24], sizes = [16, 8], strides = [1, 1]} : vector<16x32xf32> to vector<16x8xf32>
    %494 = vector.extract_strided_slice %435 {offsets = [0, 24], sizes = [16, 8], strides = [1, 1]} : vector<16x32xf32> to vector<16x8xf32>
    %cst_167 = arith.constant dense<0.000000e+00> : vector<16x16xf32>
    %495 = tpu.matmul %492, %493, %cst_167 {dimension_numbers = #tpu.dot_dimension_numbers<[1], [1], [0], [0], [0, 0, 1, 0], [], []>} : vector<16x8xf32>, vector<16x8xf32>, vector<16x16xf32> -> vector<16x16xf32>
    %cst_168 = arith.constant 0.353553385 : f32
    %496 = vector.broadcast %cst_168 : f32 to vector<16x16xf32>
    %497 = arith.mulf %495, %496 : vector<16x16xf32>
    %498 = arith.addf %497, %4 : vector<16x16xf32>
    %cst_169 = arith.constant dense<0xFF800000> : vector<16xf32>
    %499 = vector.multi_reduction <maximumf>, %498, %cst_169 [1] : vector<16x16xf32> to vector<16xf32>
    %500 = vector.shape_cast %499 : vector<16xf32> to vector<16x1xf32>
    %501 = vector.broadcast %500 : vector<16x1xf32> to vector<16x16xf32>
    %502 = arith.subf %498, %501 : vector<16x16xf32>
    %503 = math.exp %502 : vector<16x16xf32>
    %cst_170 = arith.constant dense<0.000000e+00> : vector<16xf32>
    %504 = vector.multi_reduction <add>, %503, %cst_170 [1] : vector<16x16xf32> to vector<16xf32>
    %505 = vector.shape_cast %504 : vector<16xf32> to vector<16x1xf32>
    %cst_171 = arith.constant dense<0.000000e+00> : vector<16x8xf32>
    %506 = tpu.matmul %503, %494, %cst_171 {dimension_numbers = #tpu.dot_dimension_numbers<[1], [0], [0], [1], [0, 0, 1, 1], [], []>} : vector<16x16xf32>, vector<16x8xf32>, vector<16x8xf32> -> vector<16x8xf32>
    %507 = tpu.reciprocal %505 {approx = true} : vector<16x1xf32> -> vector<16x1xf32>
    %508 = vector.broadcast %507 : vector<16x1xf32> to vector<16x8xf32>
    %509 = arith.mulf %506, %508 : vector<16x8xf32>
    %510 = tpu.concatenate %455, %473, %491, %509 in 1 : vector<16x8xf32>, vector<16x8xf32>, vector<16x8xf32>, vector<16x8xf32> -> vector<16x32xf32>
    %cst_172 = arith.constant dense<0.000000e+00> : vector<16x32xf32>
    %511 = tpu.matmul %510, %436, %cst_172 {dimension_numbers = #tpu.dot_dimension_numbers<[1], [0], [0], [1], [0, 0, 1, 1], [], []>} : vector<16x32xf32>, vector<32x32xf32>, vector<16x32xf32> -> vector<16x32xf32>
    %512 = vector.broadcast %437 : vector<1x32xf32> to vector<16x32xf32>
    %513 = arith.addf %511, %512 : vector<16x32xf32>
    %514 = arith.addf %423, %513 : vector<16x32xf32>
    %c25 = arith.constant 25 : index
    %c0_173 = arith.constant 0 : index
    %515 = vector.load %arg6[%c25, %c0_173] : memref<47x128xf32, #tpu.memory_space<vmem>>, vector<1x32xf32>
    %c26 = arith.constant 26 : index
    %c0_174 = arith.constant 0 : index
    %516 = vector.load %arg6[%c26, %c0_174] : memref<47x128xf32, #tpu.memory_space<vmem>>, vector<1x32xf32>
    %cst_175 = arith.constant dense<0.000000e+00> : vector<16xf32>
    %517 = vector.multi_reduction <add>, %514, %cst_175 [1] : vector<16x32xf32> to vector<16xf32>
    %518 = vector.shape_cast %517 : vector<16xf32> to vector<16x1xf32>
    %cst_176 = arith.constant 3.200000e+01 : f32
    %519 = vector.broadcast %cst_176 : f32 to vector<16x1xf32>
    %520 = arith.divf %518, %519 : vector<16x1xf32>
    %521 = vector.broadcast %520 : vector<16x1xf32> to vector<16x32xf32>
    %522 = arith.subf %514, %521 : vector<16x32xf32>
    %523 = arith.mulf %522, %522 : vector<16x32xf32>
    %cst_177 = arith.constant dense<0.000000e+00> : vector<16xf32>
    %524 = vector.multi_reduction <add>, %523, %cst_177 [1] : vector<16x32xf32> to vector<16xf32>
    %525 = vector.shape_cast %524 : vector<16xf32> to vector<16x1xf32>
    %cst_178 = arith.constant 3.200000e+01 : f32
    %526 = vector.broadcast %cst_178 : f32 to vector<16x1xf32>
    %527 = arith.divf %525, %526 : vector<16x1xf32>
    %cst_179 = arith.constant 9.99999974E-6 : f32
    %528 = vector.broadcast %cst_179 : f32 to vector<16x1xf32>
    %529 = arith.addf %527, %528 : vector<16x1xf32>
    %530 = math.rsqrt %529 : vector<16x1xf32>
    %531 = vector.broadcast %530 : vector<16x1xf32> to vector<16x32xf32>
    %532 = arith.mulf %522, %531 : vector<16x32xf32>
    %533 = vector.broadcast %515 : vector<1x32xf32> to vector<16x32xf32>
    %534 = arith.mulf %532, %533 : vector<16x32xf32>
    %535 = vector.broadcast %516 : vector<1x32xf32> to vector<16x32xf32>
    %536 = arith.addf %534, %535 : vector<16x32xf32>
    %c480 = arith.constant 480 : index
    %c0_180 = arith.constant 0 : index
    %537 = vector.load %arg5[%c480, %c0_180] : memref<864x128xf32, #tpu.memory_space<vmem>>, vector<32x64xf32>
    %c21 = arith.constant 21 : index
    %c0_181 = arith.constant 0 : index
    %538 = vector.load %arg6[%c21, %c0_181] : memref<47x128xf32, #tpu.memory_space<vmem>>, vector<1x64xf32>
    %c512 = arith.constant 512 : index
    %c0_182 = arith.constant 0 : index
    %539 = vector.load %arg5[%c512, %c0_182] : memref<864x128xf32, #tpu.memory_space<vmem>>, vector<64x32xf32>
    %c22 = arith.constant 22 : index
    %c0_183 = arith.constant 0 : index
    %540 = vector.load %arg6[%c22, %c0_183] : memref<47x128xf32, #tpu.memory_space<vmem>>, vector<1x32xf32>
    %cst_184 = arith.constant dense<0.000000e+00> : vector<16x64xf32>
    %541 = tpu.matmul %536, %537, %cst_184 {dimension_numbers = #tpu.dot_dimension_numbers<[1], [0], [0], [1], [0, 0, 1, 1], [], []>} : vector<16x32xf32>, vector<32x64xf32>, vector<16x64xf32> -> vector<16x64xf32>
    %542 = vector.broadcast %538 : vector<1x64xf32> to vector<16x64xf32>
    %543 = arith.addf %541, %542 : vector<16x64xf32>
    %cst_185 = arith.constant 0.000000e+00 : f32
    %544 = vector.broadcast %cst_185 : f32 to vector<16x64xf32>
    %545 = arith.maximumf %543, %544 : vector<16x64xf32>
    %cst_186 = arith.constant dense<0.000000e+00> : vector<16x32xf32>
    %546 = tpu.matmul %545, %539, %cst_186 {dimension_numbers = #tpu.dot_dimension_numbers<[1], [0], [0], [1], [0, 0, 1, 1], [], []>} : vector<16x64xf32>, vector<64x32xf32>, vector<16x32xf32> -> vector<16x32xf32>
    %547 = vector.broadcast %540 : vector<1x32xf32> to vector<16x32xf32>
    %548 = arith.addf %546, %547 : vector<16x32xf32>
    %549 = arith.addf %536, %548 : vector<16x32xf32>
    %c27 = arith.constant 27 : index
    %c0_187 = arith.constant 0 : index
    %550 = vector.load %arg6[%c27, %c0_187] : memref<47x128xf32, #tpu.memory_space<vmem>>, vector<1x32xf32>
    %c28 = arith.constant 28 : index
    %c0_188 = arith.constant 0 : index
    %551 = vector.load %arg6[%c28, %c0_188] : memref<47x128xf32, #tpu.memory_space<vmem>>, vector<1x32xf32>
    %cst_189 = arith.constant dense<0.000000e+00> : vector<16xf32>
    %552 = vector.multi_reduction <add>, %549, %cst_189 [1] : vector<16x32xf32> to vector<16xf32>
    %553 = vector.shape_cast %552 : vector<16xf32> to vector<16x1xf32>
    %cst_190 = arith.constant 3.200000e+01 : f32
    %554 = vector.broadcast %cst_190 : f32 to vector<16x1xf32>
    %555 = arith.divf %553, %554 : vector<16x1xf32>
    %556 = vector.broadcast %555 : vector<16x1xf32> to vector<16x32xf32>
    %557 = arith.subf %549, %556 : vector<16x32xf32>
    %558 = arith.mulf %557, %557 : vector<16x32xf32>
    %cst_191 = arith.constant dense<0.000000e+00> : vector<16xf32>
    %559 = vector.multi_reduction <add>, %558, %cst_191 [1] : vector<16x32xf32> to vector<16xf32>
    %560 = vector.shape_cast %559 : vector<16xf32> to vector<16x1xf32>
    %cst_192 = arith.constant 3.200000e+01 : f32
    %561 = vector.broadcast %cst_192 : f32 to vector<16x1xf32>
    %562 = arith.divf %560, %561 : vector<16x1xf32>
    %cst_193 = arith.constant 9.99999974E-6 : f32
    %563 = vector.broadcast %cst_193 : f32 to vector<16x1xf32>
    %564 = arith.addf %562, %563 : vector<16x1xf32>
    %565 = math.rsqrt %564 : vector<16x1xf32>
    %566 = vector.broadcast %565 : vector<16x1xf32> to vector<16x32xf32>
    %567 = arith.mulf %557, %566 : vector<16x32xf32>
    %568 = vector.broadcast %550 : vector<1x32xf32> to vector<16x32xf32>
    %569 = arith.mulf %567, %568 : vector<16x32xf32>
    %570 = vector.broadcast %551 : vector<1x32xf32> to vector<16x32xf32>
    %571 = arith.addf %569, %570 : vector<16x32xf32>
    %c576 = arith.constant 576 : index
    %c0_194 = arith.constant 0 : index
    %572 = vector.load %arg5[%c576, %c0_194] : memref<864x128xf32, #tpu.memory_space<vmem>>, vector<32x96xf32>
    %cst_195 = arith.constant dense<0.000000e+00> : vector<16x96xf32>
    %573 = tpu.matmul %571, %572, %cst_195 {dimension_numbers = #tpu.dot_dimension_numbers<[1], [0], [0], [1], [0, 0, 1, 1], [], []>} : vector<16x32xf32>, vector<32x96xf32>, vector<16x96xf32> -> vector<16x96xf32>
    %c29 = arith.constant 29 : index
    %c0_196 = arith.constant 0 : index
    %574 = vector.load %arg6[%c29, %c0_196] : memref<47x128xf32, #tpu.memory_space<vmem>>, vector<1x96xf32>
    %575 = vector.broadcast %574 : vector<1x96xf32> to vector<16x96xf32>
    %576 = arith.addf %573, %575 : vector<16x96xf32>
    %577 = vector.extract_strided_slice %576 {offsets = [0, 0], sizes = [16, 32], strides = [1, 1]} : vector<16x96xf32> to vector<16x32xf32>
    %578 = vector.extract_strided_slice %576 {offsets = [0, 32], sizes = [16, 32], strides = [1, 1]} : vector<16x96xf32> to vector<16x32xf32>
    %579 = vector.extract_strided_slice %576 {offsets = [0, 64], sizes = [16, 32], strides = [1, 1]} : vector<16x96xf32> to vector<16x32xf32>
    %c608 = arith.constant 608 : index
    %c0_197 = arith.constant 0 : index
    %580 = vector.load %arg5[%c608, %c0_197] : memref<864x128xf32, #tpu.memory_space<vmem>>, vector<32x32xf32>
    %c30 = arith.constant 30 : index
    %c0_198 = arith.constant 0 : index
    %581 = vector.load %arg6[%c30, %c0_198] : memref<47x128xf32, #tpu.memory_space<vmem>>, vector<1x32xf32>
    %582 = vector.extract_strided_slice %577 {offsets = [0, 0], sizes = [16, 8], strides = [1, 1]} : vector<16x32xf32> to vector<16x8xf32>
    %583 = vector.extract_strided_slice %578 {offsets = [0, 0], sizes = [16, 8], strides = [1, 1]} : vector<16x32xf32> to vector<16x8xf32>
    %584 = vector.extract_strided_slice %579 {offsets = [0, 0], sizes = [16, 8], strides = [1, 1]} : vector<16x32xf32> to vector<16x8xf32>
    %cst_199 = arith.constant dense<0.000000e+00> : vector<16x16xf32>
    %585 = tpu.matmul %582, %583, %cst_199 {dimension_numbers = #tpu.dot_dimension_numbers<[1], [1], [0], [0], [0, 0, 1, 0], [], []>} : vector<16x8xf32>, vector<16x8xf32>, vector<16x16xf32> -> vector<16x16xf32>
    %cst_200 = arith.constant 0.353553385 : f32
    %586 = vector.broadcast %cst_200 : f32 to vector<16x16xf32>
    %587 = arith.mulf %585, %586 : vector<16x16xf32>
    %588 = arith.addf %587, %3 : vector<16x16xf32>
    %cst_201 = arith.constant dense<0xFF800000> : vector<16xf32>
    %589 = vector.multi_reduction <maximumf>, %588, %cst_201 [1] : vector<16x16xf32> to vector<16xf32>
    %590 = vector.shape_cast %589 : vector<16xf32> to vector<16x1xf32>
    %591 = vector.broadcast %590 : vector<16x1xf32> to vector<16x16xf32>
    %592 = arith.subf %588, %591 : vector<16x16xf32>
    %593 = math.exp %592 : vector<16x16xf32>
    %cst_202 = arith.constant dense<0.000000e+00> : vector<16xf32>
    %594 = vector.multi_reduction <add>, %593, %cst_202 [1] : vector<16x16xf32> to vector<16xf32>
    %595 = vector.shape_cast %594 : vector<16xf32> to vector<16x1xf32>
    %cst_203 = arith.constant dense<0.000000e+00> : vector<16x8xf32>
    %596 = tpu.matmul %593, %584, %cst_203 {dimension_numbers = #tpu.dot_dimension_numbers<[1], [0], [0], [1], [0, 0, 1, 1], [], []>} : vector<16x16xf32>, vector<16x8xf32>, vector<16x8xf32> -> vector<16x8xf32>
    %597 = tpu.reciprocal %595 {approx = true} : vector<16x1xf32> -> vector<16x1xf32>
    %598 = vector.broadcast %597 : vector<16x1xf32> to vector<16x8xf32>
    %599 = arith.mulf %596, %598 : vector<16x8xf32>
    %600 = vector.extract_strided_slice %577 {offsets = [0, 8], sizes = [16, 8], strides = [1, 1]} : vector<16x32xf32> to vector<16x8xf32>
    %601 = vector.extract_strided_slice %578 {offsets = [0, 8], sizes = [16, 8], strides = [1, 1]} : vector<16x32xf32> to vector<16x8xf32>
    %602 = vector.extract_strided_slice %579 {offsets = [0, 8], sizes = [16, 8], strides = [1, 1]} : vector<16x32xf32> to vector<16x8xf32>
    %cst_204 = arith.constant dense<0.000000e+00> : vector<16x16xf32>
    %603 = tpu.matmul %600, %601, %cst_204 {dimension_numbers = #tpu.dot_dimension_numbers<[1], [1], [0], [0], [0, 0, 1, 0], [], []>} : vector<16x8xf32>, vector<16x8xf32>, vector<16x16xf32> -> vector<16x16xf32>
    %cst_205 = arith.constant 0.353553385 : f32
    %604 = vector.broadcast %cst_205 : f32 to vector<16x16xf32>
    %605 = arith.mulf %603, %604 : vector<16x16xf32>
    %606 = arith.addf %605, %3 : vector<16x16xf32>
    %cst_206 = arith.constant dense<0xFF800000> : vector<16xf32>
    %607 = vector.multi_reduction <maximumf>, %606, %cst_206 [1] : vector<16x16xf32> to vector<16xf32>
    %608 = vector.shape_cast %607 : vector<16xf32> to vector<16x1xf32>
    %609 = vector.broadcast %608 : vector<16x1xf32> to vector<16x16xf32>
    %610 = arith.subf %606, %609 : vector<16x16xf32>
    %611 = math.exp %610 : vector<16x16xf32>
    %cst_207 = arith.constant dense<0.000000e+00> : vector<16xf32>
    %612 = vector.multi_reduction <add>, %611, %cst_207 [1] : vector<16x16xf32> to vector<16xf32>
    %613 = vector.shape_cast %612 : vector<16xf32> to vector<16x1xf32>
    %cst_208 = arith.constant dense<0.000000e+00> : vector<16x8xf32>
    %614 = tpu.matmul %611, %602, %cst_208 {dimension_numbers = #tpu.dot_dimension_numbers<[1], [0], [0], [1], [0, 0, 1, 1], [], []>} : vector<16x16xf32>, vector<16x8xf32>, vector<16x8xf32> -> vector<16x8xf32>
    %615 = tpu.reciprocal %613 {approx = true} : vector<16x1xf32> -> vector<16x1xf32>
    %616 = vector.broadcast %615 : vector<16x1xf32> to vector<16x8xf32>
    %617 = arith.mulf %614, %616 : vector<16x8xf32>
    %618 = vector.extract_strided_slice %577 {offsets = [0, 16], sizes = [16, 8], strides = [1, 1]} : vector<16x32xf32> to vector<16x8xf32>
    %619 = vector.extract_strided_slice %578 {offsets = [0, 16], sizes = [16, 8], strides = [1, 1]} : vector<16x32xf32> to vector<16x8xf32>
    %620 = vector.extract_strided_slice %579 {offsets = [0, 16], sizes = [16, 8], strides = [1, 1]} : vector<16x32xf32> to vector<16x8xf32>
    %cst_209 = arith.constant dense<0.000000e+00> : vector<16x16xf32>
    %621 = tpu.matmul %618, %619, %cst_209 {dimension_numbers = #tpu.dot_dimension_numbers<[1], [1], [0], [0], [0, 0, 1, 0], [], []>} : vector<16x8xf32>, vector<16x8xf32>, vector<16x16xf32> -> vector<16x16xf32>
    %cst_210 = arith.constant 0.353553385 : f32
    %622 = vector.broadcast %cst_210 : f32 to vector<16x16xf32>
    %623 = arith.mulf %621, %622 : vector<16x16xf32>
    %624 = arith.addf %623, %3 : vector<16x16xf32>
    %cst_211 = arith.constant dense<0xFF800000> : vector<16xf32>
    %625 = vector.multi_reduction <maximumf>, %624, %cst_211 [1] : vector<16x16xf32> to vector<16xf32>
    %626 = vector.shape_cast %625 : vector<16xf32> to vector<16x1xf32>
    %627 = vector.broadcast %626 : vector<16x1xf32> to vector<16x16xf32>
    %628 = arith.subf %624, %627 : vector<16x16xf32>
    %629 = math.exp %628 : vector<16x16xf32>
    %cst_212 = arith.constant dense<0.000000e+00> : vector<16xf32>
    %630 = vector.multi_reduction <add>, %629, %cst_212 [1] : vector<16x16xf32> to vector<16xf32>
    %631 = vector.shape_cast %630 : vector<16xf32> to vector<16x1xf32>
    %cst_213 = arith.constant dense<0.000000e+00> : vector<16x8xf32>
    %632 = tpu.matmul %629, %620, %cst_213 {dimension_numbers = #tpu.dot_dimension_numbers<[1], [0], [0], [1], [0, 0, 1, 1], [], []>} : vector<16x16xf32>, vector<16x8xf32>, vector<16x8xf32> -> vector<16x8xf32>
    %633 = tpu.reciprocal %631 {approx = true} : vector<16x1xf32> -> vector<16x1xf32>
    %634 = vector.broadcast %633 : vector<16x1xf32> to vector<16x8xf32>
    %635 = arith.mulf %632, %634 : vector<16x8xf32>
    %636 = vector.extract_strided_slice %577 {offsets = [0, 24], sizes = [16, 8], strides = [1, 1]} : vector<16x32xf32> to vector<16x8xf32>
    %637 = vector.extract_strided_slice %578 {offsets = [0, 24], sizes = [16, 8], strides = [1, 1]} : vector<16x32xf32> to vector<16x8xf32>
    %638 = vector.extract_strided_slice %579 {offsets = [0, 24], sizes = [16, 8], strides = [1, 1]} : vector<16x32xf32> to vector<16x8xf32>
    %cst_214 = arith.constant dense<0.000000e+00> : vector<16x16xf32>
    %639 = tpu.matmul %636, %637, %cst_214 {dimension_numbers = #tpu.dot_dimension_numbers<[1], [1], [0], [0], [0, 0, 1, 0], [], []>} : vector<16x8xf32>, vector<16x8xf32>, vector<16x16xf32> -> vector<16x16xf32>
    %cst_215 = arith.constant 0.353553385 : f32
    %640 = vector.broadcast %cst_215 : f32 to vector<16x16xf32>
    %641 = arith.mulf %639, %640 : vector<16x16xf32>
    %642 = arith.addf %641, %3 : vector<16x16xf32>
    %cst_216 = arith.constant dense<0xFF800000> : vector<16xf32>
    %643 = vector.multi_reduction <maximumf>, %642, %cst_216 [1] : vector<16x16xf32> to vector<16xf32>
    %644 = vector.shape_cast %643 : vector<16xf32> to vector<16x1xf32>
    %645 = vector.broadcast %644 : vector<16x1xf32> to vector<16x16xf32>
    %646 = arith.subf %642, %645 : vector<16x16xf32>
    %647 = math.exp %646 : vector<16x16xf32>
    %cst_217 = arith.constant dense<0.000000e+00> : vector<16xf32>
    %648 = vector.multi_reduction <add>, %647, %cst_217 [1] : vector<16x16xf32> to vector<16xf32>
    %649 = vector.shape_cast %648 : vector<16xf32> to vector<16x1xf32>
    %cst_218 = arith.constant dense<0.000000e+00> : vector<16x8xf32>
    %650 = tpu.matmul %647, %638, %cst_218 {dimension_numbers = #tpu.dot_dimension_numbers<[1], [0], [0], [1], [0, 0, 1, 1], [], []>} : vector<16x16xf32>, vector<16x8xf32>, vector<16x8xf32> -> vector<16x8xf32>
    %651 = tpu.reciprocal %649 {approx = true} : vector<16x1xf32> -> vector<16x1xf32>
    %652 = vector.broadcast %651 : vector<16x1xf32> to vector<16x8xf32>
    %653 = arith.mulf %650, %652 : vector<16x8xf32>
    %654 = tpu.concatenate %599, %617, %635, %653 in 1 : vector<16x8xf32>, vector<16x8xf32>, vector<16x8xf32>, vector<16x8xf32> -> vector<16x32xf32>
    %cst_219 = arith.constant dense<0.000000e+00> : vector<16x32xf32>
    %655 = tpu.matmul %654, %580, %cst_219 {dimension_numbers = #tpu.dot_dimension_numbers<[1], [0], [0], [1], [0, 0, 1, 1], [], []>} : vector<16x32xf32>, vector<32x32xf32>, vector<16x32xf32> -> vector<16x32xf32>
    %656 = vector.broadcast %581 : vector<1x32xf32> to vector<16x32xf32>
    %657 = arith.addf %655, %656 : vector<16x32xf32>
    %658 = arith.addf %571, %657 : vector<16x32xf32>
    %c36 = arith.constant 36 : index
    %c0_220 = arith.constant 0 : index
    %659 = vector.load %arg6[%c36, %c0_220] : memref<47x128xf32, #tpu.memory_space<vmem>>, vector<1x32xf32>
    %c37 = arith.constant 37 : index
    %c0_221 = arith.constant 0 : index
    %660 = vector.load %arg6[%c37, %c0_221] : memref<47x128xf32, #tpu.memory_space<vmem>>, vector<1x32xf32>
    %cst_222 = arith.constant dense<0.000000e+00> : vector<16xf32>
    %661 = vector.multi_reduction <add>, %658, %cst_222 [1] : vector<16x32xf32> to vector<16xf32>
    %662 = vector.shape_cast %661 : vector<16xf32> to vector<16x1xf32>
    %cst_223 = arith.constant 3.200000e+01 : f32
    %663 = vector.broadcast %cst_223 : f32 to vector<16x1xf32>
    %664 = arith.divf %662, %663 : vector<16x1xf32>
    %665 = vector.broadcast %664 : vector<16x1xf32> to vector<16x32xf32>
    %666 = arith.subf %658, %665 : vector<16x32xf32>
    %667 = arith.mulf %666, %666 : vector<16x32xf32>
    %cst_224 = arith.constant dense<0.000000e+00> : vector<16xf32>
    %668 = vector.multi_reduction <add>, %667, %cst_224 [1] : vector<16x32xf32> to vector<16xf32>
    %669 = vector.shape_cast %668 : vector<16xf32> to vector<16x1xf32>
    %cst_225 = arith.constant 3.200000e+01 : f32
    %670 = vector.broadcast %cst_225 : f32 to vector<16x1xf32>
    %671 = arith.divf %669, %670 : vector<16x1xf32>
    %cst_226 = arith.constant 9.99999974E-6 : f32
    %672 = vector.broadcast %cst_226 : f32 to vector<16x1xf32>
    %673 = arith.addf %671, %672 : vector<16x1xf32>
    %674 = math.rsqrt %673 : vector<16x1xf32>
    %675 = vector.broadcast %674 : vector<16x1xf32> to vector<16x32xf32>
    %676 = arith.mulf %666, %675 : vector<16x32xf32>
    %677 = vector.broadcast %659 : vector<1x32xf32> to vector<16x32xf32>
    %678 = arith.mulf %676, %677 : vector<16x32xf32>
    %679 = vector.broadcast %660 : vector<1x32xf32> to vector<16x32xf32>
    %680 = arith.addf %678, %679 : vector<16x32xf32>
    %c640 = arith.constant 640 : index
    %c0_227 = arith.constant 0 : index
    %681 = vector.load %arg5[%c640, %c0_227] : memref<864x128xf32, #tpu.memory_space<vmem>>, vector<32x32xf32>
    %cst_228 = arith.constant dense<0.000000e+00> : vector<16x32xf32>
    %682 = tpu.matmul %680, %681, %cst_228 {dimension_numbers = #tpu.dot_dimension_numbers<[1], [0], [0], [1], [0, 0, 1, 1], [], []>} : vector<16x32xf32>, vector<32x32xf32>, vector<16x32xf32> -> vector<16x32xf32>
    %c31 = arith.constant 31 : index
    %c0_229 = arith.constant 0 : index
    %683 = vector.load %arg6[%c31, %c0_229] : memref<47x128xf32, #tpu.memory_space<vmem>>, vector<1x32xf32>
    %684 = vector.broadcast %683 : vector<1x32xf32> to vector<16x32xf32>
    %685 = arith.addf %682, %684 : vector<16x32xf32>
    %c672 = arith.constant 672 : index
    %c0_230 = arith.constant 0 : index
    %686 = vector.load %arg5[%c672, %c0_230] : memref<864x128xf32, #tpu.memory_space<vmem>>, vector<32x64xf32>
    %cst_231 = arith.constant dense<0.000000e+00> : vector<16x64xf32>
    %687 = tpu.matmul %314, %686, %cst_231 {dimension_numbers = #tpu.dot_dimension_numbers<[1], [0], [0], [1], [0, 0, 1, 1], [], []>} : vector<16x32xf32>, vector<32x64xf32>, vector<16x64xf32> -> vector<16x64xf32>
    %c32_232 = arith.constant 32 : index
    %c0_233 = arith.constant 0 : index
    %688 = vector.load %arg6[%c32_232, %c0_233] : memref<47x128xf32, #tpu.memory_space<vmem>>, vector<1x64xf32>
    %689 = vector.broadcast %688 : vector<1x64xf32> to vector<16x64xf32>
    %690 = arith.addf %687, %689 : vector<16x64xf32>
    %691 = vector.extract_strided_slice %690 {offsets = [0, 0], sizes = [16, 32], strides = [1, 1]} : vector<16x64xf32> to vector<16x32xf32>
    %692 = vector.extract_strided_slice %690 {offsets = [0, 32], sizes = [16, 32], strides = [1, 1]} : vector<16x64xf32> to vector<16x32xf32>
    %c704 = arith.constant 704 : index
    %c0_234 = arith.constant 0 : index
    %693 = vector.load %arg5[%c704, %c0_234] : memref<864x128xf32, #tpu.memory_space<vmem>>, vector<32x32xf32>
    %c33 = arith.constant 33 : index
    %c0_235 = arith.constant 0 : index
    %694 = vector.load %arg6[%c33, %c0_235] : memref<47x128xf32, #tpu.memory_space<vmem>>, vector<1x32xf32>
    %695 = vector.extract_strided_slice %685 {offsets = [0, 0], sizes = [16, 8], strides = [1, 1]} : vector<16x32xf32> to vector<16x8xf32>
    %696 = vector.extract_strided_slice %691 {offsets = [0, 0], sizes = [16, 8], strides = [1, 1]} : vector<16x32xf32> to vector<16x8xf32>
    %697 = vector.extract_strided_slice %692 {offsets = [0, 0], sizes = [16, 8], strides = [1, 1]} : vector<16x32xf32> to vector<16x8xf32>
    %cst_236 = arith.constant dense<0.000000e+00> : vector<16x16xf32>
    %698 = tpu.matmul %695, %696, %cst_236 {dimension_numbers = #tpu.dot_dimension_numbers<[1], [1], [0], [0], [0, 0, 1, 0], [], []>} : vector<16x8xf32>, vector<16x8xf32>, vector<16x16xf32> -> vector<16x16xf32>
    %cst_237 = arith.constant 0.353553385 : f32
    %699 = vector.broadcast %cst_237 : f32 to vector<16x16xf32>
    %700 = arith.mulf %698, %699 : vector<16x16xf32>
    %701 = arith.addf %700, %4 : vector<16x16xf32>
    %cst_238 = arith.constant dense<0xFF800000> : vector<16xf32>
    %702 = vector.multi_reduction <maximumf>, %701, %cst_238 [1] : vector<16x16xf32> to vector<16xf32>
    %703 = vector.shape_cast %702 : vector<16xf32> to vector<16x1xf32>
    %704 = vector.broadcast %703 : vector<16x1xf32> to vector<16x16xf32>
    %705 = arith.subf %701, %704 : vector<16x16xf32>
    %706 = math.exp %705 : vector<16x16xf32>
    %cst_239 = arith.constant dense<0.000000e+00> : vector<16xf32>
    %707 = vector.multi_reduction <add>, %706, %cst_239 [1] : vector<16x16xf32> to vector<16xf32>
    %708 = vector.shape_cast %707 : vector<16xf32> to vector<16x1xf32>
    %cst_240 = arith.constant dense<0.000000e+00> : vector<16x8xf32>
    %709 = tpu.matmul %706, %697, %cst_240 {dimension_numbers = #tpu.dot_dimension_numbers<[1], [0], [0], [1], [0, 0, 1, 1], [], []>} : vector<16x16xf32>, vector<16x8xf32>, vector<16x8xf32> -> vector<16x8xf32>
    %710 = tpu.reciprocal %708 {approx = true} : vector<16x1xf32> -> vector<16x1xf32>
    %711 = vector.broadcast %710 : vector<16x1xf32> to vector<16x8xf32>
    %712 = arith.mulf %709, %711 : vector<16x8xf32>
    %713 = vector.extract_strided_slice %685 {offsets = [0, 8], sizes = [16, 8], strides = [1, 1]} : vector<16x32xf32> to vector<16x8xf32>
    %714 = vector.extract_strided_slice %691 {offsets = [0, 8], sizes = [16, 8], strides = [1, 1]} : vector<16x32xf32> to vector<16x8xf32>
    %715 = vector.extract_strided_slice %692 {offsets = [0, 8], sizes = [16, 8], strides = [1, 1]} : vector<16x32xf32> to vector<16x8xf32>
    %cst_241 = arith.constant dense<0.000000e+00> : vector<16x16xf32>
    %716 = tpu.matmul %713, %714, %cst_241 {dimension_numbers = #tpu.dot_dimension_numbers<[1], [1], [0], [0], [0, 0, 1, 0], [], []>} : vector<16x8xf32>, vector<16x8xf32>, vector<16x16xf32> -> vector<16x16xf32>
    %cst_242 = arith.constant 0.353553385 : f32
    %717 = vector.broadcast %cst_242 : f32 to vector<16x16xf32>
    %718 = arith.mulf %716, %717 : vector<16x16xf32>
    %719 = arith.addf %718, %4 : vector<16x16xf32>
    %cst_243 = arith.constant dense<0xFF800000> : vector<16xf32>
    %720 = vector.multi_reduction <maximumf>, %719, %cst_243 [1] : vector<16x16xf32> to vector<16xf32>
    %721 = vector.shape_cast %720 : vector<16xf32> to vector<16x1xf32>
    %722 = vector.broadcast %721 : vector<16x1xf32> to vector<16x16xf32>
    %723 = arith.subf %719, %722 : vector<16x16xf32>
    %724 = math.exp %723 : vector<16x16xf32>
    %cst_244 = arith.constant dense<0.000000e+00> : vector<16xf32>
    %725 = vector.multi_reduction <add>, %724, %cst_244 [1] : vector<16x16xf32> to vector<16xf32>
    %726 = vector.shape_cast %725 : vector<16xf32> to vector<16x1xf32>
    %cst_245 = arith.constant dense<0.000000e+00> : vector<16x8xf32>
    %727 = tpu.matmul %724, %715, %cst_245 {dimension_numbers = #tpu.dot_dimension_numbers<[1], [0], [0], [1], [0, 0, 1, 1], [], []>} : vector<16x16xf32>, vector<16x8xf32>, vector<16x8xf32> -> vector<16x8xf32>
    %728 = tpu.reciprocal %726 {approx = true} : vector<16x1xf32> -> vector<16x1xf32>
    %729 = vector.broadcast %728 : vector<16x1xf32> to vector<16x8xf32>
    %730 = arith.mulf %727, %729 : vector<16x8xf32>
    %731 = vector.extract_strided_slice %685 {offsets = [0, 16], sizes = [16, 8], strides = [1, 1]} : vector<16x32xf32> to vector<16x8xf32>
    %732 = vector.extract_strided_slice %691 {offsets = [0, 16], sizes = [16, 8], strides = [1, 1]} : vector<16x32xf32> to vector<16x8xf32>
    %733 = vector.extract_strided_slice %692 {offsets = [0, 16], sizes = [16, 8], strides = [1, 1]} : vector<16x32xf32> to vector<16x8xf32>
    %cst_246 = arith.constant dense<0.000000e+00> : vector<16x16xf32>
    %734 = tpu.matmul %731, %732, %cst_246 {dimension_numbers = #tpu.dot_dimension_numbers<[1], [1], [0], [0], [0, 0, 1, 0], [], []>} : vector<16x8xf32>, vector<16x8xf32>, vector<16x16xf32> -> vector<16x16xf32>
    %cst_247 = arith.constant 0.353553385 : f32
    %735 = vector.broadcast %cst_247 : f32 to vector<16x16xf32>
    %736 = arith.mulf %734, %735 : vector<16x16xf32>
    %737 = arith.addf %736, %4 : vector<16x16xf32>
    %cst_248 = arith.constant dense<0xFF800000> : vector<16xf32>
    %738 = vector.multi_reduction <maximumf>, %737, %cst_248 [1] : vector<16x16xf32> to vector<16xf32>
    %739 = vector.shape_cast %738 : vector<16xf32> to vector<16x1xf32>
    %740 = vector.broadcast %739 : vector<16x1xf32> to vector<16x16xf32>
    %741 = arith.subf %737, %740 : vector<16x16xf32>
    %742 = math.exp %741 : vector<16x16xf32>
    %cst_249 = arith.constant dense<0.000000e+00> : vector<16xf32>
    %743 = vector.multi_reduction <add>, %742, %cst_249 [1] : vector<16x16xf32> to vector<16xf32>
    %744 = vector.shape_cast %743 : vector<16xf32> to vector<16x1xf32>
    %cst_250 = arith.constant dense<0.000000e+00> : vector<16x8xf32>
    %745 = tpu.matmul %742, %733, %cst_250 {dimension_numbers = #tpu.dot_dimension_numbers<[1], [0], [0], [1], [0, 0, 1, 1], [], []>} : vector<16x16xf32>, vector<16x8xf32>, vector<16x8xf32> -> vector<16x8xf32>
    %746 = tpu.reciprocal %744 {approx = true} : vector<16x1xf32> -> vector<16x1xf32>
    %747 = vector.broadcast %746 : vector<16x1xf32> to vector<16x8xf32>
    %748 = arith.mulf %745, %747 : vector<16x8xf32>
    %749 = vector.extract_strided_slice %685 {offsets = [0, 24], sizes = [16, 8], strides = [1, 1]} : vector<16x32xf32> to vector<16x8xf32>
    %750 = vector.extract_strided_slice %691 {offsets = [0, 24], sizes = [16, 8], strides = [1, 1]} : vector<16x32xf32> to vector<16x8xf32>
    %751 = vector.extract_strided_slice %692 {offsets = [0, 24], sizes = [16, 8], strides = [1, 1]} : vector<16x32xf32> to vector<16x8xf32>
    %cst_251 = arith.constant dense<0.000000e+00> : vector<16x16xf32>
    %752 = tpu.matmul %749, %750, %cst_251 {dimension_numbers = #tpu.dot_dimension_numbers<[1], [1], [0], [0], [0, 0, 1, 0], [], []>} : vector<16x8xf32>, vector<16x8xf32>, vector<16x16xf32> -> vector<16x16xf32>
    %cst_252 = arith.constant 0.353553385 : f32
    %753 = vector.broadcast %cst_252 : f32 to vector<16x16xf32>
    %754 = arith.mulf %752, %753 : vector<16x16xf32>
    %755 = arith.addf %754, %4 : vector<16x16xf32>
    %cst_253 = arith.constant dense<0xFF800000> : vector<16xf32>
    %756 = vector.multi_reduction <maximumf>, %755, %cst_253 [1] : vector<16x16xf32> to vector<16xf32>
    %757 = vector.shape_cast %756 : vector<16xf32> to vector<16x1xf32>
    %758 = vector.broadcast %757 : vector<16x1xf32> to vector<16x16xf32>
    %759 = arith.subf %755, %758 : vector<16x16xf32>
    %760 = math.exp %759 : vector<16x16xf32>
    %cst_254 = arith.constant dense<0.000000e+00> : vector<16xf32>
    %761 = vector.multi_reduction <add>, %760, %cst_254 [1] : vector<16x16xf32> to vector<16xf32>
    %762 = vector.shape_cast %761 : vector<16xf32> to vector<16x1xf32>
    %cst_255 = arith.constant dense<0.000000e+00> : vector<16x8xf32>
    %763 = tpu.matmul %760, %751, %cst_255 {dimension_numbers = #tpu.dot_dimension_numbers<[1], [0], [0], [1], [0, 0, 1, 1], [], []>} : vector<16x16xf32>, vector<16x8xf32>, vector<16x8xf32> -> vector<16x8xf32>
    %764 = tpu.reciprocal %762 {approx = true} : vector<16x1xf32> -> vector<16x1xf32>
    %765 = vector.broadcast %764 : vector<16x1xf32> to vector<16x8xf32>
    %766 = arith.mulf %763, %765 : vector<16x8xf32>
    %767 = tpu.concatenate %712, %730, %748, %766 in 1 : vector<16x8xf32>, vector<16x8xf32>, vector<16x8xf32>, vector<16x8xf32> -> vector<16x32xf32>
    %cst_256 = arith.constant dense<0.000000e+00> : vector<16x32xf32>
    %768 = tpu.matmul %767, %693, %cst_256 {dimension_numbers = #tpu.dot_dimension_numbers<[1], [0], [0], [1], [0, 0, 1, 1], [], []>} : vector<16x32xf32>, vector<32x32xf32>, vector<16x32xf32> -> vector<16x32xf32>
    %769 = vector.broadcast %694 : vector<1x32xf32> to vector<16x32xf32>
    %770 = arith.addf %768, %769 : vector<16x32xf32>
    %771 = arith.addf %680, %770 : vector<16x32xf32>
    %c38 = arith.constant 38 : index
    %c0_257 = arith.constant 0 : index
    %772 = vector.load %arg6[%c38, %c0_257] : memref<47x128xf32, #tpu.memory_space<vmem>>, vector<1x32xf32>
    %c39 = arith.constant 39 : index
    %c0_258 = arith.constant 0 : index
    %773 = vector.load %arg6[%c39, %c0_258] : memref<47x128xf32, #tpu.memory_space<vmem>>, vector<1x32xf32>
    %cst_259 = arith.constant dense<0.000000e+00> : vector<16xf32>
    %774 = vector.multi_reduction <add>, %771, %cst_259 [1] : vector<16x32xf32> to vector<16xf32>
    %775 = vector.shape_cast %774 : vector<16xf32> to vector<16x1xf32>
    %cst_260 = arith.constant 3.200000e+01 : f32
    %776 = vector.broadcast %cst_260 : f32 to vector<16x1xf32>
    %777 = arith.divf %775, %776 : vector<16x1xf32>
    %778 = vector.broadcast %777 : vector<16x1xf32> to vector<16x32xf32>
    %779 = arith.subf %771, %778 : vector<16x32xf32>
    %780 = arith.mulf %779, %779 : vector<16x32xf32>
    %cst_261 = arith.constant dense<0.000000e+00> : vector<16xf32>
    %781 = vector.multi_reduction <add>, %780, %cst_261 [1] : vector<16x32xf32> to vector<16xf32>
    %782 = vector.shape_cast %781 : vector<16xf32> to vector<16x1xf32>
    %cst_262 = arith.constant 3.200000e+01 : f32
    %783 = vector.broadcast %cst_262 : f32 to vector<16x1xf32>
    %784 = arith.divf %782, %783 : vector<16x1xf32>
    %cst_263 = arith.constant 9.99999974E-6 : f32
    %785 = vector.broadcast %cst_263 : f32 to vector<16x1xf32>
    %786 = arith.addf %784, %785 : vector<16x1xf32>
    %787 = math.rsqrt %786 : vector<16x1xf32>
    %788 = vector.broadcast %787 : vector<16x1xf32> to vector<16x32xf32>
    %789 = arith.mulf %779, %788 : vector<16x32xf32>
    %790 = vector.broadcast %772 : vector<1x32xf32> to vector<16x32xf32>
    %791 = arith.mulf %789, %790 : vector<16x32xf32>
    %792 = vector.broadcast %773 : vector<1x32xf32> to vector<16x32xf32>
    %793 = arith.addf %791, %792 : vector<16x32xf32>
    %c736 = arith.constant 736 : index
    %c0_264 = arith.constant 0 : index
    %794 = vector.load %arg5[%c736, %c0_264] : memref<864x128xf32, #tpu.memory_space<vmem>>, vector<32x64xf32>
    %c34 = arith.constant 34 : index
    %c0_265 = arith.constant 0 : index
    %795 = vector.load %arg6[%c34, %c0_265] : memref<47x128xf32, #tpu.memory_space<vmem>>, vector<1x64xf32>
    %c768 = arith.constant 768 : index
    %c0_266 = arith.constant 0 : index
    %796 = vector.load %arg5[%c768, %c0_266] : memref<864x128xf32, #tpu.memory_space<vmem>>, vector<64x32xf32>
    %c35 = arith.constant 35 : index
    %c0_267 = arith.constant 0 : index
    %797 = vector.load %arg6[%c35, %c0_267] : memref<47x128xf32, #tpu.memory_space<vmem>>, vector<1x32xf32>
    %cst_268 = arith.constant dense<0.000000e+00> : vector<16x64xf32>
    %798 = tpu.matmul %793, %794, %cst_268 {dimension_numbers = #tpu.dot_dimension_numbers<[1], [0], [0], [1], [0, 0, 1, 1], [], []>} : vector<16x32xf32>, vector<32x64xf32>, vector<16x64xf32> -> vector<16x64xf32>
    %799 = vector.broadcast %795 : vector<1x64xf32> to vector<16x64xf32>
    %800 = arith.addf %798, %799 : vector<16x64xf32>
    %cst_269 = arith.constant 0.000000e+00 : f32
    %801 = vector.broadcast %cst_269 : f32 to vector<16x64xf32>
    %802 = arith.maximumf %800, %801 : vector<16x64xf32>
    %cst_270 = arith.constant dense<0.000000e+00> : vector<16x32xf32>
    %803 = tpu.matmul %802, %796, %cst_270 {dimension_numbers = #tpu.dot_dimension_numbers<[1], [0], [0], [1], [0, 0, 1, 1], [], []>} : vector<16x64xf32>, vector<64x32xf32>, vector<16x32xf32> -> vector<16x32xf32>
    %804 = vector.broadcast %797 : vector<1x32xf32> to vector<16x32xf32>
    %805 = arith.addf %803, %804 : vector<16x32xf32>
    %806 = arith.addf %793, %805 : vector<16x32xf32>
    %c40 = arith.constant 40 : index
    %c0_271 = arith.constant 0 : index
    %807 = vector.load %arg6[%c40, %c0_271] : memref<47x128xf32, #tpu.memory_space<vmem>>, vector<1x32xf32>
    %c41 = arith.constant 41 : index
    %c0_272 = arith.constant 0 : index
    %808 = vector.load %arg6[%c41, %c0_272] : memref<47x128xf32, #tpu.memory_space<vmem>>, vector<1x32xf32>
    %cst_273 = arith.constant dense<0.000000e+00> : vector<16xf32>
    %809 = vector.multi_reduction <add>, %806, %cst_273 [1] : vector<16x32xf32> to vector<16xf32>
    %810 = vector.shape_cast %809 : vector<16xf32> to vector<16x1xf32>
    %cst_274 = arith.constant 3.200000e+01 : f32
    %811 = vector.broadcast %cst_274 : f32 to vector<16x1xf32>
    %812 = arith.divf %810, %811 : vector<16x1xf32>
    %813 = vector.broadcast %812 : vector<16x1xf32> to vector<16x32xf32>
    %814 = arith.subf %806, %813 : vector<16x32xf32>
    %815 = arith.mulf %814, %814 : vector<16x32xf32>
    %cst_275 = arith.constant dense<0.000000e+00> : vector<16xf32>
    %816 = vector.multi_reduction <add>, %815, %cst_275 [1] : vector<16x32xf32> to vector<16xf32>
    %817 = vector.shape_cast %816 : vector<16xf32> to vector<16x1xf32>
    %cst_276 = arith.constant 3.200000e+01 : f32
    %818 = vector.broadcast %cst_276 : f32 to vector<16x1xf32>
    %819 = arith.divf %817, %818 : vector<16x1xf32>
    %cst_277 = arith.constant 9.99999974E-6 : f32
    %820 = vector.broadcast %cst_277 : f32 to vector<16x1xf32>
    %821 = arith.addf %819, %820 : vector<16x1xf32>
    %822 = math.rsqrt %821 : vector<16x1xf32>
    %823 = vector.broadcast %822 : vector<16x1xf32> to vector<16x32xf32>
    %824 = arith.mulf %814, %823 : vector<16x32xf32>
    %825 = vector.broadcast %807 : vector<1x32xf32> to vector<16x32xf32>
    %826 = arith.mulf %824, %825 : vector<16x32xf32>
    %827 = vector.broadcast %808 : vector<1x32xf32> to vector<16x32xf32>
    %828 = arith.addf %826, %827 : vector<16x32xf32>
    %c44 = arith.constant 44 : index
    %c0_278 = arith.constant 0 : index
    %829 = vector.load %arg6[%c44, %c0_278] : memref<47x128xf32, #tpu.memory_space<vmem>>, vector<1x32xf32>
    %c45 = arith.constant 45 : index
    %c0_279 = arith.constant 0 : index
    %830 = vector.load %arg6[%c45, %c0_279] : memref<47x128xf32, #tpu.memory_space<vmem>>, vector<1x32xf32>
    %cst_280 = arith.constant dense<0.000000e+00> : vector<16xf32>
    %831 = vector.multi_reduction <add>, %828, %cst_280 [1] : vector<16x32xf32> to vector<16xf32>
    %832 = vector.shape_cast %831 : vector<16xf32> to vector<16x1xf32>
    %cst_281 = arith.constant 3.200000e+01 : f32
    %833 = vector.broadcast %cst_281 : f32 to vector<16x1xf32>
    %834 = arith.divf %832, %833 : vector<16x1xf32>
    %835 = vector.broadcast %834 : vector<16x1xf32> to vector<16x32xf32>
    %836 = arith.subf %828, %835 : vector<16x32xf32>
    %837 = arith.mulf %836, %836 : vector<16x32xf32>
    %cst_282 = arith.constant dense<0.000000e+00> : vector<16xf32>
    %838 = vector.multi_reduction <add>, %837, %cst_282 [1] : vector<16x32xf32> to vector<16xf32>
    %839 = vector.shape_cast %838 : vector<16xf32> to vector<16x1xf32>
    %cst_283 = arith.constant 3.200000e+01 : f32
    %840 = vector.broadcast %cst_283 : f32 to vector<16x1xf32>
    %841 = arith.divf %839, %840 : vector<16x1xf32>
    %cst_284 = arith.constant 9.99999974E-6 : f32
    %842 = vector.broadcast %cst_284 : f32 to vector<16x1xf32>
    %843 = arith.addf %841, %842 : vector<16x1xf32>
    %844 = math.rsqrt %843 : vector<16x1xf32>
    %845 = vector.broadcast %844 : vector<16x1xf32> to vector<16x32xf32>
    %846 = arith.mulf %836, %845 : vector<16x32xf32>
    %847 = vector.broadcast %829 : vector<1x32xf32> to vector<16x32xf32>
    %848 = arith.mulf %846, %847 : vector<16x32xf32>
    %849 = vector.broadcast %830 : vector<1x32xf32> to vector<16x32xf32>
    %850 = arith.addf %848, %849 : vector<16x32xf32>
    %c832 = arith.constant 832 : index
    %c0_285 = arith.constant 0 : index
    %851 = vector.load %arg5[%c832, %c0_285] : memref<864x128xf32, #tpu.memory_space<vmem>>, vector<32x128xf32>
    %cst_286 = arith.constant dense<0.000000e+00> : vector<16x128xf32>
    %852 = tpu.matmul %850, %851, %cst_286 {dimension_numbers = #tpu.dot_dimension_numbers<[1], [0], [0], [1], [0, 0, 1, 1], [], []>} : vector<16x32xf32>, vector<32x128xf32>, vector<16x128xf32> -> vector<16x128xf32>
    %c46 = arith.constant 46 : index
    %c0_287 = arith.constant 0 : index
    %853 = vector.load %arg6[%c46, %c0_287] : memref<47x128xf32, #tpu.memory_space<vmem>>, vector<1x128xf32>
    %854 = vector.broadcast %853 : vector<1x128xf32> to vector<16x128xf32>
    %855 = arith.addf %852, %854 : vector<16x128xf32>
    %c0_288 = arith.constant 0 : index
    %c0_289 = arith.constant 0 : index
    %856 = vector.load %arg7[%c0_288, %c0_289] : memref<16x128xf32, #tpu.memory_space<vmem>>, vector<16x128xf32>
    tpu.vector_store %arg7[%c0_288, %c0_289], %855 {strides = array<i32>} : memref<16x128xf32, #tpu.memory_space<vmem>>, vector<16x128xf32>,
    return
  }
}

</mosaic_0001>

<llo_original>
// kernel: tile.33
$region0: #{tile.33}
  #allocation0 [shape = 's32[1]{0}', space=sflag, size = 0x4, scoped, tag = 'scoped memory for tile.33']
  %s0 = inlined_call_operand.vmem [shape: f32[8,8], index: 0, kind: input, shape index: {}]
  %s1 = inlined_call_operand.vmem [shape: f32[2,8,2,8], index: 1, kind: output, shape index: {}]
  // Predicated region
  $region2: #{tile.33} parent=0 // pred_check
    _
  $region3: #{tile.33} parent=0 // pred_check_branch
    %3 = sbr.rel (0) target = $region5
  $region4: #{tile.33} parent=0 // pred_region
    _
  $region5: #{tile.33} parent=0 // pred_fallthru
    _
  %v4 = vld [vmem:[%s0] ss:$0 sm:$0xff]
  %5 = vst [vmem:[%s1] sm:$0x3] %v4
  %s6 = scalar_lea.vmem %s1, 16
  %7 = vst [vmem:[%s6] sm:$0x3] %v4
  %s8 = scalar_lea.vmem %s0, 1
  %v9 = vld [vmem:[%s8] ss:$0 sm:$0xff]
  %s10 = scalar_lea.vmem %s1, 2
  %11 = vst [vmem:[%s10] sm:$0x3] %v9
  %s12 = scalar_lea.vmem %s1, 18
  %13 = vst [vmem:[%s12] sm:$0x3] %v9
  %s14 = scalar_lea.vmem %s0, 2
  %v15 = vld [vmem:[%s14] ss:$0 sm:$0xff]
  %s16 = scalar_lea.vmem %s1, 4
  %17 = vst [vmem:[%s16] sm:$0x3] %v15
  %s18 = scalar_lea.vmem %s1, 20
  %19 = vst [vmem:[%s18] sm:$0x3] %v15
  %s20 = scalar_lea.vmem %s0, 3
  %v21 = vld [vmem:[%s20] ss:$0 sm:$0xff]
  %s22 = scalar_lea.vmem %s1, 6
  %23 = vst [vmem:[%s22] sm:$0x3] %v21
  %s24 = scalar_lea.vmem %s1, 22
  %25 = vst [vmem:[%s24] sm:$0x3] %v21
  %s26 = scalar_lea.vmem %s0, 4
  %v27 = vld [vmem:[%s26] ss:$0 sm:$0xff]
  %s28 = scalar_lea.vmem %s1, 8
  %29 = vst [vmem:[%s28] sm:$0x3] %v27
  %s30 = scalar_lea.vmem %s1, 24
  %31 = vst [vmem:[%s30] sm:$0x3] %v27
  %s32 = scalar_lea.vmem %s0, 5
  %v33 = vld [vmem:[%s32] ss:$0 sm:$0xff]
  %s34 = scalar_lea.vmem %s1, 10
  %35 = vst [vmem:[%s34] sm:$0x3] %v33
  %s36 = scalar_lea.vmem %s1, 26
  %37 = vst [vmem:[%s36] sm:$0x3] %v33
  %s38 = scalar_lea.vmem %s0, 6
  %v39 = vld [vmem:[%s38] ss:$0 sm:$0xff]
  %s40 = scalar_lea.vmem %s1, 12
  %41 = vst [vmem:[%s40] sm:$0x3] %v39
  %s42 = scalar_lea.vmem %s1, 28
  %43 = vst [vmem:[%s42] sm:$0x3] %v39
  %s44 = scalar_lea.vmem %s0, 7
  %v45 = vld [vmem:[%s44] ss:$0 sm:$0xff]
  %s46 = scalar_lea.vmem %s1, 14
  %47 = vst [vmem:[%s46] sm:$0x3] %v45
  %s48 = scalar_lea.vmem %s1, 30
  %49 = vst [vmem:[%s48] sm:$0x3] %v45

// kernel: tile.34
$region0: #{tile.34}
  %s0 = inlined_call_operand.vmem [shape: f32[2,8,2,8], index: 0, kind: input, shape index: {}]
  %s1 = inlined_call_operand.vmem [shape: f32[16,16], index: 1, kind: output, shape index: {}]
  $region1: #{tile.34} parent=0
    #allocation0 [shape = 'u8[65536]{0}', space=vmem, size = 0x10000, scoped, tag = 'scoped mem for input reshape']
    %s3 = sshllo.u32 0, 2
    %s4 = smul.addr 2, 15
    %s5 = scalar_lea.vmem %s0, %s4
    %v6 = vld [vmem:[%s5] sm:%s3]
    %s7 = scalar_lea.vmem [#allocation0], 120
    %8 = vst [vmem:[%s7] sm:%s3] %v6
    %s9 = smul.addr 2, 14
    %s10 = scalar_lea.vmem %s0, %s9
    %v11 = vld [vmem:[%s10] sm:%s3]
    %s12 = scalar_lea.vmem [#allocation0], 112
    %13 = vst [vmem:[%s12] sm:%s3] %v11
    %s14 = smul.addr 2, 13
    %s15 = scalar_lea.vmem %s0, %s14
    %v16 = vld [vmem:[%s15] sm:%s3]
    %s17 = scalar_lea.vmem [#allocation0], 104
    %18 = vst [vmem:[%s17] sm:%s3] %v16
    %s19 = smul.addr 2, 12
    %s20 = scalar_lea.vmem %s0, %s19
    %v21 = vld [vmem:[%s20] sm:%s3]
    %s22 = scalar_lea.vmem [#allocation0], 96
    %23 = vst [vmem:[%s22] sm:%s3] %v21
    %s24 = smul.addr 2, 11
    %s25 = scalar_lea.vmem %s0, %s24
    %v26 = vld [vmem:[%s25] sm:%s3]
    %s27 = scalar_lea.vmem [#allocation0], 88
    %28 = vst [vmem:[%s27] sm:%s3] %v26
    %s29 = smul.addr 2, 10
    %s30 = scalar_lea.vmem %s0, %s29
    %v31 = vld [vmem:[%s30] sm:%s3]
    %s32 = scalar_lea.vmem [#allocation0], 80
    %33 = vst [vmem:[%s32] sm:%s3] %v31
    %s34 = smul.addr 2, 9
    %s35 = scalar_lea.vmem %s0, %s34
    %v36 = vld [vmem:[%s35] sm:%s3]
    %s37 = scalar_lea.vmem [#allocation0], 72
    %38 = vst [vmem:[%s37] sm:%s3] %v36
    %s39 = smul.addr 2, 8
    %s40 = scalar_lea.vmem %s0, %s39
    %v41 = vld [vmem:[%s40] sm:%s3]
    %s42 = scalar_lea.vmem [#allocation0], 64
    %43 = vst [vmem:[%s42] sm:%s3] %v41
    %s44 = smul.addr 2, 7
    %s45 = scalar_lea.vmem %s0, %s44
    %v46 = vld [vmem:[%s45] sm:%s3]
    %s47 = scalar_lea.vmem [#allocation0], 56
    %48 = vst [vmem:[%s47] sm:%s3] %v46
    %s49 = smul.addr 2, 6
    %s50 = scalar_lea.vmem %s0, %s49
    %v51 = vld [vmem:[%s50] sm:%s3]
    %s52 = scalar_lea.vmem [#allocation0], 48
    %53 = vst [vmem:[%s52] sm:%s3] %v51
    %s54 = smul.addr 2, 5
    %s55 = scalar_lea.vmem %s0, %s54
    %v56 = vld [vmem:[%s55] sm:%s3]
    %s57 = scalar_lea.vmem [#allocation0], 40
    %58 = vst [vmem:[%s57] sm:%s3] %v56
    %s59 = smul.addr 2, 4
    %s60 = scalar_lea.vmem %s0, %s59
    %v61 = vld [vmem:[%s60] sm:%s3]
    %s62 = scalar_lea.vmem [#allocation0], 32
    %63 = vst [vmem:[%s62] sm:%s3] %v61
    %s64 = smul.addr 2, 3
    %s65 = scalar_lea.vmem %s0, %s64
    %v66 = vld [vmem:[%s65] sm:%s3]
    %s67 = scalar_lea.vmem [#allocation0], 24
    %68 = vst [vmem:[%s67] sm:%s3] %v66
    %s69 = smul.addr 2, 2
    %s70 = scalar_lea.vmem %s0, %s69
    %v71 = vld [vmem:[%s70] sm:%s3]
    %s72 = scalar_lea.vmem [#allocation0], 16
    %73 = vst [vmem:[%s72] sm:%s3] %v71
    %s74 = scalar_lea.vmem %s0, 2
    %v75 = vld [vmem:[%s74] sm:%s3]
    %s76 = scalar_lea.vmem [#allocation0], 8
    %77 = vst [vmem:[%s76] sm:%s3] %v75
    %v78 = vld [vmem:[%s0] sm:%s3]
    %79 = vst [vmem:[#allocation0] sm:%s3] %v78
    %v80 = vld [vmem:[#allocation0] ss:$8 sm:$0xf]
    %v81 = vld [vmem:[#allocation0] ss:$8 sm:$0xf0]
    %vm82 = vcmask 1047556
    %v83 = vsel %vm82, %v81, %v80
    %vm84 = vcmask 64512
    %85 = vst.msk [vmem:[%s1] sm:$0xff] %vm84, %v83
    %s86 = scalar_lea.vmem [#allocation0], 64
    %v87 = vld [vmem:[%s86] ss:$8 sm:$0xf]
    %s88 = scalar_lea.vmem [#allocation0], 64
    %v89 = vld [vmem:[%s88] ss:$8 sm:$0xf0]
    %vm90 = vcmask 1047556
    %v91 = vsel %vm90, %v89, %v87
    %vm92 = vcmask 64512
    %s93 = scalar_lea.vmem %s1, 8
    %94 = vst.msk [vmem:[%s93] sm:$0xff] %vm92, %v91
    %s95 = scalar_lea.vmem [#allocation0], 1
    %v96 = vld [vmem:[%s95] ss:$8 sm:$0xf]
    %s97 = scalar_lea.vmem [#allocation0], 1
    %v98 = vld [vmem:[%s97] ss:$8 sm:$0xf0]
    %vm99 = vcmask 1047556
    %v100 = vsel %vm99, %v98, %v96
    %101 = vrot.lane.b32.xlu0 %v100, 8
    %v102 = vpop.permute.xlu0 %101
    %vm103 = vcmask 130112
    %104 = vst.msk [vmem:[%s1] sm:$0xff] %vm103, %v102
    %s105 = scalar_lea.vmem [#allocation0], 65
    %v106 = vld [vmem:[%s105] ss:$8 sm:$0xf]
    %s107 = scalar_lea.vmem [#allocation0], 65
    %v108 = vld [vmem:[%s107] ss:$8 sm:$0xf0]
    %vm109 = vcmask 1047556
    %v110 = vsel %vm109, %v108, %v106
    %111 = vrot.lane.b32.xlu0 %v110, 8
    %v112 = vpop.permute.xlu0 %111
    %vm113 = vcmask 130112
    %s114 = scalar_lea.vmem %s1, 8
    %115 = vst.msk [vmem:[%s114] sm:$0xff] %vm113, %v112

// kernel: seq2seq_forward.1
$region0: #{seq2seq_forward.1}
  #allocation0 [shape = 'u32[]', space=smem, size = 0x4, offset = 0x4, fixed_abs, tag = 'smem constant byte address 0x4 - core index']
  #allocation1 [shape = 'u32[144,128]{1,0:T(1,128)}', space=vmem, size = 0x12000, scoped, tag = 'internal scratch']
  %s0 = inlined_call_operand.vmem [shape: f32[16,32], index: 0, kind: input, shape index: {}]
  %s1 = inlined_call_operand.vmem [shape: f32[16,32], index: 1, kind: input, shape index: {}]
  %s2 = inlined_call_operand.vmem [shape: f32[16,16], index: 2, kind: input, shape index: {}]
  %s3 = inlined_call_operand.vmem [shape: f32[16,16], index: 3, kind: input, shape index: {}]
  %s4 = inlined_call_operand.vmem [shape: f32[16,16], index: 4, kind: input, shape index: {}]
  %s5 = inlined_call_operand.vmem [shape: f32[864,128], index: 5, kind: input, shape index: {}]
  %s6 = inlined_call_operand.vmem [shape: f32[47,128], index: 6, kind: input, shape index: {}]
  %s7 = inlined_call_operand.vmem [shape: f32[16,128], index: 7, kind: output, shape index: {}]
  %s8 = sld [smem:[#allocation0]]
  $region38: #{seq2seq_forward.1} parent=0
    _
  %s10 = ssub.s32 1, %s8
  %s11 = scalar_select 0, %s10, %s8
  // Predicated region
  $region2: #{seq2seq_forward.1} parent=0 // pred_check
    _
  $region3: #{seq2seq_forward.1} parent=0 // pred_check_branch
    %13 = sbr.rel (0) target = $region5
  $region4: #{seq2seq_forward.1} parent=0 // pred_region
    _
  $region5: #{seq2seq_forward.1} parent=0 // pred_fallthru
    _
  // Predicated region
  $region6: #{seq2seq_forward.1} parent=0 // pred_check
    _
  $region7: #{seq2seq_forward.1} parent=0 // pred_check_branch
    %15 = sbr.rel (0) target = $region9
  $region8: #{seq2seq_forward.1} parent=0 // pred_region
    _
  $region9: #{seq2seq_forward.1} parent=0 // pred_fallthru
    _
  // Predicated region
  $region10: #{seq2seq_forward.1} parent=0 // pred_check
    _
  $region11: #{seq2seq_forward.1} parent=0 // pred_check_branch
    %17 = sbr.rel (0) target = $region13
  $region12: #{seq2seq_forward.1} parent=0 // pred_region
    _
  $region13: #{seq2seq_forward.1} parent=0 // pred_fallthru
    _
  // Predicated region
  $region14: #{seq2seq_forward.1} parent=0 // pred_check
    _
  $region15: #{seq2seq_forward.1} parent=0 // pred_check_branch
    %19 = sbr.rel (0) target = $region17
  $region16: #{seq2seq_forward.1} parent=0 // pred_region
    _
  $region17: #{seq2seq_forward.1} parent=0 // pred_fallthru
    _
  // Predicated region
  $region18: #{seq2seq_forward.1} parent=0 // pred_check
    _
  $region19: #{seq2seq_forward.1} parent=0 // pred_check_branch
    %21 = sbr.rel (0) target = $region21
  $region20: #{seq2seq_forward.1} parent=0 // pred_region
    _
  $region21: #{seq2seq_forward.1} parent=0 // pred_fallthru
    _
  // Predicated region
  $region22: #{seq2seq_forward.1} parent=0 // pred_check
    _
  $region23: #{seq2seq_forward.1} parent=0 // pred_check_branch
    %23 = sbr.rel (0) target = $region25
  $region24: #{seq2seq_forward.1} parent=0 // pred_region
    _
  $region25: #{seq2seq_forward.1} parent=0 // pred_fallthru
    _
  // Predicated region
  $region26: #{seq2seq_forward.1} parent=0 // pred_check
    _
  $region27: #{seq2seq_forward.1} parent=0 // pred_check_branch
    %25 = sbr.rel (0) target = $region29
  $region28: #{seq2seq_forward.1} parent=0 // pred_region
    _
  $region29: #{seq2seq_forward.1} parent=0 // pred_fallthru
    _
  %v26 = vld [vmem:[%s0] sm:$0xff]
  %v27 = vld [vmem:[%s0 + $0x8] sm:$0xff]
  %v28 = vld [vmem:[%s1] sm:$0xff]
  %v29 = vld [vmem:[%s1 + $0x8] sm:$0xff]
  %v30 = vld [vmem:[%s2] sm:$0xff]
  %v31 = vld [vmem:[%s2 + $0x8] sm:$0xff]
  %v32 = vld [vmem:[%s3] sm:$0xff]
  %v33 = vld [vmem:[%s3 + $0x8] sm:$0xff]
  %v34 = vld [vmem:[%s4] sm:$0xff]
  %v35 = vld [vmem:[%s4 + $0x8] sm:$0xff]
  %v36 = vld [vmem:[%s5] sm:$0xff]
  %v37 = vld [vmem:[%s5 + $0x8] sm:$0xff]
  %v38 = vld [vmem:[%s5 + $0x10] sm:$0xff]
  %v39 = vld [vmem:[%s5 + $0x18] sm:$0xff]
  %v40 = vld [vmem:[%s6] sm:$0x1]
  %v41 = vlaneseq
  %v42 = vshrl.u32 %v41, 7
  %v43 = vsub.s32 0, %v42
  %v44 = vrot.slane %v40, %v43
  %vm45 = vcmask 261120
  %v47 = vsel %vm45, %v26, 0
  %v50 = vsel %vm45, %v27, 0
  %52 = vmatprep.subr.mxu0 0.0
  %53 = vmatpush1.msra.mxu0 %v36
  %54 = vmatprep.subr.mxu0 0.0
  %55 = vmatpush1.msra.mxu0 %v37
  %56 = vmatprep.subr.mxu0 0.0
  %57 = vmatpush1.msra.mxu0 %v38
  %58 = vmatprep.subr.mxu0 0.0
  %59 = vmatpush1.msra.mxu0 %v39
  %60 = vmatprep.subr.mxu0 0.0
  %61 = vmatpush1.msra.mxu0 0.0
  %62 = vmatprep.subr.mxu0 0.0
  %63 = vmatpush1.msra.mxu0 0.0
  %64 = vmatprep.subr.mxu0 0.0
  %65 = vmatpush1.msra.mxu0 0.0
  %66 = vmatprep.subr.mxu0 0.0
  %67 = vmatpush1.msra.mxu0 0.0
  %68 = vmatprep.subr.mxu0 0.0
  %69 = vmatpush1.msra.mxu0 0.0
  %70 = vmatprep.subr.mxu0 0.0
  %71 = vmatpush1.msra.mxu0 0.0
  %72 = vmatprep.subr.mxu0 0.0
  %73 = vmatpush1.msra.mxu0 0.0
  %74 = vmatprep.subr.mxu0 0.0
  %75 = vmatpush1.msra.mxu0 0.0
  %76 = vmatprep.subr.mxu0 0.0
  %77 = vmatpush1.msra.mxu0 0.0
  %78 = vmatprep.subr.mxu0 0.0
  %79 = vmatpush1.msra.mxu0 0.0
  %80 = vmatprep.subr.mxu0 0.0
  %81 = vmatpush1.msra.mxu0 0.0
  %82 = vmatprep.subr.mxu0 0.0
  %83 = vmatpush1.msra.mxu0 0.0
  %84 = vmatprep.subr.mxu0 0.0
  %85 = vmatpush1.msra.mxu0 0.0
  %86 = vmatprep.subr.mxu0 0.0
  %87 = vmatpush1.msra.mxu0 0.0
  %88 = vmatprep.subr.mxu0 0.0
  %89 = vmatpush1.msra.mxu0 0.0
  %90 = vmatprep.subr.mxu0 0.0
  %91 = vmatpush1.msra.mxu0 0.0
  %92 = vmatprep.subr.mxu0 0.0
  %93 = vmatpush1.msra.mxu0 0.0
  %94 = vmatprep.subr.mxu0 0.0
  %95 = vmatpush1.msra.mxu0 0.0
  %96 = vmatprep.subr.mxu0 0.0
  %97 = vmatpush1.msra.mxu0 0.0
  %98 = vmatprep.subr.mxu0 0.0
  %99 = vmatpush1.msra.mxu0 0.0
  %100 = vmatprep.subr.mxu0 0.0
  %101 = vmatpush1.msra.mxu0 0.0
  %102 = vmatprep.subr.mxu0 0.0
  %103 = vmatpush1.msra.mxu0 0.0
  %104 = vmatprep.subr.mxu0 0.0
  %105 = vmatpush1.msra.mxu0 0.0
  %106 = vmatprep.subr.mxu0 0.0
  %107 = vmatpush1.msra.mxu0 0.0
  %108 = vmatprep.subr.mxu0 0.0
  %109 = vmatpush1.msra.mxu0 0.0
  %110 = vmatprep.subr.mxu0 0.0
  %111 = vmatpush1.msra.mxu0 0.0
  %112 = vmatprep.subr.mxu0 0.0
  %113 = vmatpush1.msra.mxu0 0.0
  %114 = vmatprep.subr.mxu0 0.0
  %115 = vmatpush1.msra.mxu0 0.0
  %116 = vmatprep.mubr.f32.mxu0 0.0
  %117 = vmatmul.mubr.f32.gmra.mrb[0].mxu0 %v47
  %v118 = vpop.f32.mrb[0].mxu0
  %v119 = vadd.f32 %v44, %v118
  %v120 = vpop.f32.mrb[0].mxu0
  %121 = vmatprep.mubr.f32.mxu0 0.0
  %122 = vmatmul.mubr.f32.gmra.mrb[0].mxu0 %v50
  %v123 = vpop.f32.mrb[0].mxu0
  %v124 = vadd.f32 %v44, %v123
  %v125 = vpop.f32.mrb[0].mxu0
  %126 = vdwg.mxu0
  %v127 = vld [vmem:[%s5 + $0x20] sm:$0xff]
  %v128 = vld [vmem:[%s5 + $0x28] sm:$0xff]
  %v129 = vld [vmem:[%s5 + $0x30] sm:$0xff]
  %v130 = vld [vmem:[%s5 + $0x38] sm:$0xff]
  %v131 = vld [vmem:[%s6 + $0x1] sm:$0x1]
  %134 = vrot.lane.b32.xlu0 %v119, 96
  %v135 = vpop.permute.xlu0 %134
  %136 = vrot.lane.b32.xlu0 %v124, 96
  %v137 = vpop.permute.xlu0 %136
  %vm138 = vcmask 64512
  %v139 = vsel %vm138, %v119, 0
  %v141 = vsel %vm138, %v124, 0
  %v143 = vsel %vm138, %v135, 0
  %v145 = vsel %vm138, %v137, 0
  %147 = vmatprep.subr.mxu0 0.0
  %148 = vmatpush1.xpose.msra.mxu0 %v143
  %149 = vmatprep.subr.mxu0 0.0
  %150 = vmatpush1.xpose.msra.mxu0 %v145
  %151 = vmatprep.subr.mxu0 0.0
  %152 = vmatpush1.xpose.msra.mxu0 0.0
  %153 = vmatprep.subr.mxu0 0.0
  %154 = vmatpush1.xpose.msra.mxu0 0.0
  %155 = vmatprep.subr.mxu0 0.0
  %156 = vmatpush1.xpose.msra.mxu0 0.0
  %157 = vmatprep.subr.mxu0 0.0
  %158 = vmatpush1.xpose.msra.mxu0 0.0
  %159 = vmatprep.subr.mxu0 0.0
  %160 = vmatpush1.xpose.msra.mxu0 0.0
  %161 = vmatprep.subr.mxu0 0.0
  %162 = vmatpush1.xpose.msra.mxu0 0.0
  %163 = vmatprep.subr.mxu0 0.0
  %164 = vmatpush1.xpose.msra.mxu0 0.0
  %165 = vmatprep.subr.mxu0 0.0
  %166 = vmatpush1.xpose.msra.mxu0 0.0
  %167 = vmatprep.subr.mxu0 0.0
  %168 = vmatpush1.xpose.msra.mxu0 0.0
  %169 = vmatprep.subr.mxu0 0.0
  %170 = vmatpush1.xpose.msra.mxu0 0.0
  %171 = vmatprep.subr.mxu0 0.0
  %172 = vmatpush1.xpose.msra.mxu0 0.0
  %173 = vmatprep.subr.mxu0 0.0
  %174 = vmatpush1.xpose.msra.mxu0 0.0
  %175 = vmatprep.subr.mxu0 0.0
  %176 = vmatpush1.xpose.msra.mxu0 0.0
  %177 = vmatprep.subr.mxu0 0.0
  %178 = vmatpush1.xpose.msra.mxu0 0.0
  %179 = vmatprep.subr.mxu0 0.0
  %180 = vmatpush1.xpose.msra.mxu0 0.0
  %181 = vmatprep.subr.mxu0 0.0
  %182 = vmatpush1.xpose.msra.mxu0 0.0
  %183 = vmatprep.subr.mxu0 0.0
  %184 = vmatpush1.xpose.msra.mxu0 0.0
  %185 = vmatprep.subr.mxu0 0.0
  %186 = vmatpush1.xpose.msra.mxu0 0.0
  %187 = vmatprep.subr.mxu0 0.0
  %188 = vmatpush1.xpose.msra.mxu0 0.0
  %189 = vmatprep.subr.mxu0 0.0
  %190 = vmatpush1.xpose.msra.mxu0 0.0
  %191 = vmatprep.subr.mxu0 0.0
  %192 = vmatpush1.xpose.msra.mxu0 0.0
  %193 = vmatprep.subr.mxu0 0.0
  %194 = vmatpush1.xpose.msra.mxu0 0.0
  %195 = vmatprep.subr.mxu0 0.0
  %196 = vmatpush1.xpose.msra.mxu0 0.0
  %197 = vmatprep.subr.mxu0 0.0
  %198 = vmatpush1.xpose.msra.mxu0 0.0
  %199 = vmatprep.subr.mxu0 0.0
  %200 = vmatpush1.xpose.msra.mxu0 0.0
  %201 = vmatprep.subr.mxu0 0.0
  %202 = vmatpush1.xpose.msra.mxu0 0.0
  %203 = vmatprep.subr.mxu0 0.0
  %204 = vmatpush1.xpose.msra.mxu0 0.0
  %205 = vmatprep.subr.mxu0 0.0
  %206 = vmatpush1.xpose.msra.mxu0 0.0
  %207 = vmatprep.subr.mxu0 0.0
  %208 = vmatpush1.xpose.msra.mxu0 0.0
  %209 = vmatprep.subr.mxu0 0.0
  %210 = vmatpush1.xpose.msra.mxu0 0.0
  %211 = vmatprep.mubr.f32.mxu0 0.0
  %212 = vmatmul.mubr.f32.gmra.mrb[0].mxu0 %v139
  %v213 = vpop.f32.mrb[0].mxu0
  %v214 = vadd.f32 0.0, %v213
  %v215 = vpop.f32.mrb[0].mxu0
  %216 = vmatprep.mubr.f32.mxu0 0.0
  %217 = vmatmul.mubr.f32.gmra.mrb[0].mxu0 %v141
  %v218 = vpop.f32.mrb[0].mxu0
  %v219 = vadd.f32 0.0, %v218
  %v220 = vpop.f32.mrb[0].mxu0
  %221 = vdwg.mxu0
  %v222 = vmul.f32 %v214, 0.35355338
  %v223 = vmul.f32 %v219, 0.35355338
  %v224 = vadd.f32 %v222, %v30
  %v225 = vadd.f32 %v223, %v31
  %vm226 = vcmask 130048
  %v227 = vsel %vm226, %v224, -inf
  %228 = vmax.xlane.f32.xlu0 %v227
  %v229 = vpop.xlane.xlu0 %228
  %v230 = vsel %vm226, %v225, -inf
  %231 = vmax.xlane.f32.xlu0 %v230
  %v232 = vpop.xlane.xlu0 %231
  %v233 = vsub.f32 %v224, %v229
  %v234 = vsub.f32 %v225, %v232
  %v235 = vmul.f32 %v233, 1.442695
  %v236 = vpow.pop %v235
  %v237 = vmul.f32 %v234, 1.442695
  %v238 = vpow.pop %v237
  %v239 = vsel %vm226, %v236, 0.0
  %240 = vadd.xlane.f32.xlu0 %v239
  %v241 = vpop.xlane.xlu0 %240
  %v242 = vsel %vm226, %v238, 0.0
  %243 = vadd.xlane.f32.xlu0 %v242
  %v244 = vpop.xlane.xlu0 %243
  %245 = vrot.lane.b32.xlu0 %v119, 64
  %v246 = vpop.permute.xlu0 %245
  %247 = vrot.lane.b32.xlu0 %v124, 64
  %v248 = vpop.permute.xlu0 %247
  %v252 = vsel %vm226, %v236, 0
  %v255 = vsel %vm226, %v238, 0
  %257 = vmatprep.subr.mxu0 0.0
  %258 = vmatpush1.msra.mxu0 %v246
  %259 = vmatprep.subr.mxu0 0.0
  %260 = vmatpush1.msra.mxu0 %v248
  %261 = vmatprep.subr.mxu0 0.0
  %262 = vmatpush1.msra.mxu0 0.0
  %263 = vmatprep.subr.mxu0 0.0
  %264 = vmatpush1.msra.mxu0 0.0
  %265 = vmatprep.subr.mxu0 0.0
  %266 = vmatpush1.msra.mxu0 0.0
  %267 = vmatprep.subr.mxu0 0.0
  %268 = vmatpush1.msra.mxu0 0.0
  %269 = vmatprep.subr.mxu0 0.0
  %270 = vmatpush1.msra.mxu0 0.0
  %271 = vmatprep.subr.mxu0 0.0
  %272 = vmatpush1.msra.mxu0 0.0
  %273 = vmatprep.subr.mxu0 0.0
  %274 = vmatpush1.msra.mxu0 0.0
  %275 = vmatprep.subr.mxu0 0.0
  %276 = vmatpush1.msra.mxu0 0.0
  %277 = vmatprep.subr.mxu0 0.0
  %278 = vmatpush1.msra.mxu0 0.0
  %279 = vmatprep.subr.mxu0 0.0
  %280 = vmatpush1.msra.mxu0 0.0
  %281 = vmatprep.subr.mxu0 0.0
  %282 = vmatpush1.msra.mxu0 0.0
  %283 = vmatprep.subr.mxu0 0.0
  %284 = vmatpush1.msra.mxu0 0.0
  %285 = vmatprep.subr.mxu0 0.0
  %286 = vmatpush1.msra.mxu0 0.0
  %287 = vmatprep.subr.mxu0 0.0
  %288 = vmatpush1.msra.mxu0 0.0
  %289 = vmatprep.subr.mxu0 0.0
  %290 = vmatpush1.msra.mxu0 0.0
  %291 = vmatprep.subr.mxu0 0.0
  %292 = vmatpush1.msra.mxu0 0.0
  %293 = vmatprep.subr.mxu0 0.0
  %294 = vmatpush1.msra.mxu0 0.0
  %295 = vmatprep.subr.mxu0 0.0
  %296 = vmatpush1.msra.mxu0 0.0
  %297 = vmatprep.subr.mxu0 0.0
  %298 = vmatpush1.msra.mxu0 0.0
  %299 = vmatprep.subr.mxu0 0.0
  %300 = vmatpush1.msra.mxu0 0.0
  %301 = vmatprep.subr.mxu0 0.0
  %302 = vmatpush1.msra.mxu0 0.0
  %303 = vmatprep.subr.mxu0 0.0
  %304 = vmatpush1.msra.mxu0 0.0
  %305 = vmatprep.subr.mxu0 0.0
  %306 = vmatpush1.msra.mxu0 0.0
  %307 = vmatprep.subr.mxu0 0.0
  %308 = vmatpush1.msra.mxu0 0.0
  %309 = vmatprep.subr.mxu0 0.0
  %310 = vmatpush1.msra.mxu0 0.0
  %311 = vmatprep.subr.mxu0 0.0
  %312 = vmatpush1.msra.mxu0 0.0
  %313 = vmatprep.subr.mxu0 0.0
  %314 = vmatpush1.msra.mxu0 0.0
  %315 = vmatprep.subr.mxu0 0.0
  %316 = vmatpush1.msra.mxu0 0.0
  %317 = vmatprep.subr.mxu0 0.0
  %318 = vmatpush1.msra.mxu0 0.0
  %319 = vmatprep.subr.mxu0 0.0
  %320 = vmatpush1.msra.mxu0 0.0
  %321 = vmatprep.mubr.f32.mxu0 0.0
  %322 = vmatmul.mubr.f32.gmra.mrb[0].mxu0 %v252
  %v323 = vpop.f32.mrb[0].mxu0
  %v324 = vadd.f32 0.0, %v323
  %v325 = vpop.f32.mrb[0].mxu0
  %326 = vmatprep.mubr.f32.mxu0 0.0
  %327 = vmatmul.mubr.f32.gmra.mrb[0].mxu0 %v255
  %v328 = vpop.f32.mrb[0].mxu0
  %v329 = vadd.f32 0.0, %v328
  %v330 = vpop.f32.mrb[0].mxu0
  %331 = vdwg.mxu0
  %v332 = vrcp.pop %v241
  %v333 = vrcp.pop %v244
  %v334 = vmul.f32 %v324, %v332
  %v335 = vmul.f32 %v329, %v333
  %336 = vrot.lane.b32.xlu0 %v119, 120
  %v337 = vpop.permute.xlu0 %336
  %338 = vrot.lane.b32.xlu0 %v124, 120
  %v339 = vpop.permute.xlu0 %338
  %340 = vrot.lane.b32.xlu0 %v119, 88
  %v341 = vpop.permute.xlu0 %340
  %342 = vrot.lane.b32.xlu0 %v124, 88
  %v343 = vpop.permute.xlu0 %342
  %v344 = vsel %vm138, %v337, 0
  %v346 = vsel %vm138, %v339, 0
  %v348 = vsel %vm138, %v341, 0
  %v350 = vsel %vm138, %v343, 0
  %352 = vmatprep.subr.mxu0 0.0
  %353 = vmatpush1.xpose.msra.mxu0 %v348
  %354 = vmatprep.subr.mxu0 0.0
  %355 = vmatpush1.xpose.msra.mxu0 %v350
  %356 = vmatprep.subr.mxu0 0.0
  %357 = vmatpush1.xpose.msra.mxu0 0.0
  %358 = vmatprep.subr.mxu0 0.0
  %359 = vmatpush1.xpose.msra.mxu0 0.0
  %360 = vmatprep.subr.mxu0 0.0
  %361 = vmatpush1.xpose.msra.mxu0 0.0
  %362 = vmatprep.subr.mxu0 0.0
  %363 = vmatpush1.xpose.msra.mxu0 0.0
  %364 = vmatprep.subr.mxu0 0.0
  %365 = vmatpush1.xpose.msra.mxu0 0.0
  %366 = vmatprep.subr.mxu0 0.0
  %367 = vmatpush1.xpose.msra.mxu0 0.0
  %368 = vmatprep.subr.mxu0 0.0
  %369 = vmatpush1.xpose.msra.mxu0 0.0
  %370 = vmatprep.subr.mxu0 0.0
  %371 = vmatpush1.xpose.msra.mxu0 0.0
  %372 = vmatprep.subr.mxu0 0.0
  %373 = vmatpush1.xpose.msra.mxu0 0.0
  %374 = vmatprep.subr.mxu0 0.0
  %375 = vmatpush1.xpose.msra.mxu0 0.0
  %376 = vmatprep.subr.mxu0 0.0
  %377 = vmatpush1.xpose.msra.mxu0 0.0
  %378 = vmatprep.subr.mxu0 0.0
  %379 = vmatpush1.xpose.msra.mxu0 0.0
  %380 = vmatprep.subr.mxu0 0.0
  %381 = vmatpush1.xpose.msra.mxu0 0.0
  %382 = vmatprep.subr.mxu0 0.0
  %383 = vmatpush1.xpose.msra.mxu0 0.0
  %384 = vmatprep.subr.mxu0 0.0
  %385 = vmatpush1.xpose.msra.mxu0 0.0
  %386 = vmatprep.subr.mxu0 0.0
  %387 = vmatpush1.xpose.msra.mxu0 0.0
  %388 = vmatprep.subr.mxu0 0.0
  %389 = vmatpush1.xpose.msra.mxu0 0.0
  %390 = vmatprep.subr.mxu0 0.0
  %391 = vmatpush1.xpose.msra.mxu0 0.0
  %392 = vmatprep.subr.mxu0 0.0
  %393 = vmatpush1.xpose.msra.mxu0 0.0
  %394 = vmatprep.subr.mxu0 0.0
  %395 = vmatpush1.xpose.msra.mxu0 0.0
  %396 = vmatprep.subr.mxu0 0.0
  %397 = vmatpush1.xpose.msra.mxu0 0.0
  %398 = vmatprep.subr.mxu0 0.0
  %399 = vmatpush1.xpose.msra.mxu0 0.0
  %400 = vmatprep.subr.mxu0 0.0
  %401 = vmatpush1.xpose.msra.mxu0 0.0
  %402 = vmatprep.subr.mxu0 0.0
  %403 = vmatpush1.xpose.msra.mxu0 0.0
  %404 = vmatprep.subr.mxu0 0.0
  %405 = vmatpush1.xpose.msra.mxu0 0.0
  %406 = vmatprep.subr.mxu0 0.0
  %407 = vmatpush1.xpose.msra.mxu0 0.0
  %408 = vmatprep.subr.mxu0 0.0
  %409 = vmatpush1.xpose.msra.mxu0 0.0
  %410 = vmatprep.subr.mxu0 0.0
  %411 = vmatpush1.xpose.msra.mxu0 0.0
  %412 = vmatprep.subr.mxu0 0.0
  %413 = vmatpush1.xpose.msra.mxu0 0.0
  %414 = vmatprep.subr.mxu0 0.0
  %415 = vmatpush1.xpose.msra.mxu0 0.0
  %416 = vmatprep.mubr.f32.mxu0 0.0
  %417 = vmatmul.mubr.f32.gmra.mrb[0].mxu0 %v344
  %v418 = vpop.f32.mrb[0].mxu0
  %v419 = vadd.f32 0.0, %v418
  %v420 = vpop.f32.mrb[0].mxu0
  %421 = vmatprep.mubr.f32.mxu0 0.0
  %422 = vmatmul.mubr.f32.gmra.mrb[0].mxu0 %v346
  %v423 = vpop.f32.mrb[0].mxu0
  %v424 = vadd.f32 0.0, %v423
  %v425 = vpop.f32.mrb[0].mxu0
  %426 = vdwg.mxu0
  %v427 = vmul.f32 %v419, 0.35355338
  %v428 = vmul.f32 %v424, 0.35355338
  %v429 = vadd.f32 %v427, %v30
  %v430 = vadd.f32 %v428, %v31
  %v431 = vsel %vm226, %v429, -inf
  %432 = vmax.xlane.f32.xlu0 %v431
  %v433 = vpop.xlane.xlu0 %432
  %v434 = vsel %vm226, %v430, -inf
  %435 = vmax.xlane.f32.xlu0 %v434
  %v436 = vpop.xlane.xlu0 %435
  %v437 = vsub.f32 %v429, %v433
  %v438 = vsub.f32 %v430, %v436
  %v439 = vmul.f32 %v437, 1.442695
  %v440 = vpow.pop %v439
  %v441 = vmul.f32 %v438, 1.442695
  %v442 = vpow.pop %v441
  %v443 = vsel %vm226, %v440, 0.0
  %444 = vadd.xlane.f32.xlu0 %v443
  %v445 = vpop.xlane.xlu0 %444
  %v446 = vsel %vm226, %v442, 0.0
  %447 = vadd.xlane.f32.xlu0 %v446
  %v448 = vpop.xlane.xlu0 %447
  %449 = vrot.lane.b32.xlu0 %v119, 56
  %v450 = vpop.permute.xlu0 %449
  %451 = vrot.lane.b32.xlu0 %v124, 56
  %v452 = vpop.permute.xlu0 %451
  %v456 = vsel %vm226, %v440, 0
  %v459 = vsel %vm226, %v442, 0
  %461 = vmatprep.subr.mxu0 0.0
  %462 = vmatpush1.msra.mxu0 %v450
  %463 = vmatprep.subr.mxu0 0.0
  %464 = vmatpush1.msra.mxu0 %v452
  %465 = vmatprep.subr.mxu0 0.0
  %466 = vmatpush1.msra.mxu0 0.0
  %467 = vmatprep.subr.mxu0 0.0
  %468 = vmatpush1.msra.mxu0 0.0
  %469 = vmatprep.subr.mxu0 0.0
  %470 = vmatpush1.msra.mxu0 0.0
  %471 = vmatprep.subr.mxu0 0.0
  %472 = vmatpush1.msra.mxu0 0.0
  %473 = vmatprep.subr.mxu0 0.0
  %474 = vmatpush1.msra.mxu0 0.0
  %475 = vmatprep.subr.mxu0 0.0
  %476 = vmatpush1.msra.mxu0 0.0
  %477 = vmatprep.subr.mxu0 0.0
  %478 = vmatpush1.msra.mxu0 0.0
  %479 = vmatprep.subr.mxu0 0.0
  %480 = vmatpush1.msra.mxu0 0.0
  %481 = vmatprep.subr.mxu0 0.0
  %482 = vmatpush1.msra.mxu0 0.0
  %483 = vmatprep.subr.mxu0 0.0
  %484 = vmatpush1.msra.mxu0 0.0
  %485 = vmatprep.subr.mxu0 0.0
  %486 = vmatpush1.msra.mxu0 0.0
  %487 = vmatprep.subr.mxu0 0.0
  %488 = vmatpush1.msra.mxu0 0.0
  %489 = vmatprep.subr.mxu0 0.0
  %490 = vmatpush1.msra.mxu0 0.0
  %491 = vmatprep.subr.mxu0 0.0
  %492 = vmatpush1.msra.mxu0 0.0
  %493 = vmatprep.subr.mxu0 0.0
  %494 = vmatpush1.msra.mxu0 0.0
  %495 = vmatprep.subr.mxu0 0.0
  %496 = vmatpush1.msra.mxu0 0.0
  %497 = vmatprep.subr.mxu0 0.0
  %498 = vmatpush1.msra.mxu0 0.0
  %499 = vmatprep.subr.mxu0 0.0
  %500 = vmatpush1.msra.mxu0 0.0
  %501 = vmatprep.subr.mxu0 0.0
  %502 = vmatpush1.msra.mxu0 0.0
  %503 = vmatprep.subr.mxu0 0.0
  %504 = vmatpush1.msra.mxu0 0.0
  %505 = vmatprep.subr.mxu0 0.0
  %506 = vmatpush1.msra.mxu0 0.0
  %507 = vmatprep.subr.mxu0 0.0
  %508 = vmatpush1.msra.mxu0 0.0
  %509 = vmatprep.subr.mxu0 0.0
  %510 = vmatpush1.msra.mxu0 0.0
  %511 = vmatprep.subr.mxu0 0.0
  %512 = vmatpush1.msra.mxu0 0.0
  %513 = vmatprep.subr.mxu0 0.0
  %514 = vmatpush1.msra.mxu0 0.0
  %515 = vmatprep.subr.mxu0 0.0
  %516 = vmatpush1.msra.mxu0 0.0
  %517 = vmatprep.subr.mxu0 0.0
  %518 = vmatpush1.msra.mxu0 0.0
  %519 = vmatprep.subr.mxu0 0.0
  %520 = vmatpush1.msra.mxu0 0.0
  %521 = vmatprep.subr.mxu0 0.0
  %522 = vmatpush1.msra.mxu0 0.0
  %523 = vmatprep.subr.mxu0 0.0
  %524 = vmatpush1.msra.mxu0 0.0
  %525 = vmatprep.mubr.f32.mxu0 0.0
  %526 = vmatmul.mubr.f32.gmra.mrb[0].mxu0 %v456
  %v527 = vpop.f32.mrb[0].mxu0
  %v528 = vadd.f32 0.0, %v527
  %v529 = vpop.f32.mrb[0].mxu0
  %530 = vmatprep.mubr.f32.mxu0 0.0
  %531 = vmatmul.mubr.f32.gmra.mrb[0].mxu0 %v459
  %v532 = vpop.f32.mrb[0].mxu0
  %v533 = vadd.f32 0.0, %v532
  %v534 = vpop.f32.mrb[0].mxu0
  %535 = vdwg.mxu0
  %v536 = vrcp.pop %v445
  %v537 = vrcp.pop %v448
  %v538 = vmul.f32 %v528, %v536
  %v539 = vmul.f32 %v533, %v537
  %540 = vrot.lane.b32.xlu0 %v119, 112
  %v541 = vpop.permute.xlu0 %540
  %542 = vrot.lane.b32.xlu0 %v124, 112
  %v543 = vpop.permute.xlu0 %542
  %544 = vrot.lane.b32.xlu0 %v119, 80
  %v545 = vpop.permute.xlu0 %544
  %546 = vrot.lane.b32.xlu0 %v124, 80
  %v547 = vpop.permute.xlu0 %546
  %v548 = vsel %vm138, %v541, 0
  %v550 = vsel %vm138, %v543, 0
  %v552 = vsel %vm138, %v545, 0
  %v554 = vsel %vm138, %v547, 0
  %556 = vmatprep.subr.mxu0 0.0
  %557 = vmatpush1.xpose.msra.mxu0 %v552
  %558 = vmatprep.subr.mxu0 0.0
  %559 = vmatpush1.xpose.msra.mxu0 %v554
  %560 = vmatprep.subr.mxu0 0.0
  %561 = vmatpush1.xpose.msra.mxu0 0.0
  %562 = vmatprep.subr.mxu0 0.0
  %563 = vmatpush1.xpose.msra.mxu0 0.0
  %564 = vmatprep.subr.mxu0 0.0
  %565 = vmatpush1.xpose.msra.mxu0 0.0
  %566 = vmatprep.subr.mxu0 0.0
  %567 = vmatpush1.xpose.msra.mxu0 0.0
  %568 = vmatprep.subr.mxu0 0.0
  %569 = vmatpush1.xpose.msra.mxu0 0.0
  %570 = vmatprep.subr.mxu0 0.0
  %571 = vmatpush1.xpose.msra.mxu0 0.0
  %572 = vmatprep.subr.mxu0 0.0
  %573 = vmatpush1.xpose.msra.mxu0 0.0
  %574 = vmatprep.subr.mxu0 0.0
  %575 = vmatpush1.xpose.msra.mxu0 0.0
  %576 = vmatprep.subr.mxu0 0.0
  %577 = vmatpush1.xpose.msra.mxu0 0.0
  %578 = vmatprep.subr.mxu0 0.0
  %579 = vmatpush1.xpose.msra.mxu0 0.0
  %580 = vmatprep.subr.mxu0 0.0
  %581 = vmatpush1.xpose.msra.mxu0 0.0
  %582 = vmatprep.subr.mxu0 0.0
  %583 = vmatpush1.xpose.msra.mxu0 0.0
  %584 = vmatprep.subr.mxu0 0.0
  %585 = vmatpush1.xpose.msra.mxu0 0.0
  %586 = vmatprep.subr.mxu0 0.0
  %587 = vmatpush1.xpose.msra.mxu0 0.0
  %588 = vmatprep.subr.mxu0 0.0
  %589 = vmatpush1.xpose.msra.mxu0 0.0
  %590 = vmatprep.subr.mxu0 0.0
  %591 = vmatpush1.xpose.msra.mxu0 0.0
  %592 = vmatprep.subr.mxu0 0.0
  %593 = vmatpush1.xpose.msra.mxu0 0.0
  %594 = vmatprep.subr.mxu0 0.0
  %595 = vmatpush1.xpose.msra.mxu0 0.0
  %596 = vmatprep.subr.mxu0 0.0
  %597 = vmatpush1.xpose.msra.mxu0 0.0
  %598 = vmatprep.subr.mxu0 0.0
  %599 = vmatpush1.xpose.msra.mxu0 0.0
  %600 = vmatprep.subr.mxu0 0.0
  %601 = vmatpush1.xpose.msra.mxu0 0.0
  %602 = vmatprep.subr.mxu0 0.0
  %603 = vmatpush1.xpose.msra.mxu0 0.0
  %604 = vmatprep.subr.mxu0 0.0
  %605 = vmatpush1.xpose.msra.mxu0 0.0
  %606 = vmatprep.subr.mxu0 0.0
  %607 = vmatpush1.xpose.msra.mxu0 0.0
  %608 = vmatprep.subr.mxu0 0.0
  %609 = vmatpush1.xpose.msra.mxu0 0.0
  %610 = vmatprep.subr.mxu0 0.0
  %611 = vmatpush1.xpose.msra.mxu0 0.0
  %612 = vmatprep.subr.mxu0 0.0
  %613 = vmatpush1.xpose.msra.mxu0 0.0
  %614 = vmatprep.subr.mxu0 0.0
  %615 = vmatpush1.xpose.msra.mxu0 0.0
  %616 = vmatprep.subr.mxu0 0.0
  %617 = vmatpush1.xpose.msra.mxu0 0.0
  %618 = vmatprep.subr.mxu0 0.0
  %619 = vmatpush1.xpose.msra.mxu0 0.0
  %620 = vmatprep.mubr.f32.mxu0 0.0
  %621 = vmatmul.mubr.f32.gmra.mrb[0].mxu0 %v548
  %v622 = vpop.f32.mrb[0].mxu0
  %v623 = vadd.f32 0.0, %v622
  %v624 = vpop.f32.mrb[0].mxu0
  %625 = vmatprep.mubr.f32.mxu0 0.0
  %626 = vmatmul.mubr.f32.gmra.mrb[0].mxu0 %v550
  %v627 = vpop.f32.mrb[0].mxu0
  %v628 = vadd.f32 0.0, %v627
  %v629 = vpop.f32.mrb[0].mxu0
  %630 = vdwg.mxu0
  %v631 = vmul.f32 %v623, 0.35355338
  %v632 = vmul.f32 %v628, 0.35355338
  %v633 = vadd.f32 %v631, %v30
  %v634 = vadd.f32 %v632, %v31
  %v635 = vsel %vm226, %v633, -inf
  %636 = vmax.xlane.f32.xlu0 %v635
  %v637 = vpop.xlane.xlu0 %636
  %v638 = vsel %vm226, %v634, -inf
  %639 = vmax.xlane.f32.xlu0 %v638
  %v640 = vpop.xlane.xlu0 %639
  %v641 = vsub.f32 %v633, %v637
  %v642 = vsub.f32 %v634, %v640
  %v643 = vmul.f32 %v641, 1.442695
  %v644 = vpow.pop %v643
  %v645 = vmul.f32 %v642, 1.442695
  %v646 = vpow.pop %v645
  %v647 = vsel %vm226, %v644, 0.0
  %648 = vadd.xlane.f32.xlu0 %v647
  %v649 = vpop.xlane.xlu0 %648
  %v650 = vsel %vm226, %v646, 0.0
  %651 = vadd.xlane.f32.xlu0 %v650
  %v652 = vpop.xlane.xlu0 %651
  %653 = vrot.lane.b32.xlu0 %v119, 48
  %v654 = vpop.permute.xlu0 %653
  %655 = vrot.lane.b32.xlu0 %v124, 48
  %v656 = vpop.permute.xlu0 %655
  %v660 = vsel %vm226, %v644, 0
  %v663 = vsel %vm226, %v646, 0
  %665 = vmatprep.subr.mxu0 0.0
  %666 = vmatpush1.msra.mxu0 %v654
  %667 = vmatprep.subr.mxu0 0.0
  %668 = vmatpush1.msra.mxu0 %v656
  %669 = vmatprep.subr.mxu0 0.0
  %670 = vmatpush1.msra.mxu0 0.0
  %671 = vmatprep.subr.mxu0 0.0
  %672 = vmatpush1.msra.mxu0 0.0
  %673 = vmatprep.subr.mxu0 0.0
  %674 = vmatpush1.msra.mxu0 0.0
  %675 = vmatprep.subr.mxu0 0.0
  %676 = vmatpush1.msra.mxu0 0.0
  %677 = vmatprep.subr.mxu0 0.0
  %678 = vmatpush1.msra.mxu0 0.0
  %679 = vmatprep.subr.mxu0 0.0
  %680 = vmatpush1.msra.mxu0 0.0
  %681 = vmatprep.subr.mxu0 0.0
  %682 = vmatpush1.msra.mxu0 0.0
  %683 = vmatprep.subr.mxu0 0.0
  %684 = vmatpush1.msra.mxu0 0.0
  %685 = vmatprep.subr.mxu0 0.0
  %686 = vmatpush1.msra.mxu0 0.0
  %687 = vmatprep.subr.mxu0 0.0
  %688 = vmatpush1.msra.mxu0 0.0
  %689 = vmatprep.subr.mxu0 0.0
  %690 = vmatpush1.msra.mxu0 0.0
  %691 = vmatprep.subr.mxu0 0.0
  %692 = vmatpush1.msra.mxu0 0.0
  %693 = vmatprep.subr.mxu0 0.0
  %694 = vmatpush1.msra.mxu0 0.0
  %695 = vmatprep.subr.mxu0 0.0
  %696 = vmatpush1.msra.mxu0 0.0
  %697 = vmatprep.subr.mxu0 0.0
  %698 = vmatpush1.msra.mxu0 0.0
  %699 = vmatprep.subr.mxu0 0.0
  %700 = vmatpush1.msra.mxu0 0.0
  %701 = vmatprep.subr.mxu0 0.0
  %702 = vmatpush1.msra.mxu0 0.0
  %703 = vmatprep.subr.mxu0 0.0
  %704 = vmatpush1.msra.mxu0 0.0
  %705 = vmatprep.subr.mxu0 0.0
  %706 = vmatpush1.msra.mxu0 0.0
  %707 = vmatprep.subr.mxu0 0.0
  %708 = vmatpush1.msra.mxu0 0.0
  %709 = vmatprep.subr.mxu0 0.0
  %710 = vmatpush1.msra.mxu0 0.0
  %711 = vmatprep.subr.mxu0 0.0
  %712 = vmatpush1.msra.mxu0 0.0
  %713 = vmatprep.subr.mxu0 0.0
  %714 = vmatpush1.msra.mxu0 0.0
  %715 = vmatprep.subr.mxu0 0.0
  %716 = vmatpush1.msra.mxu0 0.0
  %717 = vmatprep.subr.mxu0 0.0
  %718 = vmatpush1.msra.mxu0 0.0
  %719 = vmatprep.subr.mxu0 0.0
  %720 = vmatpush1.msra.mxu0 0.0
  %721 = vmatprep.subr.mxu0 0.0
  %722 = vmatpush1.msra.mxu0 0.0
  %723 = vmatprep.subr.mxu0 0.0
  %724 = vmatpush1.msra.mxu0 0.0
  %725 = vmatprep.subr.mxu0 0.0
  %726 = vmatpush1.msra.mxu0 0.0
  %727 = vmatprep.subr.mxu0 0.0
  %728 = vmatpush1.msra.mxu0 0.0
  %729 = vmatprep.mubr.f32.mxu0 0.0
  %730 = vmatmul.mubr.f32.gmra.mrb[0].mxu0 %v660
  %v731 = vpop.f32.mrb[0].mxu0
  %v732 = vadd.f32 0.0, %v731
  %v733 = vpop.f32.mrb[0].mxu0
  %734 = vmatprep.mubr.f32.mxu0 0.0
  %735 = vmatmul.mubr.f32.gmra.mrb[0].mxu0 %v663
  %v736 = vpop.f32.mrb[0].mxu0
  %v737 = vadd.f32 0.0, %v736
  %v738 = vpop.f32.mrb[0].mxu0
  %739 = vdwg.mxu0
  %v740 = vrcp.pop %v649
  %v741 = vrcp.pop %v652
  %v742 = vmul.f32 %v732, %v740
  %v743 = vmul.f32 %v737, %v741
  %744 = vrot.lane.b32.xlu0 %v119, 104
  %v745 = vpop.permute.xlu0 %744
  %746 = vrot.lane.b32.xlu0 %v124, 104
  %v747 = vpop.permute.xlu0 %746
  %748 = vrot.lane.b32.xlu0 %v119, 72
  %v749 = vpop.permute.xlu0 %748
  %750 = vrot.lane.b32.xlu0 %v124, 72
  %v751 = vpop.permute.xlu0 %750
  %v752 = vsel %vm138, %v745, 0
  %v754 = vsel %vm138, %v747, 0
  %v756 = vsel %vm138, %v749, 0
  %v758 = vsel %vm138, %v751, 0
  %760 = vmatprep.subr.mxu0 0.0
  %761 = vmatpush1.xpose.msra.mxu0 %v756
  %762 = vmatprep.subr.mxu0 0.0
  %763 = vmatpush1.xpose.msra.mxu0 %v758
  %764 = vmatprep.subr.mxu0 0.0
  %765 = vmatpush1.xpose.msra.mxu0 0.0
  %766 = vmatprep.subr.mxu0 0.0
  %767 = vmatpush1.xpose.msra.mxu0 0.0
  %768 = vmatprep.subr.mxu0 0.0
  %769 = vmatpush1.xpose.msra.mxu0 0.0
  %770 = vmatprep.subr.mxu0 0.0
  %771 = vmatpush1.xpose.msra.mxu0 0.0
  %772 = vmatprep.subr.mxu0 0.0
  %773 = vmatpush1.xpose.msra.mxu0 0.0
  %774 = vmatprep.subr.mxu0 0.0
  %775 = vmatpush1.xpose.msra.mxu0 0.0
  %776 = vmatprep.subr.mxu0 0.0
  %777 = vmatpush1.xpose.msra.mxu0 0.0
  %778 = vmatprep.subr.mxu0 0.0
  %779 = vmatpush1.xpose.msra.mxu0 0.0
  %780 = vmatprep.subr.mxu0 0.0
  %781 = vmatpush1.xpose.msra.mxu0 0.0
  %782 = vmatprep.subr.mxu0 0.0
  %783 = vmatpush1.xpose.msra.mxu0 0.0
  %784 = vmatprep.subr.mxu0 0.0
  %785 = vmatpush1.xpose.msra.mxu0 0.0
  %786 = vmatprep.subr.mxu0 0.0
  %787 = vmatpush1.xpose.msra.mxu0 0.0
  %788 = vmatprep.subr.mxu0 0.0
  %789 = vmatpush1.xpose.msra.mxu0 0.0
  %790 = vmatprep.subr.mxu0 0.0
  %791 = vmatpush1.xpose.msra.mxu0 0.0
  %792 = vmatprep.subr.mxu0 0.0
  %793 = vmatpush1.xpose.msra.mxu0 0.0
  %794 = vmatprep.subr.mxu0 0.0
  %795 = vmatpush1.xpose.msra.mxu0 0.0
  %796 = vmatprep.subr.mxu0 0.0
  %797 = vmatpush1.xpose.msra.mxu0 0.0
  %798 = vmatprep.subr.mxu0 0.0
  %799 = vmatpush1.xpose.msra.mxu0 0.0
  %800 = vmatprep.subr.mxu0 0.0
  %801 = vmatpush1.xpose.msra.mxu0 0.0
  %802 = vmatprep.subr.mxu0 0.0
  %803 = vmatpush1.xpose.msra.mxu0 0.0
  %804 = vmatprep.subr.mxu0 0.0
  %805 = vmatpush1.xpose.msra.mxu0 0.0
  %806 = vmatprep.subr.mxu0 0.0
  %807 = vmatpush1.xpose.msra.mxu0 0.0
  %808 = vmatprep.subr.mxu0 0.0
  %809 = vmatpush1.xpose.msra.mxu0 0.0
  %810 = vmatprep.subr.mxu0 0.0
  %811 = vmatpush1.xpose.msra.mxu0 0.0
  %812 = vmatprep.subr.mxu0 0.0
  %813 = vmatpush1.xpose.msra.mxu0 0.0
  %814 = vmatprep.subr.mxu0 0.0
  %815 = vmatpush1.xpose.msra.mxu0 0.0
  %816 = vmatprep.subr.mxu0 0.0
  %817 = vmatpush1.xpose.msra.mxu0 0.0
  %818 = vmatprep.subr.mxu0 0.0
  %819 = vmatpush1.xpose.msra.mxu0 0.0
  %820 = vmatprep.subr.mxu0 0.0
  %821 = vmatpush1.xpose.msra.mxu0 0.0
  %822 = vmatprep.subr.mxu0 0.0
  %823 = vmatpush1.xpose.msra.mxu0 0.0
  %824 = vmatprep.mubr.f32.mxu0 0.0
  %825 = vmatmul.mubr.f32.gmra.mrb[0].mxu0 %v752
  %v826 = vpop.f32.mrb[0].mxu0
  %v827 = vadd.f32 0.0, %v826
  %v828 = vpop.f32.mrb[0].mxu0
  %829 = vmatprep.mubr.f32.mxu0 0.0
  %830 = vmatmul.mubr.f32.gmra.mrb[0].mxu0 %v754
  %v831 = vpop.f32.mrb[0].mxu0
  %v832 = vadd.f32 0.0, %v831
  %v833 = vpop.f32.mrb[0].mxu0
  %834 = vdwg.mxu0
  %v835 = vmul.f32 %v827, 0.35355338
  %v836 = vmul.f32 %v832, 0.35355338
  %v837 = vadd.f32 %v835, %v30
  %v838 = vadd.f32 %v836, %v31
  %v839 = vsel %vm226, %v837, -inf
  %840 = vmax.xlane.f32.xlu0 %v839
  %v841 = vpop.xlane.xlu0 %840
  %v842 = vsel %vm226, %v838, -inf
  %843 = vmax.xlane.f32.xlu0 %v842
  %v844 = vpop.xlane.xlu0 %843
  %v845 = vsub.f32 %v837, %v841
  %v846 = vsub.f32 %v838, %v844
  %v847 = vmul.f32 %v845, 1.442695
  %v848 = vpow.pop %v847
  %v849 = vmul.f32 %v846, 1.442695
  %v850 = vpow.pop %v849
  %v851 = vsel %vm226, %v848, 0.0
  %852 = vadd.xlane.f32.xlu0 %v851
  %v853 = vpop.xlane.xlu0 %852
  %v854 = vsel %vm226, %v850, 0.0
  %855 = vadd.xlane.f32.xlu0 %v854
  %v856 = vpop.xlane.xlu0 %855
  %857 = vrot.lane.b32.xlu0 %v119, 40
  %v858 = vpop.permute.xlu0 %857
  %859 = vrot.lane.b32.xlu0 %v124, 40
  %v860 = vpop.permute.xlu0 %859
  %v864 = vsel %vm226, %v848, 0
  %v867 = vsel %vm226, %v850, 0
  %869 = vmatprep.subr.mxu0 0.0
  %870 = vmatpush1.msra.mxu0 %v858
  %871 = vmatprep.subr.mxu0 0.0
  %872 = vmatpush1.msra.mxu0 %v860
  %873 = vmatprep.subr.mxu0 0.0
  %874 = vmatpush1.msra.mxu0 0.0
  %875 = vmatprep.subr.mxu0 0.0
  %876 = vmatpush1.msra.mxu0 0.0
  %877 = vmatprep.subr.mxu0 0.0
  %878 = vmatpush1.msra.mxu0 0.0
  %879 = vmatprep.subr.mxu0 0.0
  %880 = vmatpush1.msra.mxu0 0.0
  %881 = vmatprep.subr.mxu0 0.0
  %882 = vmatpush1.msra.mxu0 0.0
  %883 = vmatprep.subr.mxu0 0.0
  %884 = vmatpush1.msra.mxu0 0.0
  %885 = vmatprep.subr.mxu0 0.0
  %886 = vmatpush1.msra.mxu0 0.0
  %887 = vmatprep.subr.mxu0 0.0
  %888 = vmatpush1.msra.mxu0 0.0
  %889 = vmatprep.subr.mxu0 0.0
  %890 = vmatpush1.msra.mxu0 0.0
  %891 = vmatprep.subr.mxu0 0.0
  %892 = vmatpush1.msra.mxu0 0.0
  %893 = vmatprep.subr.mxu0 0.0
  %894 = vmatpush1.msra.mxu0 0.0
  %895 = vmatprep.subr.mxu0 0.0
  %896 = vmatpush1.msra.mxu0 0.0
  %897 = vmatprep.subr.mxu0 0.0
  %898 = vmatpush1.msra.mxu0 0.0
  %899 = vmatprep.subr.mxu0 0.0
  %900 = vmatpush1.msra.mxu0 0.0
  %901 = vmatprep.subr.mxu0 0.0
  %902 = vmatpush1.msra.mxu0 0.0
  %903 = vmatprep.subr.mxu0 0.0
  %904 = vmatpush1.msra.mxu0 0.0
  %905 = vmatprep.subr.mxu0 0.0
  %906 = vmatpush1.msra.mxu0 0.0
  %907 = vmatprep.subr.mxu0 0.0
  %908 = vmatpush1.msra.mxu0 0.0
  %909 = vmatprep.subr.mxu0 0.0
  %910 = vmatpush1.msra.mxu0 0.0
  %911 = vmatprep.subr.mxu0 0.0
  %912 = vmatpush1.msra.mxu0 0.0
  %913 = vmatprep.subr.mxu0 0.0
  %914 = vmatpush1.msra.mxu0 0.0
  %915 = vmatprep.subr.mxu0 0.0
  %916 = vmatpush1.msra.mxu0 0.0
  %917 = vmatprep.subr.mxu0 0.0
  %918 = vmatpush1.msra.mxu0 0.0
  %919 = vmatprep.subr.mxu0 0.0
  %920 = vmatpush1.msra.mxu0 0.0
  %921 = vmatprep.subr.mxu0 0.0
  %922 = vmatpush1.msra.mxu0 0.0
  %923 = vmatprep.subr.mxu0 0.0
  %924 = vmatpush1.msra.mxu0 0.0
  %925 = vmatprep.subr.mxu0 0.0
  %926 = vmatpush1.msra.mxu0 0.0
  %927 = vmatprep.subr.mxu0 0.0
  %928 = vmatpush1.msra.mxu0 0.0
  %929 = vmatprep.subr.mxu0 0.0
  %930 = vmatpush1.msra.mxu0 0.0
  %931 = vmatprep.subr.mxu0 0.0
  %932 = vmatpush1.msra.mxu0 0.0
  %933 = vmatprep.mubr.f32.mxu0 0.0
  %934 = vmatmul.mubr.f32.gmra.mrb[0].mxu0 %v864
  %v935 = vpop.f32.mrb[0].mxu0
  %v936 = vadd.f32 0.0, %v935
  %v937 = vpop.f32.mrb[0].mxu0
  %938 = vmatprep.mubr.f32.mxu0 0.0
  %939 = vmatmul.mubr.f32.gmra.mrb[0].mxu0 %v867
  %v940 = vpop.f32.mrb[0].mxu0
  %v941 = vadd.f32 0.0, %v940
  %v942 = vpop.f32.mrb[0].mxu0
  %943 = vdwg.mxu0
  %v944 = vrcp.pop %v853
  %v945 = vrcp.pop %v856
  %v946 = vmul.f32 %v936, %v944
  %v947 = vmul.f32 %v941, %v945
  %950 = vrot.lane.b32.xlu0 %v538, 8
  %v951 = vpop.permute.xlu0 %950
  %952 = vrot.lane.b32.xlu0 %v539, 8
  %v953 = vpop.permute.xlu0 %952
  %958 = vrot.lane.b32.xlu0 %v742, 16
  %v959 = vpop.permute.xlu0 %958
  %960 = vrot.lane.b32.xlu0 %v743, 16
  %v961 = vpop.permute.xlu0 %960
  %966 = vrot.lane.b32.xlu0 %v946, 24
  %v967 = vpop.permute.xlu0 %966
  %968 = vrot.lane.b32.xlu0 %v947, 24
  %v969 = vpop.permute.xlu0 %968
  %v972 = vsel %vm138, %v334, %v951
  %v973 = vsel %vm138, %v335, %v953
  %v974 = vsel %vm226, %v972, %v959
  %v975 = vsel %vm226, %v973, %v961
  %vm976 = vcmask 195584
  %v977 = vsel %vm976, %v974, %v967
  %v978 = vsel %vm976, %v975, %v969
  %v979 = vlaneseq
  %v980 = vshrl.u32 %v979, 7
  %v981 = vsub.s32 0, %v980
  %v982 = vrot.slane %v131, %v981
  %v984 = vsel %vm45, %v977, 0
  %v987 = vsel %vm45, %v978, 0
  %989 = vmatprep.subr.mxu0 0.0
  %990 = vmatpush1.msra.mxu0 %v127
  %991 = vmatprep.subr.mxu0 0.0
  %992 = vmatpush1.msra.mxu0 %v128
  %993 = vmatprep.subr.mxu0 0.0
  %994 = vmatpush1.msra.mxu0 %v129
  %995 = vmatprep.subr.mxu0 0.0
  %996 = vmatpush1.msra.mxu0 %v130
  %997 = vmatprep.subr.mxu0 0.0
  %998 = vmatpush1.msra.mxu0 0.0
  %999 = vmatprep.subr.mxu0 0.0
  %1000 = vmatpush1.msra.mxu0 0.0
  %1001 = vmatprep.subr.mxu0 0.0
  %1002 = vmatpush1.msra.mxu0 0.0
  %1003 = vmatprep.subr.mxu0 0.0
  %1004 = vmatpush1.msra.mxu0 0.0
  %1005 = vmatprep.subr.mxu0 0.0
  %1006 = vmatpush1.msra.mxu0 0.0
  %1007 = vmatprep.subr.mxu0 0.0
  %1008 = vmatpush1.msra.mxu0 0.0
  %1009 = vmatprep.subr.mxu0 0.0
  %1010 = vmatpush1.msra.mxu0 0.0
  %1011 = vmatprep.subr.mxu0 0.0
  %1012 = vmatpush1.msra.mxu0 0.0
  %1013 = vmatprep.subr.mxu0 0.0
  %1014 = vmatpush1.msra.mxu0 0.0
  %1015 = vmatprep.subr.mxu0 0.0
  %1016 = vmatpush1.msra.mxu0 0.0
  %1017 = vmatprep.subr.mxu0 0.0
  %1018 = vmatpush1.msra.mxu0 0.0
  %1019 = vmatprep.subr.mxu0 0.0
  %1020 = vmatpush1.msra.mxu0 0.0
  %1021 = vmatprep.subr.mxu0 0.0
  %1022 = vmatpush1.msra.mxu0 0.0
  %1023 = vmatprep.subr.mxu0 0.0
  %1024 = vmatpush1.msra.mxu0 0.0
  %1025 = vmatprep.subr.mxu0 0.0
  %1026 = vmatpush1.msra.mxu0 0.0
  %1027 = vmatprep.subr.mxu0 0.0
  %1028 = vmatpush1.msra.mxu0 0.0
  %1029 = vmatprep.subr.mxu0 0.0
  %1030 = vmatpush1.msra.mxu0 0.0
  %1031 = vmatprep.subr.mxu0 0.0
  %1032 = vmatpush1.msra.mxu0 0.0
  %1033 = vmatprep.subr.mxu0 0.0
  %1034 = vmatpush1.msra.mxu0 0.0
  %1035 = vmatprep.subr.mxu0 0.0
  %1036 = vmatpush1.msra.mxu0 0.0
  %1037 = vmatprep.subr.mxu0 0.0
  %1038 = vmatpush1.msra.mxu0 0.0
  %1039 = vmatprep.subr.mxu0 0.0
  %1040 = vmatpush1.msra.mxu0 0.0
  %1041 = vmatprep.subr.mxu0 0.0
  %1042 = vmatpush1.msra.mxu0 0.0
  %1043 = vmatprep.subr.mxu0 0.0
  %1044 = vmatpush1.msra.mxu0 0.0
  %1045 = vmatprep.subr.mxu0 0.0
  %1046 = vmatpush1.msra.mxu0 0.0
  %1047 = vmatprep.subr.mxu0 0.0
  %1048 = vmatpush1.msra.mxu0 0.0
  %1049 = vmatprep.subr.mxu0 0.0
  %1050 = vmatpush1.msra.mxu0 0.0
  %1051 = vmatprep.subr.mxu0 0.0
  %1052 = vmatpush1.msra.mxu0 0.0
  %1053 = vmatprep.mubr.f32.mxu0 0.0
  %1054 = vmatmul.mubr.f32.gmra.mrb[0].mxu0 %v984
  %v1055 = vpop.f32.mrb[0].mxu0
  %v1056 = vadd.f32 %v982, %v1055
  %v1057 = vpop.f32.mrb[0].mxu0
  %1058 = vmatprep.mubr.f32.mxu0 0.0
  %1059 = vmatmul.mubr.f32.gmra.mrb[0].mxu0 %v987
  %v1060 = vpop.f32.mrb[0].mxu0
  %v1061 = vadd.f32 %v982, %v1060
  %v1062 = vpop.f32.mrb[0].mxu0
  %1063 = vdwg.mxu0
  %v1064 = vadd.f32 %v26, %v1056
  %v1065 = vadd.f32 %v27, %v1061
  %v1066 = vld [vmem:[%s6 + $0x4] sm:$0x1]
  %v1067 = vld [vmem:[%s6 + $0x5] sm:$0x1]
  %v1068 = vsel %vm45, %v1064, 0.0
  %1069 = vadd.xlane.f32.xlu0 %v1068
  %v1070 = vpop.xlane.xlu0 %1069
  %v1071 = vsel %vm45, %v1065, 0.0
  %1072 = vadd.xlane.f32.xlu0 %v1071
  %v1073 = vpop.xlane.xlu0 %1072
  %v1074 = vrcp.pop 32.0
  %v1075 = vmul.f32 %v1070, %v1074
  %v1076 = vmul.f32 %v1073, %v1074
  %v1077 = vsub.f32 %v1064, %v1075
  %v1078 = vsub.f32 %v1065, %v1076
  %v1079 = vmul.f32 %v1077, %v1077
  %v1080 = vmul.f32 %v1078, %v1078
  %v1081 = vsel %vm45, %v1079, 0.0
  %1082 = vadd.xlane.f32.xlu0 %v1081
  %v1083 = vpop.xlane.xlu0 %1082
  %v1084 = vsel %vm45, %v1080, 0.0
  %1085 = vadd.xlane.f32.xlu0 %v1084
  %v1086 = vpop.xlane.xlu0 %1085
  %v1087 = vmul.f32 %v1083, %v1074
  %v1088 = vmul.f32 %v1086, %v1074
  %v1089 = vadd.f32 %v1087, 1e-05
  %v1090 = vadd.f32 %v1088, 1e-05
  %v1091 = vrsqrt.pop %v1089
  %v1092 = vrsqrt.pop %v1090
  %v1093 = vmul.f32 %v1077, %v1091
  %v1094 = vmul.f32 %v1078, %v1092
  %v1095 = vlaneseq
  %v1096 = vshrl.u32 %v1095, 7
  %v1097 = vsub.s32 0, %v1096
  %v1098 = vrot.slane %v1066, %v1097
  %v1099 = vmul.f32 %v1093, %v1098
  %v1100 = vmul.f32 %v1094, %v1098
  %v1101 = vlaneseq
  %v1102 = vshrl.u32 %v1101, 7
  %v1103 = vsub.s32 0, %v1102
  %v1104 = vrot.slane %v1067, %v1103
  %v1105 = vadd.f32 %v1099, %v1104
  %v1106 = vadd.f32 %v1100, %v1104
  %v1107 = vld [vmem:[%s5 + $0x40] sm:$0xff]
  %v1108 = vld [vmem:[%s5 + $0x48] sm:$0xff]
  %v1109 = vld [vmem:[%s5 + $0x50] sm:$0xff]
  %v1110 = vld [vmem:[%s5 + $0x58] sm:$0xff]
  %v1111 = vld [vmem:[%s6 + $0x2] sm:$0x1]
  %v1112 = vld [vmem:[%s5 + $0x60] sm:$0xff]
  %v1113 = vld [vmem:[%s5 + $0x68] sm:$0xff]
  %v1114 = vld [vmem:[%s5 + $0x70] sm:$0xff]
  %v1115 = vld [vmem:[%s5 + $0x78] sm:$0xff]
  %v1116 = vld [vmem:[%s5 + $0x80] sm:$0xff]
  %v1117 = vld [vmem:[%s5 + $0x88] sm:$0xff]
  %v1118 = vld [vmem:[%s5 + $0x90] sm:$0xff]
  %v1119 = vld [vmem:[%s5 + $0x98] sm:$0xff]
  %v1120 = vld [vmem:[%s6 + $0x3] sm:$0x1]
  %v1121 = vlaneseq
  %v1122 = vshrl.u32 %v1121, 7
  %v1123 = vsub.s32 0, %v1122
  %v1124 = vrot.slane %v1111, %v1123
  %v1126 = vsel %vm45, %v1105, 0
  %v1129 = vsel %vm45, %v1106, 0
  %1131 = vmatprep.subr.mxu0 0.0
  %1132 = vmatpush1.msra.mxu0 %v1107
  %1133 = vmatprep.subr.mxu0 0.0
  %1134 = vmatpush1.msra.mxu0 %v1108
  %1135 = vmatprep.subr.mxu0 0.0
  %1136 = vmatpush1.msra.mxu0 %v1109
  %1137 = vmatprep.subr.mxu0 0.0
  %1138 = vmatpush1.msra.mxu0 %v1110
  %1139 = vmatprep.subr.mxu0 0.0
  %1140 = vmatpush1.msra.mxu0 0.0
  %1141 = vmatprep.subr.mxu0 0.0
  %1142 = vmatpush1.msra.mxu0 0.0
  %1143 = vmatprep.subr.mxu0 0.0
  %1144 = vmatpush1.msra.mxu0 0.0
  %1145 = vmatprep.subr.mxu0 0.0
  %1146 = vmatpush1.msra.mxu0 0.0
  %1147 = vmatprep.subr.mxu0 0.0
  %1148 = vmatpush1.msra.mxu0 0.0
  %1149 = vmatprep.subr.mxu0 0.0
  %1150 = vmatpush1.msra.mxu0 0.0
  %1151 = vmatprep.subr.mxu0 0.0
  %1152 = vmatpush1.msra.mxu0 0.0
  %1153 = vmatprep.subr.mxu0 0.0
  %1154 = vmatpush1.msra.mxu0 0.0
  %1155 = vmatprep.subr.mxu0 0.0
  %1156 = vmatpush1.msra.mxu0 0.0
  %1157 = vmatprep.subr.mxu0 0.0
  %1158 = vmatpush1.msra.mxu0 0.0
  %1159 = vmatprep.subr.mxu0 0.0
  %1160 = vmatpush1.msra.mxu0 0.0
  %1161 = vmatprep.subr.mxu0 0.0
  %1162 = vmatpush1.msra.mxu0 0.0
  %1163 = vmatprep.subr.mxu0 0.0
  %1164 = vmatpush1.msra.mxu0 0.0
  %1165 = vmatprep.subr.mxu0 0.0
  %1166 = vmatpush1.msra.mxu0 0.0
  %1167 = vmatprep.subr.mxu0 0.0
  %1168 = vmatpush1.msra.mxu0 0.0
  %1169 = vmatprep.subr.mxu0 0.0
  %1170 = vmatpush1.msra.mxu0 0.0
  %1171 = vmatprep.subr.mxu0 0.0
  %1172 = vmatpush1.msra.mxu0 0.0
  %1173 = vmatprep.subr.mxu0 0.0
  %1174 = vmatpush1.msra.mxu0 0.0
  %1175 = vmatprep.subr.mxu0 0.0
  %1176 = vmatpush1.msra.mxu0 0.0
  %1177 = vmatprep.subr.mxu0 0.0
  %1178 = vmatpush1.msra.mxu0 0.0
  %1179 = vmatprep.subr.mxu0 0.0
  %1180 = vmatpush1.msra.mxu0 0.0
  %1181 = vmatprep.subr.mxu0 0.0
  %1182 = vmatpush1.msra.mxu0 0.0
  %1183 = vmatprep.subr.mxu0 0.0
  %1184 = vmatpush1.msra.mxu0 0.0
  %1185 = vmatprep.subr.mxu0 0.0
  %1186 = vmatpush1.msra.mxu0 0.0
  %1187 = vmatprep.subr.mxu0 0.0
  %1188 = vmatpush1.msra.mxu0 0.0
  %1189 = vmatprep.subr.mxu0 0.0
  %1190 = vmatpush1.msra.mxu0 0.0
  %1191 = vmatprep.subr.mxu0 0.0
  %1192 = vmatpush1.msra.mxu0 0.0
  %1193 = vmatprep.subr.mxu0 0.0
  %1194 = vmatpush1.msra.mxu0 0.0
  %1195 = vmatprep.mubr.f32.mxu0 0.0
  %1196 = vmatmul.mubr.f32.gmra.mrb[0].mxu0 %v1126
  %v1197 = vpop.f32.mrb[0].mxu0
  %v1198 = vadd.f32 %v1124, %v1197
  %v1199 = vpop.f32.mrb[0].mxu0
  %1200 = vmatprep.mubr.f32.mxu0 0.0
  %1201 = vmatmul.mubr.f32.gmra.mrb[0].mxu0 %v1129
  %v1202 = vpop.f32.mrb[0].mxu0
  %v1203 = vadd.f32 %v1124, %v1202
  %v1204 = vpop.f32.mrb[0].mxu0
  %1205 = vdwg.mxu0
  %v1206 = vmax.f32 %v1198, 0.0
  %v1207 = vmax.f32 %v1203, 0.0
  %v1208 = vlaneseq
  %v1209 = vshrl.u32 %v1208, 7
  %v1210 = vsub.s32 0, %v1209
  %v1211 = vrot.slane %v1120, %v1210
  %vm1212 = vcmask 523264
  %v1214 = vsel %vm1212, %v1206, 0
  %v1217 = vsel %vm1212, %v1207, 0
  %1219 = vmatprep.subr.mxu0 0.0
  %1220 = vmatpush1.msra.mxu0 %v1112
  %1221 = vmatprep.subr.mxu0 0.0
  %1222 = vmatpush1.msra.mxu0 %v1113
  %1223 = vmatprep.subr.mxu0 0.0
  %1224 = vmatpush1.msra.mxu0 %v1114
  %1225 = vmatprep.subr.mxu0 0.0
  %1226 = vmatpush1.msra.mxu0 %v1115
  %1227 = vmatprep.subr.mxu0 0.0
  %1228 = vmatpush1.msra.mxu0 %v1116
  %1229 = vmatprep.subr.mxu0 0.0
  %1230 = vmatpush1.msra.mxu0 %v1117
  %1231 = vmatprep.subr.mxu0 0.0
  %1232 = vmatpush1.msra.mxu0 %v1118
  %1233 = vmatprep.subr.mxu0 0.0
  %1234 = vmatpush1.msra.mxu0 %v1119
  %1235 = vmatprep.subr.mxu0 0.0
  %1236 = vmatpush1.msra.mxu0 0.0
  %1237 = vmatprep.subr.mxu0 0.0
  %1238 = vmatpush1.msra.mxu0 0.0
  %1239 = vmatprep.subr.mxu0 0.0
  %1240 = vmatpush1.msra.mxu0 0.0
  %1241 = vmatprep.subr.mxu0 0.0
  %1242 = vmatpush1.msra.mxu0 0.0
  %1243 = vmatprep.subr.mxu0 0.0
  %1244 = vmatpush1.msra.mxu0 0.0
  %1245 = vmatprep.subr.mxu0 0.0
  %1246 = vmatpush1.msra.mxu0 0.0
  %1247 = vmatprep.subr.mxu0 0.0
  %1248 = vmatpush1.msra.mxu0 0.0
  %1249 = vmatprep.subr.mxu0 0.0
  %1250 = vmatpush1.msra.mxu0 0.0
  %1251 = vmatprep.subr.mxu0 0.0
  %1252 = vmatpush1.msra.mxu0 0.0
  %1253 = vmatprep.subr.mxu0 0.0
  %1254 = vmatpush1.msra.mxu0 0.0
  %1255 = vmatprep.subr.mxu0 0.0
  %1256 = vmatpush1.msra.mxu0 0.0
  %1257 = vmatprep.subr.mxu0 0.0
  %1258 = vmatpush1.msra.mxu0 0.0
  %1259 = vmatprep.subr.mxu0 0.0
  %1260 = vmatpush1.msra.mxu0 0.0
  %1261 = vmatprep.subr.mxu0 0.0
  %1262 = vmatpush1.msra.mxu0 0.0
  %1263 = vmatprep.subr.mxu0 0.0
  %1264 = vmatpush1.msra.mxu0 0.0
  %1265 = vmatprep.subr.mxu0 0.0
  %1266 = vmatpush1.msra.mxu0 0.0
  %1267 = vmatprep.subr.mxu0 0.0
  %1268 = vmatpush1.msra.mxu0 0.0
  %1269 = vmatprep.subr.mxu0 0.0
  %1270 = vmatpush1.msra.mxu0 0.0
  %1271 = vmatprep.subr.mxu0 0.0
  %1272 = vmatpush1.msra.mxu0 0.0
  %1273 = vmatprep.subr.mxu0 0.0
  %1274 = vmatpush1.msra.mxu0 0.0
  %1275 = vmatprep.subr.mxu0 0.0
  %1276 = vmatpush1.msra.mxu0 0.0
  %1277 = vmatprep.subr.mxu0 0.0
  %1278 = vmatpush1.msra.mxu0 0.0
  %1279 = vmatprep.subr.mxu0 0.0
  %1280 = vmatpush1.msra.mxu0 0.0
  %1281 = vmatprep.subr.mxu0 0.0
  %1282 = vmatpush1.msra.mxu0 0.0
  %1283 = vmatprep.mubr.f32.mxu0 0.0
  %1284 = vmatmul.mubr.f32.gmra.mrb[0].mxu0 %v1214
  %v1285 = vpop.f32.mrb[0].mxu0
  %v1286 = vadd.f32 %v1211, %v1285
  %v1287 = vpop.f32.mrb[0].mxu0
  %1288 = vmatprep.mubr.f32.mxu0 0.0
  %1289 = vmatmul.mubr.f32.gmra.mrb[0].mxu0 %v1217
  %v1290 = vpop.f32.mrb[0].mxu0
  %v1291 = vadd.f32 %v1211, %v1290
  %v1292 = vpop.f32.mrb[0].mxu0
  %1293 = vdwg.mxu0
  %v1294 = vadd.f32 %v1105, %v1286
  %v1295 = vadd.f32 %v1106, %v1291
  %v1296 = vld [vmem:[%s6 + $0x6] sm:$0x1]
  %v1297 = vld [vmem:[%s6 + $0x7] sm:$0x1]
  %v1298 = vsel %vm45, %v1294, 0.0
  %1299 = vadd.xlane.f32.xlu0 %v1298
  %v1300 = vpop.xlane.xlu0 %1299
  %v1301 = vsel %vm45, %v1295, 0.0
  %1302 = vadd.xlane.f32.xlu0 %v1301
  %v1303 = vpop.xlane.xlu0 %1302
  %v1304 = vmul.f32 %v1300, %v1074
  %v1305 = vmul.f32 %v1303, %v1074
  %v1306 = vsub.f32 %v1294, %v1304
  %v1307 = vsub.f32 %v1295, %v1305
  %v1308 = vmul.f32 %v1306, %v1306
  %v1309 = vmul.f32 %v1307, %v1307
  %v1310 = vsel %vm45, %v1308, 0.0
  %1311 = vadd.xlane.f32.xlu0 %v1310
  %v1312 = vpop.xlane.xlu0 %1311
  %v1313 = vsel %vm45, %v1309, 0.0
  %1314 = vadd.xlane.f32.xlu0 %v1313
  %v1315 = vpop.xlane.xlu0 %1314
  %v1316 = vmul.f32 %v1312, %v1074
  %v1317 = vmul.f32 %v1315, %v1074
  %v1318 = vadd.f32 %v1316, 1e-05
  %v1319 = vadd.f32 %v1317, 1e-05
  %v1320 = vrsqrt.pop %v1318
  %v1321 = vrsqrt.pop %v1319
  %v1322 = vmul.f32 %v1306, %v1320
  %v1323 = vmul.f32 %v1307, %v1321
  %v1324 = vlaneseq
  %v1325 = vshrl.u32 %v1324, 7
  %v1326 = vsub.s32 0, %v1325
  %v1327 = vrot.slane %v1296, %v1326
  %v1328 = vmul.f32 %v1322, %v1327
  %v1329 = vmul.f32 %v1323, %v1327
  %v1330 = vlaneseq
  %v1331 = vshrl.u32 %v1330, 7
  %v1332 = vsub.s32 0, %v1331
  %v1333 = vrot.slane %v1297, %v1332
  %v1334 = vadd.f32 %v1328, %v1333
  %v1335 = vadd.f32 %v1329, %v1333
  %v1336 = vld [vmem:[%s5 + $0xa0] sm:$0xff]
  %v1337 = vld [vmem:[%s5 + $0xa8] sm:$0xff]
  %v1338 = vld [vmem:[%s5 + $0xb0] sm:$0xff]
  %v1339 = vld [vmem:[%s5 + $0xb8] sm:$0xff]
  %v1340 = vld [vmem:[%s6 + $0x8] sm:$0x1]
  %v1341 = vlaneseq
  %v1342 = vshrl.u32 %v1341, 7
  %v1343 = vsub.s32 0, %v1342
  %v1344 = vrot.slane %v1340, %v1343
  %v1346 = vsel %vm45, %v1334, 0
  %v1349 = vsel %vm45, %v1335, 0
  %1351 = vmatprep.subr.mxu0 0.0
  %1352 = vmatpush1.msra.mxu0 %v1336
  %1353 = vmatprep.subr.mxu0 0.0
  %1354 = vmatpush1.msra.mxu0 %v1337
  %1355 = vmatprep.subr.mxu0 0.0
  %1356 = vmatpush1.msra.mxu0 %v1338
  %1357 = vmatprep.subr.mxu0 0.0
  %1358 = vmatpush1.msra.mxu0 %v1339
  %1359 = vmatprep.subr.mxu0 0.0
  %1360 = vmatpush1.msra.mxu0 0.0
  %1361 = vmatprep.subr.mxu0 0.0
  %1362 = vmatpush1.msra.mxu0 0.0
  %1363 = vmatprep.subr.mxu0 0.0
  %1364 = vmatpush1.msra.mxu0 0.0
  %1365 = vmatprep.subr.mxu0 0.0
  %1366 = vmatpush1.msra.mxu0 0.0
  %1367 = vmatprep.subr.mxu0 0.0
  %1368 = vmatpush1.msra.mxu0 0.0
  %1369 = vmatprep.subr.mxu0 0.0
  %1370 = vmatpush1.msra.mxu0 0.0
  %1371 = vmatprep.subr.mxu0 0.0
  %1372 = vmatpush1.msra.mxu0 0.0
  %1373 = vmatprep.subr.mxu0 0.0
  %1374 = vmatpush1.msra.mxu0 0.0
  %1375 = vmatprep.subr.mxu0 0.0
  %1376 = vmatpush1.msra.mxu0 0.0
  %1377 = vmatprep.subr.mxu0 0.0
  %1378 = vmatpush1.msra.mxu0 0.0
  %1379 = vmatprep.subr.mxu0 0.0
  %1380 = vmatpush1.msra.mxu0 0.0
  %1381 = vmatprep.subr.mxu0 0.0
  %1382 = vmatpush1.msra.mxu0 0.0
  %1383 = vmatprep.subr.mxu0 0.0
  %1384 = vmatpush1.msra.mxu0 0.0
  %1385 = vmatprep.subr.mxu0 0.0
  %1386 = vmatpush1.msra.mxu0 0.0
  %1387 = vmatprep.subr.mxu0 0.0
  %1388 = vmatpush1.msra.mxu0 0.0
  %1389 = vmatprep.subr.mxu0 0.0
  %1390 = vmatpush1.msra.mxu0 0.0
  %1391 = vmatprep.subr.mxu0 0.0
  %1392 = vmatpush1.msra.mxu0 0.0
  %1393 = vmatprep.subr.mxu0 0.0
  %1394 = vmatpush1.msra.mxu0 0.0
  %1395 = vmatprep.subr.mxu0 0.0
  %1396 = vmatpush1.msra.mxu0 0.0
  %1397 = vmatprep.subr.mxu0 0.0
  %1398 = vmatpush1.msra.mxu0 0.0
  %1399 = vmatprep.subr.mxu0 0.0
  %1400 = vmatpush1.msra.mxu0 0.0
  %1401 = vmatprep.subr.mxu0 0.0
  %1402 = vmatpush1.msra.mxu0 0.0
  %1403 = vmatprep.subr.mxu0 0.0
  %1404 = vmatpush1.msra.mxu0 0.0
  %1405 = vmatprep.subr.mxu0 0.0
  %1406 = vmatpush1.msra.mxu0 0.0
  %1407 = vmatprep.subr.mxu0 0.0
  %1408 = vmatpush1.msra.mxu0 0.0
  %1409 = vmatprep.subr.mxu0 0.0
  %1410 = vmatpush1.msra.mxu0 0.0
  %1411 = vmatprep.subr.mxu0 0.0
  %1412 = vmatpush1.msra.mxu0 0.0
  %1413 = vmatprep.subr.mxu0 0.0
  %1414 = vmatpush1.msra.mxu0 0.0
  %1415 = vmatprep.mubr.f32.mxu0 0.0
  %1416 = vmatmul.mubr.f32.gmra.mrb[0].mxu0 %v1346
  %v1417 = vpop.f32.mrb[0].mxu0
  %v1418 = vadd.f32 %v1344, %v1417
  %v1419 = vpop.f32.mrb[0].mxu0
  %1420 = vmatprep.mubr.f32.mxu0 0.0
  %1421 = vmatmul.mubr.f32.gmra.mrb[0].mxu0 %v1349
  %v1422 = vpop.f32.mrb[0].mxu0
  %v1423 = vadd.f32 %v1344, %v1422
  %v1424 = vpop.f32.mrb[0].mxu0
  %1425 = vdwg.mxu0
  %v1426 = vld [vmem:[%s5 + $0xc0] sm:$0xff]
  %v1427 = vld [vmem:[%s5 + $0xc8] sm:$0xff]
  %v1428 = vld [vmem:[%s5 + $0xd0] sm:$0xff]
  %v1429 = vld [vmem:[%s5 + $0xd8] sm:$0xff]
  %v1430 = vld [vmem:[%s6 + $0x9] sm:$0x1]
  %1433 = vrot.lane.b32.xlu0 %v1418, 96
  %v1434 = vpop.permute.xlu0 %1433
  %1435 = vrot.lane.b32.xlu0 %v1423, 96
  %v1436 = vpop.permute.xlu0 %1435
  %v1437 = vsel %vm138, %v1418, 0
  %v1439 = vsel %vm138, %v1423, 0
  %v1441 = vsel %vm138, %v1434, 0
  %v1443 = vsel %vm138, %v1436, 0
  %1445 = vmatprep.subr.mxu0 0.0
  %1446 = vmatpush1.xpose.msra.mxu0 %v1441
  %1447 = vmatprep.subr.mxu0 0.0
  %1448 = vmatpush1.xpose.msra.mxu0 %v1443
  %1449 = vmatprep.subr.mxu0 0.0
  %1450 = vmatpush1.xpose.msra.mxu0 0.0
  %1451 = vmatprep.subr.mxu0 0.0
  %1452 = vmatpush1.xpose.msra.mxu0 0.0
  %1453 = vmatprep.subr.mxu0 0.0
  %1454 = vmatpush1.xpose.msra.mxu0 0.0
  %1455 = vmatprep.subr.mxu0 0.0
  %1456 = vmatpush1.xpose.msra.mxu0 0.0
  %1457 = vmatprep.subr.mxu0 0.0
  %1458 = vmatpush1.xpose.msra.mxu0 0.0
  %1459 = vmatprep.subr.mxu0 0.0
  %1460 = vmatpush1.xpose.msra.mxu0 0.0
  %1461 = vmatprep.subr.mxu0 0.0
  %1462 = vmatpush1.xpose.msra.mxu0 0.0
  %1463 = vmatprep.subr.mxu0 0.0
  %1464 = vmatpush1.xpose.msra.mxu0 0.0
  %1465 = vmatprep.subr.mxu0 0.0
  %1466 = vmatpush1.xpose.msra.mxu0 0.0
  %1467 = vmatprep.subr.mxu0 0.0
  %1468 = vmatpush1.xpose.msra.mxu0 0.0
  %1469 = vmatprep.subr.mxu0 0.0
  %1470 = vmatpush1.xpose.msra.mxu0 0.0
  %1471 = vmatprep.subr.mxu0 0.0
  %1472 = vmatpush1.xpose.msra.mxu0 0.0
  %1473 = vmatprep.subr.mxu0 0.0
  %1474 = vmatpush1.xpose.msra.mxu0 0.0
  %1475 = vmatprep.subr.mxu0 0.0
  %1476 = vmatpush1.xpose.msra.mxu0 0.0
  %1477 = vmatprep.subr.mxu0 0.0
  %1478 = vmatpush1.xpose.msra.mxu0 0.0
  %1479 = vmatprep.subr.mxu0 0.0
  %1480 = vmatpush1.xpose.msra.mxu0 0.0
  %1481 = vmatprep.subr.mxu0 0.0
  %1482 = vmatpush1.xpose.msra.mxu0 0.0
  %1483 = vmatprep.subr.mxu0 0.0
  %1484 = vmatpush1.xpose.msra.mxu0 0.0
  %1485 = vmatprep.subr.mxu0 0.0
  %1486 = vmatpush1.xpose.msra.mxu0 0.0
  %1487 = vmatprep.subr.mxu0 0.0
  %1488 = vmatpush1.xpose.msra.mxu0 0.0
  %1489 = vmatprep.subr.mxu0 0.0
  %1490 = vmatpush1.xpose.msra.mxu0 0.0
  %1491 = vmatprep.subr.mxu0 0.0
  %1492 = vmatpush1.xpose.msra.mxu0 0.0
  %1493 = vmatprep.subr.mxu0 0.0
  %1494 = vmatpush1.xpose.msra.mxu0 0.0
  %1495 = vmatprep.subr.mxu0 0.0
  %1496 = vmatpush1.xpose.msra.mxu0 0.0
  %1497 = vmatprep.subr.mxu0 0.0
  %1498 = vmatpush1.xpose.msra.mxu0 0.0
  %1499 = vmatprep.subr.mxu0 0.0
  %1500 = vmatpush1.xpose.msra.mxu0 0.0
  %1501 = vmatprep.subr.mxu0 0.0
  %1502 = vmatpush1.xpose.msra.mxu0 0.0
  %1503 = vmatprep.subr.mxu0 0.0
  %1504 = vmatpush1.xpose.msra.mxu0 0.0
  %1505 = vmatprep.subr.mxu0 0.0
  %1506 = vmatpush1.xpose.msra.mxu0 0.0
  %1507 = vmatprep.subr.mxu0 0.0
  %1508 = vmatpush1.xpose.msra.mxu0 0.0
  %1509 = vmatprep.mubr.f32.mxu0 0.0
  %1510 = vmatmul.mubr.f32.gmra.mrb[0].mxu0 %v1437
  %v1511 = vpop.f32.mrb[0].mxu0
  %v1512 = vadd.f32 0.0, %v1511
  %v1513 = vpop.f32.mrb[0].mxu0
  %1514 = vmatprep.mubr.f32.mxu0 0.0
  %1515 = vmatmul.mubr.f32.gmra.mrb[0].mxu0 %v1439
  %v1516 = vpop.f32.mrb[0].mxu0
  %v1517 = vadd.f32 0.0, %v1516
  %v1518 = vpop.f32.mrb[0].mxu0
  %1519 = vdwg.mxu0
  %v1520 = vmul.f32 %v1512, 0.35355338
  %v1521 = vmul.f32 %v1517, 0.35355338
  %v1522 = vadd.f32 %v1520, %v30
  %v1523 = vadd.f32 %v1521, %v31
  %v1524 = vsel %vm226, %v1522, -inf
  %1525 = vmax.xlane.f32.xlu0 %v1524
  %v1526 = vpop.xlane.xlu0 %1525
  %v1527 = vsel %vm226, %v1523, -inf
  %1528 = vmax.xlane.f32.xlu0 %v1527
  %v1529 = vpop.xlane.xlu0 %1528
  %v1530 = vsub.f32 %v1522, %v1526
  %v1531 = vsub.f32 %v1523, %v1529
  %v1532 = vmul.f32 %v1530, 1.442695
  %v1533 = vpow.pop %v1532
  %v1534 = vmul.f32 %v1531, 1.442695
  %v1535 = vpow.pop %v1534
  %v1536 = vsel %vm226, %v1533, 0.0
  %1537 = vadd.xlane.f32.xlu0 %v1536
  %v1538 = vpop.xlane.xlu0 %1537
  %v1539 = vsel %vm226, %v1535, 0.0
  %1540 = vadd.xlane.f32.xlu0 %v1539
  %v1541 = vpop.xlane.xlu0 %1540
  %1542 = vrot.lane.b32.xlu0 %v1418, 64
  %v1543 = vpop.permute.xlu0 %1542
  %1544 = vrot.lane.b32.xlu0 %v1423, 64
  %v1545 = vpop.permute.xlu0 %1544
  %v1549 = vsel %vm226, %v1533, 0
  %v1552 = vsel %vm226, %v1535, 0
  %1554 = vmatprep.subr.mxu0 0.0
  %1555 = vmatpush1.msra.mxu0 %v1543
  %1556 = vmatprep.subr.mxu0 0.0
  %1557 = vmatpush1.msra.mxu0 %v1545
  %1558 = vmatprep.subr.mxu0 0.0
  %1559 = vmatpush1.msra.mxu0 0.0
  %1560 = vmatprep.subr.mxu0 0.0
  %1561 = vmatpush1.msra.mxu0 0.0
  %1562 = vmatprep.subr.mxu0 0.0
  %1563 = vmatpush1.msra.mxu0 0.0
  %1564 = vmatprep.subr.mxu0 0.0
  %1565 = vmatpush1.msra.mxu0 0.0
  %1566 = vmatprep.subr.mxu0 0.0
  %1567 = vmatpush1.msra.mxu0 0.0
  %1568 = vmatprep.subr.mxu0 0.0
  %1569 = vmatpush1.msra.mxu0 0.0
  %1570 = vmatprep.subr.mxu0 0.0
  %1571 = vmatpush1.msra.mxu0 0.0
  %1572 = vmatprep.subr.mxu0 0.0
  %1573 = vmatpush1.msra.mxu0 0.0
  %1574 = vmatprep.subr.mxu0 0.0
  %1575 = vmatpush1.msra.mxu0 0.0
  %1576 = vmatprep.subr.mxu0 0.0
  %1577 = vmatpush1.msra.mxu0 0.0
  %1578 = vmatprep.subr.mxu0 0.0
  %1579 = vmatpush1.msra.mxu0 0.0
  %1580 = vmatprep.subr.mxu0 0.0
  %1581 = vmatpush1.msra.mxu0 0.0
  %1582 = vmatprep.subr.mxu0 0.0
  %1583 = vmatpush1.msra.mxu0 0.0
  %1584 = vmatprep.subr.mxu0 0.0
  %1585 = vmatpush1.msra.mxu0 0.0
  %1586 = vmatprep.subr.mxu0 0.0
  %1587 = vmatpush1.msra.mxu0 0.0
  %1588 = vmatprep.subr.mxu0 0.0
  %1589 = vmatpush1.msra.mxu0 0.0
  %1590 = vmatprep.subr.mxu0 0.0
  %1591 = vmatpush1.msra.mxu0 0.0
  %1592 = vmatprep.subr.mxu0 0.0
  %1593 = vmatpush1.msra.mxu0 0.0
  %1594 = vmatprep.subr.mxu0 0.0
  %1595 = vmatpush1.msra.mxu0 0.0
  %1596 = vmatprep.subr.mxu0 0.0
  %1597 = vmatpush1.msra.mxu0 0.0
  %1598 = vmatprep.subr.mxu0 0.0
  %1599 = vmatpush1.msra.mxu0 0.0
  %1600 = vmatprep.subr.mxu0 0.0
  %1601 = vmatpush1.msra.mxu0 0.0
  %1602 = vmatprep.subr.mxu0 0.0
  %1603 = vmatpush1.msra.mxu0 0.0
  %1604 = vmatprep.subr.mxu0 0.0
  %1605 = vmatpush1.msra.mxu0 0.0
  %1606 = vmatprep.subr.mxu0 0.0
  %1607 = vmatpush1.msra.mxu0 0.0
  %1608 = vmatprep.subr.mxu0 0.0
  %1609 = vmatpush1.msra.mxu0 0.0
  %1610 = vmatprep.subr.mxu0 0.0
  %1611 = vmatpush1.msra.mxu0 0.0
  %1612 = vmatprep.subr.mxu0 0.0
  %1613 = vmatpush1.msra.mxu0 0.0
  %1614 = vmatprep.subr.mxu0 0.0
  %1615 = vmatpush1.msra.mxu0 0.0
  %1616 = vmatprep.subr.mxu0 0.0
  %1617 = vmatpush1.msra.mxu0 0.0
  %1618 = vmatprep.mubr.f32.mxu0 0.0
  %1619 = vmatmul.mubr.f32.gmra.mrb[0].mxu0 %v1549
  %v1620 = vpop.f32.mrb[0].mxu0
  %v1621 = vadd.f32 0.0, %v1620
  %v1622 = vpop.f32.mrb[0].mxu0
  %1623 = vmatprep.mubr.f32.mxu0 0.0
  %1624 = vmatmul.mubr.f32.gmra.mrb[0].mxu0 %v1552
  %v1625 = vpop.f32.mrb[0].mxu0
  %v1626 = vadd.f32 0.0, %v1625
  %v1627 = vpop.f32.mrb[0].mxu0
  %1628 = vdwg.mxu0
  %v1629 = vrcp.pop %v1538
  %v1630 = vrcp.pop %v1541
  %v1631 = vmul.f32 %v1621, %v1629
  %v1632 = vmul.f32 %v1626, %v1630
  %1633 = vrot.lane.b32.xlu0 %v1418, 120
  %v1634 = vpop.permute.xlu0 %1633
  %1635 = vrot.lane.b32.xlu0 %v1423, 120
  %v1636 = vpop.permute.xlu0 %1635
  %1637 = vrot.lane.b32.xlu0 %v1418, 88
  %v1638 = vpop.permute.xlu0 %1637
  %1639 = vrot.lane.b32.xlu0 %v1423, 88
  %v1640 = vpop.permute.xlu0 %1639
  %v1641 = vsel %vm138, %v1634, 0
  %v1643 = vsel %vm138, %v1636, 0
  %v1645 = vsel %vm138, %v1638, 0
  %v1647 = vsel %vm138, %v1640, 0
  %1649 = vmatprep.subr.mxu0 0.0
  %1650 = vmatpush1.xpose.msra.mxu0 %v1645
  %1651 = vmatprep.subr.mxu0 0.0
  %1652 = vmatpush1.xpose.msra.mxu0 %v1647
  %1653 = vmatprep.subr.mxu0 0.0
  %1654 = vmatpush1.xpose.msra.mxu0 0.0
  %1655 = vmatprep.subr.mxu0 0.0
  %1656 = vmatpush1.xpose.msra.mxu0 0.0
  %1657 = vmatprep.subr.mxu0 0.0
  %1658 = vmatpush1.xpose.msra.mxu0 0.0
  %1659 = vmatprep.subr.mxu0 0.0
  %1660 = vmatpush1.xpose.msra.mxu0 0.0
  %1661 = vmatprep.subr.mxu0 0.0
  %1662 = vmatpush1.xpose.msra.mxu0 0.0
  %1663 = vmatprep.subr.mxu0 0.0
  %1664 = vmatpush1.xpose.msra.mxu0 0.0
  %1665 = vmatprep.subr.mxu0 0.0
  %1666 = vmatpush1.xpose.msra.mxu0 0.0
  %1667 = vmatprep.subr.mxu0 0.0
  %1668 = vmatpush1.xpose.msra.mxu0 0.0
  %1669 = vmatprep.subr.mxu0 0.0
  %1670 = vmatpush1.xpose.msra.mxu0 0.0
  %1671 = vmatprep.subr.mxu0 0.0
  %1672 = vmatpush1.xpose.msra.mxu0 0.0
  %1673 = vmatprep.subr.mxu0 0.0
  %1674 = vmatpush1.xpose.msra.mxu0 0.0
  %1675 = vmatprep.subr.mxu0 0.0
  %1676 = vmatpush1.xpose.msra.mxu0 0.0
  %1677 = vmatprep.subr.mxu0 0.0
  %1678 = vmatpush1.xpose.msra.mxu0 0.0
  %1679 = vmatprep.subr.mxu0 0.0
  %1680 = vmatpush1.xpose.msra.mxu0 0.0
  %1681 = vmatprep.subr.mxu0 0.0
  %1682 = vmatpush1.xpose.msra.mxu0 0.0
  %1683 = vmatprep.subr.mxu0 0.0
  %1684 = vmatpush1.xpose.msra.mxu0 0.0
  %1685 = vmatprep.subr.mxu0 0.0
  %1686 = vmatpush1.xpose.msra.mxu0 0.0
  %1687 = vmatprep.subr.mxu0 0.0
  %1688 = vmatpush1.xpose.msra.mxu0 0.0
  %1689 = vmatprep.subr.mxu0 0.0
  %1690 = vmatpush1.xpose.msra.mxu0 0.0
  %1691 = vmatprep.subr.mxu0 0.0
  %1692 = vmatpush1.xpose.msra.mxu0 0.0
  %1693 = vmatprep.subr.mxu0 0.0
  %1694 = vmatpush1.xpose.msra.mxu0 0.0
  %1695 = vmatprep.subr.mxu0 0.0
  %1696 = vmatpush1.xpose.msra.mxu0 0.0
  %1697 = vmatprep.subr.mxu0 0.0
  %1698 = vmatpush1.xpose.msra.mxu0 0.0
  %1699 = vmatprep.subr.mxu0 0.0
  %1700 = vmatpush1.xpose.msra.mxu0 0.0
  %1701 = vmatprep.subr.mxu0 0.0
  %1702 = vmatpush1.xpose.msra.mxu0 0.0
  %1703 = vmatprep.subr.mxu0 0.0
  %1704 = vmatpush1.xpose.msra.mxu0 0.0
  %1705 = vmatprep.subr.mxu0 0.0
  %1706 = vmatpush1.xpose.msra.mxu0 0.0
  %1707 = vmatprep.subr.mxu0 0.0
  %1708 = vmatpush1.xpose.msra.mxu0 0.0
  %1709 = vmatprep.subr.mxu0 0.0
  %1710 = vmatpush1.xpose.msra.mxu0 0.0
  %1711 = vmatprep.subr.mxu0 0.0
  %1712 = vmatpush1.xpose.msra.mxu0 0.0
  %1713 = vmatprep.mubr.f32.mxu0 0.0
  %1714 = vmatmul.mubr.f32.gmra.mrb[0].mxu0 %v1641
  %v1715 = vpop.f32.mrb[0].mxu0
  %v1716 = vadd.f32 0.0, %v1715
  %v1717 = vpop.f32.mrb[0].mxu0
  %1718 = vmatprep.mubr.f32.mxu0 0.0
  %1719 = vmatmul.mubr.f32.gmra.mrb[0].mxu0 %v1643
  %v1720 = vpop.f32.mrb[0].mxu0
  %v1721 = vadd.f32 0.0, %v1720
  %v1722 = vpop.f32.mrb[0].mxu0
  %1723 = vdwg.mxu0
  %v1724 = vmul.f32 %v1716, 0.35355338
  %v1725 = vmul.f32 %v1721, 0.35355338
  %v1726 = vadd.f32 %v1724, %v30
  %v1727 = vadd.f32 %v1725, %v31
  %v1728 = vsel %vm226, %v1726, -inf
  %1729 = vmax.xlane.f32.xlu0 %v1728
  %v1730 = vpop.xlane.xlu0 %1729
  %v1731 = vsel %vm226, %v1727, -inf
  %1732 = vmax.xlane.f32.xlu0 %v1731
  %v1733 = vpop.xlane.xlu0 %1732
  %v1734 = vsub.f32 %v1726, %v1730
  %v1735 = vsub.f32 %v1727, %v1733
  %v1736 = vmul.f32 %v1734, 1.442695
  %v1737 = vpow.pop %v1736
  %v1738 = vmul.f32 %v1735, 1.442695
  %v1739 = vpow.pop %v1738
  %v1740 = vsel %vm226, %v1737, 0.0
  %1741 = vadd.xlane.f32.xlu0 %v1740
  %v1742 = vpop.xlane.xlu0 %1741
  %v1743 = vsel %vm226, %v1739, 0.0
  %1744 = vadd.xlane.f32.xlu0 %v1743
  %v1745 = vpop.xlane.xlu0 %1744
  %1746 = vrot.lane.b32.xlu0 %v1418, 56
  %v1747 = vpop.permute.xlu0 %1746
  %1748 = vrot.lane.b32.xlu0 %v1423, 56
  %v1749 = vpop.permute.xlu0 %1748
  %v1753 = vsel %vm226, %v1737, 0
  %v1756 = vsel %vm226, %v1739, 0
  %1758 = vmatprep.subr.mxu0 0.0
  %1759 = vmatpush1.msra.mxu0 %v1747
  %1760 = vmatprep.subr.mxu0 0.0
  %1761 = vmatpush1.msra.mxu0 %v1749
  %1762 = vmatprep.subr.mxu0 0.0
  %1763 = vmatpush1.msra.mxu0 0.0
  %1764 = vmatprep.subr.mxu0 0.0
  %1765 = vmatpush1.msra.mxu0 0.0
  %1766 = vmatprep.subr.mxu0 0.0
  %1767 = vmatpush1.msra.mxu0 0.0
  %1768 = vmatprep.subr.mxu0 0.0
  %1769 = vmatpush1.msra.mxu0 0.0
  %1770 = vmatprep.subr.mxu0 0.0
  %1771 = vmatpush1.msra.mxu0 0.0
  %1772 = vmatprep.subr.mxu0 0.0
  %1773 = vmatpush1.msra.mxu0 0.0
  %1774 = vmatprep.subr.mxu0 0.0
  %1775 = vmatpush1.msra.mxu0 0.0
  %1776 = vmatprep.subr.mxu0 0.0
  %1777 = vmatpush1.msra.mxu0 0.0
  %1778 = vmatprep.subr.mxu0 0.0
  %1779 = vmatpush1.msra.mxu0 0.0
  %1780 = vmatprep.subr.mxu0 0.0
  %1781 = vmatpush1.msra.mxu0 0.0
  %1782 = vmatprep.subr.mxu0 0.0
  %1783 = vmatpush1.msra.mxu0 0.0
  %1784 = vmatprep.subr.mxu0 0.0
  %1785 = vmatpush1.msra.mxu0 0.0
  %1786 = vmatprep.subr.mxu0 0.0
  %1787 = vmatpush1.msra.mxu0 0.0
  %1788 = vmatprep.subr.mxu0 0.0
  %1789 = vmatpush1.msra.mxu0 0.0
  %1790 = vmatprep.subr.mxu0 0.0
  %1791 = vmatpush1.msra.mxu0 0.0
  %1792 = vmatprep.subr.mxu0 0.0
  %1793 = vmatpush1.msra.mxu0 0.0
  %1794 = vmatprep.subr.mxu0 0.0
  %1795 = vmatpush1.msra.mxu0 0.0
  %1796 = vmatprep.subr.mxu0 0.0
  %1797 = vmatpush1.msra.mxu0 0.0
  %1798 = vmatprep.subr.mxu0 0.0
  %1799 = vmatpush1.msra.mxu0 0.0
  %1800 = vmatprep.subr.mxu0 0.0
  %1801 = vmatpush1.msra.mxu0 0.0
  %1802 = vmatprep.subr.mxu0 0.0
  %1803 = vmatpush1.msra.mxu0 0.0
  %1804 = vmatprep.subr.mxu0 0.0
  %1805 = vmatpush1.msra.mxu0 0.0
  %1806 = vmatprep.subr.mxu0 0.0
  %1807 = vmatpush1.msra.mxu0 0.0
  %1808 = vmatprep.subr.mxu0 0.0
  %1809 = vmatpush1.msra.mxu0 0.0
  %1810 = vmatprep.subr.mxu0 0.0
  %1811 = vmatpush1.msra.mxu0 0.0
  %1812 = vmatprep.subr.mxu0 0.0
  %1813 = vmatpush1.msra.mxu0 0.0
  %1814 = vmatprep.subr.mxu0 0.0
  %1815 = vmatpush1.msra.mxu0 0.0
  %1816 = vmatprep.subr.mxu0 0.0
  %1817 = vmatpush1.msra.mxu0 0.0
  %1818 = vmatprep.subr.mxu0 0.0
  %1819 = vmatpush1.msra.mxu0 0.0
  %1820 = vmatprep.subr.mxu0 0.0
  %1821 = vmatpush1.msra.mxu0 0.0
  %1822 = vmatprep.mubr.f32.mxu0 0.0
  %1823 = vmatmul.mubr.f32.gmra.mrb[0].mxu0 %v1753
  %v1824 = vpop.f32.mrb[0].mxu0
  %v1825 = vadd.f32 0.0, %v1824
  %v1826 = vpop.f32.mrb[0].mxu0
  %1827 = vmatprep.mubr.f32.mxu0 0.0
  %1828 = vmatmul.mubr.f32.gmra.mrb[0].mxu0 %v1756
  %v1829 = vpop.f32.mrb[0].mxu0
  %v1830 = vadd.f32 0.0, %v1829
  %v1831 = vpop.f32.mrb[0].mxu0
  %1832 = vdwg.mxu0
  %v1833 = vrcp.pop %v1742
  %v1834 = vrcp.pop %v1745
  %v1835 = vmul.f32 %v1825, %v1833
  %v1836 = vmul.f32 %v1830, %v1834
  %1837 = vrot.lane.b32.xlu0 %v1418, 112
  %v1838 = vpop.permute.xlu0 %1837
  %1839 = vrot.lane.b32.xlu0 %v1423, 112
  %v1840 = vpop.permute.xlu0 %1839
  %1841 = vrot.lane.b32.xlu0 %v1418, 80
  %v1842 = vpop.permute.xlu0 %1841
  %1843 = vrot.lane.b32.xlu0 %v1423, 80
  %v1844 = vpop.permute.xlu0 %1843
  %v1845 = vsel %vm138, %v1838, 0
  %v1847 = vsel %vm138, %v1840, 0
  %v1849 = vsel %vm138, %v1842, 0
  %v1851 = vsel %vm138, %v1844, 0
  %1853 = vmatprep.subr.mxu0 0.0
  %1854 = vmatpush1.xpose.msra.mxu0 %v1849
  %1855 = vmatprep.subr.mxu0 0.0
  %1856 = vmatpush1.xpose.msra.mxu0 %v1851
  %1857 = vmatprep.subr.mxu0 0.0
  %1858 = vmatpush1.xpose.msra.mxu0 0.0
  %1859 = vmatprep.subr.mxu0 0.0
  %1860 = vmatpush1.xpose.msra.mxu0 0.0
  %1861 = vmatprep.subr.mxu0 0.0
  %1862 = vmatpush1.xpose.msra.mxu0 0.0
  %1863 = vmatprep.subr.mxu0 0.0
  %1864 = vmatpush1.xpose.msra.mxu0 0.0
  %1865 = vmatprep.subr.mxu0 0.0
  %1866 = vmatpush1.xpose.msra.mxu0 0.0
  %1867 = vmatprep.subr.mxu0 0.0
  %1868 = vmatpush1.xpose.msra.mxu0 0.0
  %1869 = vmatprep.subr.mxu0 0.0
  %1870 = vmatpush1.xpose.msra.mxu0 0.0
  %1871 = vmatprep.subr.mxu0 0.0
  %1872 = vmatpush1.xpose.msra.mxu0 0.0
  %1873 = vmatprep.subr.mxu0 0.0
  %1874 = vmatpush1.xpose.msra.mxu0 0.0
  %1875 = vmatprep.subr.mxu0 0.0
  %1876 = vmatpush1.xpose.msra.mxu0 0.0
  %1877 = vmatprep.subr.mxu0 0.0
  %1878 = vmatpush1.xpose.msra.mxu0 0.0
  %1879 = vmatprep.subr.mxu0 0.0
  %1880 = vmatpush1.xpose.msra.mxu0 0.0
  %1881 = vmatprep.subr.mxu0 0.0
  %1882 = vmatpush1.xpose.msra.mxu0 0.0
  %1883 = vmatprep.subr.mxu0 0.0
  %1884 = vmatpush1.xpose.msra.mxu0 0.0
  %1885 = vmatprep.subr.mxu0 0.0
  %1886 = vmatpush1.xpose.msra.mxu0 0.0
  %1887 = vmatprep.subr.mxu0 0.0
  %1888 = vmatpush1.xpose.msra.mxu0 0.0
  %1889 = vmatprep.subr.mxu0 0.0
  %1890 = vmatpush1.xpose.msra.mxu0 0.0
  %1891 = vmatprep.subr.mxu0 0.0
  %1892 = vmatpush1.xpose.msra.mxu0 0.0
  %1893 = vmatprep.subr.mxu0 0.0
  %1894 = vmatpush1.xpose.msra.mxu0 0.0
  %1895 = vmatprep.subr.mxu0 0.0
  %1896 = vmatpush1.xpose.msra.mxu0 0.0
  %1897 = vmatprep.subr.mxu0 0.0
  %1898 = vmatpush1.xpose.msra.mxu0 0.0
  %1899 = vmatprep.subr.mxu0 0.0
  %1900 = vmatpush1.xpose.msra.mxu0 0.0
  %1901 = vmatprep.subr.mxu0 0.0
  %1902 = vmatpush1.xpose.msra.mxu0 0.0
  %1903 = vmatprep.subr.mxu0 0.0
  %1904 = vmatpush1.xpose.msra.mxu0 0.0
  %1905 = vmatprep.subr.mxu0 0.0
  %1906 = vmatpush1.xpose.msra.mxu0 0.0
  %1907 = vmatprep.subr.mxu0 0.0
  %1908 = vmatpush1.xpose.msra.mxu0 0.0
  %1909 = vmatprep.subr.mxu0 0.0
  %1910 = vmatpush1.xpose.msra.mxu0 0.0
  %1911 = vmatprep.subr.mxu0 0.0
  %1912 = vmatpush1.xpose.msra.mxu0 0.0
  %1913 = vmatprep.subr.mxu0 0.0
  %1914 = vmatpush1.xpose.msra.mxu0 0.0
  %1915 = vmatprep.subr.mxu0 0.0
  %1916 = vmatpush1.xpose.msra.mxu0 0.0
  %1917 = vmatprep.mubr.f32.mxu0 0.0
  %1918 = vmatmul.mubr.f32.gmra.mrb[0].mxu0 %v1845
  %v1919 = vpop.f32.mrb[0].mxu0
  %v1920 = vadd.f32 0.0, %v1919
  %v1921 = vpop.f32.mrb[0].mxu0
  %1922 = vmatprep.mubr.f32.mxu0 0.0
  %1923 = vmatmul.mubr.f32.gmra.mrb[0].mxu0 %v1847
  %v1924 = vpop.f32.mrb[0].mxu0
  %v1925 = vadd.f32 0.0, %v1924
  %v1926 = vpop.f32.mrb[0].mxu0
  %1927 = vdwg.mxu0
  %v1928 = vmul.f32 %v1920, 0.35355338
  %v1929 = vmul.f32 %v1925, 0.35355338
  %v1930 = vadd.f32 %v1928, %v30
  %v1931 = vadd.f32 %v1929, %v31
  %v1932 = vsel %vm226, %v1930, -inf
  %1933 = vmax.xlane.f32.xlu0 %v1932
  %v1934 = vpop.xlane.xlu0 %1933
  %v1935 = vsel %vm226, %v1931, -inf
  %1936 = vmax.xlane.f32.xlu0 %v1935
  %v1937 = vpop.xlane.xlu0 %1936
  %v1938 = vsub.f32 %v1930, %v1934
  %v1939 = vsub.f32 %v1931, %v1937
  %v1940 = vmul.f32 %v1938, 1.442695
  %v1941 = vpow.pop %v1940
  %v1942 = vmul.f32 %v1939, 1.442695
  %v1943 = vpow.pop %v1942
  %v1944 = vsel %vm226, %v1941, 0.0
  %1945 = vadd.xlane.f32.xlu0 %v1944
  %v1946 = vpop.xlane.xlu0 %1945
  %v1947 = vsel %vm226, %v1943, 0.0
  %1948 = vadd.xlane.f32.xlu0 %v1947
  %v1949 = vpop.xlane.xlu0 %1948
  %1950 = vrot.lane.b32.xlu0 %v1418, 48
  %v1951 = vpop.permute.xlu0 %1950
  %1952 = vrot.lane.b32.xlu0 %v1423, 48
  %v1953 = vpop.permute.xlu0 %1952
  %v1957 = vsel %vm226, %v1941, 0
  %v1960 = vsel %vm226, %v1943, 0
  %1962 = vmatprep.subr.mxu0 0.0
  %1963 = vmatpush1.msra.mxu0 %v1951
  %1964 = vmatprep.subr.mxu0 0.0
  %1965 = vmatpush1.msra.mxu0 %v1953
  %1966 = vmatprep.subr.mxu0 0.0
  %1967 = vmatpush1.msra.mxu0 0.0
  %1968 = vmatprep.subr.mxu0 0.0
  %1969 = vmatpush1.msra.mxu0 0.0
  %1970 = vmatprep.subr.mxu0 0.0
  %1971 = vmatpush1.msra.mxu0 0.0
  %1972 = vmatprep.subr.mxu0 0.0
  %1973 = vmatpush1.msra.mxu0 0.0
  %1974 = vmatprep.subr.mxu0 0.0
  %1975 = vmatpush1.msra.mxu0 0.0
  %1976 = vmatprep.subr.mxu0 0.0
  %1977 = vmatpush1.msra.mxu0 0.0
  %1978 = vmatprep.subr.mxu0 0.0
  %1979 = vmatpush1.msra.mxu0 0.0
  %1980 = vmatprep.subr.mxu0 0.0
  %1981 = vmatpush1.msra.mxu0 0.0
  %1982 = vmatprep.subr.mxu0 0.0
  %1983 = vmatpush1.msra.mxu0 0.0
  %1984 = vmatprep.subr.mxu0 0.0
  %1985 = vmatpush1.msra.mxu0 0.0
  %1986 = vmatprep.subr.mxu0 0.0
  %1987 = vmatpush1.msra.mxu0 0.0
  %1988 = vmatprep.subr.mxu0 0.0
  %1989 = vmatpush1.msra.mxu0 0.0
  %1990 = vmatprep.subr.mxu0 0.0
  %1991 = vmatpush1.msra.mxu0 0.0
  %1992 = vmatprep.subr.mxu0 0.0
  %1993 = vmatpush1.msra.mxu0 0.0
  %1994 = vmatprep.subr.mxu0 0.0
  %1995 = vmatpush1.msra.mxu0 0.0
  %1996 = vmatprep.subr.mxu0 0.0
  %1997 = vmatpush1.msra.mxu0 0.0
  %1998 = vmatprep.subr.mxu0 0.0
  %1999 = vmatpush1.msra.mxu0 0.0
  %2000 = vmatprep.subr.mxu0 0.0
  %2001 = vmatpush1.msra.mxu0 0.0
  %2002 = vmatprep.subr.mxu0 0.0
  %2003 = vmatpush1.msra.mxu0 0.0
  %2004 = vmatprep.subr.mxu0 0.0
  %2005 = vmatpush1.msra.mxu0 0.0
  %2006 = vmatprep.subr.mxu0 0.0
  %2007 = vmatpush1.msra.mxu0 0.0
  %2008 = vmatprep.subr.mxu0 0.0
  %2009 = vmatpush1.msra.mxu0 0.0
  %2010 = vmatprep.subr.mxu0 0.0
  %2011 = vmatpush1.msra.mxu0 0.0
  %2012 = vmatprep.subr.mxu0 0.0
  %2013 = vmatpush1.msra.mxu0 0.0
  %2014 = vmatprep.subr.mxu0 0.0
  %2015 = vmatpush1.msra.mxu0 0.0
  %2016 = vmatprep.subr.mxu0 0.0
  %2017 = vmatpush1.msra.mxu0 0.0
  %2018 = vmatprep.subr.mxu0 0.0
  %2019 = vmatpush1.msra.mxu0 0.0
  %2020 = vmatprep.subr.mxu0 0.0
  %2021 = vmatpush1.msra.mxu0 0.0
  %2022 = vmatprep.subr.mxu0 0.0
  %2023 = vmatpush1.msra.mxu0 0.0
  %2024 = vmatprep.subr.mxu0 0.0
  %2025 = vmatpush1.msra.mxu0 0.0
  %2026 = vmatprep.mubr.f32.mxu0 0.0
  %2027 = vmatmul.mubr.f32.gmra.mrb[0].mxu0 %v1957
  %v2028 = vpop.f32.mrb[0].mxu0
  %v2029 = vadd.f32 0.0, %v2028
  %v2030 = vpop.f32.mrb[0].mxu0
  %2031 = vmatprep.mubr.f32.mxu0 0.0
  %2032 = vmatmul.mubr.f32.gmra.mrb[0].mxu0 %v1960
  %v2033 = vpop.f32.mrb[0].mxu0
  %v2034 = vadd.f32 0.0, %v2033
  %v2035 = vpop.f32.mrb[0].mxu0
  %2036 = vdwg.mxu0
  %v2037 = vrcp.pop %v1946
  %v2038 = vrcp.pop %v1949
  %v2039 = vmul.f32 %v2029, %v2037
  %v2040 = vmul.f32 %v2034, %v2038
  %2041 = vrot.lane.b32.xlu0 %v1418, 104
  %v2042 = vpop.permute.xlu0 %2041
  %2043 = vrot.lane.b32.xlu0 %v1423, 104
  %v2044 = vpop.permute.xlu0 %2043
  %2045 = vrot.lane.b32.xlu0 %v1418, 72
  %v2046 = vpop.permute.xlu0 %2045
  %2047 = vrot.lane.b32.xlu0 %v1423, 72
  %v2048 = vpop.permute.xlu0 %2047
  %v2049 = vsel %vm138, %v2042, 0
  %v2051 = vsel %vm138, %v2044, 0
  %v2053 = vsel %vm138, %v2046, 0
  %v2055 = vsel %vm138, %v2048, 0
  %2057 = vmatprep.subr.mxu0 0.0
  %2058 = vmatpush1.xpose.msra.mxu0 %v2053
  %2059 = vmatprep.subr.mxu0 0.0
  %2060 = vmatpush1.xpose.msra.mxu0 %v2055
  %2061 = vmatprep.subr.mxu0 0.0
  %2062 = vmatpush1.xpose.msra.mxu0 0.0
  %2063 = vmatprep.subr.mxu0 0.0
  %2064 = vmatpush1.xpose.msra.mxu0 0.0
  %2065 = vmatprep.subr.mxu0 0.0
  %2066 = vmatpush1.xpose.msra.mxu0 0.0
  %2067 = vmatprep.subr.mxu0 0.0
  %2068 = vmatpush1.xpose.msra.mxu0 0.0
  %2069 = vmatprep.subr.mxu0 0.0
  %2070 = vmatpush1.xpose.msra.mxu0 0.0
  %2071 = vmatprep.subr.mxu0 0.0
  %2072 = vmatpush1.xpose.msra.mxu0 0.0
  %2073 = vmatprep.subr.mxu0 0.0
  %2074 = vmatpush1.xpose.msra.mxu0 0.0
  %2075 = vmatprep.subr.mxu0 0.0
  %2076 = vmatpush1.xpose.msra.mxu0 0.0
  %2077 = vmatprep.subr.mxu0 0.0
  %2078 = vmatpush1.xpose.msra.mxu0 0.0
  %2079 = vmatprep.subr.mxu0 0.0
  %2080 = vmatpush1.xpose.msra.mxu0 0.0
  %2081 = vmatprep.subr.mxu0 0.0
  %2082 = vmatpush1.xpose.msra.mxu0 0.0
  %2083 = vmatprep.subr.mxu0 0.0
  %2084 = vmatpush1.xpose.msra.mxu0 0.0
  %2085 = vmatprep.subr.mxu0 0.0
  %2086 = vmatpush1.xpose.msra.mxu0 0.0
  %2087 = vmatprep.subr.mxu0 0.0
  %2088 = vmatpush1.xpose.msra.mxu0 0.0
  %2089 = vmatprep.subr.mxu0 0.0
  %2090 = vmatpush1.xpose.msra.mxu0 0.0
  %2091 = vmatprep.subr.mxu0 0.0
  %2092 = vmatpush1.xpose.msra.mxu0 0.0
  %2093 = vmatprep.subr.mxu0 0.0
  %2094 = vmatpush1.xpose.msra.mxu0 0.0
  %2095 = vmatprep.subr.mxu0 0.0
  %2096 = vmatpush1.xpose.msra.mxu0 0.0
  %2097 = vmatprep.subr.mxu0 0.0
  %2098 = vmatpush1.xpose.msra.mxu0 0.0
  %2099 = vmatprep.subr.mxu0 0.0
  %2100 = vmatpush1.xpose.msra.mxu0 0.0
  %2101 = vmatprep.subr.mxu0 0.0
  %2102 = vmatpush1.xpose.msra.mxu0 0.0
  %2103 = vmatprep.subr.mxu0 0.0
  %2104 = vmatpush1.xpose.msra.mxu0 0.0
  %2105 = vmatprep.subr.mxu0 0.0
  %2106 = vmatpush1.xpose.msra.mxu0 0.0
  %2107 = vmatprep.subr.mxu0 0.0
  %2108 = vmatpush1.xpose.msra.mxu0 0.0
  %2109 = vmatprep.subr.mxu0 0.0
  %2110 = vmatpush1.xpose.msra.mxu0 0.0
  %2111 = vmatprep.subr.mxu0 0.0
  %2112 = vmatpush1.xpose.msra.mxu0 0.0
  %2113 = vmatprep.subr.mxu0 0.0
  %2114 = vmatpush1.xpose.msra.mxu0 0.0
  %2115 = vmatprep.subr.mxu0 0.0
  %2116 = vmatpush1.xpose.msra.mxu0 0.0
  %2117 = vmatprep.subr.mxu0 0.0
  %2118 = vmatpush1.xpose.msra.mxu0 0.0
  %2119 = vmatprep.subr.mxu0 0.0
  %2120 = vmatpush1.xpose.msra.mxu0 0.0
  %2121 = vmatprep.mubr.f32.mxu0 0.0
  %2122 = vmatmul.mubr.f32.gmra.mrb[0].mxu0 %v2049
  %v2123 = vpop.f32.mrb[0].mxu0
  %v2124 = vadd.f32 0.0, %v2123
  %v2125 = vpop.f32.mrb[0].mxu0
  %2126 = vmatprep.mubr.f32.mxu0 0.0
  %2127 = vmatmul.mubr.f32.gmra.mrb[0].mxu0 %v2051
  %v2128 = vpop.f32.mrb[0].mxu0
  %v2129 = vadd.f32 0.0, %v2128
  %v2130 = vpop.f32.mrb[0].mxu0
  %2131 = vdwg.mxu0
  %v2132 = vmul.f32 %v2124, 0.35355338
  %v2133 = vmul.f32 %v2129, 0.35355338
  %v2134 = vadd.f32 %v2132, %v30
  %v2135 = vadd.f32 %v2133, %v31
  %v2136 = vsel %vm226, %v2134, -inf
  %2137 = vmax.xlane.f32.xlu0 %v2136
  %v2138 = vpop.xlane.xlu0 %2137
  %v2139 = vsel %vm226, %v2135, -inf
  %2140 = vmax.xlane.f32.xlu0 %v2139
  %v2141 = vpop.xlane.xlu0 %2140
  %v2142 = vsub.f32 %v2134, %v2138
  %v2143 = vsub.f32 %v2135, %v2141
  %v2144 = vmul.f32 %v2142, 1.442695
  %v2145 = vpow.pop %v2144
  %v2146 = vmul.f32 %v2143, 1.442695
  %v2147 = vpow.pop %v2146
  %v2148 = vsel %vm226, %v2145, 0.0
  %2149 = vadd.xlane.f32.xlu0 %v2148
  %v2150 = vpop.xlane.xlu0 %2149
  %v2151 = vsel %vm226, %v2147, 0.0
  %2152 = vadd.xlane.f32.xlu0 %v2151
  %v2153 = vpop.xlane.xlu0 %2152
  %2154 = vrot.lane.b32.xlu0 %v1418, 40
  %v2155 = vpop.permute.xlu0 %2154
  %2156 = vrot.lane.b32.xlu0 %v1423, 40
  %v2157 = vpop.permute.xlu0 %2156
  %v2161 = vsel %vm226, %v2145, 0
  %v2164 = vsel %vm226, %v2147, 0
  %2166 = vmatprep.subr.mxu0 0.0
  %2167 = vmatpush1.msra.mxu0 %v2155
  %2168 = vmatprep.subr.mxu0 0.0
  %2169 = vmatpush1.msra.mxu0 %v2157
  %2170 = vmatprep.subr.mxu0 0.0
  %2171 = vmatpush1.msra.mxu0 0.0
  %2172 = vmatprep.subr.mxu0 0.0
  %2173 = vmatpush1.msra.mxu0 0.0
  %2174 = vmatprep.subr.mxu0 0.0
  %2175 = vmatpush1.msra.mxu0 0.0
  %2176 = vmatprep.subr.mxu0 0.0
  %2177 = vmatpush1.msra.mxu0 0.0
  %2178 = vmatprep.subr.mxu0 0.0
  %2179 = vmatpush1.msra.mxu0 0.0
  %2180 = vmatprep.subr.mxu0 0.0
  %2181 = vmatpush1.msra.mxu0 0.0
  %2182 = vmatprep.subr.mxu0 0.0
  %2183 = vmatpush1.msra.mxu0 0.0
  %2184 = vmatprep.subr.mxu0 0.0
  %2185 = vmatpush1.msra.mxu0 0.0
  %2186 = vmatprep.subr.mxu0 0.0
  %2187 = vmatpush1.msra.mxu0 0.0
  %2188 = vmatprep.subr.mxu0 0.0
  %2189 = vmatpush1.msra.mxu0 0.0
  %2190 = vmatprep.subr.mxu0 0.0
  %2191 = vmatpush1.msra.mxu0 0.0
  %2192 = vmatprep.subr.mxu0 0.0
  %2193 = vmatpush1.msra.mxu0 0.0
  %2194 = vmatprep.subr.mxu0 0.0
  %2195 = vmatpush1.msra.mxu0 0.0
  %2196 = vmatprep.subr.mxu0 0.0
  %2197 = vmatpush1.msra.mxu0 0.0
  %2198 = vmatprep.subr.mxu0 0.0
  %2199 = vmatpush1.msra.mxu0 0.0
  %2200 = vmatprep.subr.mxu0 0.0
  %2201 = vmatpush1.msra.mxu0 0.0
  %2202 = vmatprep.subr.mxu0 0.0
  %2203 = vmatpush1.msra.mxu0 0.0
  %2204 = vmatprep.subr.mxu0 0.0
  %2205 = vmatpush1.msra.mxu0 0.0
  %2206 = vmatprep.subr.mxu0 0.0
  %2207 = vmatpush1.msra.mxu0 0.0
  %2208 = vmatprep.subr.mxu0 0.0
  %2209 = vmatpush1.msra.mxu0 0.0
  %2210 = vmatprep.subr.mxu0 0.0
  %2211 = vmatpush1.msra.mxu0 0.0
  %2212 = vmatprep.subr.mxu0 0.0
  %2213 = vmatpush1.msra.mxu0 0.0
  %2214 = vmatprep.subr.mxu0 0.0
  %2215 = vmatpush1.msra.mxu0 0.0
  %2216 = vmatprep.subr.mxu0 0.0
  %2217 = vmatpush1.msra.mxu0 0.0
  %2218 = vmatprep.subr.mxu0 0.0
  %2219 = vmatpush1.msra.mxu0 0.0
  %2220 = vmatprep.subr.mxu0 0.0
  %2221 = vmatpush1.msra.mxu0 0.0
  %2222 = vmatprep.subr.mxu0 0.0
  %2223 = vmatpush1.msra.mxu0 0.0
  %2224 = vmatprep.subr.mxu0 0.0
  %2225 = vmatpush1.msra.mxu0 0.0
  %2226 = vmatprep.subr.mxu0 0.0
  %2227 = vmatpush1.msra.mxu0 0.0
  %2228 = vmatprep.subr.mxu0 0.0
  %2229 = vmatpush1.msra.mxu0 0.0
  %2230 = vmatprep.mubr.f32.mxu0 0.0
  %2231 = vmatmul.mubr.f32.gmra.mrb[0].mxu0 %v2161
  %v2232 = vpop.f32.mrb[0].mxu0
  %v2233 = vadd.f32 0.0, %v2232
  %v2234 = vpop.f32.mrb[0].mxu0
  %2235 = vmatprep.mubr.f32.mxu0 0.0
  %2236 = vmatmul.mubr.f32.gmra.mrb[0].mxu0 %v2164
  %v2237 = vpop.f32.mrb[0].mxu0
  %v2238 = vadd.f32 0.0, %v2237
  %v2239 = vpop.f32.mrb[0].mxu0
  %2240 = vdwg.mxu0
  %v2241 = vrcp.pop %v2150
  %v2242 = vrcp.pop %v2153
  %v2243 = vmul.f32 %v2233, %v2241
  %v2244 = vmul.f32 %v2238, %v2242
  %2247 = vrot.lane.b32.xlu0 %v1835, 8
  %v2248 = vpop.permute.xlu0 %2247
  %2249 = vrot.lane.b32.xlu0 %v1836, 8
  %v2250 = vpop.permute.xlu0 %2249
  %2255 = vrot.lane.b32.xlu0 %v2039, 16
  %v2256 = vpop.permute.xlu0 %2255
  %2257 = vrot.lane.b32.xlu0 %v2040, 16
  %v2258 = vpop.permute.xlu0 %2257
  %2263 = vrot.lane.b32.xlu0 %v2243, 24
  %v2264 = vpop.permute.xlu0 %2263
  %2265 = vrot.lane.b32.xlu0 %v2244, 24
  %v2266 = vpop.permute.xlu0 %2265
  %v2269 = vsel %vm138, %v1631, %v2248
  %v2270 = vsel %vm138, %v1632, %v2250
  %v2271 = vsel %vm226, %v2269, %v2256
  %v2272 = vsel %vm226, %v2270, %v2258
  %v2273 = vsel %vm976, %v2271, %v2264
  %v2274 = vsel %vm976, %v2272, %v2266
  %v2275 = vlaneseq
  %v2276 = vshrl.u32 %v2275, 7
  %v2277 = vsub.s32 0, %v2276
  %v2278 = vrot.slane %v1430, %v2277
  %v2280 = vsel %vm45, %v2273, 0
  %v2283 = vsel %vm45, %v2274, 0
  %2285 = vmatprep.subr.mxu0 0.0
  %2286 = vmatpush1.msra.mxu0 %v1426
  %2287 = vmatprep.subr.mxu0 0.0
  %2288 = vmatpush1.msra.mxu0 %v1427
  %2289 = vmatprep.subr.mxu0 0.0
  %2290 = vmatpush1.msra.mxu0 %v1428
  %2291 = vmatprep.subr.mxu0 0.0
  %2292 = vmatpush1.msra.mxu0 %v1429
  %2293 = vmatprep.subr.mxu0 0.0
  %2294 = vmatpush1.msra.mxu0 0.0
  %2295 = vmatprep.subr.mxu0 0.0
  %2296 = vmatpush1.msra.mxu0 0.0
  %2297 = vmatprep.subr.mxu0 0.0
  %2298 = vmatpush1.msra.mxu0 0.0
  %2299 = vmatprep.subr.mxu0 0.0
  %2300 = vmatpush1.msra.mxu0 0.0
  %2301 = vmatprep.subr.mxu0 0.0
  %2302 = vmatpush1.msra.mxu0 0.0
  %2303 = vmatprep.subr.mxu0 0.0
  %2304 = vmatpush1.msra.mxu0 0.0
  %2305 = vmatprep.subr.mxu0 0.0
  %2306 = vmatpush1.msra.mxu0 0.0
  %2307 = vmatprep.subr.mxu0 0.0
  %2308 = vmatpush1.msra.mxu0 0.0
  %2309 = vmatprep.subr.mxu0 0.0
  %2310 = vmatpush1.msra.mxu0 0.0
  %2311 = vmatprep.subr.mxu0 0.0
  %2312 = vmatpush1.msra.mxu0 0.0
  %2313 = vmatprep.subr.mxu0 0.0
  %2314 = vmatpush1.msra.mxu0 0.0
  %2315 = vmatprep.subr.mxu0 0.0
  %2316 = vmatpush1.msra.mxu0 0.0
  %2317 = vmatprep.subr.mxu0 0.0
  %2318 = vmatpush1.msra.mxu0 0.0
  %2319 = vmatprep.subr.mxu0 0.0
  %2320 = vmatpush1.msra.mxu0 0.0
  %2321 = vmatprep.subr.mxu0 0.0
  %2322 = vmatpush1.msra.mxu0 0.0
  %2323 = vmatprep.subr.mxu0 0.0
  %2324 = vmatpush1.msra.mxu0 0.0
  %2325 = vmatprep.subr.mxu0 0.0
  %2326 = vmatpush1.msra.mxu0 0.0
  %2327 = vmatprep.subr.mxu0 0.0
  %2328 = vmatpush1.msra.mxu0 0.0
  %2329 = vmatprep.subr.mxu0 0.0
  %2330 = vmatpush1.msra.mxu0 0.0
  %2331 = vmatprep.subr.mxu0 0.0
  %2332 = vmatpush1.msra.mxu0 0.0
  %2333 = vmatprep.subr.mxu0 0.0
  %2334 = vmatpush1.msra.mxu0 0.0
  %2335 = vmatprep.subr.mxu0 0.0
  %2336 = vmatpush1.msra.mxu0 0.0
  %2337 = vmatprep.subr.mxu0 0.0
  %2338 = vmatpush1.msra.mxu0 0.0
  %2339 = vmatprep.subr.mxu0 0.0
  %2340 = vmatpush1.msra.mxu0 0.0
  %2341 = vmatprep.subr.mxu0 0.0
  %2342 = vmatpush1.msra.mxu0 0.0
  %2343 = vmatprep.subr.mxu0 0.0
  %2344 = vmatpush1.msra.mxu0 0.0
  %2345 = vmatprep.subr.mxu0 0.0
  %2346 = vmatpush1.msra.mxu0 0.0
  %2347 = vmatprep.subr.mxu0 0.0
  %2348 = vmatpush1.msra.mxu0 0.0
  %2349 = vmatprep.mubr.f32.mxu0 0.0
  %2350 = vmatmul.mubr.f32.gmra.mrb[0].mxu0 %v2280
  %v2351 = vpop.f32.mrb[0].mxu0
  %v2352 = vadd.f32 %v2278, %v2351
  %v2353 = vpop.f32.mrb[0].mxu0
  %2354 = vmatprep.mubr.f32.mxu0 0.0
  %2355 = vmatmul.mubr.f32.gmra.mrb[0].mxu0 %v2283
  %v2356 = vpop.f32.mrb[0].mxu0
  %v2357 = vadd.f32 %v2278, %v2356
  %v2358 = vpop.f32.mrb[0].mxu0
  %2359 = vdwg.mxu0
  %v2360 = vadd.f32 %v1334, %v2352
  %v2361 = vadd.f32 %v1335, %v2357
  %v2362 = vld [vmem:[%s6 + $0xc] sm:$0x1]
  %v2363 = vld [vmem:[%s6 + $0xd] sm:$0x1]
  %v2364 = vsel %vm45, %v2360, 0.0
  %2365 = vadd.xlane.f32.xlu0 %v2364
  %v2366 = vpop.xlane.xlu0 %2365
  %v2367 = vsel %vm45, %v2361, 0.0
  %2368 = vadd.xlane.f32.xlu0 %v2367
  %v2369 = vpop.xlane.xlu0 %2368
  %v2370 = vmul.f32 %v2366, %v1074
  %v2371 = vmul.f32 %v2369, %v1074
  %v2372 = vsub.f32 %v2360, %v2370
  %v2373 = vsub.f32 %v2361, %v2371
  %v2374 = vmul.f32 %v2372, %v2372
  %v2375 = vmul.f32 %v2373, %v2373
  %v2376 = vsel %vm45, %v2374, 0.0
  %2377 = vadd.xlane.f32.xlu0 %v2376
  %v2378 = vpop.xlane.xlu0 %2377
  %v2379 = vsel %vm45, %v2375, 0.0
  %2380 = vadd.xlane.f32.xlu0 %v2379
  %v2381 = vpop.xlane.xlu0 %2380
  %v2382 = vmul.f32 %v2378, %v1074
  %v2383 = vmul.f32 %v2381, %v1074
  %v2384 = vadd.f32 %v2382, 1e-05
  %v2385 = vadd.f32 %v2383, 1e-05
  %v2386 = vrsqrt.pop %v2384
  %v2387 = vrsqrt.pop %v2385
  %v2388 = vmul.f32 %v2372, %v2386
  %v2389 = vmul.f32 %v2373, %v2387
  %v2390 = vlaneseq
  %v2391 = vshrl.u32 %v2390, 7
  %v2392 = vsub.s32 0, %v2391
  %v2393 = vrot.slane %v2362, %v2392
  %v2394 = vmul.f32 %v2388, %v2393
  %v2395 = vmul.f32 %v2389, %v2393
  %v2396 = vlaneseq
  %v2397 = vshrl.u32 %v2396, 7
  %v2398 = vsub.s32 0, %v2397
  %v2399 = vrot.slane %v2363, %v2398
  %v2400 = vadd.f32 %v2394, %v2399
  %v2401 = vadd.f32 %v2395, %v2399
  %v2402 = vld [vmem:[%s5 + $0xe0] sm:$0xff]
  %v2403 = vld [vmem:[%s5 + $0xe8] sm:$0xff]
  %v2404 = vld [vmem:[%s5 + $0xf0] sm:$0xff]
  %v2405 = vld [vmem:[%s5 + $0xf8] sm:$0xff]
  %v2406 = vld [vmem:[%s6 + $0xa] sm:$0x1]
  %v2407 = vld [vmem:[%s5 + $0x100] sm:$0xff]
  %v2408 = vld [vmem:[%s5 + $0x108] sm:$0xff]
  %v2409 = vld [vmem:[%s5 + $0x110] sm:$0xff]
  %v2410 = vld [vmem:[%s5 + $0x118] sm:$0xff]
  %v2411 = vld [vmem:[%s5 + $0x120] sm:$0xff]
  %v2412 = vld [vmem:[%s5 + $0x128] sm:$0xff]
  %v2413 = vld [vmem:[%s5 + $0x130] sm:$0xff]
  %v2414 = vld [vmem:[%s5 + $0x138] sm:$0xff]
  %v2415 = vld [vmem:[%s6 + $0xb] sm:$0x1]
  %v2416 = vlaneseq
  %v2417 = vshrl.u32 %v2416, 7
  %v2418 = vsub.s32 0, %v2417
  %v2419 = vrot.slane %v2406, %v2418
  %v2421 = vsel %vm45, %v2400, 0
  %v2424 = vsel %vm45, %v2401, 0
  %2426 = vmatprep.subr.mxu0 0.0
  %2427 = vmatpush1.msra.mxu0 %v2402
  %2428 = vmatprep.subr.mxu0 0.0
  %2429 = vmatpush1.msra.mxu0 %v2403
  %2430 = vmatprep.subr.mxu0 0.0
  %2431 = vmatpush1.msra.mxu0 %v2404
  %2432 = vmatprep.subr.mxu0 0.0
  %2433 = vmatpush1.msra.mxu0 %v2405
  %2434 = vmatprep.subr.mxu0 0.0
  %2435 = vmatpush1.msra.mxu0 0.0
  %2436 = vmatprep.subr.mxu0 0.0
  %2437 = vmatpush1.msra.mxu0 0.0
  %2438 = vmatprep.subr.mxu0 0.0
  %2439 = vmatpush1.msra.mxu0 0.0
  %2440 = vmatprep.subr.mxu0 0.0
  %2441 = vmatpush1.msra.mxu0 0.0
  %2442 = vmatprep.subr.mxu0 0.0
  %2443 = vmatpush1.msra.mxu0 0.0
  %2444 = vmatprep.subr.mxu0 0.0
  %2445 = vmatpush1.msra.mxu0 0.0
  %2446 = vmatprep.subr.mxu0 0.0
  %2447 = vmatpush1.msra.mxu0 0.0
  %2448 = vmatprep.subr.mxu0 0.0
  %2449 = vmatpush1.msra.mxu0 0.0
  %2450 = vmatprep.subr.mxu0 0.0
  %2451 = vmatpush1.msra.mxu0 0.0
  %2452 = vmatprep.subr.mxu0 0.0
  %2453 = vmatpush1.msra.mxu0 0.0
  %2454 = vmatprep.subr.mxu0 0.0
  %2455 = vmatpush1.msra.mxu0 0.0
  %2456 = vmatprep.subr.mxu0 0.0
  %2457 = vmatpush1.msra.mxu0 0.0
  %2458 = vmatprep.subr.mxu0 0.0
  %2459 = vmatpush1.msra.mxu0 0.0
  %2460 = vmatprep.subr.mxu0 0.0
  %2461 = vmatpush1.msra.mxu0 0.0
  %2462 = vmatprep.subr.mxu0 0.0
  %2463 = vmatpush1.msra.mxu0 0.0
  %2464 = vmatprep.subr.mxu0 0.0
  %2465 = vmatpush1.msra.mxu0 0.0
  %2466 = vmatprep.subr.mxu0 0.0
  %2467 = vmatpush1.msra.mxu0 0.0
  %2468 = vmatprep.subr.mxu0 0.0
  %2469 = vmatpush1.msra.mxu0 0.0
  %2470 = vmatprep.subr.mxu0 0.0
  %2471 = vmatpush1.msra.mxu0 0.0
  %2472 = vmatprep.subr.mxu0 0.0
  %2473 = vmatpush1.msra.mxu0 0.0
  %2474 = vmatprep.subr.mxu0 0.0
  %2475 = vmatpush1.msra.mxu0 0.0
  %2476 = vmatprep.subr.mxu0 0.0
  %2477 = vmatpush1.msra.mxu0 0.0
  %2478 = vmatprep.subr.mxu0 0.0
  %2479 = vmatpush1.msra.mxu0 0.0
  %2480 = vmatprep.subr.mxu0 0.0
  %2481 = vmatpush1.msra.mxu0 0.0
  %2482 = vmatprep.subr.mxu0 0.0
  %2483 = vmatpush1.msra.mxu0 0.0
  %2484 = vmatprep.subr.mxu0 0.0
  %2485 = vmatpush1.msra.mxu0 0.0
  %2486 = vmatprep.subr.mxu0 0.0
  %2487 = vmatpush1.msra.mxu0 0.0
  %2488 = vmatprep.subr.mxu0 0.0
  %2489 = vmatpush1.msra.mxu0 0.0
  %2490 = vmatprep.mubr.f32.mxu0 0.0
  %2491 = vmatmul.mubr.f32.gmra.mrb[0].mxu0 %v2421
  %v2492 = vpop.f32.mrb[0].mxu0
  %v2493 = vadd.f32 %v2419, %v2492
  %v2494 = vpop.f32.mrb[0].mxu0
  %2495 = vmatprep.mubr.f32.mxu0 0.0
  %2496 = vmatmul.mubr.f32.gmra.mrb[0].mxu0 %v2424
  %v2497 = vpop.f32.mrb[0].mxu0
  %v2498 = vadd.f32 %v2419, %v2497
  %v2499 = vpop.f32.mrb[0].mxu0
  %2500 = vdwg.mxu0
  %v2501 = vmax.f32 %v2493, 0.0
  %v2502 = vmax.f32 %v2498, 0.0
  %v2503 = vlaneseq
  %v2504 = vshrl.u32 %v2503, 7
  %v2505 = vsub.s32 0, %v2504
  %v2506 = vrot.slane %v2415, %v2505
  %v2508 = vsel %vm1212, %v2501, 0
  %v2511 = vsel %vm1212, %v2502, 0
  %2513 = vmatprep.subr.mxu0 0.0
  %2514 = vmatpush1.msra.mxu0 %v2407
  %2515 = vmatprep.subr.mxu0 0.0
  %2516 = vmatpush1.msra.mxu0 %v2408
  %2517 = vmatprep.subr.mxu0 0.0
  %2518 = vmatpush1.msra.mxu0 %v2409
  %2519 = vmatprep.subr.mxu0 0.0
  %2520 = vmatpush1.msra.mxu0 %v2410
  %2521 = vmatprep.subr.mxu0 0.0
  %2522 = vmatpush1.msra.mxu0 %v2411
  %2523 = vmatprep.subr.mxu0 0.0
  %2524 = vmatpush1.msra.mxu0 %v2412
  %2525 = vmatprep.subr.mxu0 0.0
  %2526 = vmatpush1.msra.mxu0 %v2413
  %2527 = vmatprep.subr.mxu0 0.0
  %2528 = vmatpush1.msra.mxu0 %v2414
  %2529 = vmatprep.subr.mxu0 0.0
  %2530 = vmatpush1.msra.mxu0 0.0
  %2531 = vmatprep.subr.mxu0 0.0
  %2532 = vmatpush1.msra.mxu0 0.0
  %2533 = vmatprep.subr.mxu0 0.0
  %2534 = vmatpush1.msra.mxu0 0.0
  %2535 = vmatprep.subr.mxu0 0.0
  %2536 = vmatpush1.msra.mxu0 0.0
  %2537 = vmatprep.subr.mxu0 0.0
  %2538 = vmatpush1.msra.mxu0 0.0
  %2539 = vmatprep.subr.mxu0 0.0
  %2540 = vmatpush1.msra.mxu0 0.0
  %2541 = vmatprep.subr.mxu0 0.0
  %2542 = vmatpush1.msra.mxu0 0.0
  %2543 = vmatprep.subr.mxu0 0.0
  %2544 = vmatpush1.msra.mxu0 0.0
  %2545 = vmatprep.subr.mxu0 0.0
  %2546 = vmatpush1.msra.mxu0 0.0
  %2547 = vmatprep.subr.mxu0 0.0
  %2548 = vmatpush1.msra.mxu0 0.0
  %2549 = vmatprep.subr.mxu0 0.0
  %2550 = vmatpush1.msra.mxu0 0.0
  %2551 = vmatprep.subr.mxu0 0.0
  %2552 = vmatpush1.msra.mxu0 0.0
  %2553 = vmatprep.subr.mxu0 0.0
  %2554 = vmatpush1.msra.mxu0 0.0
  %2555 = vmatprep.subr.mxu0 0.0
  %2556 = vmatpush1.msra.mxu0 0.0
  %2557 = vmatprep.subr.mxu0 0.0
  %2558 = vmatpush1.msra.mxu0 0.0
  %2559 = vmatprep.subr.mxu0 0.0
  %2560 = vmatpush1.msra.mxu0 0.0
  %2561 = vmatprep.subr.mxu0 0.0
  %2562 = vmatpush1.msra.mxu0 0.0
  %2563 = vmatprep.subr.mxu0 0.0
  %2564 = vmatpush1.msra.mxu0 0.0
  %2565 = vmatprep.subr.mxu0 0.0
  %2566 = vmatpush1.msra.mxu0 0.0
  %2567 = vmatprep.subr.mxu0 0.0
  %2568 = vmatpush1.msra.mxu0 0.0
  %2569 = vmatprep.subr.mxu0 0.0
  %2570 = vmatpush1.msra.mxu0 0.0
  %2571 = vmatprep.subr.mxu0 0.0
  %2572 = vmatpush1.msra.mxu0 0.0
  %2573 = vmatprep.subr.mxu0 0.0
  %2574 = vmatpush1.msra.mxu0 0.0
  %2575 = vmatprep.subr.mxu0 0.0
  %2576 = vmatpush1.msra.mxu0 0.0
  %2577 = vmatprep.mubr.f32.mxu0 0.0
  %2578 = vmatmul.mubr.f32.gmra.mrb[0].mxu0 %v2508
  %v2579 = vpop.f32.mrb[0].mxu0
  %v2580 = vadd.f32 %v2506, %v2579
  %v2581 = vpop.f32.mrb[0].mxu0
  %2582 = vmatprep.mubr.f32.mxu0 0.0
  %2583 = vmatmul.mubr.f32.gmra.mrb[0].mxu0 %v2511
  %v2584 = vpop.f32.mrb[0].mxu0
  %v2585 = vadd.f32 %v2506, %v2584
  %v2586 = vpop.f32.mrb[0].mxu0
  %2587 = vdwg.mxu0
  %v2588 = vadd.f32 %v2400, %v2580
  %v2589 = vadd.f32 %v2401, %v2585
  %v2590 = vld [vmem:[%s6 + $0xe] sm:$0x1]
  %v2591 = vld [vmem:[%s6 + $0xf] sm:$0x1]
  %v2592 = vsel %vm45, %v2588, 0.0
  %2593 = vadd.xlane.f32.xlu0 %v2592
  %v2594 = vpop.xlane.xlu0 %2593
  %v2595 = vsel %vm45, %v2589, 0.0
  %2596 = vadd.xlane.f32.xlu0 %v2595
  %v2597 = vpop.xlane.xlu0 %2596
  %v2598 = vmul.f32 %v2594, %v1074
  %v2599 = vmul.f32 %v2597, %v1074
  %v2600 = vsub.f32 %v2588, %v2598
  %v2601 = vsub.f32 %v2589, %v2599
  %v2602 = vmul.f32 %v2600, %v2600
  %v2603 = vmul.f32 %v2601, %v2601
  %v2604 = vsel %vm45, %v2602, 0.0
  %2605 = vadd.xlane.f32.xlu0 %v2604
  %v2606 = vpop.xlane.xlu0 %2605
  %v2607 = vsel %vm45, %v2603, 0.0
  %2608 = vadd.xlane.f32.xlu0 %v2607
  %v2609 = vpop.xlane.xlu0 %2608
  %v2610 = vmul.f32 %v2606, %v1074
  %v2611 = vmul.f32 %v2609, %v1074
  %v2612 = vadd.f32 %v2610, 1e-05
  %v2613 = vadd.f32 %v2611, 1e-05
  %v2614 = vrsqrt.pop %v2612
  %v2615 = vrsqrt.pop %v2613
  %v2616 = vmul.f32 %v2600, %v2614
  %v2617 = vmul.f32 %v2601, %v2615
  %v2618 = vlaneseq
  %v2619 = vshrl.u32 %v2618, 7
  %v2620 = vsub.s32 0, %v2619
  %v2621 = vrot.slane %v2590, %v2620
  %v2622 = vmul.f32 %v2616, %v2621
  %v2623 = vmul.f32 %v2617, %v2621
  %v2624 = vlaneseq
  %v2625 = vshrl.u32 %v2624, 7
  %v2626 = vsub.s32 0, %v2625
  %v2627 = vrot.slane %v2591, %v2626
  %v2628 = vadd.f32 %v2622, %v2627
  %v2629 = vadd.f32 %v2623, %v2627
  %v2630 = vld [vmem:[%s6 + $0x2a] sm:$0x1]
  %v2631 = vld [vmem:[%s6 + $0x2b] sm:$0x1]
  %v2632 = vsel %vm45, %v2628, 0.0
  %2633 = vadd.xlane.f32.xlu0 %v2632
  %v2634 = vpop.xlane.xlu0 %2633
  %v2635 = vsel %vm45, %v2629, 0.0
  %2636 = vadd.xlane.f32.xlu0 %v2635
  %v2637 = vpop.xlane.xlu0 %2636
  %v2638 = vmul.f32 %v2634, %v1074
  %v2639 = vmul.f32 %v2637, %v1074
  %v2640 = vsub.f32 %v2628, %v2638
  %v2641 = vsub.f32 %v2629, %v2639
  %v2642 = vmul.f32 %v2640, %v2640
  %v2643 = vmul.f32 %v2641, %v2641
  %v2644 = vsel %vm45, %v2642, 0.0
  %2645 = vadd.xlane.f32.xlu0 %v2644
  %v2646 = vpop.xlane.xlu0 %2645
  %v2647 = vsel %vm45, %v2643, 0.0
  %2648 = vadd.xlane.f32.xlu0 %v2647
  %v2649 = vpop.xlane.xlu0 %2648
  %v2650 = vmul.f32 %v2646, %v1074
  %v2651 = vmul.f32 %v2649, %v1074
  %v2652 = vadd.f32 %v2650, 1e-05
  %v2653 = vadd.f32 %v2651, 1e-05
  %v2654 = vrsqrt.pop %v2652
  %v2655 = vrsqrt.pop %v2653
  %v2656 = vmul.f32 %v2640, %v2654
  %v2657 = vmul.f32 %v2641, %v2655
  %v2658 = vlaneseq
  %v2659 = vshrl.u32 %v2658, 7
  %v2660 = vsub.s32 0, %v2659
  %v2661 = vrot.slane %v2630, %v2660
  %v2662 = vmul.f32 %v2656, %v2661
  %v2663 = vmul.f32 %v2657, %v2661
  %v2664 = vlaneseq
  %v2665 = vshrl.u32 %v2664, 7
  %v2666 = vsub.s32 0, %v2665
  %v2667 = vrot.slane %v2631, %v2666
  %v2668 = vadd.f32 %v2662, %v2667
  %v2669 = vadd.f32 %v2663, %v2667
  %v2670 = vld [vmem:[%s5 + $0x140] sm:$0xff]
  %v2671 = vld [vmem:[%s5 + $0x148] sm:$0xff]
  %v2672 = vld [vmem:[%s5 + $0x150] sm:$0xff]
  %v2673 = vld [vmem:[%s5 + $0x158] sm:$0xff]
  %v2674 = vld [vmem:[%s6 + $0x10] sm:$0x1]
  %v2675 = vlaneseq
  %v2676 = vshrl.u32 %v2675, 7
  %v2677 = vsub.s32 0, %v2676
  %v2678 = vrot.slane %v2674, %v2677
  %v2680 = vsel %vm45, %v28, 0
  %v2683 = vsel %vm45, %v29, 0
  %2685 = vmatprep.subr.mxu0 0.0
  %2686 = vmatpush1.msra.mxu0 %v2670
  %2687 = vmatprep.subr.mxu0 0.0
  %2688 = vmatpush1.msra.mxu0 %v2671
  %2689 = vmatprep.subr.mxu0 0.0
  %2690 = vmatpush1.msra.mxu0 %v2672
  %2691 = vmatprep.subr.mxu0 0.0
  %2692 = vmatpush1.msra.mxu0 %v2673
  %2693 = vmatprep.subr.mxu0 0.0
  %2694 = vmatpush1.msra.mxu0 0.0
  %2695 = vmatprep.subr.mxu0 0.0
  %2696 = vmatpush1.msra.mxu0 0.0
  %2697 = vmatprep.subr.mxu0 0.0
  %2698 = vmatpush1.msra.mxu0 0.0
  %2699 = vmatprep.subr.mxu0 0.0
  %2700 = vmatpush1.msra.mxu0 0.0
  %2701 = vmatprep.subr.mxu0 0.0
  %2702 = vmatpush1.msra.mxu0 0.0
  %2703 = vmatprep.subr.mxu0 0.0
  %2704 = vmatpush1.msra.mxu0 0.0
  %2705 = vmatprep.subr.mxu0 0.0
  %2706 = vmatpush1.msra.mxu0 0.0
  %2707 = vmatprep.subr.mxu0 0.0
  %2708 = vmatpush1.msra.mxu0 0.0
  %2709 = vmatprep.subr.mxu0 0.0
  %2710 = vmatpush1.msra.mxu0 0.0
  %2711 = vmatprep.subr.mxu0 0.0
  %2712 = vmatpush1.msra.mxu0 0.0
  %2713 = vmatprep.subr.mxu0 0.0
  %2714 = vmatpush1.msra.mxu0 0.0
  %2715 = vmatprep.subr.mxu0 0.0
  %2716 = vmatpush1.msra.mxu0 0.0
  %2717 = vmatprep.subr.mxu0 0.0
  %2718 = vmatpush1.msra.mxu0 0.0
  %2719 = vmatprep.subr.mxu0 0.0
  %2720 = vmatpush1.msra.mxu0 0.0
  %2721 = vmatprep.subr.mxu0 0.0
  %2722 = vmatpush1.msra.mxu0 0.0
  %2723 = vmatprep.subr.mxu0 0.0
  %2724 = vmatpush1.msra.mxu0 0.0
  %2725 = vmatprep.subr.mxu0 0.0
  %2726 = vmatpush1.msra.mxu0 0.0
  %2727 = vmatprep.subr.mxu0 0.0
  %2728 = vmatpush1.msra.mxu0 0.0
  %2729 = vmatprep.subr.mxu0 0.0
  %2730 = vmatpush1.msra.mxu0 0.0
  %2731 = vmatprep.subr.mxu0 0.0
  %2732 = vmatpush1.msra.mxu0 0.0
  %2733 = vmatprep.subr.mxu0 0.0
  %2734 = vmatpush1.msra.mxu0 0.0
  %2735 = vmatprep.subr.mxu0 0.0
  %2736 = vmatpush1.msra.mxu0 0.0
  %2737 = vmatprep.subr.mxu0 0.0
  %2738 = vmatpush1.msra.mxu0 0.0
  %2739 = vmatprep.subr.mxu0 0.0
  %2740 = vmatpush1.msra.mxu0 0.0
  %2741 = vmatprep.subr.mxu0 0.0
  %2742 = vmatpush1.msra.mxu0 0.0
  %2743 = vmatprep.subr.mxu0 0.0
  %2744 = vmatpush1.msra.mxu0 0.0
  %2745 = vmatprep.subr.mxu0 0.0
  %2746 = vmatpush1.msra.mxu0 0.0
  %2747 = vmatprep.subr.mxu0 0.0
  %2748 = vmatpush1.msra.mxu0 0.0
  %2749 = vmatprep.mubr.f32.mxu0 0.0
  %2750 = vmatmul.mubr.f32.gmra.mrb[0].mxu0 %v2680
  %v2751 = vpop.f32.mrb[0].mxu0
  %v2752 = vadd.f32 %v2678, %v2751
  %v2753 = vpop.f32.mrb[0].mxu0
  %2754 = vmatprep.mubr.f32.mxu0 0.0
  %2755 = vmatmul.mubr.f32.gmra.mrb[0].mxu0 %v2683
  %v2756 = vpop.f32.mrb[0].mxu0
  %v2757 = vadd.f32 %v2678, %v2756
  %v2758 = vpop.f32.mrb[0].mxu0
  %2759 = vdwg.mxu0
  %v2760 = vld [vmem:[%s5 + $0x160] sm:$0xff]
  %v2761 = vld [vmem:[%s5 + $0x168] sm:$0xff]
  %v2762 = vld [vmem:[%s5 + $0x170] sm:$0xff]
  %v2763 = vld [vmem:[%s5 + $0x178] sm:$0xff]
  %v2764 = vld [vmem:[%s6 + $0x11] sm:$0x1]
  %2767 = vrot.lane.b32.xlu0 %v2752, 96
  %v2768 = vpop.permute.xlu0 %2767
  %2769 = vrot.lane.b32.xlu0 %v2757, 96
  %v2770 = vpop.permute.xlu0 %2769
  %v2771 = vsel %vm138, %v2752, 0
  %v2773 = vsel %vm138, %v2757, 0
  %v2775 = vsel %vm138, %v2768, 0
  %v2777 = vsel %vm138, %v2770, 0
  %2779 = vmatprep.subr.mxu0 0.0
  %2780 = vmatpush1.xpose.msra.mxu0 %v2775
  %2781 = vmatprep.subr.mxu0 0.0
  %2782 = vmatpush1.xpose.msra.mxu0 %v2777
  %2783 = vmatprep.subr.mxu0 0.0
  %2784 = vmatpush1.xpose.msra.mxu0 0.0
  %2785 = vmatprep.subr.mxu0 0.0
  %2786 = vmatpush1.xpose.msra.mxu0 0.0
  %2787 = vmatprep.subr.mxu0 0.0
  %2788 = vmatpush1.xpose.msra.mxu0 0.0
  %2789 = vmatprep.subr.mxu0 0.0
  %2790 = vmatpush1.xpose.msra.mxu0 0.0
  %2791 = vmatprep.subr.mxu0 0.0
  %2792 = vmatpush1.xpose.msra.mxu0 0.0
  %2793 = vmatprep.subr.mxu0 0.0
  %2794 = vmatpush1.xpose.msra.mxu0 0.0
  %2795 = vmatprep.subr.mxu0 0.0
  %2796 = vmatpush1.xpose.msra.mxu0 0.0
  %2797 = vmatprep.subr.mxu0 0.0
  %2798 = vmatpush1.xpose.msra.mxu0 0.0
  %2799 = vmatprep.subr.mxu0 0.0
  %2800 = vmatpush1.xpose.msra.mxu0 0.0
  %2801 = vmatprep.subr.mxu0 0.0
  %2802 = vmatpush1.xpose.msra.mxu0 0.0
  %2803 = vmatprep.subr.mxu0 0.0
  %2804 = vmatpush1.xpose.msra.mxu0 0.0
  %2805 = vmatprep.subr.mxu0 0.0
  %2806 = vmatpush1.xpose.msra.mxu0 0.0
  %2807 = vmatprep.subr.mxu0 0.0
  %2808 = vmatpush1.xpose.msra.mxu0 0.0
  %2809 = vmatprep.subr.mxu0 0.0
  %2810 = vmatpush1.xpose.msra.mxu0 0.0
  %2811 = vmatprep.subr.mxu0 0.0
  %2812 = vmatpush1.xpose.msra.mxu0 0.0
  %2813 = vmatprep.subr.mxu0 0.0
  %2814 = vmatpush1.xpose.msra.mxu0 0.0
  %2815 = vmatprep.subr.mxu0 0.0
  %2816 = vmatpush1.xpose.msra.mxu0 0.0
  %2817 = vmatprep.subr.mxu0 0.0
  %2818 = vmatpush1.xpose.msra.mxu0 0.0
  %2819 = vmatprep.subr.mxu0 0.0
  %2820 = vmatpush1.xpose.msra.mxu0 0.0
  %2821 = vmatprep.subr.mxu0 0.0
  %2822 = vmatpush1.xpose.msra.mxu0 0.0
  %2823 = vmatprep.subr.mxu0 0.0
  %2824 = vmatpush1.xpose.msra.mxu0 0.0
  %2825 = vmatprep.subr.mxu0 0.0
  %2826 = vmatpush1.xpose.msra.mxu0 0.0
  %2827 = vmatprep.subr.mxu0 0.0
  %2828 = vmatpush1.xpose.msra.mxu0 0.0
  %2829 = vmatprep.subr.mxu0 0.0
  %2830 = vmatpush1.xpose.msra.mxu0 0.0
  %2831 = vmatprep.subr.mxu0 0.0
  %2832 = vmatpush1.xpose.msra.mxu0 0.0
  %2833 = vmatprep.subr.mxu0 0.0
  %2834 = vmatpush1.xpose.msra.mxu0 0.0
  %2835 = vmatprep.subr.mxu0 0.0
  %2836 = vmatpush1.xpose.msra.mxu0 0.0
  %2837 = vmatprep.subr.mxu0 0.0
  %2838 = vmatpush1.xpose.msra.mxu0 0.0
  %2839 = vmatprep.subr.mxu0 0.0
  %2840 = vmatpush1.xpose.msra.mxu0 0.0
  %2841 = vmatprep.subr.mxu0 0.0
  %2842 = vmatpush1.xpose.msra.mxu0 0.0
  %2843 = vmatprep.mubr.f32.mxu0 0.0
  %2844 = vmatmul.mubr.f32.gmra.mrb[0].mxu0 %v2771
  %v2845 = vpop.f32.mrb[0].mxu0
  %v2846 = vadd.f32 0.0, %v2845
  %v2847 = vpop.f32.mrb[0].mxu0
  %2848 = vmatprep.mubr.f32.mxu0 0.0
  %2849 = vmatmul.mubr.f32.gmra.mrb[0].mxu0 %v2773
  %v2850 = vpop.f32.mrb[0].mxu0
  %v2851 = vadd.f32 0.0, %v2850
  %v2852 = vpop.f32.mrb[0].mxu0
  %2853 = vdwg.mxu0
  %v2854 = vmul.f32 %v2846, 0.35355338
  %v2855 = vmul.f32 %v2851, 0.35355338
  %v2856 = vadd.f32 %v2854, %v32
  %v2857 = vadd.f32 %v2855, %v33
  %v2858 = vsel %vm226, %v2856, -inf
  %2859 = vmax.xlane.f32.xlu0 %v2858
  %v2860 = vpop.xlane.xlu0 %2859
  %v2861 = vsel %vm226, %v2857, -inf
  %2862 = vmax.xlane.f32.xlu0 %v2861
  %v2863 = vpop.xlane.xlu0 %2862
  %v2864 = vsub.f32 %v2856, %v2860
  %v2865 = vsub.f32 %v2857, %v2863
  %v2866 = vmul.f32 %v2864, 1.442695
  %v2867 = vpow.pop %v2866
  %v2868 = vmul.f32 %v2865, 1.442695
  %v2869 = vpow.pop %v2868
  %v2870 = vsel %vm226, %v2867, 0.0
  %2871 = vadd.xlane.f32.xlu0 %v2870
  %v2872 = vpop.xlane.xlu0 %2871
  %v2873 = vsel %vm226, %v2869, 0.0
  %2874 = vadd.xlane.f32.xlu0 %v2873
  %v2875 = vpop.xlane.xlu0 %2874
  %2876 = vrot.lane.b32.xlu0 %v2752, 64
  %v2877 = vpop.permute.xlu0 %2876
  %2878 = vrot.lane.b32.xlu0 %v2757, 64
  %v2879 = vpop.permute.xlu0 %2878
  %v2883 = vsel %vm226, %v2867, 0
  %v2886 = vsel %vm226, %v2869, 0
  %2888 = vmatprep.subr.mxu0 0.0
  %2889 = vmatpush1.msra.mxu0 %v2877
  %2890 = vmatprep.subr.mxu0 0.0
  %2891 = vmatpush1.msra.mxu0 %v2879
  %2892 = vmatprep.subr.mxu0 0.0
  %2893 = vmatpush1.msra.mxu0 0.0
  %2894 = vmatprep.subr.mxu0 0.0
  %2895 = vmatpush1.msra.mxu0 0.0
  %2896 = vmatprep.subr.mxu0 0.0
  %2897 = vmatpush1.msra.mxu0 0.0
  %2898 = vmatprep.subr.mxu0 0.0
  %2899 = vmatpush1.msra.mxu0 0.0
  %2900 = vmatprep.subr.mxu0 0.0
  %2901 = vmatpush1.msra.mxu0 0.0
  %2902 = vmatprep.subr.mxu0 0.0
  %2903 = vmatpush1.msra.mxu0 0.0
  %2904 = vmatprep.subr.mxu0 0.0
  %2905 = vmatpush1.msra.mxu0 0.0
  %2906 = vmatprep.subr.mxu0 0.0
  %2907 = vmatpush1.msra.mxu0 0.0
  %2908 = vmatprep.subr.mxu0 0.0
  %2909 = vmatpush1.msra.mxu0 0.0
  %2910 = vmatprep.subr.mxu0 0.0
  %2911 = vmatpush1.msra.mxu0 0.0
  %2912 = vmatprep.subr.mxu0 0.0
  %2913 = vmatpush1.msra.mxu0 0.0
  %2914 = vmatprep.subr.mxu0 0.0
  %2915 = vmatpush1.msra.mxu0 0.0
  %2916 = vmatprep.subr.mxu0 0.0
  %2917 = vmatpush1.msra.mxu0 0.0
  %2918 = vmatprep.subr.mxu0 0.0
  %2919 = vmatpush1.msra.mxu0 0.0
  %2920 = vmatprep.subr.mxu0 0.0
  %2921 = vmatpush1.msra.mxu0 0.0
  %2922 = vmatprep.subr.mxu0 0.0
  %2923 = vmatpush1.msra.mxu0 0.0
  %2924 = vmatprep.subr.mxu0 0.0
  %2925 = vmatpush1.msra.mxu0 0.0
  %2926 = vmatprep.subr.mxu0 0.0
  %2927 = vmatpush1.msra.mxu0 0.0
  %2928 = vmatprep.subr.mxu0 0.0
  %2929 = vmatpush1.msra.mxu0 0.0
  %2930 = vmatprep.subr.mxu0 0.0
  %2931 = vmatpush1.msra.mxu0 0.0
  %2932 = vmatprep.subr.mxu0 0.0
  %2933 = vmatpush1.msra.mxu0 0.0
  %2934 = vmatprep.subr.mxu0 0.0
  %2935 = vmatpush1.msra.mxu0 0.0
  %2936 = vmatprep.subr.mxu0 0.0
  %2937 = vmatpush1.msra.mxu0 0.0
  %2938 = vmatprep.subr.mxu0 0.0
  %2939 = vmatpush1.msra.mxu0 0.0
  %2940 = vmatprep.subr.mxu0 0.0
  %2941 = vmatpush1.msra.mxu0 0.0
  %2942 = vmatprep.subr.mxu0 0.0
  %2943 = vmatpush1.msra.mxu0 0.0
  %2944 = vmatprep.subr.mxu0 0.0
  %2945 = vmatpush1.msra.mxu0 0.0
  %2946 = vmatprep.subr.mxu0 0.0
  %2947 = vmatpush1.msra.mxu0 0.0
  %2948 = vmatprep.subr.mxu0 0.0
  %2949 = vmatpush1.msra.mxu0 0.0
  %2950 = vmatprep.subr.mxu0 0.0
  %2951 = vmatpush1.msra.mxu0 0.0
  %2952 = vmatprep.mubr.f32.mxu0 0.0
  %2953 = vmatmul.mubr.f32.gmra.mrb[0].mxu0 %v2883
  %v2954 = vpop.f32.mrb[0].mxu0
  %v2955 = vadd.f32 0.0, %v2954
  %v2956 = vpop.f32.mrb[0].mxu0
  %2957 = vmatprep.mubr.f32.mxu0 0.0
  %2958 = vmatmul.mubr.f32.gmra.mrb[0].mxu0 %v2886
  %v2959 = vpop.f32.mrb[0].mxu0
  %v2960 = vadd.f32 0.0, %v2959
  %v2961 = vpop.f32.mrb[0].mxu0
  %2962 = vdwg.mxu0
  %v2963 = vrcp.pop %v2872
  %v2964 = vrcp.pop %v2875
  %v2965 = vmul.f32 %v2955, %v2963
  %v2966 = vmul.f32 %v2960, %v2964
  %2967 = vrot.lane.b32.xlu0 %v2752, 120
  %v2968 = vpop.permute.xlu0 %2967
  %2969 = vrot.lane.b32.xlu0 %v2757, 120
  %v2970 = vpop.permute.xlu0 %2969
  %2971 = vrot.lane.b32.xlu0 %v2752, 88
  %v2972 = vpop.permute.xlu0 %2971
  %2973 = vrot.lane.b32.xlu0 %v2757, 88
  %v2974 = vpop.permute.xlu0 %2973
  %v2975 = vsel %vm138, %v2968, 0
  %v2977 = vsel %vm138, %v2970, 0
  %v2979 = vsel %vm138, %v2972, 0
  %v2981 = vsel %vm138, %v2974, 0
  %2983 = vmatprep.subr.mxu0 0.0
  %2984 = vmatpush1.xpose.msra.mxu0 %v2979
  %2985 = vmatprep.subr.mxu0 0.0
  %2986 = vmatpush1.xpose.msra.mxu0 %v2981
  %2987 = vmatprep.subr.mxu0 0.0
  %2988 = vmatpush1.xpose.msra.mxu0 0.0
  %2989 = vmatprep.subr.mxu0 0.0
  %2990 = vmatpush1.xpose.msra.mxu0 0.0
  %2991 = vmatprep.subr.mxu0 0.0
  %2992 = vmatpush1.xpose.msra.mxu0 0.0
  %2993 = vmatprep.subr.mxu0 0.0
  %2994 = vmatpush1.xpose.msra.mxu0 0.0
  %2995 = vmatprep.subr.mxu0 0.0
  %2996 = vmatpush1.xpose.msra.mxu0 0.0
  %2997 = vmatprep.subr.mxu0 0.0
  %2998 = vmatpush1.xpose.msra.mxu0 0.0
  %2999 = vmatprep.subr.mxu0 0.0
  %3000 = vmatpush1.xpose.msra.mxu0 0.0
  %3001 = vmatprep.subr.mxu0 0.0
  %3002 = vmatpush1.xpose.msra.mxu0 0.0
  %3003 = vmatprep.subr.mxu0 0.0
  %3004 = vmatpush1.xpose.msra.mxu0 0.0
  %3005 = vmatprep.subr.mxu0 0.0
  %3006 = vmatpush1.xpose.msra.mxu0 0.0
  %3007 = vmatprep.subr.mxu0 0.0
  %3008 = vmatpush1.xpose.msra.mxu0 0.0
  %3009 = vmatprep.subr.mxu0 0.0
  %3010 = vmatpush1.xpose.msra.mxu0 0.0
  %3011 = vmatprep.subr.mxu0 0.0
  %3012 = vmatpush1.xpose.msra.mxu0 0.0
  %3013 = vmatprep.subr.mxu0 0.0
  %3014 = vmatpush1.xpose.msra.mxu0 0.0
  %3015 = vmatprep.subr.mxu0 0.0
  %3016 = vmatpush1.xpose.msra.mxu0 0.0
  %3017 = vmatprep.subr.mxu0 0.0
  %3018 = vmatpush1.xpose.msra.mxu0 0.0
  %3019 = vmatprep.subr.mxu0 0.0
  %3020 = vmatpush1.xpose.msra.mxu0 0.0
  %3021 = vmatprep.subr.mxu0 0.0
  %3022 = vmatpush1.xpose.msra.mxu0 0.0
  %3023 = vmatprep.subr.mxu0 0.0
  %3024 = vmatpush1.xpose.msra.mxu0 0.0
  %3025 = vmatprep.subr.mxu0 0.0
  %3026 = vmatpush1.xpose.msra.mxu0 0.0
  %3027 = vmatprep.subr.mxu0 0.0
  %3028 = vmatpush1.xpose.msra.mxu0 0.0
  %3029 = vmatprep.subr.mxu0 0.0
  %3030 = vmatpush1.xpose.msra.mxu0 0.0
  %3031 = vmatprep.subr.mxu0 0.0
  %3032 = vmatpush1.xpose.msra.mxu0 0.0
  %3033 = vmatprep.subr.mxu0 0.0
  %3034 = vmatpush1.xpose.msra.mxu0 0.0
  %3035 = vmatprep.subr.mxu0 0.0
  %3036 = vmatpush1.xpose.msra.mxu0 0.0
  %3037 = vmatprep.subr.mxu0 0.0
  %3038 = vmatpush1.xpose.msra.mxu0 0.0
  %3039 = vmatprep.subr.mxu0 0.0
  %3040 = vmatpush1.xpose.msra.mxu0 0.0
  %3041 = vmatprep.subr.mxu0 0.0
  %3042 = vmatpush1.xpose.msra.mxu0 0.0
  %3043 = vmatprep.subr.mxu0 0.0
  %3044 = vmatpush1.xpose.msra.mxu0 0.0
  %3045 = vmatprep.subr.mxu0 0.0
  %3046 = vmatpush1.xpose.msra.mxu0 0.0
  %3047 = vmatprep.mubr.f32.mxu0 0.0
  %3048 = vmatmul.mubr.f32.gmra.mrb[0].mxu0 %v2975
  %v3049 = vpop.f32.mrb[0].mxu0
  %v3050 = vadd.f32 0.0, %v3049
  %v3051 = vpop.f32.mrb[0].mxu0
  %3052 = vmatprep.mubr.f32.mxu0 0.0
  %3053 = vmatmul.mubr.f32.gmra.mrb[0].mxu0 %v2977
  %v3054 = vpop.f32.mrb[0].mxu0
  %v3055 = vadd.f32 0.0, %v3054
  %v3056 = vpop.f32.mrb[0].mxu0
  %3057 = vdwg.mxu0
  %v3058 = vmul.f32 %v3050, 0.35355338
  %v3059 = vmul.f32 %v3055, 0.35355338
  %v3060 = vadd.f32 %v3058, %v32
  %v3061 = vadd.f32 %v3059, %v33
  %v3062 = vsel %vm226, %v3060, -inf
  %3063 = vmax.xlane.f32.xlu0 %v3062
  %v3064 = vpop.xlane.xlu0 %3063
  %v3065 = vsel %vm226, %v3061, -inf
  %3066 = vmax.xlane.f32.xlu0 %v3065
  %v3067 = vpop.xlane.xlu0 %3066
  %v3068 = vsub.f32 %v3060, %v3064
  %v3069 = vsub.f32 %v3061, %v3067
  %v3070 = vmul.f32 %v3068, 1.442695
  %v3071 = vpow.pop %v3070
  %v3072 = vmul.f32 %v3069, 1.442695
  %v3073 = vpow.pop %v3072
  %v3074 = vsel %vm226, %v3071, 0.0
  %3075 = vadd.xlane.f32.xlu0 %v3074
  %v3076 = vpop.xlane.xlu0 %3075
  %v3077 = vsel %vm226, %v3073, 0.0
  %3078 = vadd.xlane.f32.xlu0 %v3077
  %v3079 = vpop.xlane.xlu0 %3078
  %3080 = vrot.lane.b32.xlu0 %v2752, 56
  %v3081 = vpop.permute.xlu0 %3080
  %3082 = vrot.lane.b32.xlu0 %v2757, 56
  %v3083 = vpop.permute.xlu0 %3082
  %v3087 = vsel %vm226, %v3071, 0
  %v3090 = vsel %vm226, %v3073, 0
  %3092 = vmatprep.subr.mxu0 0.0
  %3093 = vmatpush1.msra.mxu0 %v3081
  %3094 = vmatprep.subr.mxu0 0.0
  %3095 = vmatpush1.msra.mxu0 %v3083
  %3096 = vmatprep.subr.mxu0 0.0
  %3097 = vmatpush1.msra.mxu0 0.0
  %3098 = vmatprep.subr.mxu0 0.0
  %3099 = vmatpush1.msra.mxu0 0.0
  %3100 = vmatprep.subr.mxu0 0.0
  %3101 = vmatpush1.msra.mxu0 0.0
  %3102 = vmatprep.subr.mxu0 0.0
  %3103 = vmatpush1.msra.mxu0 0.0
  %3104 = vmatprep.subr.mxu0 0.0
  %3105 = vmatpush1.msra.mxu0 0.0
  %3106 = vmatprep.subr.mxu0 0.0
  %3107 = vmatpush1.msra.mxu0 0.0
  %3108 = vmatprep.subr.mxu0 0.0
  %3109 = vmatpush1.msra.mxu0 0.0
  %3110 = vmatprep.subr.mxu0 0.0
  %3111 = vmatpush1.msra.mxu0 0.0
  %3112 = vmatprep.subr.mxu0 0.0
  %3113 = vmatpush1.msra.mxu0 0.0
  %3114 = vmatprep.subr.mxu0 0.0
  %3115 = vmatpush1.msra.mxu0 0.0
  %3116 = vmatprep.subr.mxu0 0.0
  %3117 = vmatpush1.msra.mxu0 0.0
  %3118 = vmatprep.subr.mxu0 0.0
  %3119 = vmatpush1.msra.mxu0 0.0
  %3120 = vmatprep.subr.mxu0 0.0
  %3121 = vmatpush1.msra.mxu0 0.0
  %3122 = vmatprep.subr.mxu0 0.0
  %3123 = vmatpush1.msra.mxu0 0.0
  %3124 = vmatprep.subr.mxu0 0.0
  %3125 = vmatpush1.msra.mxu0 0.0
  %3126 = vmatprep.subr.mxu0 0.0
  %3127 = vmatpush1.msra.mxu0 0.0
  %3128 = vmatprep.subr.mxu0 0.0
  %3129 = vmatpush1.msra.mxu0 0.0
  %3130 = vmatprep.subr.mxu0 0.0
  %3131 = vmatpush1.msra.mxu0 0.0
  %3132 = vmatprep.subr.mxu0 0.0
  %3133 = vmatpush1.msra.mxu0 0.0
  %3134 = vmatprep.subr.mxu0 0.0
  %3135 = vmatpush1.msra.mxu0 0.0
  %3136 = vmatprep.subr.mxu0 0.0
  %3137 = vmatpush1.msra.mxu0 0.0
  %3138 = vmatprep.subr.mxu0 0.0
  %3139 = vmatpush1.msra.mxu0 0.0
  %3140 = vmatprep.subr.mxu0 0.0
  %3141 = vmatpush1.msra.mxu0 0.0
  %3142 = vmatprep.subr.mxu0 0.0
  %3143 = vmatpush1.msra.mxu0 0.0
  %3144 = vmatprep.subr.mxu0 0.0
  %3145 = vmatpush1.msra.mxu0 0.0
  %3146 = vmatprep.subr.mxu0 0.0
  %3147 = vmatpush1.msra.mxu0 0.0
  %3148 = vmatprep.subr.mxu0 0.0
  %3149 = vmatpush1.msra.mxu0 0.0
  %3150 = vmatprep.subr.mxu0 0.0
  %3151 = vmatpush1.msra.mxu0 0.0
  %3152 = vmatprep.subr.mxu0 0.0
  %3153 = vmatpush1.msra.mxu0 0.0
  %3154 = vmatprep.subr.mxu0 0.0
  %3155 = vmatpush1.msra.mxu0 0.0
  %3156 = vmatprep.mubr.f32.mxu0 0.0
  %3157 = vmatmul.mubr.f32.gmra.mrb[0].mxu0 %v3087
  %v3158 = vpop.f32.mrb[0].mxu0
  %v3159 = vadd.f32 0.0, %v3158
  %v3160 = vpop.f32.mrb[0].mxu0
  %3161 = vmatprep.mubr.f32.mxu0 0.0
  %3162 = vmatmul.mubr.f32.gmra.mrb[0].mxu0 %v3090
  %v3163 = vpop.f32.mrb[0].mxu0
  %v3164 = vadd.f32 0.0, %v3163
  %v3165 = vpop.f32.mrb[0].mxu0
  %3166 = vdwg.mxu0
  %v3167 = vrcp.pop %v3076
  %v3168 = vrcp.pop %v3079
  %v3169 = vmul.f32 %v3159, %v3167
  %v3170 = vmul.f32 %v3164, %v3168
  %3171 = vrot.lane.b32.xlu0 %v2752, 112
  %v3172 = vpop.permute.xlu0 %3171
  %3173 = vrot.lane.b32.xlu0 %v2757, 112
  %v3174 = vpop.permute.xlu0 %3173
  %3175 = vrot.lane.b32.xlu0 %v2752, 80
  %v3176 = vpop.permute.xlu0 %3175
  %3177 = vrot.lane.b32.xlu0 %v2757, 80
  %v3178 = vpop.permute.xlu0 %3177
  %v3179 = vsel %vm138, %v3172, 0
  %v3181 = vsel %vm138, %v3174, 0
  %v3183 = vsel %vm138, %v3176, 0
  %v3185 = vsel %vm138, %v3178, 0
  %3187 = vmatprep.subr.mxu0 0.0
  %3188 = vmatpush1.xpose.msra.mxu0 %v3183
  %3189 = vmatprep.subr.mxu0 0.0
  %3190 = vmatpush1.xpose.msra.mxu0 %v3185
  %3191 = vmatprep.subr.mxu0 0.0
  %3192 = vmatpush1.xpose.msra.mxu0 0.0
  %3193 = vmatprep.subr.mxu0 0.0
  %3194 = vmatpush1.xpose.msra.mxu0 0.0
  %3195 = vmatprep.subr.mxu0 0.0
  %3196 = vmatpush1.xpose.msra.mxu0 0.0
  %3197 = vmatprep.subr.mxu0 0.0
  %3198 = vmatpush1.xpose.msra.mxu0 0.0
  %3199 = vmatprep.subr.mxu0 0.0
  %3200 = vmatpush1.xpose.msra.mxu0 0.0
  %3201 = vmatprep.subr.mxu0 0.0
  %3202 = vmatpush1.xpose.msra.mxu0 0.0
  %3203 = vmatprep.subr.mxu0 0.0
  %3204 = vmatpush1.xpose.msra.mxu0 0.0
  %3205 = vmatprep.subr.mxu0 0.0
  %3206 = vmatpush1.xpose.msra.mxu0 0.0
  %3207 = vmatprep.subr.mxu0 0.0
  %3208 = vmatpush1.xpose.msra.mxu0 0.0
  %3209 = vmatprep.subr.mxu0 0.0
  %3210 = vmatpush1.xpose.msra.mxu0 0.0
  %3211 = vmatprep.subr.mxu0 0.0
  %3212 = vmatpush1.xpose.msra.mxu0 0.0
  %3213 = vmatprep.subr.mxu0 0.0
  %3214 = vmatpush1.xpose.msra.mxu0 0.0
  %3215 = vmatprep.subr.mxu0 0.0
  %3216 = vmatpush1.xpose.msra.mxu0 0.0
  %3217 = vmatprep.subr.mxu0 0.0
  %3218 = vmatpush1.xpose.msra.mxu0 0.0
  %3219 = vmatprep.subr.mxu0 0.0
  %3220 = vmatpush1.xpose.msra.mxu0 0.0
  %3221 = vmatprep.subr.mxu0 0.0
  %3222 = vmatpush1.xpose.msra.mxu0 0.0
  %3223 = vmatprep.subr.mxu0 0.0
  %3224 = vmatpush1.xpose.msra.mxu0 0.0
  %3225 = vmatprep.subr.mxu0 0.0
  %3226 = vmatpush1.xpose.msra.mxu0 0.0
  %3227 = vmatprep.subr.mxu0 0.0
  %3228 = vmatpush1.xpose.msra.mxu0 0.0
  %3229 = vmatprep.subr.mxu0 0.0
  %3230 = vmatpush1.xpose.msra.mxu0 0.0
  %3231 = vmatprep.subr.mxu0 0.0
  %3232 = vmatpush1.xpose.msra.mxu0 0.0
  %3233 = vmatprep.subr.mxu0 0.0
  %3234 = vmatpush1.xpose.msra.mxu0 0.0
  %3235 = vmatprep.subr.mxu0 0.0
  %3236 = vmatpush1.xpose.msra.mxu0 0.0
  %3237 = vmatprep.subr.mxu0 0.0
  %3238 = vmatpush1.xpose.msra.mxu0 0.0
  %3239 = vmatprep.subr.mxu0 0.0
  %3240 = vmatpush1.xpose.msra.mxu0 0.0
  %3241 = vmatprep.subr.mxu0 0.0
  %3242 = vmatpush1.xpose.msra.mxu0 0.0
  %3243 = vmatprep.subr.mxu0 0.0
  %3244 = vmatpush1.xpose.msra.mxu0 0.0
  %3245 = vmatprep.subr.mxu0 0.0
  %3246 = vmatpush1.xpose.msra.mxu0 0.0
  %3247 = vmatprep.subr.mxu0 0.0
  %3248 = vmatpush1.xpose.msra.mxu0 0.0
  %3249 = vmatprep.subr.mxu0 0.0
  %3250 = vmatpush1.xpose.msra.mxu0 0.0
  %3251 = vmatprep.mubr.f32.mxu0 0.0
  %3252 = vmatmul.mubr.f32.gmra.mrb[0].mxu0 %v3179
  %v3253 = vpop.f32.mrb[0].mxu0
  %v3254 = vadd.f32 0.0, %v3253
  %v3255 = vpop.f32.mrb[0].mxu0
  %3256 = vmatprep.mubr.f32.mxu0 0.0
  %3257 = vmatmul.mubr.f32.gmra.mrb[0].mxu0 %v3181
  %v3258 = vpop.f32.mrb[0].mxu0
  %v3259 = vadd.f32 0.0, %v3258
  %v3260 = vpop.f32.mrb[0].mxu0
  %3261 = vdwg.mxu0
  %v3262 = vmul.f32 %v3254, 0.35355338
  %v3263 = vmul.f32 %v3259, 0.35355338
  %v3264 = vadd.f32 %v3262, %v32
  %v3265 = vadd.f32 %v3263, %v33
  %v3266 = vsel %vm226, %v3264, -inf
  %3267 = vmax.xlane.f32.xlu0 %v3266
  %v3268 = vpop.xlane.xlu0 %3267
  %v3269 = vsel %vm226, %v3265, -inf
  %3270 = vmax.xlane.f32.xlu0 %v3269
  %v3271 = vpop.xlane.xlu0 %3270
  %v3272 = vsub.f32 %v3264, %v3268
  %v3273 = vsub.f32 %v3265, %v3271
  %v3274 = vmul.f32 %v3272, 1.442695
  %v3275 = vpow.pop %v3274
  %v3276 = vmul.f32 %v3273, 1.442695
  %v3277 = vpow.pop %v3276
  %v3278 = vsel %vm226, %v3275, 0.0
  %3279 = vadd.xlane.f32.xlu0 %v3278
  %v3280 = vpop.xlane.xlu0 %3279
  %v3281 = vsel %vm226, %v3277, 0.0
  %3282 = vadd.xlane.f32.xlu0 %v3281
  %v3283 = vpop.xlane.xlu0 %3282
  %3284 = vrot.lane.b32.xlu0 %v2752, 48
  %v3285 = vpop.permute.xlu0 %3284
  %3286 = vrot.lane.b32.xlu0 %v2757, 48
  %v3287 = vpop.permute.xlu0 %3286
  %v3291 = vsel %vm226, %v3275, 0
  %v3294 = vsel %vm226, %v3277, 0
  %3296 = vmatprep.subr.mxu0 0.0
  %3297 = vmatpush1.msra.mxu0 %v3285
  %3298 = vmatprep.subr.mxu0 0.0
  %3299 = vmatpush1.msra.mxu0 %v3287
  %3300 = vmatprep.subr.mxu0 0.0
  %3301 = vmatpush1.msra.mxu0 0.0
  %3302 = vmatprep.subr.mxu0 0.0
  %3303 = vmatpush1.msra.mxu0 0.0
  %3304 = vmatprep.subr.mxu0 0.0
  %3305 = vmatpush1.msra.mxu0 0.0
  %3306 = vmatprep.subr.mxu0 0.0
  %3307 = vmatpush1.msra.mxu0 0.0
  %3308 = vmatprep.subr.mxu0 0.0
  %3309 = vmatpush1.msra.mxu0 0.0
  %3310 = vmatprep.subr.mxu0 0.0
  %3311 = vmatpush1.msra.mxu0 0.0
  %3312 = vmatprep.subr.mxu0 0.0
  %3313 = vmatpush1.msra.mxu0 0.0
  %3314 = vmatprep.subr.mxu0 0.0
  %3315 = vmatpush1.msra.mxu0 0.0
  %3316 = vmatprep.subr.mxu0 0.0
  %3317 = vmatpush1.msra.mxu0 0.0
  %3318 = vmatprep.subr.mxu0 0.0
  %3319 = vmatpush1.msra.mxu0 0.0
  %3320 = vmatprep.subr.mxu0 0.0
  %3321 = vmatpush1.msra.mxu0 0.0
  %3322 = vmatprep.subr.mxu0 0.0
  %3323 = vmatpush1.msra.mxu0 0.0
  %3324 = vmatprep.subr.mxu0 0.0
  %3325 = vmatpush1.msra.mxu0 0.0
  %3326 = vmatprep.subr.mxu0 0.0
  %3327 = vmatpush1.msra.mxu0 0.0
  %3328 = vmatprep.subr.mxu0 0.0
  %3329 = vmatpush1.msra.mxu0 0.0
  %3330 = vmatprep.subr.mxu0 0.0
  %3331 = vmatpush1.msra.mxu0 0.0
  %3332 = vmatprep.subr.mxu0 0.0
  %3333 = vmatpush1.msra.mxu0 0.0
  %3334 = vmatprep.subr.mxu0 0.0
  %3335 = vmatpush1.msra.mxu0 0.0
  %3336 = vmatprep.subr.mxu0 0.0
  %3337 = vmatpush1.msra.mxu0 0.0
  %3338 = vmatprep.subr.mxu0 0.0
  %3339 = vmatpush1.msra.mxu0 0.0
  %3340 = vmatprep.subr.mxu0 0.0
  %3341 = vmatpush1.msra.mxu0 0.0
  %3342 = vmatprep.subr.mxu0 0.0
  %3343 = vmatpush1.msra.mxu0 0.0
  %3344 = vmatprep.subr.mxu0 0.0
  %3345 = vmatpush1.msra.mxu0 0.0
  %3346 = vmatprep.subr.mxu0 0.0
  %3347 = vmatpush1.msra.mxu0 0.0
  %3348 = vmatprep.subr.mxu0 0.0
  %3349 = vmatpush1.msra.mxu0 0.0
  %3350 = vmatprep.subr.mxu0 0.0
  %3351 = vmatpush1.msra.mxu0 0.0
  %3352 = vmatprep.subr.mxu0 0.0
  %3353 = vmatpush1.msra.mxu0 0.0
  %3354 = vmatprep.subr.mxu0 0.0
  %3355 = vmatpush1.msra.mxu0 0.0
  %3356 = vmatprep.subr.mxu0 0.0
  %3357 = vmatpush1.msra.mxu0 0.0
  %3358 = vmatprep.subr.mxu0 0.0
  %3359 = vmatpush1.msra.mxu0 0.0
  %3360 = vmatprep.mubr.f32.mxu0 0.0
  %3361 = vmatmul.mubr.f32.gmra.mrb[0].mxu0 %v3291
  %v3362 = vpop.f32.mrb[0].mxu0
  %v3363 = vadd.f32 0.0, %v3362
  %v3364 = vpop.f32.mrb[0].mxu0
  %3365 = vmatprep.mubr.f32.mxu0 0.0
  %3366 = vmatmul.mubr.f32.gmra.mrb[0].mxu0 %v3294
  %v3367 = vpop.f32.mrb[0].mxu0
  %v3368 = vadd.f32 0.0, %v3367
  %v3369 = vpop.f32.mrb[0].mxu0
  %3370 = vdwg.mxu0
  %v3371 = vrcp.pop %v3280
  %v3372 = vrcp.pop %v3283
  %v3373 = vmul.f32 %v3363, %v3371
  %v3374 = vmul.f32 %v3368, %v3372
  %3375 = vrot.lane.b32.xlu0 %v2752, 104
  %v3376 = vpop.permute.xlu0 %3375
  %3377 = vrot.lane.b32.xlu0 %v2757, 104
  %v3378 = vpop.permute.xlu0 %3377
  %3379 = vrot.lane.b32.xlu0 %v2752, 72
  %v3380 = vpop.permute.xlu0 %3379
  %3381 = vrot.lane.b32.xlu0 %v2757, 72
  %v3382 = vpop.permute.xlu0 %3381
  %v3383 = vsel %vm138, %v3376, 0
  %v3385 = vsel %vm138, %v3378, 0
  %v3387 = vsel %vm138, %v3380, 0
  %v3389 = vsel %vm138, %v3382, 0
  %3391 = vmatprep.subr.mxu0 0.0
  %3392 = vmatpush1.xpose.msra.mxu0 %v3387
  %3393 = vmatprep.subr.mxu0 0.0
  %3394 = vmatpush1.xpose.msra.mxu0 %v3389
  %3395 = vmatprep.subr.mxu0 0.0
  %3396 = vmatpush1.xpose.msra.mxu0 0.0
  %3397 = vmatprep.subr.mxu0 0.0
  %3398 = vmatpush1.xpose.msra.mxu0 0.0
  %3399 = vmatprep.subr.mxu0 0.0
  %3400 = vmatpush1.xpose.msra.mxu0 0.0
  %3401 = vmatprep.subr.mxu0 0.0
  %3402 = vmatpush1.xpose.msra.mxu0 0.0
  %3403 = vmatprep.subr.mxu0 0.0
  %3404 = vmatpush1.xpose.msra.mxu0 0.0
  %3405 = vmatprep.subr.mxu0 0.0
  %3406 = vmatpush1.xpose.msra.mxu0 0.0
  %3407 = vmatprep.subr.mxu0 0.0
  %3408 = vmatpush1.xpose.msra.mxu0 0.0
  %3409 = vmatprep.subr.mxu0 0.0
  %3410 = vmatpush1.xpose.msra.mxu0 0.0
  %3411 = vmatprep.subr.mxu0 0.0
  %3412 = vmatpush1.xpose.msra.mxu0 0.0
  %3413 = vmatprep.subr.mxu0 0.0
  %3414 = vmatpush1.xpose.msra.mxu0 0.0
  %3415 = vmatprep.subr.mxu0 0.0
  %3416 = vmatpush1.xpose.msra.mxu0 0.0
  %3417 = vmatprep.subr.mxu0 0.0
  %3418 = vmatpush1.xpose.msra.mxu0 0.0
  %3419 = vmatprep.subr.mxu0 0.0
  %3420 = vmatpush1.xpose.msra.mxu0 0.0
  %3421 = vmatprep.subr.mxu0 0.0
  %3422 = vmatpush1.xpose.msra.mxu0 0.0
  %3423 = vmatprep.subr.mxu0 0.0
  %3424 = vmatpush1.xpose.msra.mxu0 0.0
  %3425 = vmatprep.subr.mxu0 0.0
  %3426 = vmatpush1.xpose.msra.mxu0 0.0
  %3427 = vmatprep.subr.mxu0 0.0
  %3428 = vmatpush1.xpose.msra.mxu0 0.0
  %3429 = vmatprep.subr.mxu0 0.0
  %3430 = vmatpush1.xpose.msra.mxu0 0.0
  %3431 = vmatprep.subr.mxu0 0.0
  %3432 = vmatpush1.xpose.msra.mxu0 0.0
  %3433 = vmatprep.subr.mxu0 0.0
  %3434 = vmatpush1.xpose.msra.mxu0 0.0
  %3435 = vmatprep.subr.mxu0 0.0
  %3436 = vmatpush1.xpose.msra.mxu0 0.0
  %3437 = vmatprep.subr.mxu0 0.0
  %3438 = vmatpush1.xpose.msra.mxu0 0.0
  %3439 = vmatprep.subr.mxu0 0.0
  %3440 = vmatpush1.xpose.msra.mxu0 0.0
  %3441 = vmatprep.subr.mxu0 0.0
  %3442 = vmatpush1.xpose.msra.mxu0 0.0
  %3443 = vmatprep.subr.mxu0 0.0
  %3444 = vmatpush1.xpose.msra.mxu0 0.0
  %3445 = vmatprep.subr.mxu0 0.0
  %3446 = vmatpush1.xpose.msra.mxu0 0.0
  %3447 = vmatprep.subr.mxu0 0.0
  %3448 = vmatpush1.xpose.msra.mxu0 0.0
  %3449 = vmatprep.subr.mxu0 0.0
  %3450 = vmatpush1.xpose.msra.mxu0 0.0
  %3451 = vmatprep.subr.mxu0 0.0
  %3452 = vmatpush1.xpose.msra.mxu0 0.0
  %3453 = vmatprep.subr.mxu0 0.0
  %3454 = vmatpush1.xpose.msra.mxu0 0.0
  %3455 = vmatprep.mubr.f32.mxu0 0.0
  %3456 = vmatmul.mubr.f32.gmra.mrb[0].mxu0 %v3383
  %v3457 = vpop.f32.mrb[0].mxu0
  %v3458 = vadd.f32 0.0, %v3457
  %v3459 = vpop.f32.mrb[0].mxu0
  %3460 = vmatprep.mubr.f32.mxu0 0.0
  %3461 = vmatmul.mubr.f32.gmra.mrb[0].mxu0 %v3385
  %v3462 = vpop.f32.mrb[0].mxu0
  %v3463 = vadd.f32 0.0, %v3462
  %v3464 = vpop.f32.mrb[0].mxu0
  %3465 = vdwg.mxu0
  %v3466 = vmul.f32 %v3458, 0.35355338
  %v3467 = vmul.f32 %v3463, 0.35355338
  %v3468 = vadd.f32 %v3466, %v32
  %v3469 = vadd.f32 %v3467, %v33
  %v3470 = vsel %vm226, %v3468, -inf
  %3471 = vmax.xlane.f32.xlu0 %v3470
  %v3472 = vpop.xlane.xlu0 %3471
  %v3473 = vsel %vm226, %v3469, -inf
  %3474 = vmax.xlane.f32.xlu0 %v3473
  %v3475 = vpop.xlane.xlu0 %3474
  %v3476 = vsub.f32 %v3468, %v3472
  %v3477 = vsub.f32 %v3469, %v3475
  %v3478 = vmul.f32 %v3476, 1.442695
  %v3479 = vpow.pop %v3478
  %v3480 = vmul.f32 %v3477, 1.442695
  %v3481 = vpow.pop %v3480
  %v3482 = vsel %vm226, %v3479, 0.0
  %3483 = vadd.xlane.f32.xlu0 %v3482
  %v3484 = vpop.xlane.xlu0 %3483
  %v3485 = vsel %vm226, %v3481, 0.0
  %3486 = vadd.xlane.f32.xlu0 %v3485
  %v3487 = vpop.xlane.xlu0 %3486
  %3488 = vrot.lane.b32.xlu0 %v2752, 40
  %v3489 = vpop.permute.xlu0 %3488
  %3490 = vrot.lane.b32.xlu0 %v2757, 40
  %v3491 = vpop.permute.xlu0 %3490
  %v3495 = vsel %vm226, %v3479, 0
  %v3498 = vsel %vm226, %v3481, 0
  %3500 = vmatprep.subr.mxu0 0.0
  %3501 = vmatpush1.msra.mxu0 %v3489
  %3502 = vmatprep.subr.mxu0 0.0
  %3503 = vmatpush1.msra.mxu0 %v3491
  %3504 = vmatprep.subr.mxu0 0.0
  %3505 = vmatpush1.msra.mxu0 0.0
  %3506 = vmatprep.subr.mxu0 0.0
  %3507 = vmatpush1.msra.mxu0 0.0
  %3508 = vmatprep.subr.mxu0 0.0
  %3509 = vmatpush1.msra.mxu0 0.0
  %3510 = vmatprep.subr.mxu0 0.0
  %3511 = vmatpush1.msra.mxu0 0.0
  %3512 = vmatprep.subr.mxu0 0.0
  %3513 = vmatpush1.msra.mxu0 0.0
  %3514 = vmatprep.subr.mxu0 0.0
  %3515 = vmatpush1.msra.mxu0 0.0
  %3516 = vmatprep.subr.mxu0 0.0
  %3517 = vmatpush1.msra.mxu0 0.0
  %3518 = vmatprep.subr.mxu0 0.0
  %3519 = vmatpush1.msra.mxu0 0.0
  %3520 = vmatprep.subr.mxu0 0.0
  %3521 = vmatpush1.msra.mxu0 0.0
  %3522 = vmatprep.subr.mxu0 0.0
  %3523 = vmatpush1.msra.mxu0 0.0
  %3524 = vmatprep.subr.mxu0 0.0
  %3525 = vmatpush1.msra.mxu0 0.0
  %3526 = vmatprep.subr.mxu0 0.0
  %3527 = vmatpush1.msra.mxu0 0.0
  %3528 = vmatprep.subr.mxu0 0.0
  %3529 = vmatpush1.msra.mxu0 0.0
  %3530 = vmatprep.subr.mxu0 0.0
  %3531 = vmatpush1.msra.mxu0 0.0
  %3532 = vmatprep.subr.mxu0 0.0
  %3533 = vmatpush1.msra.mxu0 0.0
  %3534 = vmatprep.subr.mxu0 0.0
  %3535 = vmatpush1.msra.mxu0 0.0
  %3536 = vmatprep.subr.mxu0 0.0
  %3537 = vmatpush1.msra.mxu0 0.0
  %3538 = vmatprep.subr.mxu0 0.0
  %3539 = vmatpush1.msra.mxu0 0.0
  %3540 = vmatprep.subr.mxu0 0.0
  %3541 = vmatpush1.msra.mxu0 0.0
  %3542 = vmatprep.subr.mxu0 0.0
  %3543 = vmatpush1.msra.mxu0 0.0
  %3544 = vmatprep.subr.mxu0 0.0
  %3545 = vmatpush1.msra.mxu0 0.0
  %3546 = vmatprep.subr.mxu0 0.0
  %3547 = vmatpush1.msra.mxu0 0.0
  %3548 = vmatprep.subr.mxu0 0.0
  %3549 = vmatpush1.msra.mxu0 0.0
  %3550 = vmatprep.subr.mxu0 0.0
  %3551 = vmatpush1.msra.mxu0 0.0
  %3552 = vmatprep.subr.mxu0 0.0
  %3553 = vmatpush1.msra.mxu0 0.0
  %3554 = vmatprep.subr.mxu0 0.0
  %3555 = vmatpush1.msra.mxu0 0.0
  %3556 = vmatprep.subr.mxu0 0.0
  %3557 = vmatpush1.msra.mxu0 0.0
  %3558 = vmatprep.subr.mxu0 0.0
  %3559 = vmatpush1.msra.mxu0 0.0
  %3560 = vmatprep.subr.mxu0 0.0
  %3561 = vmatpush1.msra.mxu0 0.0
  %3562 = vmatprep.subr.mxu0 0.0
  %3563 = vmatpush1.msra.mxu0 0.0
  %3564 = vmatprep.mubr.f32.mxu0 0.0
  %3565 = vmatmul.mubr.f32.gmra.mrb[0].mxu0 %v3495
  %v3566 = vpop.f32.mrb[0].mxu0
  %v3567 = vadd.f32 0.0, %v3566
  %v3568 = vpop.f32.mrb[0].mxu0
  %3569 = vmatprep.mubr.f32.mxu0 0.0
  %3570 = vmatmul.mubr.f32.gmra.mrb[0].mxu0 %v3498
  %v3571 = vpop.f32.mrb[0].mxu0
  %v3572 = vadd.f32 0.0, %v3571
  %v3573 = vpop.f32.mrb[0].mxu0
  %3574 = vdwg.mxu0
  %v3575 = vrcp.pop %v3484
  %v3576 = vrcp.pop %v3487
  %v3577 = vmul.f32 %v3567, %v3575
  %v3578 = vmul.f32 %v3572, %v3576
  %3581 = vrot.lane.b32.xlu0 %v3169, 8
  %v3582 = vpop.permute.xlu0 %3581
  %3583 = vrot.lane.b32.xlu0 %v3170, 8
  %v3584 = vpop.permute.xlu0 %3583
  %3589 = vrot.lane.b32.xlu0 %v3373, 16
  %v3590 = vpop.permute.xlu0 %3589
  %3591 = vrot.lane.b32.xlu0 %v3374, 16
  %v3592 = vpop.permute.xlu0 %3591
  %3597 = vrot.lane.b32.xlu0 %v3577, 24
  %v3598 = vpop.permute.xlu0 %3597
  %3599 = vrot.lane.b32.xlu0 %v3578, 24
  %v3600 = vpop.permute.xlu0 %3599
  %v3603 = vsel %vm138, %v2965, %v3582
  %v3604 = vsel %vm138, %v2966, %v3584
  %v3605 = vsel %vm226, %v3603, %v3590
  %v3606 = vsel %vm226, %v3604, %v3592
  %v3607 = vsel %vm976, %v3605, %v3598
  %v3608 = vsel %vm976, %v3606, %v3600
  %v3609 = vlaneseq
  %v3610 = vshrl.u32 %v3609, 7
  %v3611 = vsub.s32 0, %v3610
  %v3612 = vrot.slane %v2764, %v3611
  %v3614 = vsel %vm45, %v3607, 0
  %v3617 = vsel %vm45, %v3608, 0
  %3619 = vmatprep.subr.mxu0 0.0
  %3620 = vmatpush1.msra.mxu0 %v2760
  %3621 = vmatprep.subr.mxu0 0.0
  %3622 = vmatpush1.msra.mxu0 %v2761
  %3623 = vmatprep.subr.mxu0 0.0
  %3624 = vmatpush1.msra.mxu0 %v2762
  %3625 = vmatprep.subr.mxu0 0.0
  %3626 = vmatpush1.msra.mxu0 %v2763
  %3627 = vmatprep.subr.mxu0 0.0
  %3628 = vmatpush1.msra.mxu0 0.0
  %3629 = vmatprep.subr.mxu0 0.0
  %3630 = vmatpush1.msra.mxu0 0.0
  %3631 = vmatprep.subr.mxu0 0.0
  %3632 = vmatpush1.msra.mxu0 0.0
  %3633 = vmatprep.subr.mxu0 0.0
  %3634 = vmatpush1.msra.mxu0 0.0
  %3635 = vmatprep.subr.mxu0 0.0
  %3636 = vmatpush1.msra.mxu0 0.0
  %3637 = vmatprep.subr.mxu0 0.0
  %3638 = vmatpush1.msra.mxu0 0.0
  %3639 = vmatprep.subr.mxu0 0.0
  %3640 = vmatpush1.msra.mxu0 0.0
  %3641 = vmatprep.subr.mxu0 0.0
  %3642 = vmatpush1.msra.mxu0 0.0
  %3643 = vmatprep.subr.mxu0 0.0
  %3644 = vmatpush1.msra.mxu0 0.0
  %3645 = vmatprep.subr.mxu0 0.0
  %3646 = vmatpush1.msra.mxu0 0.0
  %3647 = vmatprep.subr.mxu0 0.0
  %3648 = vmatpush1.msra.mxu0 0.0
  %3649 = vmatprep.subr.mxu0 0.0
  %3650 = vmatpush1.msra.mxu0 0.0
  %3651 = vmatprep.subr.mxu0 0.0
  %3652 = vmatpush1.msra.mxu0 0.0
  %3653 = vmatprep.subr.mxu0 0.0
  %3654 = vmatpush1.msra.mxu0 0.0
  %3655 = vmatprep.subr.mxu0 0.0
  %3656 = vmatpush1.msra.mxu0 0.0
  %3657 = vmatprep.subr.mxu0 0.0
  %3658 = vmatpush1.msra.mxu0 0.0
  %3659 = vmatprep.subr.mxu0 0.0
  %3660 = vmatpush1.msra.mxu0 0.0
  %3661 = vmatprep.subr.mxu0 0.0
  %3662 = vmatpush1.msra.mxu0 0.0
  %3663 = vmatprep.subr.mxu0 0.0
  %3664 = vmatpush1.msra.mxu0 0.0
  %3665 = vmatprep.subr.mxu0 0.0
  %3666 = vmatpush1.msra.mxu0 0.0
  %3667 = vmatprep.subr.mxu0 0.0
  %3668 = vmatpush1.msra.mxu0 0.0
  %3669 = vmatprep.subr.mxu0 0.0
  %3670 = vmatpush1.msra.mxu0 0.0
  %3671 = vmatprep.subr.mxu0 0.0
  %3672 = vmatpush1.msra.mxu0 0.0
  %3673 = vmatprep.subr.mxu0 0.0
  %3674 = vmatpush1.msra.mxu0 0.0
  %3675 = vmatprep.subr.mxu0 0.0
  %3676 = vmatpush1.msra.mxu0 0.0
  %3677 = vmatprep.subr.mxu0 0.0
  %3678 = vmatpush1.msra.mxu0 0.0
  %3679 = vmatprep.subr.mxu0 0.0
  %3680 = vmatpush1.msra.mxu0 0.0
  %3681 = vmatprep.subr.mxu0 0.0
  %3682 = vmatpush1.msra.mxu0 0.0
  %3683 = vmatprep.mubr.f32.mxu0 0.0
  %3684 = vmatmul.mubr.f32.gmra.mrb[0].mxu0 %v3614
  %v3685 = vpop.f32.mrb[0].mxu0
  %v3686 = vadd.f32 %v3612, %v3685
  %v3687 = vpop.f32.mrb[0].mxu0
  %3688 = vmatprep.mubr.f32.mxu0 0.0
  %3689 = vmatmul.mubr.f32.gmra.mrb[0].mxu0 %v3617
  %v3690 = vpop.f32.mrb[0].mxu0
  %v3691 = vadd.f32 %v3612, %v3690
  %v3692 = vpop.f32.mrb[0].mxu0
  %3693 = vdwg.mxu0
  %v3694 = vadd.f32 %v28, %v3686
  %v3695 = vadd.f32 %v29, %v3691
  %v3696 = vld [vmem:[%s6 + $0x17] sm:$0x1]
  %v3697 = vld [vmem:[%s6 + $0x18] sm:$0x1]
  %v3698 = vsel %vm45, %v3694, 0.0
  %3699 = vadd.xlane.f32.xlu0 %v3698
  %v3700 = vpop.xlane.xlu0 %3699
  %v3701 = vsel %vm45, %v3695, 0.0
  %3702 = vadd.xlane.f32.xlu0 %v3701
  %v3703 = vpop.xlane.xlu0 %3702
  %v3704 = vmul.f32 %v3700, %v1074
  %v3705 = vmul.f32 %v3703, %v1074
  %v3706 = vsub.f32 %v3694, %v3704
  %v3707 = vsub.f32 %v3695, %v3705
  %v3708 = vmul.f32 %v3706, %v3706
  %v3709 = vmul.f32 %v3707, %v3707
  %v3710 = vsel %vm45, %v3708, 0.0
  %3711 = vadd.xlane.f32.xlu0 %v3710
  %v3712 = vpop.xlane.xlu0 %3711
  %v3713 = vsel %vm45, %v3709, 0.0
  %3714 = vadd.xlane.f32.xlu0 %v3713
  %v3715 = vpop.xlane.xlu0 %3714
  %v3716 = vmul.f32 %v3712, %v1074
  %v3717 = vmul.f32 %v3715, %v1074
  %v3718 = vadd.f32 %v3716, 1e-05
  %v3719 = vadd.f32 %v3717, 1e-05
  %v3720 = vrsqrt.pop %v3718
  %v3721 = vrsqrt.pop %v3719
  %v3722 = vmul.f32 %v3706, %v3720
  %v3723 = vmul.f32 %v3707, %v3721
  %v3724 = vlaneseq
  %v3725 = vshrl.u32 %v3724, 7
  %v3726 = vsub.s32 0, %v3725
  %v3727 = vrot.slane %v3696, %v3726
  %v3728 = vmul.f32 %v3722, %v3727
  %v3729 = vmul.f32 %v3723, %v3727
  %v3730 = vlaneseq
  %v3731 = vshrl.u32 %v3730, 7
  %v3732 = vsub.s32 0, %v3731
  %v3733 = vrot.slane %v3697, %v3732
  %v3734 = vadd.f32 %v3728, %v3733
  %v3735 = vadd.f32 %v3729, %v3733
  %v3736 = vld [vmem:[%s5 + $0x180] sm:$0xff]
  %v3737 = vld [vmem:[%s5 + $0x188] sm:$0xff]
  %v3738 = vld [vmem:[%s5 + $0x190] sm:$0xff]
  %v3739 = vld [vmem:[%s5 + $0x198] sm:$0xff]
  %v3740 = vld [vmem:[%s6 + $0x12] sm:$0x1]
  %v3741 = vlaneseq
  %v3742 = vshrl.u32 %v3741, 7
  %v3743 = vsub.s32 0, %v3742
  %v3744 = vrot.slane %v3740, %v3743
  %v3746 = vsel %vm45, %v3734, 0
  %v3749 = vsel %vm45, %v3735, 0
  %3751 = vmatprep.subr.mxu0 0.0
  %3752 = vmatpush1.msra.mxu0 %v3736
  %3753 = vmatprep.subr.mxu0 0.0
  %3754 = vmatpush1.msra.mxu0 %v3737
  %3755 = vmatprep.subr.mxu0 0.0
  %3756 = vmatpush1.msra.mxu0 %v3738
  %3757 = vmatprep.subr.mxu0 0.0
  %3758 = vmatpush1.msra.mxu0 %v3739
  %3759 = vmatprep.subr.mxu0 0.0
  %3760 = vmatpush1.msra.mxu0 0.0
  %3761 = vmatprep.subr.mxu0 0.0
  %3762 = vmatpush1.msra.mxu0 0.0
  %3763 = vmatprep.subr.mxu0 0.0
  %3764 = vmatpush1.msra.mxu0 0.0
  %3765 = vmatprep.subr.mxu0 0.0
  %3766 = vmatpush1.msra.mxu0 0.0
  %3767 = vmatprep.subr.mxu0 0.0
  %3768 = vmatpush1.msra.mxu0 0.0
  %3769 = vmatprep.subr.mxu0 0.0
  %3770 = vmatpush1.msra.mxu0 0.0
  %3771 = vmatprep.subr.mxu0 0.0
  %3772 = vmatpush1.msra.mxu0 0.0
  %3773 = vmatprep.subr.mxu0 0.0
  %3774 = vmatpush1.msra.mxu0 0.0
  %3775 = vmatprep.subr.mxu0 0.0
  %3776 = vmatpush1.msra.mxu0 0.0
  %3777 = vmatprep.subr.mxu0 0.0
  %3778 = vmatpush1.msra.mxu0 0.0
  %3779 = vmatprep.subr.mxu0 0.0
  %3780 = vmatpush1.msra.mxu0 0.0
  %3781 = vmatprep.subr.mxu0 0.0
  %3782 = vmatpush1.msra.mxu0 0.0
  %3783 = vmatprep.subr.mxu0 0.0
  %3784 = vmatpush1.msra.mxu0 0.0
  %3785 = vmatprep.subr.mxu0 0.0
  %3786 = vmatpush1.msra.mxu0 0.0
  %3787 = vmatprep.subr.mxu0 0.0
  %3788 = vmatpush1.msra.mxu0 0.0
  %3789 = vmatprep.subr.mxu0 0.0
  %3790 = vmatpush1.msra.mxu0 0.0
  %3791 = vmatprep.subr.mxu0 0.0
  %3792 = vmatpush1.msra.mxu0 0.0
  %3793 = vmatprep.subr.mxu0 0.0
  %3794 = vmatpush1.msra.mxu0 0.0
  %3795 = vmatprep.subr.mxu0 0.0
  %3796 = vmatpush1.msra.mxu0 0.0
  %3797 = vmatprep.subr.mxu0 0.0
  %3798 = vmatpush1.msra.mxu0 0.0
  %3799 = vmatprep.subr.mxu0 0.0
  %3800 = vmatpush1.msra.mxu0 0.0
  %3801 = vmatprep.subr.mxu0 0.0
  %3802 = vmatpush1.msra.mxu0 0.0
  %3803 = vmatprep.subr.mxu0 0.0
  %3804 = vmatpush1.msra.mxu0 0.0
  %3805 = vmatprep.subr.mxu0 0.0
  %3806 = vmatpush1.msra.mxu0 0.0
  %3807 = vmatprep.subr.mxu0 0.0
  %3808 = vmatpush1.msra.mxu0 0.0
  %3809 = vmatprep.subr.mxu0 0.0
  %3810 = vmatpush1.msra.mxu0 0.0
  %3811 = vmatprep.subr.mxu0 0.0
  %3812 = vmatpush1.msra.mxu0 0.0
  %3813 = vmatprep.subr.mxu0 0.0
  %3814 = vmatpush1.msra.mxu0 0.0
  %3815 = vmatprep.mubr.f32.mxu0 0.0
  %3816 = vmatmul.mubr.f32.gmra.mrb[0].mxu0 %v3746
  %v3817 = vpop.f32.mrb[0].mxu0
  %v3818 = vadd.f32 %v3744, %v3817
  %v3819 = vpop.f32.mrb[0].mxu0
  %3820 = vmatprep.mubr.f32.mxu0 0.0
  %3821 = vmatmul.mubr.f32.gmra.mrb[0].mxu0 %v3749
  %v3822 = vpop.f32.mrb[0].mxu0
  %v3823 = vadd.f32 %v3744, %v3822
  %v3824 = vpop.f32.mrb[0].mxu0
  %3825 = vdwg.mxu0
  %v3826 = vld [vmem:[%s5 + $0x1a0] sm:$0xff]
  %v3827 = vld [vmem:[%s5 + $0x1a8] sm:$0xff]
  %v3828 = vld [vmem:[%s5 + $0x1b0] sm:$0xff]
  %v3829 = vld [vmem:[%s5 + $0x1b8] sm:$0xff]
  %v3830 = vld [vmem:[%s6 + $0x13] sm:$0x1]
  %v3831 = vlaneseq
  %v3832 = vshrl.u32 %v3831, 7
  %v3833 = vsub.s32 0, %v3832
  %v3834 = vrot.slane %v3830, %v3833
  %v3836 = vsel %vm45, %v2668, 0
  %v3839 = vsel %vm45, %v2669, 0
  %3841 = vmatprep.subr.mxu0 0.0
  %3842 = vmatpush1.msra.mxu0 %v3826
  %3843 = vmatprep.subr.mxu0 0.0
  %3844 = vmatpush1.msra.mxu0 %v3827
  %3845 = vmatprep.subr.mxu0 0.0
  %3846 = vmatpush1.msra.mxu0 %v3828
  %3847 = vmatprep.subr.mxu0 0.0
  %3848 = vmatpush1.msra.mxu0 %v3829
  %3849 = vmatprep.subr.mxu0 0.0
  %3850 = vmatpush1.msra.mxu0 0.0
  %3851 = vmatprep.subr.mxu0 0.0
  %3852 = vmatpush1.msra.mxu0 0.0
  %3853 = vmatprep.subr.mxu0 0.0
  %3854 = vmatpush1.msra.mxu0 0.0
  %3855 = vmatprep.subr.mxu0 0.0
  %3856 = vmatpush1.msra.mxu0 0.0
  %3857 = vmatprep.subr.mxu0 0.0
  %3858 = vmatpush1.msra.mxu0 0.0
  %3859 = vmatprep.subr.mxu0 0.0
  %3860 = vmatpush1.msra.mxu0 0.0
  %3861 = vmatprep.subr.mxu0 0.0
  %3862 = vmatpush1.msra.mxu0 0.0
  %3863 = vmatprep.subr.mxu0 0.0
  %3864 = vmatpush1.msra.mxu0 0.0
  %3865 = vmatprep.subr.mxu0 0.0
  %3866 = vmatpush1.msra.mxu0 0.0
  %3867 = vmatprep.subr.mxu0 0.0
  %3868 = vmatpush1.msra.mxu0 0.0
  %3869 = vmatprep.subr.mxu0 0.0
  %3870 = vmatpush1.msra.mxu0 0.0
  %3871 = vmatprep.subr.mxu0 0.0
  %3872 = vmatpush1.msra.mxu0 0.0
  %3873 = vmatprep.subr.mxu0 0.0
  %3874 = vmatpush1.msra.mxu0 0.0
  %3875 = vmatprep.subr.mxu0 0.0
  %3876 = vmatpush1.msra.mxu0 0.0
  %3877 = vmatprep.subr.mxu0 0.0
  %3878 = vmatpush1.msra.mxu0 0.0
  %3879 = vmatprep.subr.mxu0 0.0
  %3880 = vmatpush1.msra.mxu0 0.0
  %3881 = vmatprep.subr.mxu0 0.0
  %3882 = vmatpush1.msra.mxu0 0.0
  %3883 = vmatprep.subr.mxu0 0.0
  %3884 = vmatpush1.msra.mxu0 0.0
  %3885 = vmatprep.subr.mxu0 0.0
  %3886 = vmatpush1.msra.mxu0 0.0
  %3887 = vmatprep.subr.mxu0 0.0
  %3888 = vmatpush1.msra.mxu0 0.0
  %3889 = vmatprep.subr.mxu0 0.0
  %3890 = vmatpush1.msra.mxu0 0.0
  %3891 = vmatprep.subr.mxu0 0.0
  %3892 = vmatpush1.msra.mxu0 0.0
  %3893 = vmatprep.subr.mxu0 0.0
  %3894 = vmatpush1.msra.mxu0 0.0
  %3895 = vmatprep.subr.mxu0 0.0
  %3896 = vmatpush1.msra.mxu0 0.0
  %3897 = vmatprep.subr.mxu0 0.0
  %3898 = vmatpush1.msra.mxu0 0.0
  %3899 = vmatprep.subr.mxu0 0.0
  %3900 = vmatpush1.msra.mxu0 0.0
  %3901 = vmatprep.subr.mxu0 0.0
  %3902 = vmatpush1.msra.mxu0 0.0
  %3903 = vmatprep.subr.mxu0 0.0
  %3904 = vmatpush1.msra.mxu0 0.0
  %3905 = vmatprep.mubr.f32.mxu0 0.0
  %3906 = vmatmul.mubr.f32.gmra.mrb[0].mxu0 %v3836
  %v3907 = vpop.f32.mrb[0].mxu0
  %v3908 = vadd.f32 %v3834, %v3907
  %v3909 = vpop.f32.mrb[0].mxu0
  %3910 = vmatprep.mubr.f32.mxu0 0.0
  %3911 = vmatmul.mubr.f32.gmra.mrb[0].mxu0 %v3839
  %v3912 = vpop.f32.mrb[0].mxu0
  %v3913 = vadd.f32 %v3834, %v3912
  %v3914 = vpop.f32.mrb[0].mxu0
  %3915 = vdwg.mxu0
  %v3916 = vld [vmem:[%s5 + $0x1c0] sm:$0xff]
  %v3917 = vld [vmem:[%s5 + $0x1c8] sm:$0xff]
  %v3918 = vld [vmem:[%s5 + $0x1d0] sm:$0xff]
  %v3919 = vld [vmem:[%s5 + $0x1d8] sm:$0xff]
  %v3920 = vld [vmem:[%s6 + $0x14] sm:$0x1]
  %v3922 = vsel %vm138, %v3818, 0
  %v3925 = vsel %vm138, %v3823, 0
  %v3928 = vsel %vm138, %v3908, 0
  %v3931 = vsel %vm138, %v3913, 0
  %3933 = vmatprep.subr.mxu0 0.0
  %3934 = vmatpush1.xpose.msra.mxu0 %v3928
  %3935 = vmatprep.subr.mxu0 0.0
  %3936 = vmatpush1.xpose.msra.mxu0 %v3931
  %3937 = vmatprep.subr.mxu0 0.0
  %3938 = vmatpush1.xpose.msra.mxu0 0.0
  %3939 = vmatprep.subr.mxu0 0.0
  %3940 = vmatpush1.xpose.msra.mxu0 0.0
  %3941 = vmatprep.subr.mxu0 0.0
  %3942 = vmatpush1.xpose.msra.mxu0 0.0
  %3943 = vmatprep.subr.mxu0 0.0
  %3944 = vmatpush1.xpose.msra.mxu0 0.0
  %3945 = vmatprep.subr.mxu0 0.0
  %3946 = vmatpush1.xpose.msra.mxu0 0.0
  %3947 = vmatprep.subr.mxu0 0.0
  %3948 = vmatpush1.xpose.msra.mxu0 0.0
  %3949 = vmatprep.subr.mxu0 0.0
  %3950 = vmatpush1.xpose.msra.mxu0 0.0
  %3951 = vmatprep.subr.mxu0 0.0
  %3952 = vmatpush1.xpose.msra.mxu0 0.0
  %3953 = vmatprep.subr.mxu0 0.0
  %3954 = vmatpush1.xpose.msra.mxu0 0.0
  %3955 = vmatprep.subr.mxu0 0.0
  %3956 = vmatpush1.xpose.msra.mxu0 0.0
  %3957 = vmatprep.subr.mxu0 0.0
  %3958 = vmatpush1.xpose.msra.mxu0 0.0
  %3959 = vmatprep.subr.mxu0 0.0
  %3960 = vmatpush1.xpose.msra.mxu0 0.0
  %3961 = vmatprep.subr.mxu0 0.0
  %3962 = vmatpush1.xpose.msra.mxu0 0.0
  %3963 = vmatprep.subr.mxu0 0.0
  %3964 = vmatpush1.xpose.msra.mxu0 0.0
  %3965 = vmatprep.subr.mxu0 0.0
  %3966 = vmatpush1.xpose.msra.mxu0 0.0
  %3967 = vmatprep.subr.mxu0 0.0
  %3968 = vmatpush1.xpose.msra.mxu0 0.0
  %3969 = vmatprep.subr.mxu0 0.0
  %3970 = vmatpush1.xpose.msra.mxu0 0.0
  %3971 = vmatprep.subr.mxu0 0.0
  %3972 = vmatpush1.xpose.msra.mxu0 0.0
  %3973 = vmatprep.subr.mxu0 0.0
  %3974 = vmatpush1.xpose.msra.mxu0 0.0
  %3975 = vmatprep.subr.mxu0 0.0
  %3976 = vmatpush1.xpose.msra.mxu0 0.0
  %3977 = vmatprep.subr.mxu0 0.0
  %3978 = vmatpush1.xpose.msra.mxu0 0.0
  %3979 = vmatprep.subr.mxu0 0.0
  %3980 = vmatpush1.xpose.msra.mxu0 0.0
  %3981 = vmatprep.subr.mxu0 0.0
  %3982 = vmatpush1.xpose.msra.mxu0 0.0
  %3983 = vmatprep.subr.mxu0 0.0
  %3984 = vmatpush1.xpose.msra.mxu0 0.0
  %3985 = vmatprep.subr.mxu0 0.0
  %3986 = vmatpush1.xpose.msra.mxu0 0.0
  %3987 = vmatprep.subr.mxu0 0.0
  %3988 = vmatpush1.xpose.msra.mxu0 0.0
  %3989 = vmatprep.subr.mxu0 0.0
  %3990 = vmatpush1.xpose.msra.mxu0 0.0
  %3991 = vmatprep.subr.mxu0 0.0
  %3992 = vmatpush1.xpose.msra.mxu0 0.0
  %3993 = vmatprep.subr.mxu0 0.0
  %3994 = vmatpush1.xpose.msra.mxu0 0.0
  %3995 = vmatprep.subr.mxu0 0.0
  %3996 = vmatpush1.xpose.msra.mxu0 0.0
  %3997 = vmatprep.mubr.f32.mxu0 0.0
  %3998 = vmatmul.mubr.f32.gmra.mrb[0].mxu0 %v3922
  %v3999 = vpop.f32.mrb[0].mxu0
  %v4000 = vadd.f32 0.0, %v3999
  %v4001 = vpop.f32.mrb[0].mxu0
  %4002 = vmatprep.mubr.f32.mxu0 0.0
  %4003 = vmatmul.mubr.f32.gmra.mrb[0].mxu0 %v3925
  %v4004 = vpop.f32.mrb[0].mxu0
  %v4005 = vadd.f32 0.0, %v4004
  %v4006 = vpop.f32.mrb[0].mxu0
  %4007 = vdwg.mxu0
  %v4008 = vmul.f32 %v4000, 0.35355338
  %v4009 = vmul.f32 %v4005, 0.35355338
  %v4010 = vadd.f32 %v4008, %v34
  %v4011 = vadd.f32 %v4009, %v35
  %v4012 = vsel %vm226, %v4010, -inf
  %4013 = vmax.xlane.f32.xlu0 %v4012
  %v4014 = vpop.xlane.xlu0 %4013
  %v4015 = vsel %vm226, %v4011, -inf
  %4016 = vmax.xlane.f32.xlu0 %v4015
  %v4017 = vpop.xlane.xlu0 %4016
  %v4018 = vsub.f32 %v4010, %v4014
  %v4019 = vsub.f32 %v4011, %v4017
  %v4020 = vmul.f32 %v4018, 1.442695
  %v4021 = vpow.pop %v4020
  %v4022 = vmul.f32 %v4019, 1.442695
  %v4023 = vpow.pop %v4022
  %v4024 = vsel %vm226, %v4021, 0.0
  %4025 = vadd.xlane.f32.xlu0 %v4024
  %v4026 = vpop.xlane.xlu0 %4025
  %v4027 = vsel %vm226, %v4023, 0.0
  %4028 = vadd.xlane.f32.xlu0 %v4027
  %v4029 = vpop.xlane.xlu0 %4028
  %4030 = vrot.lane.b32.xlu0 %v3908, 96
  %v4031 = vpop.permute.xlu0 %4030
  %4032 = vrot.lane.b32.xlu0 %v3913, 96
  %v4033 = vpop.permute.xlu0 %4032
  %v4037 = vsel %vm226, %v4021, 0
  %v4040 = vsel %vm226, %v4023, 0
  %4042 = vmatprep.subr.mxu0 0.0
  %4043 = vmatpush1.msra.mxu0 %v4031
  %4044 = vmatprep.subr.mxu0 0.0
  %4045 = vmatpush1.msra.mxu0 %v4033
  %4046 = vmatprep.subr.mxu0 0.0
  %4047 = vmatpush1.msra.mxu0 0.0
  %4048 = vmatprep.subr.mxu0 0.0
  %4049 = vmatpush1.msra.mxu0 0.0
  %4050 = vmatprep.subr.mxu0 0.0
  %4051 = vmatpush1.msra.mxu0 0.0
  %4052 = vmatprep.subr.mxu0 0.0
  %4053 = vmatpush1.msra.mxu0 0.0
  %4054 = vmatprep.subr.mxu0 0.0
  %4055 = vmatpush1.msra.mxu0 0.0
  %4056 = vmatprep.subr.mxu0 0.0
  %4057 = vmatpush1.msra.mxu0 0.0
  %4058 = vmatprep.subr.mxu0 0.0
  %4059 = vmatpush1.msra.mxu0 0.0
  %4060 = vmatprep.subr.mxu0 0.0
  %4061 = vmatpush1.msra.mxu0 0.0
  %4062 = vmatprep.subr.mxu0 0.0
  %4063 = vmatpush1.msra.mxu0 0.0
  %4064 = vmatprep.subr.mxu0 0.0
  %4065 = vmatpush1.msra.mxu0 0.0
  %4066 = vmatprep.subr.mxu0 0.0
  %4067 = vmatpush1.msra.mxu0 0.0
  %4068 = vmatprep.subr.mxu0 0.0
  %4069 = vmatpush1.msra.mxu0 0.0
  %4070 = vmatprep.subr.mxu0 0.0
  %4071 = vmatpush1.msra.mxu0 0.0
  %4072 = vmatprep.subr.mxu0 0.0
  %4073 = vmatpush1.msra.mxu0 0.0
  %4074 = vmatprep.subr.mxu0 0.0
  %4075 = vmatpush1.msra.mxu0 0.0
  %4076 = vmatprep.subr.mxu0 0.0
  %4077 = vmatpush1.msra.mxu0 0.0
  %4078 = vmatprep.subr.mxu0 0.0
  %4079 = vmatpush1.msra.mxu0 0.0
  %4080 = vmatprep.subr.mxu0 0.0
  %4081 = vmatpush1.msra.mxu0 0.0
  %4082 = vmatprep.subr.mxu0 0.0
  %4083 = vmatpush1.msra.mxu0 0.0
  %4084 = vmatprep.subr.mxu0 0.0
  %4085 = vmatpush1.msra.mxu0 0.0
  %4086 = vmatprep.subr.mxu0 0.0
  %4087 = vmatpush1.msra.mxu0 0.0
  %4088 = vmatprep.subr.mxu0 0.0
  %4089 = vmatpush1.msra.mxu0 0.0
  %4090 = vmatprep.subr.mxu0 0.0
  %4091 = vmatpush1.msra.mxu0 0.0
  %4092 = vmatprep.subr.mxu0 0.0
  %4093 = vmatpush1.msra.mxu0 0.0
  %4094 = vmatprep.subr.mxu0 0.0
  %4095 = vmatpush1.msra.mxu0 0.0
  %4096 = vmatprep.subr.mxu0 0.0
  %4097 = vmatpush1.msra.mxu0 0.0
  %4098 = vmatprep.subr.mxu0 0.0
  %4099 = vmatpush1.msra.mxu0 0.0
  %4100 = vmatprep.subr.mxu0 0.0
  %4101 = vmatpush1.msra.mxu0 0.0
  %4102 = vmatprep.subr.mxu0 0.0
  %4103 = vmatpush1.msra.mxu0 0.0
  %4104 = vmatprep.subr.mxu0 0.0
  %4105 = vmatpush1.msra.mxu0 0.0
  %4106 = vmatprep.mubr.f32.mxu0 0.0
  %4107 = vmatmul.mubr.f32.gmra.mrb[0].mxu0 %v4037
  %v4108 = vpop.f32.mrb[0].mxu0
  %v4109 = vadd.f32 0.0, %v4108
  %v4110 = vpop.f32.mrb[0].mxu0
  %4111 = vmatprep.mubr.f32.mxu0 0.0
  %4112 = vmatmul.mubr.f32.gmra.mrb[0].mxu0 %v4040
  %v4113 = vpop.f32.mrb[0].mxu0
  %v4114 = vadd.f32 0.0, %v4113
  %v4115 = vpop.f32.mrb[0].mxu0
  %4116 = vdwg.mxu0
  %v4117 = vrcp.pop %v4026
  %v4118 = vrcp.pop %v4029
  %v4119 = vmul.f32 %v4109, %v4117
  %v4120 = vmul.f32 %v4114, %v4118
  %4121 = vrot.lane.b32.xlu0 %v3818, 120
  %v4122 = vpop.permute.xlu0 %4121
  %4123 = vrot.lane.b32.xlu0 %v3823, 120
  %v4124 = vpop.permute.xlu0 %4123
  %4125 = vrot.lane.b32.xlu0 %v3908, 120
  %v4126 = vpop.permute.xlu0 %4125
  %4127 = vrot.lane.b32.xlu0 %v3913, 120
  %v4128 = vpop.permute.xlu0 %4127
  %v4129 = vsel %vm138, %v4122, 0
  %v4131 = vsel %vm138, %v4124, 0
  %v4133 = vsel %vm138, %v4126, 0
  %v4135 = vsel %vm138, %v4128, 0
  %4137 = vmatprep.subr.mxu0 0.0
  %4138 = vmatpush1.xpose.msra.mxu0 %v4133
  %4139 = vmatprep.subr.mxu0 0.0
  %4140 = vmatpush1.xpose.msra.mxu0 %v4135
  %4141 = vmatprep.subr.mxu0 0.0
  %4142 = vmatpush1.xpose.msra.mxu0 0.0
  %4143 = vmatprep.subr.mxu0 0.0
  %4144 = vmatpush1.xpose.msra.mxu0 0.0
  %4145 = vmatprep.subr.mxu0 0.0
  %4146 = vmatpush1.xpose.msra.mxu0 0.0
  %4147 = vmatprep.subr.mxu0 0.0
  %4148 = vmatpush1.xpose.msra.mxu0 0.0
  %4149 = vmatprep.subr.mxu0 0.0
  %4150 = vmatpush1.xpose.msra.mxu0 0.0
  %4151 = vmatprep.subr.mxu0 0.0
  %4152 = vmatpush1.xpose.msra.mxu0 0.0
  %4153 = vmatprep.subr.mxu0 0.0
  %4154 = vmatpush1.xpose.msra.mxu0 0.0
  %4155 = vmatprep.subr.mxu0 0.0
  %4156 = vmatpush1.xpose.msra.mxu0 0.0
  %4157 = vmatprep.subr.mxu0 0.0
  %4158 = vmatpush1.xpose.msra.mxu0 0.0
  %4159 = vmatprep.subr.mxu0 0.0
  %4160 = vmatpush1.xpose.msra.mxu0 0.0
  %4161 = vmatprep.subr.mxu0 0.0
  %4162 = vmatpush1.xpose.msra.mxu0 0.0
  %4163 = vmatprep.subr.mxu0 0.0
  %4164 = vmatpush1.xpose.msra.mxu0 0.0
  %4165 = vmatprep.subr.mxu0 0.0
  %4166 = vmatpush1.xpose.msra.mxu0 0.0
  %4167 = vmatprep.subr.mxu0 0.0
  %4168 = vmatpush1.xpose.msra.mxu0 0.0
  %4169 = vmatprep.subr.mxu0 0.0
  %4170 = vmatpush1.xpose.msra.mxu0 0.0
  %4171 = vmatprep.subr.mxu0 0.0
  %4172 = vmatpush1.xpose.msra.mxu0 0.0
  %4173 = vmatprep.subr.mxu0 0.0
  %4174 = vmatpush1.xpose.msra.mxu0 0.0
  %4175 = vmatprep.subr.mxu0 0.0
  %4176 = vmatpush1.xpose.msra.mxu0 0.0
  %4177 = vmatprep.subr.mxu0 0.0
  %4178 = vmatpush1.xpose.msra.mxu0 0.0
  %4179 = vmatprep.subr.mxu0 0.0
  %4180 = vmatpush1.xpose.msra.mxu0 0.0
  %4181 = vmatprep.subr.mxu0 0.0
  %4182 = vmatpush1.xpose.msra.mxu0 0.0
  %4183 = vmatprep.subr.mxu0 0.0
  %4184 = vmatpush1.xpose.msra.mxu0 0.0
  %4185 = vmatprep.subr.mxu0 0.0
  %4186 = vmatpush1.xpose.msra.mxu0 0.0
  %4187 = vmatprep.subr.mxu0 0.0
  %4188 = vmatpush1.xpose.msra.mxu0 0.0
  %4189 = vmatprep.subr.mxu0 0.0
  %4190 = vmatpush1.xpose.msra.mxu0 0.0
  %4191 = vmatprep.subr.mxu0 0.0
  %4192 = vmatpush1.xpose.msra.mxu0 0.0
  %4193 = vmatprep.subr.mxu0 0.0
  %4194 = vmatpush1.xpose.msra.mxu0 0.0
  %4195 = vmatprep.subr.mxu0 0.0
  %4196 = vmatpush1.xpose.msra.mxu0 0.0
  %4197 = vmatprep.subr.mxu0 0.0
  %4198 = vmatpush1.xpose.msra.mxu0 0.0
  %4199 = vmatprep.subr.mxu0 0.0
  %4200 = vmatpush1.xpose.msra.mxu0 0.0
  %4201 = vmatprep.mubr.f32.mxu0 0.0
  %4202 = vmatmul.mubr.f32.gmra.mrb[0].mxu0 %v4129
  %v4203 = vpop.f32.mrb[0].mxu0
  %v4204 = vadd.f32 0.0, %v4203
  %v4205 = vpop.f32.mrb[0].mxu0
  %4206 = vmatprep.mubr.f32.mxu0 0.0
  %4207 = vmatmul.mubr.f32.gmra.mrb[0].mxu0 %v4131
  %v4208 = vpop.f32.mrb[0].mxu0
  %v4209 = vadd.f32 0.0, %v4208
  %v4210 = vpop.f32.mrb[0].mxu0
  %4211 = vdwg.mxu0
  %v4212 = vmul.f32 %v4204, 0.35355338
  %v4213 = vmul.f32 %v4209, 0.35355338
  %v4214 = vadd.f32 %v4212, %v34
  %v4215 = vadd.f32 %v4213, %v35
  %v4216 = vsel %vm226, %v4214, -inf
  %4217 = vmax.xlane.f32.xlu0 %v4216
  %v4218 = vpop.xlane.xlu0 %4217
  %v4219 = vsel %vm226, %v4215, -inf
  %4220 = vmax.xlane.f32.xlu0 %v4219
  %v4221 = vpop.xlane.xlu0 %4220
  %v4222 = vsub.f32 %v4214, %v4218
  %v4223 = vsub.f32 %v4215, %v4221
  %v4224 = vmul.f32 %v4222, 1.442695
  %v4225 = vpow.pop %v4224
  %v4226 = vmul.f32 %v4223, 1.442695
  %v4227 = vpow.pop %v4226
  %v4228 = vsel %vm226, %v4225, 0.0
  %4229 = vadd.xlane.f32.xlu0 %v4228
  %v4230 = vpop.xlane.xlu0 %4229
  %v4231 = vsel %vm226, %v4227, 0.0
  %4232 = vadd.xlane.f32.xlu0 %v4231
  %v4233 = vpop.xlane.xlu0 %4232
  %4234 = vrot.lane.b32.xlu0 %v3908, 88
  %v4235 = vpop.permute.xlu0 %4234
  %4236 = vrot.lane.b32.xlu0 %v3913, 88
  %v4237 = vpop.permute.xlu0 %4236
  %v4241 = vsel %vm226, %v4225, 0
  %v4244 = vsel %vm226, %v4227, 0
  %4246 = vmatprep.subr.mxu0 0.0
  %4247 = vmatpush1.msra.mxu0 %v4235
  %4248 = vmatprep.subr.mxu0 0.0
  %4249 = vmatpush1.msra.mxu0 %v4237
  %4250 = vmatprep.subr.mxu0 0.0
  %4251 = vmatpush1.msra.mxu0 0.0
  %4252 = vmatprep.subr.mxu0 0.0
  %4253 = vmatpush1.msra.mxu0 0.0
  %4254 = vmatprep.subr.mxu0 0.0
  %4255 = vmatpush1.msra.mxu0 0.0
  %4256 = vmatprep.subr.mxu0 0.0
  %4257 = vmatpush1.msra.mxu0 0.0
  %4258 = vmatprep.subr.mxu0 0.0
  %4259 = vmatpush1.msra.mxu0 0.0
  %4260 = vmatprep.subr.mxu0 0.0
  %4261 = vmatpush1.msra.mxu0 0.0
  %4262 = vmatprep.subr.mxu0 0.0
  %4263 = vmatpush1.msra.mxu0 0.0
  %4264 = vmatprep.subr.mxu0 0.0
  %4265 = vmatpush1.msra.mxu0 0.0
  %4266 = vmatprep.subr.mxu0 0.0
  %4267 = vmatpush1.msra.mxu0 0.0
  %4268 = vmatprep.subr.mxu0 0.0
  %4269 = vmatpush1.msra.mxu0 0.0
  %4270 = vmatprep.subr.mxu0 0.0
  %4271 = vmatpush1.msra.mxu0 0.0
  %4272 = vmatprep.subr.mxu0 0.0
  %4273 = vmatpush1.msra.mxu0 0.0
  %4274 = vmatprep.subr.mxu0 0.0
  %4275 = vmatpush1.msra.mxu0 0.0
  %4276 = vmatprep.subr.mxu0 0.0
  %4277 = vmatpush1.msra.mxu0 0.0
  %4278 = vmatprep.subr.mxu0 0.0
  %4279 = vmatpush1.msra.mxu0 0.0
  %4280 = vmatprep.subr.mxu0 0.0
  %4281 = vmatpush1.msra.mxu0 0.0
  %4282 = vmatprep.subr.mxu0 0.0
  %4283 = vmatpush1.msra.mxu0 0.0
  %4284 = vmatprep.subr.mxu0 0.0
  %4285 = vmatpush1.msra.mxu0 0.0
  %4286 = vmatprep.subr.mxu0 0.0
  %4287 = vmatpush1.msra.mxu0 0.0
  %4288 = vmatprep.subr.mxu0 0.0
  %4289 = vmatpush1.msra.mxu0 0.0
  %4290 = vmatprep.subr.mxu0 0.0
  %4291 = vmatpush1.msra.mxu0 0.0
  %4292 = vmatprep.subr.mxu0 0.0
  %4293 = vmatpush1.msra.mxu0 0.0
  %4294 = vmatprep.subr.mxu0 0.0
  %4295 = vmatpush1.msra.mxu0 0.0
  %4296 = vmatprep.subr.mxu0 0.0
  %4297 = vmatpush1.msra.mxu0 0.0
  %4298 = vmatprep.subr.mxu0 0.0
  %4299 = vmatpush1.msra.mxu0 0.0
  %4300 = vmatprep.subr.mxu0 0.0
  %4301 = vmatpush1.msra.mxu0 0.0
  %4302 = vmatprep.subr.mxu0 0.0
  %4303 = vmatpush1.msra.mxu0 0.0
  %4304 = vmatprep.subr.mxu0 0.0
  %4305 = vmatpush1.msra.mxu0 0.0
  %4306 = vmatprep.subr.mxu0 0.0
  %4307 = vmatpush1.msra.mxu0 0.0
  %4308 = vmatprep.subr.mxu0 0.0
  %4309 = vmatpush1.msra.mxu0 0.0
  %4310 = vmatprep.mubr.f32.mxu0 0.0
  %4311 = vmatmul.mubr.f32.gmra.mrb[0].mxu0 %v4241
  %v4312 = vpop.f32.mrb[0].mxu0
  %v4313 = vadd.f32 0.0, %v4312
  %v4314 = vpop.f32.mrb[0].mxu0
  %4315 = vmatprep.mubr.f32.mxu0 0.0
  %4316 = vmatmul.mubr.f32.gmra.mrb[0].mxu0 %v4244
  %v4317 = vpop.f32.mrb[0].mxu0
  %v4318 = vadd.f32 0.0, %v4317
  %v4319 = vpop.f32.mrb[0].mxu0
  %4320 = vdwg.mxu0
  %v4321 = vrcp.pop %v4230
  %v4322 = vrcp.pop %v4233
  %v4323 = vmul.f32 %v4313, %v4321
  %v4324 = vmul.f32 %v4318, %v4322
  %4325 = vrot.lane.b32.xlu0 %v3818, 112
  %v4326 = vpop.permute.xlu0 %4325
  %4327 = vrot.lane.b32.xlu0 %v3823, 112
  %v4328 = vpop.permute.xlu0 %4327
  %4329 = vrot.lane.b32.xlu0 %v3908, 112
  %v4330 = vpop.permute.xlu0 %4329
  %4331 = vrot.lane.b32.xlu0 %v3913, 112
  %v4332 = vpop.permute.xlu0 %4331
  %v4333 = vsel %vm138, %v4326, 0
  %v4335 = vsel %vm138, %v4328, 0
  %v4337 = vsel %vm138, %v4330, 0
  %v4339 = vsel %vm138, %v4332, 0
  %4341 = vmatprep.subr.mxu0 0.0
  %4342 = vmatpush1.xpose.msra.mxu0 %v4337
  %4343 = vmatprep.subr.mxu0 0.0
  %4344 = vmatpush1.xpose.msra.mxu0 %v4339
  %4345 = vmatprep.subr.mxu0 0.0
  %4346 = vmatpush1.xpose.msra.mxu0 0.0
  %4347 = vmatprep.subr.mxu0 0.0
  %4348 = vmatpush1.xpose.msra.mxu0 0.0
  %4349 = vmatprep.subr.mxu0 0.0
  %4350 = vmatpush1.xpose.msra.mxu0 0.0
  %4351 = vmatprep.subr.mxu0 0.0
  %4352 = vmatpush1.xpose.msra.mxu0 0.0
  %4353 = vmatprep.subr.mxu0 0.0
  %4354 = vmatpush1.xpose.msra.mxu0 0.0
  %4355 = vmatprep.subr.mxu0 0.0
  %4356 = vmatpush1.xpose.msra.mxu0 0.0
  %4357 = vmatprep.subr.mxu0 0.0
  %4358 = vmatpush1.xpose.msra.mxu0 0.0
  %4359 = vmatprep.subr.mxu0 0.0
  %4360 = vmatpush1.xpose.msra.mxu0 0.0
  %4361 = vmatprep.subr.mxu0 0.0
  %4362 = vmatpush1.xpose.msra.mxu0 0.0
  %4363 = vmatprep.subr.mxu0 0.0
  %4364 = vmatpush1.xpose.msra.mxu0 0.0
  %4365 = vmatprep.subr.mxu0 0.0
  %4366 = vmatpush1.xpose.msra.mxu0 0.0
  %4367 = vmatprep.subr.mxu0 0.0
  %4368 = vmatpush1.xpose.msra.mxu0 0.0
  %4369 = vmatprep.subr.mxu0 0.0
  %4370 = vmatpush1.xpose.msra.mxu0 0.0
  %4371 = vmatprep.subr.mxu0 0.0
  %4372 = vmatpush1.xpose.msra.mxu0 0.0
  %4373 = vmatprep.subr.mxu0 0.0
  %4374 = vmatpush1.xpose.msra.mxu0 0.0
  %4375 = vmatprep.subr.mxu0 0.0
  %4376 = vmatpush1.xpose.msra.mxu0 0.0
  %4377 = vmatprep.subr.mxu0 0.0
  %4378 = vmatpush1.xpose.msra.mxu0 0.0
  %4379 = vmatprep.subr.mxu0 0.0
  %4380 = vmatpush1.xpose.msra.mxu0 0.0
  %4381 = vmatprep.subr.mxu0 0.0
  %4382 = vmatpush1.xpose.msra.mxu0 0.0
  %4383 = vmatprep.subr.mxu0 0.0
  %4384 = vmatpush1.xpose.msra.mxu0 0.0
  %4385 = vmatprep.subr.mxu0 0.0
  %4386 = vmatpush1.xpose.msra.mxu0 0.0
  %4387 = vmatprep.subr.mxu0 0.0
  %4388 = vmatpush1.xpose.msra.mxu0 0.0
  %4389 = vmatprep.subr.mxu0 0.0
  %4390 = vmatpush1.xpose.msra.mxu0 0.0
  %4391 = vmatprep.subr.mxu0 0.0
  %4392 = vmatpush1.xpose.msra.mxu0 0.0
  %4393 = vmatprep.subr.mxu0 0.0
  %4394 = vmatpush1.xpose.msra.mxu0 0.0
  %4395 = vmatprep.subr.mxu0 0.0
  %4396 = vmatpush1.xpose.msra.mxu0 0.0
  %4397 = vmatprep.subr.mxu0 0.0
  %4398 = vmatpush1.xpose.msra.mxu0 0.0
  %4399 = vmatprep.subr.mxu0 0.0
  %4400 = vmatpush1.xpose.msra.mxu0 0.0
  %4401 = vmatprep.subr.mxu0 0.0
  %4402 = vmatpush1.xpose.msra.mxu0 0.0
  %4403 = vmatprep.subr.mxu0 0.0
  %4404 = vmatpush1.xpose.msra.mxu0 0.0
  %4405 = vmatprep.mubr.f32.mxu0 0.0
  %4406 = vmatmul.mubr.f32.gmra.mrb[0].mxu0 %v4333
  %v4407 = vpop.f32.mrb[0].mxu0
  %v4408 = vadd.f32 0.0, %v4407
  %v4409 = vpop.f32.mrb[0].mxu0
  %4410 = vmatprep.mubr.f32.mxu0 0.0
  %4411 = vmatmul.mubr.f32.gmra.mrb[0].mxu0 %v4335
  %v4412 = vpop.f32.mrb[0].mxu0
  %v4413 = vadd.f32 0.0, %v4412
  %v4414 = vpop.f32.mrb[0].mxu0
  %4415 = vdwg.mxu0
  %v4416 = vmul.f32 %v4408, 0.35355338
  %v4417 = vmul.f32 %v4413, 0.35355338
  %v4418 = vadd.f32 %v4416, %v34
  %v4419 = vadd.f32 %v4417, %v35
  %v4420 = vsel %vm226, %v4418, -inf
  %4421 = vmax.xlane.f32.xlu0 %v4420
  %v4422 = vpop.xlane.xlu0 %4421
  %v4423 = vsel %vm226, %v4419, -inf
  %4424 = vmax.xlane.f32.xlu0 %v4423
  %v4425 = vpop.xlane.xlu0 %4424
  %v4426 = vsub.f32 %v4418, %v4422
  %v4427 = vsub.f32 %v4419, %v4425
  %v4428 = vmul.f32 %v4426, 1.442695
  %v4429 = vpow.pop %v4428
  %v4430 = vmul.f32 %v4427, 1.442695
  %v4431 = vpow.pop %v4430
  %v4432 = vsel %vm226, %v4429, 0.0
  %4433 = vadd.xlane.f32.xlu0 %v4432
  %v4434 = vpop.xlane.xlu0 %4433
  %v4435 = vsel %vm226, %v4431, 0.0
  %4436 = vadd.xlane.f32.xlu0 %v4435
  %v4437 = vpop.xlane.xlu0 %4436
  %4438 = vrot.lane.b32.xlu0 %v3908, 80
  %v4439 = vpop.permute.xlu0 %4438
  %4440 = vrot.lane.b32.xlu0 %v3913, 80
  %v4441 = vpop.permute.xlu0 %4440
  %v4445 = vsel %vm226, %v4429, 0
  %v4448 = vsel %vm226, %v4431, 0
  %4450 = vmatprep.subr.mxu0 0.0
  %4451 = vmatpush1.msra.mxu0 %v4439
  %4452 = vmatprep.subr.mxu0 0.0
  %4453 = vmatpush1.msra.mxu0 %v4441
  %4454 = vmatprep.subr.mxu0 0.0
  %4455 = vmatpush1.msra.mxu0 0.0
  %4456 = vmatprep.subr.mxu0 0.0
  %4457 = vmatpush1.msra.mxu0 0.0
  %4458 = vmatprep.subr.mxu0 0.0
  %4459 = vmatpush1.msra.mxu0 0.0
  %4460 = vmatprep.subr.mxu0 0.0
  %4461 = vmatpush1.msra.mxu0 0.0
  %4462 = vmatprep.subr.mxu0 0.0
  %4463 = vmatpush1.msra.mxu0 0.0
  %4464 = vmatprep.subr.mxu0 0.0
  %4465 = vmatpush1.msra.mxu0 0.0
  %4466 = vmatprep.subr.mxu0 0.0
  %4467 = vmatpush1.msra.mxu0 0.0
  %4468 = vmatprep.subr.mxu0 0.0
  %4469 = vmatpush1.msra.mxu0 0.0
  %4470 = vmatprep.subr.mxu0 0.0
  %4471 = vmatpush1.msra.mxu0 0.0
  %4472 = vmatprep.subr.mxu0 0.0
  %4473 = vmatpush1.msra.mxu0 0.0
  %4474 = vmatprep.subr.mxu0 0.0
  %4475 = vmatpush1.msra.mxu0 0.0
  %4476 = vmatprep.subr.mxu0 0.0
  %4477 = vmatpush1.msra.mxu0 0.0
  %4478 = vmatprep.subr.mxu0 0.0
  %4479 = vmatpush1.msra.mxu0 0.0
  %4480 = vmatprep.subr.mxu0 0.0
  %4481 = vmatpush1.msra.mxu0 0.0
  %4482 = vmatprep.subr.mxu0 0.0
  %4483 = vmatpush1.msra.mxu0 0.0
  %4484 = vmatprep.subr.mxu0 0.0
  %4485 = vmatpush1.msra.mxu0 0.0
  %4486 = vmatprep.subr.mxu0 0.0
  %4487 = vmatpush1.msra.mxu0 0.0
  %4488 = vmatprep.subr.mxu0 0.0
  %4489 = vmatpush1.msra.mxu0 0.0
  %4490 = vmatprep.subr.mxu0 0.0
  %4491 = vmatpush1.msra.mxu0 0.0
  %4492 = vmatprep.subr.mxu0 0.0
  %4493 = vmatpush1.msra.mxu0 0.0
  %4494 = vmatprep.subr.mxu0 0.0
  %4495 = vmatpush1.msra.mxu0 0.0
  %4496 = vmatprep.subr.mxu0 0.0
  %4497 = vmatpush1.msra.mxu0 0.0
  %4498 = vmatprep.subr.mxu0 0.0
  %4499 = vmatpush1.msra.mxu0 0.0
  %4500 = vmatprep.subr.mxu0 0.0
  %4501 = vmatpush1.msra.mxu0 0.0
  %4502 = vmatprep.subr.mxu0 0.0
  %4503 = vmatpush1.msra.mxu0 0.0
  %4504 = vmatprep.subr.mxu0 0.0
  %4505 = vmatpush1.msra.mxu0 0.0
  %4506 = vmatprep.subr.mxu0 0.0
  %4507 = vmatpush1.msra.mxu0 0.0
  %4508 = vmatprep.subr.mxu0 0.0
  %4509 = vmatpush1.msra.mxu0 0.0
  %4510 = vmatprep.subr.mxu0 0.0
  %4511 = vmatpush1.msra.mxu0 0.0
  %4512 = vmatprep.subr.mxu0 0.0
  %4513 = vmatpush1.msra.mxu0 0.0
  %4514 = vmatprep.mubr.f32.mxu0 0.0
  %4515 = vmatmul.mubr.f32.gmra.mrb[0].mxu0 %v4445
  %v4516 = vpop.f32.mrb[0].mxu0
  %v4517 = vadd.f32 0.0, %v4516
  %v4518 = vpop.f32.mrb[0].mxu0
  %4519 = vmatprep.mubr.f32.mxu0 0.0
  %4520 = vmatmul.mubr.f32.gmra.mrb[0].mxu0 %v4448
  %v4521 = vpop.f32.mrb[0].mxu0
  %v4522 = vadd.f32 0.0, %v4521
  %v4523 = vpop.f32.mrb[0].mxu0
  %4524 = vdwg.mxu0
  %v4525 = vrcp.pop %v4434
  %v4526 = vrcp.pop %v4437
  %v4527 = vmul.f32 %v4517, %v4525
  %v4528 = vmul.f32 %v4522, %v4526
  %4529 = vrot.lane.b32.xlu0 %v3818, 104
  %v4530 = vpop.permute.xlu0 %4529
  %4531 = vrot.lane.b32.xlu0 %v3823, 104
  %v4532 = vpop.permute.xlu0 %4531
  %4533 = vrot.lane.b32.xlu0 %v3908, 104
  %v4534 = vpop.permute.xlu0 %4533
  %4535 = vrot.lane.b32.xlu0 %v3913, 104
  %v4536 = vpop.permute.xlu0 %4535
  %v4537 = vsel %vm138, %v4530, 0
  %v4539 = vsel %vm138, %v4532, 0
  %v4541 = vsel %vm138, %v4534, 0
  %v4543 = vsel %vm138, %v4536, 0
  %4545 = vmatprep.subr.mxu0 0.0
  %4546 = vmatpush1.xpose.msra.mxu0 %v4541
  %4547 = vmatprep.subr.mxu0 0.0
  %4548 = vmatpush1.xpose.msra.mxu0 %v4543
  %4549 = vmatprep.subr.mxu0 0.0
  %4550 = vmatpush1.xpose.msra.mxu0 0.0
  %4551 = vmatprep.subr.mxu0 0.0
  %4552 = vmatpush1.xpose.msra.mxu0 0.0
  %4553 = vmatprep.subr.mxu0 0.0
  %4554 = vmatpush1.xpose.msra.mxu0 0.0
  %4555 = vmatprep.subr.mxu0 0.0
  %4556 = vmatpush1.xpose.msra.mxu0 0.0
  %4557 = vmatprep.subr.mxu0 0.0
  %4558 = vmatpush1.xpose.msra.mxu0 0.0
  %4559 = vmatprep.subr.mxu0 0.0
  %4560 = vmatpush1.xpose.msra.mxu0 0.0
  %4561 = vmatprep.subr.mxu0 0.0
  %4562 = vmatpush1.xpose.msra.mxu0 0.0
  %4563 = vmatprep.subr.mxu0 0.0
  %4564 = vmatpush1.xpose.msra.mxu0 0.0
  %4565 = vmatprep.subr.mxu0 0.0
  %4566 = vmatpush1.xpose.msra.mxu0 0.0
  %4567 = vmatprep.subr.mxu0 0.0
  %4568 = vmatpush1.xpose.msra.mxu0 0.0
  %4569 = vmatprep.subr.mxu0 0.0
  %4570 = vmatpush1.xpose.msra.mxu0 0.0
  %4571 = vmatprep.subr.mxu0 0.0
  %4572 = vmatpush1.xpose.msra.mxu0 0.0
  %4573 = vmatprep.subr.mxu0 0.0
  %4574 = vmatpush1.xpose.msra.mxu0 0.0
  %4575 = vmatprep.subr.mxu0 0.0
  %4576 = vmatpush1.xpose.msra.mxu0 0.0
  %4577 = vmatprep.subr.mxu0 0.0
  %4578 = vmatpush1.xpose.msra.mxu0 0.0
  %4579 = vmatprep.subr.mxu0 0.0
  %4580 = vmatpush1.xpose.msra.mxu0 0.0
  %4581 = vmatprep.subr.mxu0 0.0
  %4582 = vmatpush1.xpose.msra.mxu0 0.0
  %4583 = vmatprep.subr.mxu0 0.0
  %4584 = vmatpush1.xpose.msra.mxu0 0.0
  %4585 = vmatprep.subr.mxu0 0.0
  %4586 = vmatpush1.xpose.msra.mxu0 0.0
  %4587 = vmatprep.subr.mxu0 0.0
  %4588 = vmatpush1.xpose.msra.mxu0 0.0
  %4589 = vmatprep.subr.mxu0 0.0
  %4590 = vmatpush1.xpose.msra.mxu0 0.0
  %4591 = vmatprep.subr.mxu0 0.0
  %4592 = vmatpush1.xpose.msra.mxu0 0.0
  %4593 = vmatprep.subr.mxu0 0.0
  %4594 = vmatpush1.xpose.msra.mxu0 0.0
  %4595 = vmatprep.subr.mxu0 0.0
  %4596 = vmatpush1.xpose.msra.mxu0 0.0
  %4597 = vmatprep.subr.mxu0 0.0
  %4598 = vmatpush1.xpose.msra.mxu0 0.0
  %4599 = vmatprep.subr.mxu0 0.0
  %4600 = vmatpush1.xpose.msra.mxu0 0.0
  %4601 = vmatprep.subr.mxu0 0.0
  %4602 = vmatpush1.xpose.msra.mxu0 0.0
  %4603 = vmatprep.subr.mxu0 0.0
  %4604 = vmatpush1.xpose.msra.mxu0 0.0
  %4605 = vmatprep.subr.mxu0 0.0
  %4606 = vmatpush1.xpose.msra.mxu0 0.0
  %4607 = vmatprep.subr.mxu0 0.0
  %4608 = vmatpush1.xpose.msra.mxu0 0.0
  %4609 = vmatprep.mubr.f32.mxu0 0.0
  %4610 = vmatmul.mubr.f32.gmra.mrb[0].mxu0 %v4537
  %v4611 = vpop.f32.mrb[0].mxu0
  %v4612 = vadd.f32 0.0, %v4611
  %v4613 = vpop.f32.mrb[0].mxu0
  %4614 = vmatprep.mubr.f32.mxu0 0.0
  %4615 = vmatmul.mubr.f32.gmra.mrb[0].mxu0 %v4539
  %v4616 = vpop.f32.mrb[0].mxu0
  %v4617 = vadd.f32 0.0, %v4616
  %v4618 = vpop.f32.mrb[0].mxu0
  %4619 = vdwg.mxu0
  %v4620 = vmul.f32 %v4612, 0.35355338
  %v4621 = vmul.f32 %v4617, 0.35355338
  %v4622 = vadd.f32 %v4620, %v34
  %v4623 = vadd.f32 %v4621, %v35
  %v4624 = vsel %vm226, %v4622, -inf
  %4625 = vmax.xlane.f32.xlu0 %v4624
  %v4626 = vpop.xlane.xlu0 %4625
  %v4627 = vsel %vm226, %v4623, -inf
  %4628 = vmax.xlane.f32.xlu0 %v4627
  %v4629 = vpop.xlane.xlu0 %4628
  %v4630 = vsub.f32 %v4622, %v4626
  %v4631 = vsub.f32 %v4623, %v4629
  %v4632 = vmul.f32 %v4630, 1.442695
  %v4633 = vpow.pop %v4632
  %v4634 = vmul.f32 %v4631, 1.442695
  %v4635 = vpow.pop %v4634
  %v4636 = vsel %vm226, %v4633, 0.0
  %4637 = vadd.xlane.f32.xlu0 %v4636
  %v4638 = vpop.xlane.xlu0 %4637
  %v4639 = vsel %vm226, %v4635, 0.0
  %4640 = vadd.xlane.f32.xlu0 %v4639
  %v4641 = vpop.xlane.xlu0 %4640
  %4642 = vrot.lane.b32.xlu0 %v3908, 72
  %v4643 = vpop.permute.xlu0 %4642
  %4644 = vrot.lane.b32.xlu0 %v3913, 72
  %v4645 = vpop.permute.xlu0 %4644
  %v4649 = vsel %vm226, %v4633, 0
  %v4652 = vsel %vm226, %v4635, 0
  %4654 = vmatprep.subr.mxu0 0.0
  %4655 = vmatpush1.msra.mxu0 %v4643
  %4656 = vmatprep.subr.mxu0 0.0
  %4657 = vmatpush1.msra.mxu0 %v4645
  %4658 = vmatprep.subr.mxu0 0.0
  %4659 = vmatpush1.msra.mxu0 0.0
  %4660 = vmatprep.subr.mxu0 0.0
  %4661 = vmatpush1.msra.mxu0 0.0
  %4662 = vmatprep.subr.mxu0 0.0
  %4663 = vmatpush1.msra.mxu0 0.0
  %4664 = vmatprep.subr.mxu0 0.0
  %4665 = vmatpush1.msra.mxu0 0.0
  %4666 = vmatprep.subr.mxu0 0.0
  %4667 = vmatpush1.msra.mxu0 0.0
  %4668 = vmatprep.subr.mxu0 0.0
  %4669 = vmatpush1.msra.mxu0 0.0
  %4670 = vmatprep.subr.mxu0 0.0
  %4671 = vmatpush1.msra.mxu0 0.0
  %4672 = vmatprep.subr.mxu0 0.0
  %4673 = vmatpush1.msra.mxu0 0.0
  %4674 = vmatprep.subr.mxu0 0.0
  %4675 = vmatpush1.msra.mxu0 0.0
  %4676 = vmatprep.subr.mxu0 0.0
  %4677 = vmatpush1.msra.mxu0 0.0
  %4678 = vmatprep.subr.mxu0 0.0
  %4679 = vmatpush1.msra.mxu0 0.0
  %4680 = vmatprep.subr.mxu0 0.0
  %4681 = vmatpush1.msra.mxu0 0.0
  %4682 = vmatprep.subr.mxu0 0.0
  %4683 = vmatpush1.msra.mxu0 0.0
  %4684 = vmatprep.subr.mxu0 0.0
  %4685 = vmatpush1.msra.mxu0 0.0
  %4686 = vmatprep.subr.mxu0 0.0
  %4687 = vmatpush1.msra.mxu0 0.0
  %4688 = vmatprep.subr.mxu0 0.0
  %4689 = vmatpush1.msra.mxu0 0.0
  %4690 = vmatprep.subr.mxu0 0.0
  %4691 = vmatpush1.msra.mxu0 0.0
  %4692 = vmatprep.subr.mxu0 0.0
  %4693 = vmatpush1.msra.mxu0 0.0
  %4694 = vmatprep.subr.mxu0 0.0
  %4695 = vmatpush1.msra.mxu0 0.0
  %4696 = vmatprep.subr.mxu0 0.0
  %4697 = vmatpush1.msra.mxu0 0.0
  %4698 = vmatprep.subr.mxu0 0.0
  %4699 = vmatpush1.msra.mxu0 0.0
  %4700 = vmatprep.subr.mxu0 0.0
  %4701 = vmatpush1.msra.mxu0 0.0
  %4702 = vmatprep.subr.mxu0 0.0
  %4703 = vmatpush1.msra.mxu0 0.0
  %4704 = vmatprep.subr.mxu0 0.0
  %4705 = vmatpush1.msra.mxu0 0.0
  %4706 = vmatprep.subr.mxu0 0.0
  %4707 = vmatpush1.msra.mxu0 0.0
  %4708 = vmatprep.subr.mxu0 0.0
  %4709 = vmatpush1.msra.mxu0 0.0
  %4710 = vmatprep.subr.mxu0 0.0
  %4711 = vmatpush1.msra.mxu0 0.0
  %4712 = vmatprep.subr.mxu0 0.0
  %4713 = vmatpush1.msra.mxu0 0.0
  %4714 = vmatprep.subr.mxu0 0.0
  %4715 = vmatpush1.msra.mxu0 0.0
  %4716 = vmatprep.subr.mxu0 0.0
  %4717 = vmatpush1.msra.mxu0 0.0
  %4718 = vmatprep.mubr.f32.mxu0 0.0
  %4719 = vmatmul.mubr.f32.gmra.mrb[0].mxu0 %v4649
  %v4720 = vpop.f32.mrb[0].mxu0
  %v4721 = vadd.f32 0.0, %v4720
  %v4722 = vpop.f32.mrb[0].mxu0
  %4723 = vmatprep.mubr.f32.mxu0 0.0
  %4724 = vmatmul.mubr.f32.gmra.mrb[0].mxu0 %v4652
  %v4725 = vpop.f32.mrb[0].mxu0
  %v4726 = vadd.f32 0.0, %v4725
  %v4727 = vpop.f32.mrb[0].mxu0
  %4728 = vdwg.mxu0
  %v4729 = vrcp.pop %v4638
  %v4730 = vrcp.pop %v4641
  %v4731 = vmul.f32 %v4721, %v4729
  %v4732 = vmul.f32 %v4726, %v4730
  %4735 = vrot.lane.b32.xlu0 %v4323, 8
  %v4736 = vpop.permute.xlu0 %4735
  %4737 = vrot.lane.b32.xlu0 %v4324, 8
  %v4738 = vpop.permute.xlu0 %4737
  %4743 = vrot.lane.b32.xlu0 %v4527, 16
  %v4744 = vpop.permute.xlu0 %4743
  %4745 = vrot.lane.b32.xlu0 %v4528, 16
  %v4746 = vpop.permute.xlu0 %4745
  %4751 = vrot.lane.b32.xlu0 %v4731, 24
  %v4752 = vpop.permute.xlu0 %4751
  %4753 = vrot.lane.b32.xlu0 %v4732, 24
  %v4754 = vpop.permute.xlu0 %4753
  %v4757 = vsel %vm138, %v4119, %v4736
  %v4758 = vsel %vm138, %v4120, %v4738
  %v4759 = vsel %vm226, %v4757, %v4744
  %v4760 = vsel %vm226, %v4758, %v4746
  %v4761 = vsel %vm976, %v4759, %v4752
  %v4762 = vsel %vm976, %v4760, %v4754
  %v4763 = vlaneseq
  %v4764 = vshrl.u32 %v4763, 7
  %v4765 = vsub.s32 0, %v4764
  %v4766 = vrot.slane %v3920, %v4765
  %v4768 = vsel %vm45, %v4761, 0
  %v4771 = vsel %vm45, %v4762, 0
  %4773 = vmatprep.subr.mxu0 0.0
  %4774 = vmatpush1.msra.mxu0 %v3916
  %4775 = vmatprep.subr.mxu0 0.0
  %4776 = vmatpush1.msra.mxu0 %v3917
  %4777 = vmatprep.subr.mxu0 0.0
  %4778 = vmatpush1.msra.mxu0 %v3918
  %4779 = vmatprep.subr.mxu0 0.0
  %4780 = vmatpush1.msra.mxu0 %v3919
  %4781 = vmatprep.subr.mxu0 0.0
  %4782 = vmatpush1.msra.mxu0 0.0
  %4783 = vmatprep.subr.mxu0 0.0
  %4784 = vmatpush1.msra.mxu0 0.0
  %4785 = vmatprep.subr.mxu0 0.0
  %4786 = vmatpush1.msra.mxu0 0.0
  %4787 = vmatprep.subr.mxu0 0.0
  %4788 = vmatpush1.msra.mxu0 0.0
  %4789 = vmatprep.subr.mxu0 0.0
  %4790 = vmatpush1.msra.mxu0 0.0
  %4791 = vmatprep.subr.mxu0 0.0
  %4792 = vmatpush1.msra.mxu0 0.0
  %4793 = vmatprep.subr.mxu0 0.0
  %4794 = vmatpush1.msra.mxu0 0.0
  %4795 = vmatprep.subr.mxu0 0.0
  %4796 = vmatpush1.msra.mxu0 0.0
  %4797 = vmatprep.subr.mxu0 0.0
  %4798 = vmatpush1.msra.mxu0 0.0
  %4799 = vmatprep.subr.mxu0 0.0
  %4800 = vmatpush1.msra.mxu0 0.0
  %4801 = vmatprep.subr.mxu0 0.0
  %4802 = vmatpush1.msra.mxu0 0.0
  %4803 = vmatprep.subr.mxu0 0.0
  %4804 = vmatpush1.msra.mxu0 0.0
  %4805 = vmatprep.subr.mxu0 0.0
  %4806 = vmatpush1.msra.mxu0 0.0
  %4807 = vmatprep.subr.mxu0 0.0
  %4808 = vmatpush1.msra.mxu0 0.0
  %4809 = vmatprep.subr.mxu0 0.0
  %4810 = vmatpush1.msra.mxu0 0.0
  %4811 = vmatprep.subr.mxu0 0.0
  %4812 = vmatpush1.msra.mxu0 0.0
  %4813 = vmatprep.subr.mxu0 0.0
  %4814 = vmatpush1.msra.mxu0 0.0
  %4815 = vmatprep.subr.mxu0 0.0
  %4816 = vmatpush1.msra.mxu0 0.0
  %4817 = vmatprep.subr.mxu0 0.0
  %4818 = vmatpush1.msra.mxu0 0.0
  %4819 = vmatprep.subr.mxu0 0.0
  %4820 = vmatpush1.msra.mxu0 0.0
  %4821 = vmatprep.subr.mxu0 0.0
  %4822 = vmatpush1.msra.mxu0 0.0
  %4823 = vmatprep.subr.mxu0 0.0
  %4824 = vmatpush1.msra.mxu0 0.0
  %4825 = vmatprep.subr.mxu0 0.0
  %4826 = vmatpush1.msra.mxu0 0.0
  %4827 = vmatprep.subr.mxu0 0.0
  %4828 = vmatpush1.msra.mxu0 0.0
  %4829 = vmatprep.subr.mxu0 0.0
  %4830 = vmatpush1.msra.mxu0 0.0
  %4831 = vmatprep.subr.mxu0 0.0
  %4832 = vmatpush1.msra.mxu0 0.0
  %4833 = vmatprep.subr.mxu0 0.0
  %4834 = vmatpush1.msra.mxu0 0.0
  %4835 = vmatprep.subr.mxu0 0.0
  %4836 = vmatpush1.msra.mxu0 0.0
  %4837 = vmatprep.mubr.f32.mxu0 0.0
  %4838 = vmatmul.mubr.f32.gmra.mrb[0].mxu0 %v4768
  %v4839 = vpop.f32.mrb[0].mxu0
  %v4840 = vadd.f32 %v4766, %v4839
  %v4841 = vpop.f32.mrb[0].mxu0
  %4842 = vmatprep.mubr.f32.mxu0 0.0
  %4843 = vmatmul.mubr.f32.gmra.mrb[0].mxu0 %v4771
  %v4844 = vpop.f32.mrb[0].mxu0
  %v4845 = vadd.f32 %v4766, %v4844
  %v4846 = vpop.f32.mrb[0].mxu0
  %4847 = vdwg.mxu0
  %v4848 = vadd.f32 %v3734, %v4840
  %v4849 = vadd.f32 %v3735, %v4845
  %v4850 = vld [vmem:[%s6 + $0x19] sm:$0x1]
  %v4851 = vld [vmem:[%s6 + $0x1a] sm:$0x1]
  %v4852 = vsel %vm45, %v4848, 0.0
  %4853 = vadd.xlane.f32.xlu0 %v4852
  %v4854 = vpop.xlane.xlu0 %4853
  %v4855 = vsel %vm45, %v4849, 0.0
  %4856 = vadd.xlane.f32.xlu0 %v4855
  %v4857 = vpop.xlane.xlu0 %4856
  %v4858 = vmul.f32 %v4854, %v1074
  %v4859 = vmul.f32 %v4857, %v1074
  %v4860 = vsub.f32 %v4848, %v4858
  %v4861 = vsub.f32 %v4849, %v4859
  %v4862 = vmul.f32 %v4860, %v4860
  %v4863 = vmul.f32 %v4861, %v4861
  %v4864 = vsel %vm45, %v4862, 0.0
  %4865 = vadd.xlane.f32.xlu0 %v4864
  %v4866 = vpop.xlane.xlu0 %4865
  %v4867 = vsel %vm45, %v4863, 0.0
  %4868 = vadd.xlane.f32.xlu0 %v4867
  %v4869 = vpop.xlane.xlu0 %4868
  %v4870 = vmul.f32 %v4866, %v1074
  %v4871 = vmul.f32 %v4869, %v1074
  %v4872 = vadd.f32 %v4870, 1e-05
  %v4873 = vadd.f32 %v4871, 1e-05
  %v4874 = vrsqrt.pop %v4872
  %v4875 = vrsqrt.pop %v4873
  %v4876 = vmul.f32 %v4860, %v4874
  %v4877 = vmul.f32 %v4861, %v4875
  %v4878 = vlaneseq
  %v4879 = vshrl.u32 %v4878, 7
  %v4880 = vsub.s32 0, %v4879
  %v4881 = vrot.slane %v4850, %v4880
  %v4882 = vmul.f32 %v4876, %v4881
  %v4883 = vmul.f32 %v4877, %v4881
  %v4884 = vlaneseq
  %v4885 = vshrl.u32 %v4884, 7
  %v4886 = vsub.s32 0, %v4885
  %v4887 = vrot.slane %v4851, %v4886
  %v4888 = vadd.f32 %v4882, %v4887
  %v4889 = vadd.f32 %v4883, %v4887
  %v4890 = vld [vmem:[%s5 + $0x1e0] sm:$0xff]
  %v4891 = vld [vmem:[%s5 + $0x1e8] sm:$0xff]
  %v4892 = vld [vmem:[%s5 + $0x1f0] sm:$0xff]
  %v4893 = vld [vmem:[%s5 + $0x1f8] sm:$0xff]
  %v4894 = vld [vmem:[%s6 + $0x15] sm:$0x1]
  %v4895 = vld [vmem:[%s5 + $0x200] sm:$0xff]
  %v4896 = vld [vmem:[%s5 + $0x208] sm:$0xff]
  %v4897 = vld [vmem:[%s5 + $0x210] sm:$0xff]
  %v4898 = vld [vmem:[%s5 + $0x218] sm:$0xff]
  %v4899 = vld [vmem:[%s5 + $0x220] sm:$0xff]
  %v4900 = vld [vmem:[%s5 + $0x228] sm:$0xff]
  %v4901 = vld [vmem:[%s5 + $0x230] sm:$0xff]
  %v4902 = vld [vmem:[%s5 + $0x238] sm:$0xff]
  %v4903 = vld [vmem:[%s6 + $0x16] sm:$0x1]
  %v4904 = vlaneseq
  %v4905 = vshrl.u32 %v4904, 7
  %v4906 = vsub.s32 0, %v4905
  %v4907 = vrot.slane %v4894, %v4906
  %v4909 = vsel %vm45, %v4888, 0
  %v4912 = vsel %vm45, %v4889, 0
  %4914 = vmatprep.subr.mxu0 0.0
  %4915 = vmatpush1.msra.mxu0 %v4890
  %4916 = vmatprep.subr.mxu0 0.0
  %4917 = vmatpush1.msra.mxu0 %v4891
  %4918 = vmatprep.subr.mxu0 0.0
  %4919 = vmatpush1.msra.mxu0 %v4892
  %4920 = vmatprep.subr.mxu0 0.0
  %4921 = vmatpush1.msra.mxu0 %v4893
  %4922 = vmatprep.subr.mxu0 0.0
  %4923 = vmatpush1.msra.mxu0 0.0
  %4924 = vmatprep.subr.mxu0 0.0
  %4925 = vmatpush1.msra.mxu0 0.0
  %4926 = vmatprep.subr.mxu0 0.0
  %4927 = vmatpush1.msra.mxu0 0.0
  %4928 = vmatprep.subr.mxu0 0.0
  %4929 = vmatpush1.msra.mxu0 0.0
  %4930 = vmatprep.subr.mxu0 0.0
  %4931 = vmatpush1.msra.mxu0 0.0
  %4932 = vmatprep.subr.mxu0 0.0
  %4933 = vmatpush1.msra.mxu0 0.0
  %4934 = vmatprep.subr.mxu0 0.0
  %4935 = vmatpush1.msra.mxu0 0.0
  %4936 = vmatprep.subr.mxu0 0.0
  %4937 = vmatpush1.msra.mxu0 0.0
  %4938 = vmatprep.subr.mxu0 0.0
  %4939 = vmatpush1.msra.mxu0 0.0
  %4940 = vmatprep.subr.mxu0 0.0
  %4941 = vmatpush1.msra.mxu0 0.0
  %4942 = vmatprep.subr.mxu0 0.0
  %4943 = vmatpush1.msra.mxu0 0.0
  %4944 = vmatprep.subr.mxu0 0.0
  %4945 = vmatpush1.msra.mxu0 0.0
  %4946 = vmatprep.subr.mxu0 0.0
  %4947 = vmatpush1.msra.mxu0 0.0
  %4948 = vmatprep.subr.mxu0 0.0
  %4949 = vmatpush1.msra.mxu0 0.0
  %4950 = vmatprep.subr.mxu0 0.0
  %4951 = vmatpush1.msra.mxu0 0.0
  %4952 = vmatprep.subr.mxu0 0.0
  %4953 = vmatpush1.msra.mxu0 0.0
  %4954 = vmatprep.subr.mxu0 0.0
  %4955 = vmatpush1.msra.mxu0 0.0
  %4956 = vmatprep.subr.mxu0 0.0
  %4957 = vmatpush1.msra.mxu0 0.0
  %4958 = vmatprep.subr.mxu0 0.0
  %4959 = vmatpush1.msra.mxu0 0.0
  %4960 = vmatprep.subr.mxu0 0.0
  %4961 = vmatpush1.msra.mxu0 0.0
  %4962 = vmatprep.subr.mxu0 0.0
  %4963 = vmatpush1.msra.mxu0 0.0
  %4964 = vmatprep.subr.mxu0 0.0
  %4965 = vmatpush1.msra.mxu0 0.0
  %4966 = vmatprep.subr.mxu0 0.0
  %4967 = vmatpush1.msra.mxu0 0.0
  %4968 = vmatprep.subr.mxu0 0.0
  %4969 = vmatpush1.msra.mxu0 0.0
  %4970 = vmatprep.subr.mxu0 0.0
  %4971 = vmatpush1.msra.mxu0 0.0
  %4972 = vmatprep.subr.mxu0 0.0
  %4973 = vmatpush1.msra.mxu0 0.0
  %4974 = vmatprep.subr.mxu0 0.0
  %4975 = vmatpush1.msra.mxu0 0.0
  %4976 = vmatprep.subr.mxu0 0.0
  %4977 = vmatpush1.msra.mxu0 0.0
  %4978 = vmatprep.mubr.f32.mxu0 0.0
  %4979 = vmatmul.mubr.f32.gmra.mrb[0].mxu0 %v4909
  %v4980 = vpop.f32.mrb[0].mxu0
  %v4981 = vadd.f32 %v4907, %v4980
  %v4982 = vpop.f32.mrb[0].mxu0
  %4983 = vmatprep.mubr.f32.mxu0 0.0
  %4984 = vmatmul.mubr.f32.gmra.mrb[0].mxu0 %v4912
  %v4985 = vpop.f32.mrb[0].mxu0
  %v4986 = vadd.f32 %v4907, %v4985
  %v4987 = vpop.f32.mrb[0].mxu0
  %4988 = vdwg.mxu0
  %v4989 = vmax.f32 %v4981, 0.0
  %v4990 = vmax.f32 %v4986, 0.0
  %v4991 = vlaneseq
  %v4992 = vshrl.u32 %v4991, 7
  %v4993 = vsub.s32 0, %v4992
  %v4994 = vrot.slane %v4903, %v4993
  %v4996 = vsel %vm1212, %v4989, 0
  %v4999 = vsel %vm1212, %v4990, 0
  %5001 = vmatprep.subr.mxu0 0.0
  %5002 = vmatpush1.msra.mxu0 %v4895
  %5003 = vmatprep.subr.mxu0 0.0
  %5004 = vmatpush1.msra.mxu0 %v4896
  %5005 = vmatprep.subr.mxu0 0.0
  %5006 = vmatpush1.msra.mxu0 %v4897
  %5007 = vmatprep.subr.mxu0 0.0
  %5008 = vmatpush1.msra.mxu0 %v4898
  %5009 = vmatprep.subr.mxu0 0.0
  %5010 = vmatpush1.msra.mxu0 %v4899
  %5011 = vmatprep.subr.mxu0 0.0
  %5012 = vmatpush1.msra.mxu0 %v4900
  %5013 = vmatprep.subr.mxu0 0.0
  %5014 = vmatpush1.msra.mxu0 %v4901
  %5015 = vmatprep.subr.mxu0 0.0
  %5016 = vmatpush1.msra.mxu0 %v4902
  %5017 = vmatprep.subr.mxu0 0.0
  %5018 = vmatpush1.msra.mxu0 0.0
  %5019 = vmatprep.subr.mxu0 0.0
  %5020 = vmatpush1.msra.mxu0 0.0
  %5021 = vmatprep.subr.mxu0 0.0
  %5022 = vmatpush1.msra.mxu0 0.0
  %5023 = vmatprep.subr.mxu0 0.0
  %5024 = vmatpush1.msra.mxu0 0.0
  %5025 = vmatprep.subr.mxu0 0.0
  %5026 = vmatpush1.msra.mxu0 0.0
  %5027 = vmatprep.subr.mxu0 0.0
  %5028 = vmatpush1.msra.mxu0 0.0
  %5029 = vmatprep.subr.mxu0 0.0
  %5030 = vmatpush1.msra.mxu0 0.0
  %5031 = vmatprep.subr.mxu0 0.0
  %5032 = vmatpush1.msra.mxu0 0.0
  %5033 = vmatprep.subr.mxu0 0.0
  %5034 = vmatpush1.msra.mxu0 0.0
  %5035 = vmatprep.subr.mxu0 0.0
  %5036 = vmatpush1.msra.mxu0 0.0
  %5037 = vmatprep.subr.mxu0 0.0
  %5038 = vmatpush1.msra.mxu0 0.0
  %5039 = vmatprep.subr.mxu0 0.0
  %5040 = vmatpush1.msra.mxu0 0.0
  %5041 = vmatprep.subr.mxu0 0.0
  %5042 = vmatpush1.msra.mxu0 0.0
  %5043 = vmatprep.subr.mxu0 0.0
  %5044 = vmatpush1.msra.mxu0 0.0
  %5045 = vmatprep.subr.mxu0 0.0
  %5046 = vmatpush1.msra.mxu0 0.0
  %5047 = vmatprep.subr.mxu0 0.0
  %5048 = vmatpush1.msra.mxu0 0.0
  %5049 = vmatprep.subr.mxu0 0.0
  %5050 = vmatpush1.msra.mxu0 0.0
  %5051 = vmatprep.subr.mxu0 0.0
  %5052 = vmatpush1.msra.mxu0 0.0
  %5053 = vmatprep.subr.mxu0 0.0
  %5054 = vmatpush1.msra.mxu0 0.0
  %5055 = vmatprep.subr.mxu0 0.0
  %5056 = vmatpush1.msra.mxu0 0.0
  %5057 = vmatprep.subr.mxu0 0.0
  %5058 = vmatpush1.msra.mxu0 0.0
  %5059 = vmatprep.subr.mxu0 0.0
  %5060 = vmatpush1.msra.mxu0 0.0
  %5061 = vmatprep.subr.mxu0 0.0
  %5062 = vmatpush1.msra.mxu0 0.0
  %5063 = vmatprep.subr.mxu0 0.0
  %5064 = vmatpush1.msra.mxu0 0.0
  %5065 = vmatprep.mubr.f32.mxu0 0.0
  %5066 = vmatmul.mubr.f32.gmra.mrb[0].mxu0 %v4996
  %v5067 = vpop.f32.mrb[0].mxu0
  %v5068 = vadd.f32 %v4994, %v5067
  %v5069 = vpop.f32.mrb[0].mxu0
  %5070 = vmatprep.mubr.f32.mxu0 0.0
  %5071 = vmatmul.mubr.f32.gmra.mrb[0].mxu0 %v4999
  %v5072 = vpop.f32.mrb[0].mxu0
  %v5073 = vadd.f32 %v4994, %v5072
  %v5074 = vpop.f32.mrb[0].mxu0
  %5075 = vdwg.mxu0
  %v5076 = vadd.f32 %v4888, %v5068
  %v5077 = vadd.f32 %v4889, %v5073
  %v5078 = vld [vmem:[%s6 + $0x1b] sm:$0x1]
  %v5079 = vld [vmem:[%s6 + $0x1c] sm:$0x1]
  %v5080 = vsel %vm45, %v5076, 0.0
  %5081 = vadd.xlane.f32.xlu0 %v5080
  %v5082 = vpop.xlane.xlu0 %5081
  %v5083 = vsel %vm45, %v5077, 0.0
  %5084 = vadd.xlane.f32.xlu0 %v5083
  %v5085 = vpop.xlane.xlu0 %5084
  %v5086 = vmul.f32 %v5082, %v1074
  %v5087 = vmul.f32 %v5085, %v1074
  %v5088 = vsub.f32 %v5076, %v5086
  %v5089 = vsub.f32 %v5077, %v5087
  %v5090 = vmul.f32 %v5088, %v5088
  %v5091 = vmul.f32 %v5089, %v5089
  %v5092 = vsel %vm45, %v5090, 0.0
  %5093 = vadd.xlane.f32.xlu0 %v5092
  %v5094 = vpop.xlane.xlu0 %5093
  %v5095 = vsel %vm45, %v5091, 0.0
  %5096 = vadd.xlane.f32.xlu0 %v5095
  %v5097 = vpop.xlane.xlu0 %5096
  %v5098 = vmul.f32 %v5094, %v1074
  %v5099 = vmul.f32 %v5097, %v1074
  %v5100 = vadd.f32 %v5098, 1e-05
  %v5101 = vadd.f32 %v5099, 1e-05
  %v5102 = vrsqrt.pop %v5100
  %v5103 = vrsqrt.pop %v5101
  %v5104 = vmul.f32 %v5088, %v5102
  %v5105 = vmul.f32 %v5089, %v5103
  %v5106 = vlaneseq
  %v5107 = vshrl.u32 %v5106, 7
  %v5108 = vsub.s32 0, %v5107
  %v5109 = vrot.slane %v5078, %v5108
  %v5110 = vmul.f32 %v5104, %v5109
  %v5111 = vmul.f32 %v5105, %v5109
  %v5112 = vlaneseq
  %v5113 = vshrl.u32 %v5112, 7
  %v5114 = vsub.s32 0, %v5113
  %v5115 = vrot.slane %v5079, %v5114
  %v5116 = vadd.f32 %v5110, %v5115
  %v5117 = vadd.f32 %v5111, %v5115
  %v5118 = vld [vmem:[%s5 + $0x240] sm:$0xff]
  %v5119 = vld [vmem:[%s5 + $0x248] sm:$0xff]
  %v5120 = vld [vmem:[%s5 + $0x250] sm:$0xff]
  %v5121 = vld [vmem:[%s5 + $0x258] sm:$0xff]
  %v5122 = vld [vmem:[%s6 + $0x1d] sm:$0x1]
  %v5123 = vlaneseq
  %v5124 = vshrl.u32 %v5123, 7
  %v5125 = vsub.s32 0, %v5124
  %v5126 = vrot.slane %v5122, %v5125
  %v5128 = vsel %vm45, %v5116, 0
  %v5131 = vsel %vm45, %v5117, 0
  %5133 = vmatprep.subr.mxu0 0.0
  %5134 = vmatpush1.msra.mxu0 %v5118
  %5135 = vmatprep.subr.mxu0 0.0
  %5136 = vmatpush1.msra.mxu0 %v5119
  %5137 = vmatprep.subr.mxu0 0.0
  %5138 = vmatpush1.msra.mxu0 %v5120
  %5139 = vmatprep.subr.mxu0 0.0
  %5140 = vmatpush1.msra.mxu0 %v5121
  %5141 = vmatprep.subr.mxu0 0.0
  %5142 = vmatpush1.msra.mxu0 0.0
  %5143 = vmatprep.subr.mxu0 0.0
  %5144 = vmatpush1.msra.mxu0 0.0
  %5145 = vmatprep.subr.mxu0 0.0
  %5146 = vmatpush1.msra.mxu0 0.0
  %5147 = vmatprep.subr.mxu0 0.0
  %5148 = vmatpush1.msra.mxu0 0.0
  %5149 = vmatprep.subr.mxu0 0.0
  %5150 = vmatpush1.msra.mxu0 0.0
  %5151 = vmatprep.subr.mxu0 0.0
  %5152 = vmatpush1.msra.mxu0 0.0
  %5153 = vmatprep.subr.mxu0 0.0
  %5154 = vmatpush1.msra.mxu0 0.0
  %5155 = vmatprep.subr.mxu0 0.0
  %5156 = vmatpush1.msra.mxu0 0.0
  %5157 = vmatprep.subr.mxu0 0.0
  %5158 = vmatpush1.msra.mxu0 0.0
  %5159 = vmatprep.subr.mxu0 0.0
  %5160 = vmatpush1.msra.mxu0 0.0
  %5161 = vmatprep.subr.mxu0 0.0
  %5162 = vmatpush1.msra.mxu0 0.0
  %5163 = vmatprep.subr.mxu0 0.0
  %5164 = vmatpush1.msra.mxu0 0.0
  %5165 = vmatprep.subr.mxu0 0.0
  %5166 = vmatpush1.msra.mxu0 0.0
  %5167 = vmatprep.subr.mxu0 0.0
  %5168 = vmatpush1.msra.mxu0 0.0
  %5169 = vmatprep.subr.mxu0 0.0
  %5170 = vmatpush1.msra.mxu0 0.0
  %5171 = vmatprep.subr.mxu0 0.0
  %5172 = vmatpush1.msra.mxu0 0.0
  %5173 = vmatprep.subr.mxu0 0.0
  %5174 = vmatpush1.msra.mxu0 0.0
  %5175 = vmatprep.subr.mxu0 0.0
  %5176 = vmatpush1.msra.mxu0 0.0
  %5177 = vmatprep.subr.mxu0 0.0
  %5178 = vmatpush1.msra.mxu0 0.0
  %5179 = vmatprep.subr.mxu0 0.0
  %5180 = vmatpush1.msra.mxu0 0.0
  %5181 = vmatprep.subr.mxu0 0.0
  %5182 = vmatpush1.msra.mxu0 0.0
  %5183 = vmatprep.subr.mxu0 0.0
  %5184 = vmatpush1.msra.mxu0 0.0
  %5185 = vmatprep.subr.mxu0 0.0
  %5186 = vmatpush1.msra.mxu0 0.0
  %5187 = vmatprep.subr.mxu0 0.0
  %5188 = vmatpush1.msra.mxu0 0.0
  %5189 = vmatprep.subr.mxu0 0.0
  %5190 = vmatpush1.msra.mxu0 0.0
  %5191 = vmatprep.subr.mxu0 0.0
  %5192 = vmatpush1.msra.mxu0 0.0
  %5193 = vmatprep.subr.mxu0 0.0
  %5194 = vmatpush1.msra.mxu0 0.0
  %5195 = vmatprep.subr.mxu0 0.0
  %5196 = vmatpush1.msra.mxu0 0.0
  %5197 = vmatprep.mubr.f32.mxu0 0.0
  %5198 = vmatmul.mubr.f32.gmra.mrb[0].mxu0 %v5128
  %v5199 = vpop.f32.mrb[0].mxu0
  %v5200 = vadd.f32 %v5126, %v5199
  %v5201 = vpop.f32.mrb[0].mxu0
  %5202 = vmatprep.mubr.f32.mxu0 0.0
  %5203 = vmatmul.mubr.f32.gmra.mrb[0].mxu0 %v5131
  %v5204 = vpop.f32.mrb[0].mxu0
  %v5205 = vadd.f32 %v5126, %v5204
  %v5206 = vpop.f32.mrb[0].mxu0
  %5207 = vdwg.mxu0
  %v5208 = vld [vmem:[%s5 + $0x260] sm:$0xff]
  %v5209 = vld [vmem:[%s5 + $0x268] sm:$0xff]
  %v5210 = vld [vmem:[%s5 + $0x270] sm:$0xff]
  %v5211 = vld [vmem:[%s5 + $0x278] sm:$0xff]
  %v5212 = vld [vmem:[%s6 + $0x1e] sm:$0x1]
  %5215 = vrot.lane.b32.xlu0 %v5200, 96
  %v5216 = vpop.permute.xlu0 %5215
  %5217 = vrot.lane.b32.xlu0 %v5205, 96
  %v5218 = vpop.permute.xlu0 %5217
  %v5219 = vsel %vm138, %v5200, 0
  %v5221 = vsel %vm138, %v5205, 0
  %v5223 = vsel %vm138, %v5216, 0
  %v5225 = vsel %vm138, %v5218, 0
  %5227 = vmatprep.subr.mxu0 0.0
  %5228 = vmatpush1.xpose.msra.mxu0 %v5223
  %5229 = vmatprep.subr.mxu0 0.0
  %5230 = vmatpush1.xpose.msra.mxu0 %v5225
  %5231 = vmatprep.subr.mxu0 0.0
  %5232 = vmatpush1.xpose.msra.mxu0 0.0
  %5233 = vmatprep.subr.mxu0 0.0
  %5234 = vmatpush1.xpose.msra.mxu0 0.0
  %5235 = vmatprep.subr.mxu0 0.0
  %5236 = vmatpush1.xpose.msra.mxu0 0.0
  %5237 = vmatprep.subr.mxu0 0.0
  %5238 = vmatpush1.xpose.msra.mxu0 0.0
  %5239 = vmatprep.subr.mxu0 0.0
  %5240 = vmatpush1.xpose.msra.mxu0 0.0
  %5241 = vmatprep.subr.mxu0 0.0
  %5242 = vmatpush1.xpose.msra.mxu0 0.0
  %5243 = vmatprep.subr.mxu0 0.0
  %5244 = vmatpush1.xpose.msra.mxu0 0.0
  %5245 = vmatprep.subr.mxu0 0.0
  %5246 = vmatpush1.xpose.msra.mxu0 0.0
  %5247 = vmatprep.subr.mxu0 0.0
  %5248 = vmatpush1.xpose.msra.mxu0 0.0
  %5249 = vmatprep.subr.mxu0 0.0
  %5250 = vmatpush1.xpose.msra.mxu0 0.0
  %5251 = vmatprep.subr.mxu0 0.0
  %5252 = vmatpush1.xpose.msra.mxu0 0.0
  %5253 = vmatprep.subr.mxu0 0.0
  %5254 = vmatpush1.xpose.msra.mxu0 0.0
  %5255 = vmatprep.subr.mxu0 0.0
  %5256 = vmatpush1.xpose.msra.mxu0 0.0
  %5257 = vmatprep.subr.mxu0 0.0
  %5258 = vmatpush1.xpose.msra.mxu0 0.0
  %5259 = vmatprep.subr.mxu0 0.0
  %5260 = vmatpush1.xpose.msra.mxu0 0.0
  %5261 = vmatprep.subr.mxu0 0.0
  %5262 = vmatpush1.xpose.msra.mxu0 0.0
  %5263 = vmatprep.subr.mxu0 0.0
  %5264 = vmatpush1.xpose.msra.mxu0 0.0
  %5265 = vmatprep.subr.mxu0 0.0
  %5266 = vmatpush1.xpose.msra.mxu0 0.0
  %5267 = vmatprep.subr.mxu0 0.0
  %5268 = vmatpush1.xpose.msra.mxu0 0.0
  %5269 = vmatprep.subr.mxu0 0.0
  %5270 = vmatpush1.xpose.msra.mxu0 0.0
  %5271 = vmatprep.subr.mxu0 0.0
  %5272 = vmatpush1.xpose.msra.mxu0 0.0
  %5273 = vmatprep.subr.mxu0 0.0
  %5274 = vmatpush1.xpose.msra.mxu0 0.0
  %5275 = vmatprep.subr.mxu0 0.0
  %5276 = vmatpush1.xpose.msra.mxu0 0.0
  %5277 = vmatprep.subr.mxu0 0.0
  %5278 = vmatpush1.xpose.msra.mxu0 0.0
  %5279 = vmatprep.subr.mxu0 0.0
  %5280 = vmatpush1.xpose.msra.mxu0 0.0
  %5281 = vmatprep.subr.mxu0 0.0
  %5282 = vmatpush1.xpose.msra.mxu0 0.0
  %5283 = vmatprep.subr.mxu0 0.0
  %5284 = vmatpush1.xpose.msra.mxu0 0.0
  %5285 = vmatprep.subr.mxu0 0.0
  %5286 = vmatpush1.xpose.msra.mxu0 0.0
  %5287 = vmatprep.subr.mxu0 0.0
  %5288 = vmatpush1.xpose.msra.mxu0 0.0
  %5289 = vmatprep.subr.mxu0 0.0
  %5290 = vmatpush1.xpose.msra.mxu0 0.0
  %5291 = vmatprep.mubr.f32.mxu0 0.0
  %5292 = vmatmul.mubr.f32.gmra.mrb[0].mxu0 %v5219
  %v5293 = vpop.f32.mrb[0].mxu0
  %v5294 = vadd.f32 0.0, %v5293
  %v5295 = vpop.f32.mrb[0].mxu0
  %5296 = vmatprep.mubr.f32.mxu0 0.0
  %5297 = vmatmul.mubr.f32.gmra.mrb[0].mxu0 %v5221
  %v5298 = vpop.f32.mrb[0].mxu0
  %v5299 = vadd.f32 0.0, %v5298
  %v5300 = vpop.f32.mrb[0].mxu0
  %5301 = vdwg.mxu0
  %v5302 = vmul.f32 %v5294, 0.35355338
  %v5303 = vmul.f32 %v5299, 0.35355338
  %v5304 = vadd.f32 %v5302, %v32
  %v5305 = vadd.f32 %v5303, %v33
  %v5306 = vsel %vm226, %v5304, -inf
  %5307 = vmax.xlane.f32.xlu0 %v5306
  %v5308 = vpop.xlane.xlu0 %5307
  %v5309 = vsel %vm226, %v5305, -inf
  %5310 = vmax.xlane.f32.xlu0 %v5309
  %v5311 = vpop.xlane.xlu0 %5310
  %v5312 = vsub.f32 %v5304, %v5308
  %v5313 = vsub.f32 %v5305, %v5311
  %v5314 = vmul.f32 %v5312, 1.442695
  %v5315 = vpow.pop %v5314
  %v5316 = vmul.f32 %v5313, 1.442695
  %v5317 = vpow.pop %v5316
  %v5318 = vsel %vm226, %v5315, 0.0
  %5319 = vadd.xlane.f32.xlu0 %v5318
  %v5320 = vpop.xlane.xlu0 %5319
  %v5321 = vsel %vm226, %v5317, 0.0
  %5322 = vadd.xlane.f32.xlu0 %v5321
  %v5323 = vpop.xlane.xlu0 %5322
  %5324 = vrot.lane.b32.xlu0 %v5200, 64
  %v5325 = vpop.permute.xlu0 %5324
  %5326 = vrot.lane.b32.xlu0 %v5205, 64
  %v5327 = vpop.permute.xlu0 %5326
  %v5331 = vsel %vm226, %v5315, 0
  %v5334 = vsel %vm226, %v5317, 0
  %5336 = vmatprep.subr.mxu0 0.0
  %5337 = vmatpush1.msra.mxu0 %v5325
  %5338 = vmatprep.subr.mxu0 0.0
  %5339 = vmatpush1.msra.mxu0 %v5327
  %5340 = vmatprep.subr.mxu0 0.0
  %5341 = vmatpush1.msra.mxu0 0.0
  %5342 = vmatprep.subr.mxu0 0.0
  %5343 = vmatpush1.msra.mxu0 0.0
  %5344 = vmatprep.subr.mxu0 0.0
  %5345 = vmatpush1.msra.mxu0 0.0
  %5346 = vmatprep.subr.mxu0 0.0
  %5347 = vmatpush1.msra.mxu0 0.0
  %5348 = vmatprep.subr.mxu0 0.0
  %5349 = vmatpush1.msra.mxu0 0.0
  %5350 = vmatprep.subr.mxu0 0.0
  %5351 = vmatpush1.msra.mxu0 0.0
  %5352 = vmatprep.subr.mxu0 0.0
  %5353 = vmatpush1.msra.mxu0 0.0
  %5354 = vmatprep.subr.mxu0 0.0
  %5355 = vmatpush1.msra.mxu0 0.0
  %5356 = vmatprep.subr.mxu0 0.0
  %5357 = vmatpush1.msra.mxu0 0.0
  %5358 = vmatprep.subr.mxu0 0.0
  %5359 = vmatpush1.msra.mxu0 0.0
  %5360 = vmatprep.subr.mxu0 0.0
  %5361 = vmatpush1.msra.mxu0 0.0
  %5362 = vmatprep.subr.mxu0 0.0
  %5363 = vmatpush1.msra.mxu0 0.0
  %5364 = vmatprep.subr.mxu0 0.0
  %5365 = vmatpush1.msra.mxu0 0.0
  %5366 = vmatprep.subr.mxu0 0.0
  %5367 = vmatpush1.msra.mxu0 0.0
  %5368 = vmatprep.subr.mxu0 0.0
  %5369 = vmatpush1.msra.mxu0 0.0
  %5370 = vmatprep.subr.mxu0 0.0
  %5371 = vmatpush1.msra.mxu0 0.0
  %5372 = vmatprep.subr.mxu0 0.0
  %5373 = vmatpush1.msra.mxu0 0.0
  %5374 = vmatprep.subr.mxu0 0.0
  %5375 = vmatpush1.msra.mxu0 0.0
  %5376 = vmatprep.subr.mxu0 0.0
  %5377 = vmatpush1.msra.mxu0 0.0
  %5378 = vmatprep.subr.mxu0 0.0
  %5379 = vmatpush1.msra.mxu0 0.0
  %5380 = vmatprep.subr.mxu0 0.0
  %5381 = vmatpush1.msra.mxu0 0.0
  %5382 = vmatprep.subr.mxu0 0.0
  %5383 = vmatpush1.msra.mxu0 0.0
  %5384 = vmatprep.subr.mxu0 0.0
  %5385 = vmatpush1.msra.mxu0 0.0
  %5386 = vmatprep.subr.mxu0 0.0
  %5387 = vmatpush1.msra.mxu0 0.0
  %5388 = vmatprep.subr.mxu0 0.0
  %5389 = vmatpush1.msra.mxu0 0.0
  %5390 = vmatprep.subr.mxu0 0.0
  %5391 = vmatpush1.msra.mxu0 0.0
  %5392 = vmatprep.subr.mxu0 0.0
  %5393 = vmatpush1.msra.mxu0 0.0
  %5394 = vmatprep.subr.mxu0 0.0
  %5395 = vmatpush1.msra.mxu0 0.0
  %5396 = vmatprep.subr.mxu0 0.0
  %5397 = vmatpush1.msra.mxu0 0.0
  %5398 = vmatprep.subr.mxu0 0.0
  %5399 = vmatpush1.msra.mxu0 0.0
  %5400 = vmatprep.mubr.f32.mxu0 0.0
  %5401 = vmatmul.mubr.f32.gmra.mrb[0].mxu0 %v5331
  %v5402 = vpop.f32.mrb[0].mxu0
  %v5403 = vadd.f32 0.0, %v5402
  %v5404 = vpop.f32.mrb[0].mxu0
  %5405 = vmatprep.mubr.f32.mxu0 0.0
  %5406 = vmatmul.mubr.f32.gmra.mrb[0].mxu0 %v5334
  %v5407 = vpop.f32.mrb[0].mxu0
  %v5408 = vadd.f32 0.0, %v5407
  %v5409 = vpop.f32.mrb[0].mxu0
  %5410 = vdwg.mxu0
  %v5411 = vrcp.pop %v5320
  %v5412 = vrcp.pop %v5323
  %v5413 = vmul.f32 %v5403, %v5411
  %v5414 = vmul.f32 %v5408, %v5412
  %5415 = vrot.lane.b32.xlu0 %v5200, 120
  %v5416 = vpop.permute.xlu0 %5415
  %5417 = vrot.lane.b32.xlu0 %v5205, 120
  %v5418 = vpop.permute.xlu0 %5417
  %5419 = vrot.lane.b32.xlu0 %v5200, 88
  %v5420 = vpop.permute.xlu0 %5419
  %5421 = vrot.lane.b32.xlu0 %v5205, 88
  %v5422 = vpop.permute.xlu0 %5421
  %v5423 = vsel %vm138, %v5416, 0
  %v5425 = vsel %vm138, %v5418, 0
  %v5427 = vsel %vm138, %v5420, 0
  %v5429 = vsel %vm138, %v5422, 0
  %5431 = vmatprep.subr.mxu0 0.0
  %5432 = vmatpush1.xpose.msra.mxu0 %v5427
  %5433 = vmatprep.subr.mxu0 0.0
  %5434 = vmatpush1.xpose.msra.mxu0 %v5429
  %5435 = vmatprep.subr.mxu0 0.0
  %5436 = vmatpush1.xpose.msra.mxu0 0.0
  %5437 = vmatprep.subr.mxu0 0.0
  %5438 = vmatpush1.xpose.msra.mxu0 0.0
  %5439 = vmatprep.subr.mxu0 0.0
  %5440 = vmatpush1.xpose.msra.mxu0 0.0
  %5441 = vmatprep.subr.mxu0 0.0
  %5442 = vmatpush1.xpose.msra.mxu0 0.0
  %5443 = vmatprep.subr.mxu0 0.0
  %5444 = vmatpush1.xpose.msra.mxu0 0.0
  %5445 = vmatprep.subr.mxu0 0.0
  %5446 = vmatpush1.xpose.msra.mxu0 0.0
  %5447 = vmatprep.subr.mxu0 0.0
  %5448 = vmatpush1.xpose.msra.mxu0 0.0
  %5449 = vmatprep.subr.mxu0 0.0
  %5450 = vmatpush1.xpose.msra.mxu0 0.0
  %5451 = vmatprep.subr.mxu0 0.0
  %5452 = vmatpush1.xpose.msra.mxu0 0.0
  %5453 = vmatprep.subr.mxu0 0.0
  %5454 = vmatpush1.xpose.msra.mxu0 0.0
  %5455 = vmatprep.subr.mxu0 0.0
  %5456 = vmatpush1.xpose.msra.mxu0 0.0
  %5457 = vmatprep.subr.mxu0 0.0
  %5458 = vmatpush1.xpose.msra.mxu0 0.0
  %5459 = vmatprep.subr.mxu0 0.0
  %5460 = vmatpush1.xpose.msra.mxu0 0.0
  %5461 = vmatprep.subr.mxu0 0.0
  %5462 = vmatpush1.xpose.msra.mxu0 0.0
  %5463 = vmatprep.subr.mxu0 0.0
  %5464 = vmatpush1.xpose.msra.mxu0 0.0
  %5465 = vmatprep.subr.mxu0 0.0
  %5466 = vmatpush1.xpose.msra.mxu0 0.0
  %5467 = vmatprep.subr.mxu0 0.0
  %5468 = vmatpush1.xpose.msra.mxu0 0.0
  %5469 = vmatprep.subr.mxu0 0.0
  %5470 = vmatpush1.xpose.msra.mxu0 0.0
  %5471 = vmatprep.subr.mxu0 0.0
  %5472 = vmatpush1.xpose.msra.mxu0 0.0
  %5473 = vmatprep.subr.mxu0 0.0
  %5474 = vmatpush1.xpose.msra.mxu0 0.0
  %5475 = vmatprep.subr.mxu0 0.0
  %5476 = vmatpush1.xpose.msra.mxu0 0.0
  %5477 = vmatprep.subr.mxu0 0.0
  %5478 = vmatpush1.xpose.msra.mxu0 0.0
  %5479 = vmatprep.subr.mxu0 0.0
  %5480 = vmatpush1.xpose.msra.mxu0 0.0
  %5481 = vmatprep.subr.mxu0 0.0
  %5482 = vmatpush1.xpose.msra.mxu0 0.0
  %5483 = vmatprep.subr.mxu0 0.0
  %5484 = vmatpush1.xpose.msra.mxu0 0.0
  %5485 = vmatprep.subr.mxu0 0.0
  %5486 = vmatpush1.xpose.msra.mxu0 0.0
  %5487 = vmatprep.subr.mxu0 0.0
  %5488 = vmatpush1.xpose.msra.mxu0 0.0
  %5489 = vmatprep.subr.mxu0 0.0
  %5490 = vmatpush1.xpose.msra.mxu0 0.0
  %5491 = vmatprep.subr.mxu0 0.0
  %5492 = vmatpush1.xpose.msra.mxu0 0.0
  %5493 = vmatprep.subr.mxu0 0.0
  %5494 = vmatpush1.xpose.msra.mxu0 0.0
  %5495 = vmatprep.mubr.f32.mxu0 0.0
  %5496 = vmatmul.mubr.f32.gmra.mrb[0].mxu0 %v5423
  %v5497 = vpop.f32.mrb[0].mxu0
  %v5498 = vadd.f32 0.0, %v5497
  %v5499 = vpop.f32.mrb[0].mxu0
  %5500 = vmatprep.mubr.f32.mxu0 0.0
  %5501 = vmatmul.mubr.f32.gmra.mrb[0].mxu0 %v5425
  %v5502 = vpop.f32.mrb[0].mxu0
  %v5503 = vadd.f32 0.0, %v5502
  %v5504 = vpop.f32.mrb[0].mxu0
  %5505 = vdwg.mxu0
  %v5506 = vmul.f32 %v5498, 0.35355338
  %v5507 = vmul.f32 %v5503, 0.35355338
  %v5508 = vadd.f32 %v5506, %v32
  %v5509 = vadd.f32 %v5507, %v33
  %v5510 = vsel %vm226, %v5508, -inf
  %5511 = vmax.xlane.f32.xlu0 %v5510
  %v5512 = vpop.xlane.xlu0 %5511
  %v5513 = vsel %vm226, %v5509, -inf
  %5514 = vmax.xlane.f32.xlu0 %v5513
  %v5515 = vpop.xlane.xlu0 %5514
  %v5516 = vsub.f32 %v5508, %v5512
  %v5517 = vsub.f32 %v5509, %v5515
  %v5518 = vmul.f32 %v5516, 1.442695
  %v5519 = vpow.pop %v5518
  %v5520 = vmul.f32 %v5517, 1.442695
  %v5521 = vpow.pop %v5520
  %v5522 = vsel %vm226, %v5519, 0.0
  %5523 = vadd.xlane.f32.xlu0 %v5522
  %v5524 = vpop.xlane.xlu0 %5523
  %v5525 = vsel %vm226, %v5521, 0.0
  %5526 = vadd.xlane.f32.xlu0 %v5525
  %v5527 = vpop.xlane.xlu0 %5526
  %5528 = vrot.lane.b32.xlu0 %v5200, 56
  %v5529 = vpop.permute.xlu0 %5528
  %5530 = vrot.lane.b32.xlu0 %v5205, 56
  %v5531 = vpop.permute.xlu0 %5530
  %v5535 = vsel %vm226, %v5519, 0
  %v5538 = vsel %vm226, %v5521, 0
  %5540 = vmatprep.subr.mxu0 0.0
  %5541 = vmatpush1.msra.mxu0 %v5529
  %5542 = vmatprep.subr.mxu0 0.0
  %5543 = vmatpush1.msra.mxu0 %v5531
  %5544 = vmatprep.subr.mxu0 0.0
  %5545 = vmatpush1.msra.mxu0 0.0
  %5546 = vmatprep.subr.mxu0 0.0
  %5547 = vmatpush1.msra.mxu0 0.0
  %5548 = vmatprep.subr.mxu0 0.0
  %5549 = vmatpush1.msra.mxu0 0.0
  %5550 = vmatprep.subr.mxu0 0.0
  %5551 = vmatpush1.msra.mxu0 0.0
  %5552 = vmatprep.subr.mxu0 0.0
  %5553 = vmatpush1.msra.mxu0 0.0
  %5554 = vmatprep.subr.mxu0 0.0
  %5555 = vmatpush1.msra.mxu0 0.0
  %5556 = vmatprep.subr.mxu0 0.0
  %5557 = vmatpush1.msra.mxu0 0.0
  %5558 = vmatprep.subr.mxu0 0.0
  %5559 = vmatpush1.msra.mxu0 0.0
  %5560 = vmatprep.subr.mxu0 0.0
  %5561 = vmatpush1.msra.mxu0 0.0
  %5562 = vmatprep.subr.mxu0 0.0
  %5563 = vmatpush1.msra.mxu0 0.0
  %5564 = vmatprep.subr.mxu0 0.0
  %5565 = vmatpush1.msra.mxu0 0.0
  %5566 = vmatprep.subr.mxu0 0.0
  %5567 = vmatpush1.msra.mxu0 0.0
  %5568 = vmatprep.subr.mxu0 0.0
  %5569 = vmatpush1.msra.mxu0 0.0
  %5570 = vmatprep.subr.mxu0 0.0
  %5571 = vmatpush1.msra.mxu0 0.0
  %5572 = vmatprep.subr.mxu0 0.0
  %5573 = vmatpush1.msra.mxu0 0.0
  %5574 = vmatprep.subr.mxu0 0.0
  %5575 = vmatpush1.msra.mxu0 0.0
  %5576 = vmatprep.subr.mxu0 0.0
  %5577 = vmatpush1.msra.mxu0 0.0
  %5578 = vmatprep.subr.mxu0 0.0
  %5579 = vmatpush1.msra.mxu0 0.0
  %5580 = vmatprep.subr.mxu0 0.0
  %5581 = vmatpush1.msra.mxu0 0.0
  %5582 = vmatprep.subr.mxu0 0.0
  %5583 = vmatpush1.msra.mxu0 0.0
  %5584 = vmatprep.subr.mxu0 0.0
  %5585 = vmatpush1.msra.mxu0 0.0
  %5586 = vmatprep.subr.mxu0 0.0
  %5587 = vmatpush1.msra.mxu0 0.0
  %5588 = vmatprep.subr.mxu0 0.0
  %5589 = vmatpush1.msra.mxu0 0.0
  %5590 = vmatprep.subr.mxu0 0.0
  %5591 = vmatpush1.msra.mxu0 0.0
  %5592 = vmatprep.subr.mxu0 0.0
  %5593 = vmatpush1.msra.mxu0 0.0
  %5594 = vmatprep.subr.mxu0 0.0
  %5595 = vmatpush1.msra.mxu0 0.0
  %5596 = vmatprep.subr.mxu0 0.0
  %5597 = vmatpush1.msra.mxu0 0.0
  %5598 = vmatprep.subr.mxu0 0.0
  %5599 = vmatpush1.msra.mxu0 0.0
  %5600 = vmatprep.subr.mxu0 0.0
  %5601 = vmatpush1.msra.mxu0 0.0
  %5602 = vmatprep.subr.mxu0 0.0
  %5603 = vmatpush1.msra.mxu0 0.0
  %5604 = vmatprep.mubr.f32.mxu0 0.0
  %5605 = vmatmul.mubr.f32.gmra.mrb[0].mxu0 %v5535
  %v5606 = vpop.f32.mrb[0].mxu0
  %v5607 = vadd.f32 0.0, %v5606
  %v5608 = vpop.f32.mrb[0].mxu0
  %5609 = vmatprep.mubr.f32.mxu0 0.0
  %5610 = vmatmul.mubr.f32.gmra.mrb[0].mxu0 %v5538
  %v5611 = vpop.f32.mrb[0].mxu0
  %v5612 = vadd.f32 0.0, %v5611
  %v5613 = vpop.f32.mrb[0].mxu0
  %5614 = vdwg.mxu0
  %v5615 = vrcp.pop %v5524
  %v5616 = vrcp.pop %v5527
  %v5617 = vmul.f32 %v5607, %v5615
  %v5618 = vmul.f32 %v5612, %v5616
  %5619 = vrot.lane.b32.xlu0 %v5200, 112
  %v5620 = vpop.permute.xlu0 %5619
  %5621 = vrot.lane.b32.xlu0 %v5205, 112
  %v5622 = vpop.permute.xlu0 %5621
  %5623 = vrot.lane.b32.xlu0 %v5200, 80
  %v5624 = vpop.permute.xlu0 %5623
  %5625 = vrot.lane.b32.xlu0 %v5205, 80
  %v5626 = vpop.permute.xlu0 %5625
  %v5627 = vsel %vm138, %v5620, 0
  %v5629 = vsel %vm138, %v5622, 0
  %v5631 = vsel %vm138, %v5624, 0
  %v5633 = vsel %vm138, %v5626, 0
  %5635 = vmatprep.subr.mxu0 0.0
  %5636 = vmatpush1.xpose.msra.mxu0 %v5631
  %5637 = vmatprep.subr.mxu0 0.0
  %5638 = vmatpush1.xpose.msra.mxu0 %v5633
  %5639 = vmatprep.subr.mxu0 0.0
  %5640 = vmatpush1.xpose.msra.mxu0 0.0
  %5641 = vmatprep.subr.mxu0 0.0
  %5642 = vmatpush1.xpose.msra.mxu0 0.0
  %5643 = vmatprep.subr.mxu0 0.0
  %5644 = vmatpush1.xpose.msra.mxu0 0.0
  %5645 = vmatprep.subr.mxu0 0.0
  %5646 = vmatpush1.xpose.msra.mxu0 0.0
  %5647 = vmatprep.subr.mxu0 0.0
  %5648 = vmatpush1.xpose.msra.mxu0 0.0
  %5649 = vmatprep.subr.mxu0 0.0
  %5650 = vmatpush1.xpose.msra.mxu0 0.0
  %5651 = vmatprep.subr.mxu0 0.0
  %5652 = vmatpush1.xpose.msra.mxu0 0.0
  %5653 = vmatprep.subr.mxu0 0.0
  %5654 = vmatpush1.xpose.msra.mxu0 0.0
  %5655 = vmatprep.subr.mxu0 0.0
  %5656 = vmatpush1.xpose.msra.mxu0 0.0
  %5657 = vmatprep.subr.mxu0 0.0
  %5658 = vmatpush1.xpose.msra.mxu0 0.0
  %5659 = vmatprep.subr.mxu0 0.0
  %5660 = vmatpush1.xpose.msra.mxu0 0.0
  %5661 = vmatprep.subr.mxu0 0.0
  %5662 = vmatpush1.xpose.msra.mxu0 0.0
  %5663 = vmatprep.subr.mxu0 0.0
  %5664 = vmatpush1.xpose.msra.mxu0 0.0
  %5665 = vmatprep.subr.mxu0 0.0
  %5666 = vmatpush1.xpose.msra.mxu0 0.0
  %5667 = vmatprep.subr.mxu0 0.0
  %5668 = vmatpush1.xpose.msra.mxu0 0.0
  %5669 = vmatprep.subr.mxu0 0.0
  %5670 = vmatpush1.xpose.msra.mxu0 0.0
  %5671 = vmatprep.subr.mxu0 0.0
  %5672 = vmatpush1.xpose.msra.mxu0 0.0
  %5673 = vmatprep.subr.mxu0 0.0
  %5674 = vmatpush1.xpose.msra.mxu0 0.0
  %5675 = vmatprep.subr.mxu0 0.0
  %5676 = vmatpush1.xpose.msra.mxu0 0.0
  %5677 = vmatprep.subr.mxu0 0.0
  %5678 = vmatpush1.xpose.msra.mxu0 0.0
  %5679 = vmatprep.subr.mxu0 0.0
  %5680 = vmatpush1.xpose.msra.mxu0 0.0
  %5681 = vmatprep.subr.mxu0 0.0
  %5682 = vmatpush1.xpose.msra.mxu0 0.0
  %5683 = vmatprep.subr.mxu0 0.0
  %5684 = vmatpush1.xpose.msra.mxu0 0.0
  %5685 = vmatprep.subr.mxu0 0.0
  %5686 = vmatpush1.xpose.msra.mxu0 0.0
  %5687 = vmatprep.subr.mxu0 0.0
  %5688 = vmatpush1.xpose.msra.mxu0 0.0
  %5689 = vmatprep.subr.mxu0 0.0
  %5690 = vmatpush1.xpose.msra.mxu0 0.0
  %5691 = vmatprep.subr.mxu0 0.0
  %5692 = vmatpush1.xpose.msra.mxu0 0.0
  %5693 = vmatprep.subr.mxu0 0.0
  %5694 = vmatpush1.xpose.msra.mxu0 0.0
  %5695 = vmatprep.subr.mxu0 0.0
  %5696 = vmatpush1.xpose.msra.mxu0 0.0
  %5697 = vmatprep.subr.mxu0 0.0
  %5698 = vmatpush1.xpose.msra.mxu0 0.0
  %5699 = vmatprep.mubr.f32.mxu0 0.0
  %5700 = vmatmul.mubr.f32.gmra.mrb[0].mxu0 %v5627
  %v5701 = vpop.f32.mrb[0].mxu0
  %v5702 = vadd.f32 0.0, %v5701
  %v5703 = vpop.f32.mrb[0].mxu0
  %5704 = vmatprep.mubr.f32.mxu0 0.0
  %5705 = vmatmul.mubr.f32.gmra.mrb[0].mxu0 %v5629
  %v5706 = vpop.f32.mrb[0].mxu0
  %v5707 = vadd.f32 0.0, %v5706
  %v5708 = vpop.f32.mrb[0].mxu0
  %5709 = vdwg.mxu0
  %v5710 = vmul.f32 %v5702, 0.35355338
  %v5711 = vmul.f32 %v5707, 0.35355338
  %v5712 = vadd.f32 %v5710, %v32
  %v5713 = vadd.f32 %v5711, %v33
  %v5714 = vsel %vm226, %v5712, -inf
  %5715 = vmax.xlane.f32.xlu0 %v5714
  %v5716 = vpop.xlane.xlu0 %5715
  %v5717 = vsel %vm226, %v5713, -inf
  %5718 = vmax.xlane.f32.xlu0 %v5717
  %v5719 = vpop.xlane.xlu0 %5718
  %v5720 = vsub.f32 %v5712, %v5716
  %v5721 = vsub.f32 %v5713, %v5719
  %v5722 = vmul.f32 %v5720, 1.442695
  %v5723 = vpow.pop %v5722
  %v5724 = vmul.f32 %v5721, 1.442695
  %v5725 = vpow.pop %v5724
  %v5726 = vsel %vm226, %v5723, 0.0
  %5727 = vadd.xlane.f32.xlu0 %v5726
  %v5728 = vpop.xlane.xlu0 %5727
  %v5729 = vsel %vm226, %v5725, 0.0
  %5730 = vadd.xlane.f32.xlu0 %v5729
  %v5731 = vpop.xlane.xlu0 %5730
  %5732 = vrot.lane.b32.xlu0 %v5200, 48
  %v5733 = vpop.permute.xlu0 %5732
  %5734 = vrot.lane.b32.xlu0 %v5205, 48
  %v5735 = vpop.permute.xlu0 %5734
  %v5739 = vsel %vm226, %v5723, 0
  %v5742 = vsel %vm226, %v5725, 0
  %5744 = vmatprep.subr.mxu0 0.0
  %5745 = vmatpush1.msra.mxu0 %v5733
  %5746 = vmatprep.subr.mxu0 0.0
  %5747 = vmatpush1.msra.mxu0 %v5735
  %5748 = vmatprep.subr.mxu0 0.0
  %5749 = vmatpush1.msra.mxu0 0.0
  %5750 = vmatprep.subr.mxu0 0.0
  %5751 = vmatpush1.msra.mxu0 0.0
  %5752 = vmatprep.subr.mxu0 0.0
  %5753 = vmatpush1.msra.mxu0 0.0
  %5754 = vmatprep.subr.mxu0 0.0
  %5755 = vmatpush1.msra.mxu0 0.0
  %5756 = vmatprep.subr.mxu0 0.0
  %5757 = vmatpush1.msra.mxu0 0.0
  %5758 = vmatprep.subr.mxu0 0.0
  %5759 = vmatpush1.msra.mxu0 0.0
  %5760 = vmatprep.subr.mxu0 0.0
  %5761 = vmatpush1.msra.mxu0 0.0
  %5762 = vmatprep.subr.mxu0 0.0
  %5763 = vmatpush1.msra.mxu0 0.0
  %5764 = vmatprep.subr.mxu0 0.0
  %5765 = vmatpush1.msra.mxu0 0.0
  %5766 = vmatprep.subr.mxu0 0.0
  %5767 = vmatpush1.msra.mxu0 0.0
  %5768 = vmatprep.subr.mxu0 0.0
  %5769 = vmatpush1.msra.mxu0 0.0
  %5770 = vmatprep.subr.mxu0 0.0
  %5771 = vmatpush1.msra.mxu0 0.0
  %5772 = vmatprep.subr.mxu0 0.0
  %5773 = vmatpush1.msra.mxu0 0.0
  %5774 = vmatprep.subr.mxu0 0.0
  %5775 = vmatpush1.msra.mxu0 0.0
  %5776 = vmatprep.subr.mxu0 0.0
  %5777 = vmatpush1.msra.mxu0 0.0
  %5778 = vmatprep.subr.mxu0 0.0
  %5779 = vmatpush1.msra.mxu0 0.0
  %5780 = vmatprep.subr.mxu0 0.0
  %5781 = vmatpush1.msra.mxu0 0.0
  %5782 = vmatprep.subr.mxu0 0.0
  %5783 = vmatpush1.msra.mxu0 0.0
  %5784 = vmatprep.subr.mxu0 0.0
  %5785 = vmatpush1.msra.mxu0 0.0
  %5786 = vmatprep.subr.mxu0 0.0
  %5787 = vmatpush1.msra.mxu0 0.0
  %5788 = vmatprep.subr.mxu0 0.0
  %5789 = vmatpush1.msra.mxu0 0.0
  %5790 = vmatprep.subr.mxu0 0.0
  %5791 = vmatpush1.msra.mxu0 0.0
  %5792 = vmatprep.subr.mxu0 0.0
  %5793 = vmatpush1.msra.mxu0 0.0
  %5794 = vmatprep.subr.mxu0 0.0
  %5795 = vmatpush1.msra.mxu0 0.0
  %5796 = vmatprep.subr.mxu0 0.0
  %5797 = vmatpush1.msra.mxu0 0.0
  %5798 = vmatprep.subr.mxu0 0.0
  %5799 = vmatpush1.msra.mxu0 0.0
  %5800 = vmatprep.subr.mxu0 0.0
  %5801 = vmatpush1.msra.mxu0 0.0
  %5802 = vmatprep.subr.mxu0 0.0
  %5803 = vmatpush1.msra.mxu0 0.0
  %5804 = vmatprep.subr.mxu0 0.0
  %5805 = vmatpush1.msra.mxu0 0.0
  %5806 = vmatprep.subr.mxu0 0.0
  %5807 = vmatpush1.msra.mxu0 0.0
  %5808 = vmatprep.mubr.f32.mxu0 0.0
  %5809 = vmatmul.mubr.f32.gmra.mrb[0].mxu0 %v5739
  %v5810 = vpop.f32.mrb[0].mxu0
  %v5811 = vadd.f32 0.0, %v5810
  %v5812 = vpop.f32.mrb[0].mxu0
  %5813 = vmatprep.mubr.f32.mxu0 0.0
  %5814 = vmatmul.mubr.f32.gmra.mrb[0].mxu0 %v5742
  %v5815 = vpop.f32.mrb[0].mxu0
  %v5816 = vadd.f32 0.0, %v5815
  %v5817 = vpop.f32.mrb[0].mxu0
  %5818 = vdwg.mxu0
  %v5819 = vrcp.pop %v5728
  %v5820 = vrcp.pop %v5731
  %v5821 = vmul.f32 %v5811, %v5819
  %v5822 = vmul.f32 %v5816, %v5820
  %5823 = vrot.lane.b32.xlu0 %v5200, 104
  %v5824 = vpop.permute.xlu0 %5823
  %5825 = vrot.lane.b32.xlu0 %v5205, 104
  %v5826 = vpop.permute.xlu0 %5825
  %5827 = vrot.lane.b32.xlu0 %v5200, 72
  %v5828 = vpop.permute.xlu0 %5827
  %5829 = vrot.lane.b32.xlu0 %v5205, 72
  %v5830 = vpop.permute.xlu0 %5829
  %v5831 = vsel %vm138, %v5824, 0
  %v5833 = vsel %vm138, %v5826, 0
  %v5835 = vsel %vm138, %v5828, 0
  %v5837 = vsel %vm138, %v5830, 0
  %5839 = vmatprep.subr.mxu0 0.0
  %5840 = vmatpush1.xpose.msra.mxu0 %v5835
  %5841 = vmatprep.subr.mxu0 0.0
  %5842 = vmatpush1.xpose.msra.mxu0 %v5837
  %5843 = vmatprep.subr.mxu0 0.0
  %5844 = vmatpush1.xpose.msra.mxu0 0.0
  %5845 = vmatprep.subr.mxu0 0.0
  %5846 = vmatpush1.xpose.msra.mxu0 0.0
  %5847 = vmatprep.subr.mxu0 0.0
  %5848 = vmatpush1.xpose.msra.mxu0 0.0
  %5849 = vmatprep.subr.mxu0 0.0
  %5850 = vmatpush1.xpose.msra.mxu0 0.0
  %5851 = vmatprep.subr.mxu0 0.0
  %5852 = vmatpush1.xpose.msra.mxu0 0.0
  %5853 = vmatprep.subr.mxu0 0.0
  %5854 = vmatpush1.xpose.msra.mxu0 0.0
  %5855 = vmatprep.subr.mxu0 0.0
  %5856 = vmatpush1.xpose.msra.mxu0 0.0
  %5857 = vmatprep.subr.mxu0 0.0
  %5858 = vmatpush1.xpose.msra.mxu0 0.0
  %5859 = vmatprep.subr.mxu0 0.0
  %5860 = vmatpush1.xpose.msra.mxu0 0.0
  %5861 = vmatprep.subr.mxu0 0.0
  %5862 = vmatpush1.xpose.msra.mxu0 0.0
  %5863 = vmatprep.subr.mxu0 0.0
  %5864 = vmatpush1.xpose.msra.mxu0 0.0
  %5865 = vmatprep.subr.mxu0 0.0
  %5866 = vmatpush1.xpose.msra.mxu0 0.0
  %5867 = vmatprep.subr.mxu0 0.0
  %5868 = vmatpush1.xpose.msra.mxu0 0.0
  %5869 = vmatprep.subr.mxu0 0.0
  %5870 = vmatpush1.xpose.msra.mxu0 0.0
  %5871 = vmatprep.subr.mxu0 0.0
  %5872 = vmatpush1.xpose.msra.mxu0 0.0
  %5873 = vmatprep.subr.mxu0 0.0
  %5874 = vmatpush1.xpose.msra.mxu0 0.0
  %5875 = vmatprep.subr.mxu0 0.0
  %5876 = vmatpush1.xpose.msra.mxu0 0.0
  %5877 = vmatprep.subr.mxu0 0.0
  %5878 = vmatpush1.xpose.msra.mxu0 0.0
  %5879 = vmatprep.subr.mxu0 0.0
  %5880 = vmatpush1.xpose.msra.mxu0 0.0
  %5881 = vmatprep.subr.mxu0 0.0
  %5882 = vmatpush1.xpose.msra.mxu0 0.0
  %5883 = vmatprep.subr.mxu0 0.0
  %5884 = vmatpush1.xpose.msra.mxu0 0.0
  %5885 = vmatprep.subr.mxu0 0.0
  %5886 = vmatpush1.xpose.msra.mxu0 0.0
  %5887 = vmatprep.subr.mxu0 0.0
  %5888 = vmatpush1.xpose.msra.mxu0 0.0
  %5889 = vmatprep.subr.mxu0 0.0
  %5890 = vmatpush1.xpose.msra.mxu0 0.0
  %5891 = vmatprep.subr.mxu0 0.0
  %5892 = vmatpush1.xpose.msra.mxu0 0.0
  %5893 = vmatprep.subr.mxu0 0.0
  %5894 = vmatpush1.xpose.msra.mxu0 0.0
  %5895 = vmatprep.subr.mxu0 0.0
  %5896 = vmatpush1.xpose.msra.mxu0 0.0
  %5897 = vmatprep.subr.mxu0 0.0
  %5898 = vmatpush1.xpose.msra.mxu0 0.0
  %5899 = vmatprep.subr.mxu0 0.0
  %5900 = vmatpush1.xpose.msra.mxu0 0.0
  %5901 = vmatprep.subr.mxu0 0.0
  %5902 = vmatpush1.xpose.msra.mxu0 0.0
  %5903 = vmatprep.mubr.f32.mxu0 0.0
  %5904 = vmatmul.mubr.f32.gmra.mrb[0].mxu0 %v5831
  %v5905 = vpop.f32.mrb[0].mxu0
  %v5906 = vadd.f32 0.0, %v5905
  %v5907 = vpop.f32.mrb[0].mxu0
  %5908 = vmatprep.mubr.f32.mxu0 0.0
  %5909 = vmatmul.mubr.f32.gmra.mrb[0].mxu0 %v5833
  %v5910 = vpop.f32.mrb[0].mxu0
  %v5911 = vadd.f32 0.0, %v5910
  %v5912 = vpop.f32.mrb[0].mxu0
  %5913 = vdwg.mxu0
  %v5914 = vmul.f32 %v5906, 0.35355338
  %v5915 = vmul.f32 %v5911, 0.35355338
  %v5916 = vadd.f32 %v5914, %v32
  %v5917 = vadd.f32 %v5915, %v33
  %v5918 = vsel %vm226, %v5916, -inf
  %5919 = vmax.xlane.f32.xlu0 %v5918
  %v5920 = vpop.xlane.xlu0 %5919
  %v5921 = vsel %vm226, %v5917, -inf
  %5922 = vmax.xlane.f32.xlu0 %v5921
  %v5923 = vpop.xlane.xlu0 %5922
  %v5924 = vsub.f32 %v5916, %v5920
  %v5925 = vsub.f32 %v5917, %v5923
  %v5926 = vmul.f32 %v5924, 1.442695
  %v5927 = vpow.pop %v5926
  %v5928 = vmul.f32 %v5925, 1.442695
  %v5929 = vpow.pop %v5928
  %v5930 = vsel %vm226, %v5927, 0.0
  %5931 = vadd.xlane.f32.xlu0 %v5930
  %v5932 = vpop.xlane.xlu0 %5931
  %v5933 = vsel %vm226, %v5929, 0.0
  %5934 = vadd.xlane.f32.xlu0 %v5933
  %v5935 = vpop.xlane.xlu0 %5934
  %5936 = vrot.lane.b32.xlu0 %v5200, 40
  %v5937 = vpop.permute.xlu0 %5936
  %5938 = vrot.lane.b32.xlu0 %v5205, 40
  %v5939 = vpop.permute.xlu0 %5938
  %v5943 = vsel %vm226, %v5927, 0
  %v5946 = vsel %vm226, %v5929, 0
  %5948 = vmatprep.subr.mxu0 0.0
  %5949 = vmatpush1.msra.mxu0 %v5937
  %5950 = vmatprep.subr.mxu0 0.0
  %5951 = vmatpush1.msra.mxu0 %v5939
  %5952 = vmatprep.subr.mxu0 0.0
  %5953 = vmatpush1.msra.mxu0 0.0
  %5954 = vmatprep.subr.mxu0 0.0
  %5955 = vmatpush1.msra.mxu0 0.0
  %5956 = vmatprep.subr.mxu0 0.0
  %5957 = vmatpush1.msra.mxu0 0.0
  %5958 = vmatprep.subr.mxu0 0.0
  %5959 = vmatpush1.msra.mxu0 0.0
  %5960 = vmatprep.subr.mxu0 0.0
  %5961 = vmatpush1.msra.mxu0 0.0
  %5962 = vmatprep.subr.mxu0 0.0
  %5963 = vmatpush1.msra.mxu0 0.0
  %5964 = vmatprep.subr.mxu0 0.0
  %5965 = vmatpush1.msra.mxu0 0.0
  %5966 = vmatprep.subr.mxu0 0.0
  %5967 = vmatpush1.msra.mxu0 0.0
  %5968 = vmatprep.subr.mxu0 0.0
  %5969 = vmatpush1.msra.mxu0 0.0
  %5970 = vmatprep.subr.mxu0 0.0
  %5971 = vmatpush1.msra.mxu0 0.0
  %5972 = vmatprep.subr.mxu0 0.0
  %5973 = vmatpush1.msra.mxu0 0.0
  %5974 = vmatprep.subr.mxu0 0.0
  %5975 = vmatpush1.msra.mxu0 0.0
  %5976 = vmatprep.subr.mxu0 0.0
  %5977 = vmatpush1.msra.mxu0 0.0
  %5978 = vmatprep.subr.mxu0 0.0
  %5979 = vmatpush1.msra.mxu0 0.0
  %5980 = vmatprep.subr.mxu0 0.0
  %5981 = vmatpush1.msra.mxu0 0.0
  %5982 = vmatprep.subr.mxu0 0.0
  %5983 = vmatpush1.msra.mxu0 0.0
  %5984 = vmatprep.subr.mxu0 0.0
  %5985 = vmatpush1.msra.mxu0 0.0
  %5986 = vmatprep.subr.mxu0 0.0
  %5987 = vmatpush1.msra.mxu0 0.0
  %5988 = vmatprep.subr.mxu0 0.0
  %5989 = vmatpush1.msra.mxu0 0.0
  %5990 = vmatprep.subr.mxu0 0.0
  %5991 = vmatpush1.msra.mxu0 0.0
  %5992 = vmatprep.subr.mxu0 0.0
  %5993 = vmatpush1.msra.mxu0 0.0
  %5994 = vmatprep.subr.mxu0 0.0
  %5995 = vmatpush1.msra.mxu0 0.0
  %5996 = vmatprep.subr.mxu0 0.0
  %5997 = vmatpush1.msra.mxu0 0.0
  %5998 = vmatprep.subr.mxu0 0.0
  %5999 = vmatpush1.msra.mxu0 0.0
  %6000 = vmatprep.subr.mxu0 0.0
  %6001 = vmatpush1.msra.mxu0 0.0
  %6002 = vmatprep.subr.mxu0 0.0
  %6003 = vmatpush1.msra.mxu0 0.0
  %6004 = vmatprep.subr.mxu0 0.0
  %6005 = vmatpush1.msra.mxu0 0.0
  %6006 = vmatprep.subr.mxu0 0.0
  %6007 = vmatpush1.msra.mxu0 0.0
  %6008 = vmatprep.subr.mxu0 0.0
  %6009 = vmatpush1.msra.mxu0 0.0
  %6010 = vmatprep.subr.mxu0 0.0
  %6011 = vmatpush1.msra.mxu0 0.0
  %6012 = vmatprep.mubr.f32.mxu0 0.0
  %6013 = vmatmul.mubr.f32.gmra.mrb[0].mxu0 %v5943
  %v6014 = vpop.f32.mrb[0].mxu0
  %v6015 = vadd.f32 0.0, %v6014
  %v6016 = vpop.f32.mrb[0].mxu0
  %6017 = vmatprep.mubr.f32.mxu0 0.0
  %6018 = vmatmul.mubr.f32.gmra.mrb[0].mxu0 %v5946
  %v6019 = vpop.f32.mrb[0].mxu0
  %v6020 = vadd.f32 0.0, %v6019
  %v6021 = vpop.f32.mrb[0].mxu0
  %6022 = vdwg.mxu0
  %v6023 = vrcp.pop %v5932
  %v6024 = vrcp.pop %v5935
  %v6025 = vmul.f32 %v6015, %v6023
  %v6026 = vmul.f32 %v6020, %v6024
  %6029 = vrot.lane.b32.xlu0 %v5617, 8
  %v6030 = vpop.permute.xlu0 %6029
  %6031 = vrot.lane.b32.xlu0 %v5618, 8
  %v6032 = vpop.permute.xlu0 %6031
  %6037 = vrot.lane.b32.xlu0 %v5821, 16
  %v6038 = vpop.permute.xlu0 %6037
  %6039 = vrot.lane.b32.xlu0 %v5822, 16
  %v6040 = vpop.permute.xlu0 %6039
  %6045 = vrot.lane.b32.xlu0 %v6025, 24
  %v6046 = vpop.permute.xlu0 %6045
  %6047 = vrot.lane.b32.xlu0 %v6026, 24
  %v6048 = vpop.permute.xlu0 %6047
  %v6051 = vsel %vm138, %v5413, %v6030
  %v6052 = vsel %vm138, %v5414, %v6032
  %v6053 = vsel %vm226, %v6051, %v6038
  %v6054 = vsel %vm226, %v6052, %v6040
  %v6055 = vsel %vm976, %v6053, %v6046
  %v6056 = vsel %vm976, %v6054, %v6048
  %v6057 = vlaneseq
  %v6058 = vshrl.u32 %v6057, 7
  %v6059 = vsub.s32 0, %v6058
  %v6060 = vrot.slane %v5212, %v6059
  %v6062 = vsel %vm45, %v6055, 0
  %v6065 = vsel %vm45, %v6056, 0
  %6067 = vmatprep.subr.mxu0 0.0
  %6068 = vmatpush1.msra.mxu0 %v5208
  %6069 = vmatprep.subr.mxu0 0.0
  %6070 = vmatpush1.msra.mxu0 %v5209
  %6071 = vmatprep.subr.mxu0 0.0
  %6072 = vmatpush1.msra.mxu0 %v5210
  %6073 = vmatprep.subr.mxu0 0.0
  %6074 = vmatpush1.msra.mxu0 %v5211
  %6075 = vmatprep.subr.mxu0 0.0
  %6076 = vmatpush1.msra.mxu0 0.0
  %6077 = vmatprep.subr.mxu0 0.0
  %6078 = vmatpush1.msra.mxu0 0.0
  %6079 = vmatprep.subr.mxu0 0.0
  %6080 = vmatpush1.msra.mxu0 0.0
  %6081 = vmatprep.subr.mxu0 0.0
  %6082 = vmatpush1.msra.mxu0 0.0
  %6083 = vmatprep.subr.mxu0 0.0
  %6084 = vmatpush1.msra.mxu0 0.0
  %6085 = vmatprep.subr.mxu0 0.0
  %6086 = vmatpush1.msra.mxu0 0.0
  %6087 = vmatprep.subr.mxu0 0.0
  %6088 = vmatpush1.msra.mxu0 0.0
  %6089 = vmatprep.subr.mxu0 0.0
  %6090 = vmatpush1.msra.mxu0 0.0
  %6091 = vmatprep.subr.mxu0 0.0
  %6092 = vmatpush1.msra.mxu0 0.0
  %6093 = vmatprep.subr.mxu0 0.0
  %6094 = vmatpush1.msra.mxu0 0.0
  %6095 = vmatprep.subr.mxu0 0.0
  %6096 = vmatpush1.msra.mxu0 0.0
  %6097 = vmatprep.subr.mxu0 0.0
  %6098 = vmatpush1.msra.mxu0 0.0
  %6099 = vmatprep.subr.mxu0 0.0
  %6100 = vmatpush1.msra.mxu0 0.0
  %6101 = vmatprep.subr.mxu0 0.0
  %6102 = vmatpush1.msra.mxu0 0.0
  %6103 = vmatprep.subr.mxu0 0.0
  %6104 = vmatpush1.msra.mxu0 0.0
  %6105 = vmatprep.subr.mxu0 0.0
  %6106 = vmatpush1.msra.mxu0 0.0
  %6107 = vmatprep.subr.mxu0 0.0
  %6108 = vmatpush1.msra.mxu0 0.0
  %6109 = vmatprep.subr.mxu0 0.0
  %6110 = vmatpush1.msra.mxu0 0.0
  %6111 = vmatprep.subr.mxu0 0.0
  %6112 = vmatpush1.msra.mxu0 0.0
  %6113 = vmatprep.subr.mxu0 0.0
  %6114 = vmatpush1.msra.mxu0 0.0
  %6115 = vmatprep.subr.mxu0 0.0
  %6116 = vmatpush1.msra.mxu0 0.0
  %6117 = vmatprep.subr.mxu0 0.0
  %6118 = vmatpush1.msra.mxu0 0.0
  %6119 = vmatprep.subr.mxu0 0.0
  %6120 = vmatpush1.msra.mxu0 0.0
  %6121 = vmatprep.subr.mxu0 0.0
  %6122 = vmatpush1.msra.mxu0 0.0
  %6123 = vmatprep.subr.mxu0 0.0
  %6124 = vmatpush1.msra.mxu0 0.0
  %6125 = vmatprep.subr.mxu0 0.0
  %6126 = vmatpush1.msra.mxu0 0.0
  %6127 = vmatprep.subr.mxu0 0.0
  %6128 = vmatpush1.msra.mxu0 0.0
  %6129 = vmatprep.subr.mxu0 0.0
  %6130 = vmatpush1.msra.mxu0 0.0
  %6131 = vmatprep.mubr.f32.mxu0 0.0
  %6132 = vmatmul.mubr.f32.gmra.mrb[0].mxu0 %v6062
  %v6133 = vpop.f32.mrb[0].mxu0
  %v6134 = vadd.f32 %v6060, %v6133
  %v6135 = vpop.f32.mrb[0].mxu0
  %6136 = vmatprep.mubr.f32.mxu0 0.0
  %6137 = vmatmul.mubr.f32.gmra.mrb[0].mxu0 %v6065
  %v6138 = vpop.f32.mrb[0].mxu0
  %v6139 = vadd.f32 %v6060, %v6138
  %v6140 = vpop.f32.mrb[0].mxu0
  %6141 = vdwg.mxu0
  %v6142 = vadd.f32 %v5116, %v6134
  %v6143 = vadd.f32 %v5117, %v6139
  %v6144 = vld [vmem:[%s6 + $0x24] sm:$0x1]
  %v6145 = vld [vmem:[%s6 + $0x25] sm:$0x1]
  %v6146 = vsel %vm45, %v6142, 0.0
  %6147 = vadd.xlane.f32.xlu0 %v6146
  %v6148 = vpop.xlane.xlu0 %6147
  %v6149 = vsel %vm45, %v6143, 0.0
  %6150 = vadd.xlane.f32.xlu0 %v6149
  %v6151 = vpop.xlane.xlu0 %6150
  %v6152 = vmul.f32 %v6148, %v1074
  %v6153 = vmul.f32 %v6151, %v1074
  %v6154 = vsub.f32 %v6142, %v6152
  %v6155 = vsub.f32 %v6143, %v6153
  %v6156 = vmul.f32 %v6154, %v6154
  %v6157 = vmul.f32 %v6155, %v6155
  %v6158 = vsel %vm45, %v6156, 0.0
  %6159 = vadd.xlane.f32.xlu0 %v6158
  %v6160 = vpop.xlane.xlu0 %6159
  %v6161 = vsel %vm45, %v6157, 0.0
  %6162 = vadd.xlane.f32.xlu0 %v6161
  %v6163 = vpop.xlane.xlu0 %6162
  %v6164 = vmul.f32 %v6160, %v1074
  %v6165 = vmul.f32 %v6163, %v1074
  %v6166 = vadd.f32 %v6164, 1e-05
  %v6167 = vadd.f32 %v6165, 1e-05
  %v6168 = vrsqrt.pop %v6166
  %v6169 = vrsqrt.pop %v6167
  %v6170 = vmul.f32 %v6154, %v6168
  %v6171 = vmul.f32 %v6155, %v6169
  %v6172 = vlaneseq
  %v6173 = vshrl.u32 %v6172, 7
  %v6174 = vsub.s32 0, %v6173
  %v6175 = vrot.slane %v6144, %v6174
  %v6176 = vmul.f32 %v6170, %v6175
  %v6177 = vmul.f32 %v6171, %v6175
  %v6178 = vlaneseq
  %v6179 = vshrl.u32 %v6178, 7
  %v6180 = vsub.s32 0, %v6179
  %v6181 = vrot.slane %v6145, %v6180
  %v6182 = vadd.f32 %v6176, %v6181
  %v6183 = vadd.f32 %v6177, %v6181
  %v6184 = vld [vmem:[%s5 + $0x280] sm:$0xff]
  %v6185 = vld [vmem:[%s5 + $0x288] sm:$0xff]
  %v6186 = vld [vmem:[%s5 + $0x290] sm:$0xff]
  %v6187 = vld [vmem:[%s5 + $0x298] sm:$0xff]
  %v6188 = vld [vmem:[%s6 + $0x1f] sm:$0x1]
  %v6189 = vlaneseq
  %v6190 = vshrl.u32 %v6189, 7
  %v6191 = vsub.s32 0, %v6190
  %v6192 = vrot.slane %v6188, %v6191
  %v6194 = vsel %vm45, %v6182, 0
  %v6197 = vsel %vm45, %v6183, 0
  %6199 = vmatprep.subr.mxu0 0.0
  %6200 = vmatpush1.msra.mxu0 %v6184
  %6201 = vmatprep.subr.mxu0 0.0
  %6202 = vmatpush1.msra.mxu0 %v6185
  %6203 = vmatprep.subr.mxu0 0.0
  %6204 = vmatpush1.msra.mxu0 %v6186
  %6205 = vmatprep.subr.mxu0 0.0
  %6206 = vmatpush1.msra.mxu0 %v6187
  %6207 = vmatprep.subr.mxu0 0.0
  %6208 = vmatpush1.msra.mxu0 0.0
  %6209 = vmatprep.subr.mxu0 0.0
  %6210 = vmatpush1.msra.mxu0 0.0
  %6211 = vmatprep.subr.mxu0 0.0
  %6212 = vmatpush1.msra.mxu0 0.0
  %6213 = vmatprep.subr.mxu0 0.0
  %6214 = vmatpush1.msra.mxu0 0.0
  %6215 = vmatprep.subr.mxu0 0.0
  %6216 = vmatpush1.msra.mxu0 0.0
  %6217 = vmatprep.subr.mxu0 0.0
  %6218 = vmatpush1.msra.mxu0 0.0
  %6219 = vmatprep.subr.mxu0 0.0
  %6220 = vmatpush1.msra.mxu0 0.0
  %6221 = vmatprep.subr.mxu0 0.0
  %6222 = vmatpush1.msra.mxu0 0.0
  %6223 = vmatprep.subr.mxu0 0.0
  %6224 = vmatpush1.msra.mxu0 0.0
  %6225 = vmatprep.subr.mxu0 0.0
  %6226 = vmatpush1.msra.mxu0 0.0
  %6227 = vmatprep.subr.mxu0 0.0
  %6228 = vmatpush1.msra.mxu0 0.0
  %6229 = vmatprep.subr.mxu0 0.0
  %6230 = vmatpush1.msra.mxu0 0.0
  %6231 = vmatprep.subr.mxu0 0.0
  %6232 = vmatpush1.msra.mxu0 0.0
  %6233 = vmatprep.subr.mxu0 0.0
  %6234 = vmatpush1.msra.mxu0 0.0
  %6235 = vmatprep.subr.mxu0 0.0
  %6236 = vmatpush1.msra.mxu0 0.0
  %6237 = vmatprep.subr.mxu0 0.0
  %6238 = vmatpush1.msra.mxu0 0.0
  %6239 = vmatprep.subr.mxu0 0.0
  %6240 = vmatpush1.msra.mxu0 0.0
  %6241 = vmatprep.subr.mxu0 0.0
  %6242 = vmatpush1.msra.mxu0 0.0
  %6243 = vmatprep.subr.mxu0 0.0
  %6244 = vmatpush1.msra.mxu0 0.0
  %6245 = vmatprep.subr.mxu0 0.0
  %6246 = vmatpush1.msra.mxu0 0.0
  %6247 = vmatprep.subr.mxu0 0.0
  %6248 = vmatpush1.msra.mxu0 0.0
  %6249 = vmatprep.subr.mxu0 0.0
  %6250 = vmatpush1.msra.mxu0 0.0
  %6251 = vmatprep.subr.mxu0 0.0
  %6252 = vmatpush1.msra.mxu0 0.0
  %6253 = vmatprep.subr.mxu0 0.0
  %6254 = vmatpush1.msra.mxu0 0.0
  %6255 = vmatprep.subr.mxu0 0.0
  %6256 = vmatpush1.msra.mxu0 0.0
  %6257 = vmatprep.subr.mxu0 0.0
  %6258 = vmatpush1.msra.mxu0 0.0
  %6259 = vmatprep.subr.mxu0 0.0
  %6260 = vmatpush1.msra.mxu0 0.0
  %6261 = vmatprep.subr.mxu0 0.0
  %6262 = vmatpush1.msra.mxu0 0.0
  %6263 = vmatprep.mubr.f32.mxu0 0.0
  %6264 = vmatmul.mubr.f32.gmra.mrb[0].mxu0 %v6194
  %v6265 = vpop.f32.mrb[0].mxu0
  %v6266 = vadd.f32 %v6192, %v6265
  %v6267 = vpop.f32.mrb[0].mxu0
  %6268 = vmatprep.mubr.f32.mxu0 0.0
  %6269 = vmatmul.mubr.f32.gmra.mrb[0].mxu0 %v6197
  %v6270 = vpop.f32.mrb[0].mxu0
  %v6271 = vadd.f32 %v6192, %v6270
  %v6272 = vpop.f32.mrb[0].mxu0
  %6273 = vdwg.mxu0
  %v6274 = vld [vmem:[%s5 + $0x2a0] sm:$0xff]
  %v6275 = vld [vmem:[%s5 + $0x2a8] sm:$0xff]
  %v6276 = vld [vmem:[%s5 + $0x2b0] sm:$0xff]
  %v6277 = vld [vmem:[%s5 + $0x2b8] sm:$0xff]
  %v6278 = vld [vmem:[%s6 + $0x20] sm:$0x1]
  %v6279 = vlaneseq
  %v6280 = vshrl.u32 %v6279, 7
  %v6281 = vsub.s32 0, %v6280
  %v6282 = vrot.slane %v6278, %v6281
  %6283 = vmatprep.subr.mxu0 0.0
  %6284 = vmatpush1.msra.mxu0 %v6274
  %6285 = vmatprep.subr.mxu0 0.0
  %6286 = vmatpush1.msra.mxu0 %v6275
  %6287 = vmatprep.subr.mxu0 0.0
  %6288 = vmatpush1.msra.mxu0 %v6276
  %6289 = vmatprep.subr.mxu0 0.0
  %6290 = vmatpush1.msra.mxu0 %v6277
  %6291 = vmatprep.subr.mxu0 0.0
  %6292 = vmatpush1.msra.mxu0 0.0
  %6293 = vmatprep.subr.mxu0 0.0
  %6294 = vmatpush1.msra.mxu0 0.0
  %6295 = vmatprep.subr.mxu0 0.0
  %6296 = vmatpush1.msra.mxu0 0.0
  %6297 = vmatprep.subr.mxu0 0.0
  %6298 = vmatpush1.msra.mxu0 0.0
  %6299 = vmatprep.subr.mxu0 0.0
  %6300 = vmatpush1.msra.mxu0 0.0
  %6301 = vmatprep.subr.mxu0 0.0
  %6302 = vmatpush1.msra.mxu0 0.0
  %6303 = vmatprep.subr.mxu0 0.0
  %6304 = vmatpush1.msra.mxu0 0.0
  %6305 = vmatprep.subr.mxu0 0.0
  %6306 = vmatpush1.msra.mxu0 0.0
  %6307 = vmatprep.subr.mxu0 0.0
  %6308 = vmatpush1.msra.mxu0 0.0
  %6309 = vmatprep.subr.mxu0 0.0
  %6310 = vmatpush1.msra.mxu0 0.0
  %6311 = vmatprep.subr.mxu0 0.0
  %6312 = vmatpush1.msra.mxu0 0.0
  %6313 = vmatprep.subr.mxu0 0.0
  %6314 = vmatpush1.msra.mxu0 0.0
  %6315 = vmatprep.subr.mxu0 0.0
  %6316 = vmatpush1.msra.mxu0 0.0
  %6317 = vmatprep.subr.mxu0 0.0
  %6318 = vmatpush1.msra.mxu0 0.0
  %6319 = vmatprep.subr.mxu0 0.0
  %6320 = vmatpush1.msra.mxu0 0.0
  %6321 = vmatprep.subr.mxu0 0.0
  %6322 = vmatpush1.msra.mxu0 0.0
  %6323 = vmatprep.subr.mxu0 0.0
  %6324 = vmatpush1.msra.mxu0 0.0
  %6325 = vmatprep.subr.mxu0 0.0
  %6326 = vmatpush1.msra.mxu0 0.0
  %6327 = vmatprep.subr.mxu0 0.0
  %6328 = vmatpush1.msra.mxu0 0.0
  %6329 = vmatprep.subr.mxu0 0.0
  %6330 = vmatpush1.msra.mxu0 0.0
  %6331 = vmatprep.subr.mxu0 0.0
  %6332 = vmatpush1.msra.mxu0 0.0
  %6333 = vmatprep.subr.mxu0 0.0
  %6334 = vmatpush1.msra.mxu0 0.0
  %6335 = vmatprep.subr.mxu0 0.0
  %6336 = vmatpush1.msra.mxu0 0.0
  %6337 = vmatprep.subr.mxu0 0.0
  %6338 = vmatpush1.msra.mxu0 0.0
  %6339 = vmatprep.subr.mxu0 0.0
  %6340 = vmatpush1.msra.mxu0 0.0
  %6341 = vmatprep.subr.mxu0 0.0
  %6342 = vmatpush1.msra.mxu0 0.0
  %6343 = vmatprep.subr.mxu0 0.0
  %6344 = vmatpush1.msra.mxu0 0.0
  %6345 = vmatprep.subr.mxu0 0.0
  %6346 = vmatpush1.msra.mxu0 0.0
  %6347 = vmatprep.mubr.f32.mxu0 0.0
  %6348 = vmatmul.mubr.f32.gmra.mrb[0].mxu0 %v3836
  %v6349 = vpop.f32.mrb[0].mxu0
  %v6350 = vadd.f32 %v6282, %v6349
  %v6351 = vpop.f32.mrb[0].mxu0
  %6352 = vmatprep.mubr.f32.mxu0 0.0
  %6353 = vmatmul.mubr.f32.gmra.mrb[0].mxu0 %v3839
  %v6354 = vpop.f32.mrb[0].mxu0
  %v6355 = vadd.f32 %v6282, %v6354
  %v6356 = vpop.f32.mrb[0].mxu0
  %6357 = vdwg.mxu0
  %v6358 = vld [vmem:[%s5 + $0x2c0] sm:$0xff]
  %v6359 = vld [vmem:[%s5 + $0x2c8] sm:$0xff]
  %v6360 = vld [vmem:[%s5 + $0x2d0] sm:$0xff]
  %v6361 = vld [vmem:[%s5 + $0x2d8] sm:$0xff]
  %v6362 = vld [vmem:[%s6 + $0x21] sm:$0x1]
  %v6364 = vsel %vm138, %v6266, 0
  %v6367 = vsel %vm138, %v6271, 0
  %v6370 = vsel %vm138, %v6350, 0
  %v6373 = vsel %vm138, %v6355, 0
  %6375 = vmatprep.subr.mxu0 0.0
  %6376 = vmatpush1.xpose.msra.mxu0 %v6370
  %6377 = vmatprep.subr.mxu0 0.0
  %6378 = vmatpush1.xpose.msra.mxu0 %v6373
  %6379 = vmatprep.subr.mxu0 0.0
  %6380 = vmatpush1.xpose.msra.mxu0 0.0
  %6381 = vmatprep.subr.mxu0 0.0
  %6382 = vmatpush1.xpose.msra.mxu0 0.0
  %6383 = vmatprep.subr.mxu0 0.0
  %6384 = vmatpush1.xpose.msra.mxu0 0.0
  %6385 = vmatprep.subr.mxu0 0.0
  %6386 = vmatpush1.xpose.msra.mxu0 0.0
  %6387 = vmatprep.subr.mxu0 0.0
  %6388 = vmatpush1.xpose.msra.mxu0 0.0
  %6389 = vmatprep.subr.mxu0 0.0
  %6390 = vmatpush1.xpose.msra.mxu0 0.0
  %6391 = vmatprep.subr.mxu0 0.0
  %6392 = vmatpush1.xpose.msra.mxu0 0.0
  %6393 = vmatprep.subr.mxu0 0.0
  %6394 = vmatpush1.xpose.msra.mxu0 0.0
  %6395 = vmatprep.subr.mxu0 0.0
  %6396 = vmatpush1.xpose.msra.mxu0 0.0
  %6397 = vmatprep.subr.mxu0 0.0
  %6398 = vmatpush1.xpose.msra.mxu0 0.0
  %6399 = vmatprep.subr.mxu0 0.0
  %6400 = vmatpush1.xpose.msra.mxu0 0.0
  %6401 = vmatprep.subr.mxu0 0.0
  %6402 = vmatpush1.xpose.msra.mxu0 0.0
  %6403 = vmatprep.subr.mxu0 0.0
  %6404 = vmatpush1.xpose.msra.mxu0 0.0
  %6405 = vmatprep.subr.mxu0 0.0
  %6406 = vmatpush1.xpose.msra.mxu0 0.0
  %6407 = vmatprep.subr.mxu0 0.0
  %6408 = vmatpush1.xpose.msra.mxu0 0.0
  %6409 = vmatprep.subr.mxu0 0.0
  %6410 = vmatpush1.xpose.msra.mxu0 0.0
  %6411 = vmatprep.subr.mxu0 0.0
  %6412 = vmatpush1.xpose.msra.mxu0 0.0
  %6413 = vmatprep.subr.mxu0 0.0
  %6414 = vmatpush1.xpose.msra.mxu0 0.0
  %6415 = vmatprep.subr.mxu0 0.0
  %6416 = vmatpush1.xpose.msra.mxu0 0.0
  %6417 = vmatprep.subr.mxu0 0.0
  %6418 = vmatpush1.xpose.msra.mxu0 0.0
  %6419 = vmatprep.subr.mxu0 0.0
  %6420 = vmatpush1.xpose.msra.mxu0 0.0
  %6421 = vmatprep.subr.mxu0 0.0
  %6422 = vmatpush1.xpose.msra.mxu0 0.0
  %6423 = vmatprep.subr.mxu0 0.0
  %6424 = vmatpush1.xpose.msra.mxu0 0.0
  %6425 = vmatprep.subr.mxu0 0.0
  %6426 = vmatpush1.xpose.msra.mxu0 0.0
  %6427 = vmatprep.subr.mxu0 0.0
  %6428 = vmatpush1.xpose.msra.mxu0 0.0
  %6429 = vmatprep.subr.mxu0 0.0
  %6430 = vmatpush1.xpose.msra.mxu0 0.0
  %6431 = vmatprep.subr.mxu0 0.0
  %6432 = vmatpush1.xpose.msra.mxu0 0.0
  %6433 = vmatprep.subr.mxu0 0.0
  %6434 = vmatpush1.xpose.msra.mxu0 0.0
  %6435 = vmatprep.subr.mxu0 0.0
  %6436 = vmatpush1.xpose.msra.mxu0 0.0
  %6437 = vmatprep.subr.mxu0 0.0
  %6438 = vmatpush1.xpose.msra.mxu0 0.0
  %6439 = vmatprep.mubr.f32.mxu0 0.0
  %6440 = vmatmul.mubr.f32.gmra.mrb[0].mxu0 %v6364
  %v6441 = vpop.f32.mrb[0].mxu0
  %v6442 = vadd.f32 0.0, %v6441
  %v6443 = vpop.f32.mrb[0].mxu0
  %6444 = vmatprep.mubr.f32.mxu0 0.0
  %6445 = vmatmul.mubr.f32.gmra.mrb[0].mxu0 %v6367
  %v6446 = vpop.f32.mrb[0].mxu0
  %v6447 = vadd.f32 0.0, %v6446
  %v6448 = vpop.f32.mrb[0].mxu0
  %6449 = vdwg.mxu0
  %v6450 = vmul.f32 %v6442, 0.35355338
  %v6451 = vmul.f32 %v6447, 0.35355338
  %v6452 = vadd.f32 %v6450, %v34
  %v6453 = vadd.f32 %v6451, %v35
  %v6454 = vsel %vm226, %v6452, -inf
  %6455 = vmax.xlane.f32.xlu0 %v6454
  %v6456 = vpop.xlane.xlu0 %6455
  %v6457 = vsel %vm226, %v6453, -inf
  %6458 = vmax.xlane.f32.xlu0 %v6457
  %v6459 = vpop.xlane.xlu0 %6458
  %v6460 = vsub.f32 %v6452, %v6456
  %v6461 = vsub.f32 %v6453, %v6459
  %v6462 = vmul.f32 %v6460, 1.442695
  %v6463 = vpow.pop %v6462
  %v6464 = vmul.f32 %v6461, 1.442695
  %v6465 = vpow.pop %v6464
  %v6466 = vsel %vm226, %v6463, 0.0
  %6467 = vadd.xlane.f32.xlu0 %v6466
  %v6468 = vpop.xlane.xlu0 %6467
  %v6469 = vsel %vm226, %v6465, 0.0
  %6470 = vadd.xlane.f32.xlu0 %v6469
  %v6471 = vpop.xlane.xlu0 %6470
  %6472 = vrot.lane.b32.xlu0 %v6350, 96
  %v6473 = vpop.permute.xlu0 %6472
  %6474 = vrot.lane.b32.xlu0 %v6355, 96
  %v6475 = vpop.permute.xlu0 %6474
  %v6479 = vsel %vm226, %v6463, 0
  %v6482 = vsel %vm226, %v6465, 0
  %6484 = vmatprep.subr.mxu0 0.0
  %6485 = vmatpush1.msra.mxu0 %v6473
  %6486 = vmatprep.subr.mxu0 0.0
  %6487 = vmatpush1.msra.mxu0 %v6475
  %6488 = vmatprep.subr.mxu0 0.0
  %6489 = vmatpush1.msra.mxu0 0.0
  %6490 = vmatprep.subr.mxu0 0.0
  %6491 = vmatpush1.msra.mxu0 0.0
  %6492 = vmatprep.subr.mxu0 0.0
  %6493 = vmatpush1.msra.mxu0 0.0
  %6494 = vmatprep.subr.mxu0 0.0
  %6495 = vmatpush1.msra.mxu0 0.0
  %6496 = vmatprep.subr.mxu0 0.0
  %6497 = vmatpush1.msra.mxu0 0.0
  %6498 = vmatprep.subr.mxu0 0.0
  %6499 = vmatpush1.msra.mxu0 0.0
  %6500 = vmatprep.subr.mxu0 0.0
  %6501 = vmatpush1.msra.mxu0 0.0
  %6502 = vmatprep.subr.mxu0 0.0
  %6503 = vmatpush1.msra.mxu0 0.0
  %6504 = vmatprep.subr.mxu0 0.0
  %6505 = vmatpush1.msra.mxu0 0.0
  %6506 = vmatprep.subr.mxu0 0.0
  %6507 = vmatpush1.msra.mxu0 0.0
  %6508 = vmatprep.subr.mxu0 0.0
  %6509 = vmatpush1.msra.mxu0 0.0
  %6510 = vmatprep.subr.mxu0 0.0
  %6511 = vmatpush1.msra.mxu0 0.0
  %6512 = vmatprep.subr.mxu0 0.0
  %6513 = vmatpush1.msra.mxu0 0.0
  %6514 = vmatprep.subr.mxu0 0.0
  %6515 = vmatpush1.msra.mxu0 0.0
  %6516 = vmatprep.subr.mxu0 0.0
  %6517 = vmatpush1.msra.mxu0 0.0
  %6518 = vmatprep.subr.mxu0 0.0
  %6519 = vmatpush1.msra.mxu0 0.0
  %6520 = vmatprep.subr.mxu0 0.0
  %6521 = vmatpush1.msra.mxu0 0.0
  %6522 = vmatprep.subr.mxu0 0.0
  %6523 = vmatpush1.msra.mxu0 0.0
  %6524 = vmatprep.subr.mxu0 0.0
  %6525 = vmatpush1.msra.mxu0 0.0
  %6526 = vmatprep.subr.mxu0 0.0
  %6527 = vmatpush1.msra.mxu0 0.0
  %6528 = vmatprep.subr.mxu0 0.0
  %6529 = vmatpush1.msra.mxu0 0.0
  %6530 = vmatprep.subr.mxu0 0.0
  %6531 = vmatpush1.msra.mxu0 0.0
  %6532 = vmatprep.subr.mxu0 0.0
  %6533 = vmatpush1.msra.mxu0 0.0
  %6534 = vmatprep.subr.mxu0 0.0
  %6535 = vmatpush1.msra.mxu0 0.0
  %6536 = vmatprep.subr.mxu0 0.0
  %6537 = vmatpush1.msra.mxu0 0.0
  %6538 = vmatprep.subr.mxu0 0.0
  %6539 = vmatpush1.msra.mxu0 0.0
  %6540 = vmatprep.subr.mxu0 0.0
  %6541 = vmatpush1.msra.mxu0 0.0
  %6542 = vmatprep.subr.mxu0 0.0
  %6543 = vmatpush1.msra.mxu0 0.0
  %6544 = vmatprep.subr.mxu0 0.0
  %6545 = vmatpush1.msra.mxu0 0.0
  %6546 = vmatprep.subr.mxu0 0.0
  %6547 = vmatpush1.msra.mxu0 0.0
  %6548 = vmatprep.mubr.f32.mxu0 0.0
  %6549 = vmatmul.mubr.f32.gmra.mrb[0].mxu0 %v6479
  %v6550 = vpop.f32.mrb[0].mxu0
  %v6551 = vadd.f32 0.0, %v6550
  %v6552 = vpop.f32.mrb[0].mxu0
  %6553 = vmatprep.mubr.f32.mxu0 0.0
  %6554 = vmatmul.mubr.f32.gmra.mrb[0].mxu0 %v6482
  %v6555 = vpop.f32.mrb[0].mxu0
  %v6556 = vadd.f32 0.0, %v6555
  %v6557 = vpop.f32.mrb[0].mxu0
  %6558 = vdwg.mxu0
  %v6559 = vrcp.pop %v6468
  %v6560 = vrcp.pop %v6471
  %v6561 = vmul.f32 %v6551, %v6559
  %v6562 = vmul.f32 %v6556, %v6560
  %6563 = vrot.lane.b32.xlu0 %v6266, 120
  %v6564 = vpop.permute.xlu0 %6563
  %6565 = vrot.lane.b32.xlu0 %v6271, 120
  %v6566 = vpop.permute.xlu0 %6565
  %6567 = vrot.lane.b32.xlu0 %v6350, 120
  %v6568 = vpop.permute.xlu0 %6567
  %6569 = vrot.lane.b32.xlu0 %v6355, 120
  %v6570 = vpop.permute.xlu0 %6569
  %v6571 = vsel %vm138, %v6564, 0
  %v6573 = vsel %vm138, %v6566, 0
  %v6575 = vsel %vm138, %v6568, 0
  %v6577 = vsel %vm138, %v6570, 0
  %6579 = vmatprep.subr.mxu0 0.0
  %6580 = vmatpush1.xpose.msra.mxu0 %v6575
  %6581 = vmatprep.subr.mxu0 0.0
  %6582 = vmatpush1.xpose.msra.mxu0 %v6577
  %6583 = vmatprep.subr.mxu0 0.0
  %6584 = vmatpush1.xpose.msra.mxu0 0.0
  %6585 = vmatprep.subr.mxu0 0.0
  %6586 = vmatpush1.xpose.msra.mxu0 0.0
  %6587 = vmatprep.subr.mxu0 0.0
  %6588 = vmatpush1.xpose.msra.mxu0 0.0
  %6589 = vmatprep.subr.mxu0 0.0
  %6590 = vmatpush1.xpose.msra.mxu0 0.0
  %6591 = vmatprep.subr.mxu0 0.0
  %6592 = vmatpush1.xpose.msra.mxu0 0.0
  %6593 = vmatprep.subr.mxu0 0.0
  %6594 = vmatpush1.xpose.msra.mxu0 0.0
  %6595 = vmatprep.subr.mxu0 0.0
  %6596 = vmatpush1.xpose.msra.mxu0 0.0
  %6597 = vmatprep.subr.mxu0 0.0
  %6598 = vmatpush1.xpose.msra.mxu0 0.0
  %6599 = vmatprep.subr.mxu0 0.0
  %6600 = vmatpush1.xpose.msra.mxu0 0.0
  %6601 = vmatprep.subr.mxu0 0.0
  %6602 = vmatpush1.xpose.msra.mxu0 0.0
  %6603 = vmatprep.subr.mxu0 0.0
  %6604 = vmatpush1.xpose.msra.mxu0 0.0
  %6605 = vmatprep.subr.mxu0 0.0
  %6606 = vmatpush1.xpose.msra.mxu0 0.0
  %6607 = vmatprep.subr.mxu0 0.0
  %6608 = vmatpush1.xpose.msra.mxu0 0.0
  %6609 = vmatprep.subr.mxu0 0.0
  %6610 = vmatpush1.xpose.msra.mxu0 0.0
  %6611 = vmatprep.subr.mxu0 0.0
  %6612 = vmatpush1.xpose.msra.mxu0 0.0
  %6613 = vmatprep.subr.mxu0 0.0
  %6614 = vmatpush1.xpose.msra.mxu0 0.0
  %6615 = vmatprep.subr.mxu0 0.0
  %6616 = vmatpush1.xpose.msra.mxu0 0.0
  %6617 = vmatprep.subr.mxu0 0.0
  %6618 = vmatpush1.xpose.msra.mxu0 0.0
  %6619 = vmatprep.subr.mxu0 0.0
  %6620 = vmatpush1.xpose.msra.mxu0 0.0
  %6621 = vmatprep.subr.mxu0 0.0
  %6622 = vmatpush1.xpose.msra.mxu0 0.0
  %6623 = vmatprep.subr.mxu0 0.0
  %6624 = vmatpush1.xpose.msra.mxu0 0.0
  %6625 = vmatprep.subr.mxu0 0.0
  %6626 = vmatpush1.xpose.msra.mxu0 0.0
  %6627 = vmatprep.subr.mxu0 0.0
  %6628 = vmatpush1.xpose.msra.mxu0 0.0
  %6629 = vmatprep.subr.mxu0 0.0
  %6630 = vmatpush1.xpose.msra.mxu0 0.0
  %6631 = vmatprep.subr.mxu0 0.0
  %6632 = vmatpush1.xpose.msra.mxu0 0.0
  %6633 = vmatprep.subr.mxu0 0.0
  %6634 = vmatpush1.xpose.msra.mxu0 0.0
  %6635 = vmatprep.subr.mxu0 0.0
  %6636 = vmatpush1.xpose.msra.mxu0 0.0
  %6637 = vmatprep.subr.mxu0 0.0
  %6638 = vmatpush1.xpose.msra.mxu0 0.0
  %6639 = vmatprep.subr.mxu0 0.0
  %6640 = vmatpush1.xpose.msra.mxu0 0.0
  %6641 = vmatprep.subr.mxu0 0.0
  %6642 = vmatpush1.xpose.msra.mxu0 0.0
  %6643 = vmatprep.mubr.f32.mxu0 0.0
  %6644 = vmatmul.mubr.f32.gmra.mrb[0].mxu0 %v6571
  %v6645 = vpop.f32.mrb[0].mxu0
  %v6646 = vadd.f32 0.0, %v6645
  %v6647 = vpop.f32.mrb[0].mxu0
  %6648 = vmatprep.mubr.f32.mxu0 0.0
  %6649 = vmatmul.mubr.f32.gmra.mrb[0].mxu0 %v6573
  %v6650 = vpop.f32.mrb[0].mxu0
  %v6651 = vadd.f32 0.0, %v6650
  %v6652 = vpop.f32.mrb[0].mxu0
  %6653 = vdwg.mxu0
  %v6654 = vmul.f32 %v6646, 0.35355338
  %v6655 = vmul.f32 %v6651, 0.35355338
  %v6656 = vadd.f32 %v6654, %v34
  %v6657 = vadd.f32 %v6655, %v35
  %v6658 = vsel %vm226, %v6656, -inf
  %6659 = vmax.xlane.f32.xlu0 %v6658
  %v6660 = vpop.xlane.xlu0 %6659
  %v6661 = vsel %vm226, %v6657, -inf
  %6662 = vmax.xlane.f32.xlu0 %v6661
  %v6663 = vpop.xlane.xlu0 %6662
  %v6664 = vsub.f32 %v6656, %v6660
  %v6665 = vsub.f32 %v6657, %v6663
  %v6666 = vmul.f32 %v6664, 1.442695
  %v6667 = vpow.pop %v6666
  %v6668 = vmul.f32 %v6665, 1.442695
  %v6669 = vpow.pop %v6668
  %v6670 = vsel %vm226, %v6667, 0.0
  %6671 = vadd.xlane.f32.xlu0 %v6670
  %v6672 = vpop.xlane.xlu0 %6671
  %v6673 = vsel %vm226, %v6669, 0.0
  %6674 = vadd.xlane.f32.xlu0 %v6673
  %v6675 = vpop.xlane.xlu0 %6674
  %6676 = vrot.lane.b32.xlu0 %v6350, 88
  %v6677 = vpop.permute.xlu0 %6676
  %6678 = vrot.lane.b32.xlu0 %v6355, 88
  %v6679 = vpop.permute.xlu0 %6678
  %v6683 = vsel %vm226, %v6667, 0
  %v6686 = vsel %vm226, %v6669, 0
  %6688 = vmatprep.subr.mxu0 0.0
  %6689 = vmatpush1.msra.mxu0 %v6677
  %6690 = vmatprep.subr.mxu0 0.0
  %6691 = vmatpush1.msra.mxu0 %v6679
  %6692 = vmatprep.subr.mxu0 0.0
  %6693 = vmatpush1.msra.mxu0 0.0
  %6694 = vmatprep.subr.mxu0 0.0
  %6695 = vmatpush1.msra.mxu0 0.0
  %6696 = vmatprep.subr.mxu0 0.0
  %6697 = vmatpush1.msra.mxu0 0.0
  %6698 = vmatprep.subr.mxu0 0.0
  %6699 = vmatpush1.msra.mxu0 0.0
  %6700 = vmatprep.subr.mxu0 0.0
  %6701 = vmatpush1.msra.mxu0 0.0
  %6702 = vmatprep.subr.mxu0 0.0
  %6703 = vmatpush1.msra.mxu0 0.0
  %6704 = vmatprep.subr.mxu0 0.0
  %6705 = vmatpush1.msra.mxu0 0.0
  %6706 = vmatprep.subr.mxu0 0.0
  %6707 = vmatpush1.msra.mxu0 0.0
  %6708 = vmatprep.subr.mxu0 0.0
  %6709 = vmatpush1.msra.mxu0 0.0
  %6710 = vmatprep.subr.mxu0 0.0
  %6711 = vmatpush1.msra.mxu0 0.0
  %6712 = vmatprep.subr.mxu0 0.0
  %6713 = vmatpush1.msra.mxu0 0.0
  %6714 = vmatprep.subr.mxu0 0.0
  %6715 = vmatpush1.msra.mxu0 0.0
  %6716 = vmatprep.subr.mxu0 0.0
  %6717 = vmatpush1.msra.mxu0 0.0
  %6718 = vmatprep.subr.mxu0 0.0
  %6719 = vmatpush1.msra.mxu0 0.0
  %6720 = vmatprep.subr.mxu0 0.0
  %6721 = vmatpush1.msra.mxu0 0.0
  %6722 = vmatprep.subr.mxu0 0.0
  %6723 = vmatpush1.msra.mxu0 0.0
  %6724 = vmatprep.subr.mxu0 0.0
  %6725 = vmatpush1.msra.mxu0 0.0
  %6726 = vmatprep.subr.mxu0 0.0
  %6727 = vmatpush1.msra.mxu0 0.0
  %6728 = vmatprep.subr.mxu0 0.0
  %6729 = vmatpush1.msra.mxu0 0.0
  %6730 = vmatprep.subr.mxu0 0.0
  %6731 = vmatpush1.msra.mxu0 0.0
  %6732 = vmatprep.subr.mxu0 0.0
  %6733 = vmatpush1.msra.mxu0 0.0
  %6734 = vmatprep.subr.mxu0 0.0
  %6735 = vmatpush1.msra.mxu0 0.0
  %6736 = vmatprep.subr.mxu0 0.0
  %6737 = vmatpush1.msra.mxu0 0.0
  %6738 = vmatprep.subr.mxu0 0.0
  %6739 = vmatpush1.msra.mxu0 0.0
  %6740 = vmatprep.subr.mxu0 0.0
  %6741 = vmatpush1.msra.mxu0 0.0
  %6742 = vmatprep.subr.mxu0 0.0
  %6743 = vmatpush1.msra.mxu0 0.0
  %6744 = vmatprep.subr.mxu0 0.0
  %6745 = vmatpush1.msra.mxu0 0.0
  %6746 = vmatprep.subr.mxu0 0.0
  %6747 = vmatpush1.msra.mxu0 0.0
  %6748 = vmatprep.subr.mxu0 0.0
  %6749 = vmatpush1.msra.mxu0 0.0
  %6750 = vmatprep.subr.mxu0 0.0
  %6751 = vmatpush1.msra.mxu0 0.0
  %6752 = vmatprep.mubr.f32.mxu0 0.0
  %6753 = vmatmul.mubr.f32.gmra.mrb[0].mxu0 %v6683
  %v6754 = vpop.f32.mrb[0].mxu0
  %v6755 = vadd.f32 0.0, %v6754
  %v6756 = vpop.f32.mrb[0].mxu0
  %6757 = vmatprep.mubr.f32.mxu0 0.0
  %6758 = vmatmul.mubr.f32.gmra.mrb[0].mxu0 %v6686
  %v6759 = vpop.f32.mrb[0].mxu0
  %v6760 = vadd.f32 0.0, %v6759
  %v6761 = vpop.f32.mrb[0].mxu0
  %6762 = vdwg.mxu0
  %v6763 = vrcp.pop %v6672
  %v6764 = vrcp.pop %v6675
  %v6765 = vmul.f32 %v6755, %v6763
  %v6766 = vmul.f32 %v6760, %v6764
  %6767 = vrot.lane.b32.xlu0 %v6266, 112
  %v6768 = vpop.permute.xlu0 %6767
  %6769 = vrot.lane.b32.xlu0 %v6271, 112
  %v6770 = vpop.permute.xlu0 %6769
  %6771 = vrot.lane.b32.xlu0 %v6350, 112
  %v6772 = vpop.permute.xlu0 %6771
  %6773 = vrot.lane.b32.xlu0 %v6355, 112
  %v6774 = vpop.permute.xlu0 %6773
  %v6775 = vsel %vm138, %v6768, 0
  %v6777 = vsel %vm138, %v6770, 0
  %v6779 = vsel %vm138, %v6772, 0
  %v6781 = vsel %vm138, %v6774, 0
  %6783 = vmatprep.subr.mxu0 0.0
  %6784 = vmatpush1.xpose.msra.mxu0 %v6779
  %6785 = vmatprep.subr.mxu0 0.0
  %6786 = vmatpush1.xpose.msra.mxu0 %v6781
  %6787 = vmatprep.subr.mxu0 0.0
  %6788 = vmatpush1.xpose.msra.mxu0 0.0
  %6789 = vmatprep.subr.mxu0 0.0
  %6790 = vmatpush1.xpose.msra.mxu0 0.0
  %6791 = vmatprep.subr.mxu0 0.0
  %6792 = vmatpush1.xpose.msra.mxu0 0.0
  %6793 = vmatprep.subr.mxu0 0.0
  %6794 = vmatpush1.xpose.msra.mxu0 0.0
  %6795 = vmatprep.subr.mxu0 0.0
  %6796 = vmatpush1.xpose.msra.mxu0 0.0
  %6797 = vmatprep.subr.mxu0 0.0
  %6798 = vmatpush1.xpose.msra.mxu0 0.0
  %6799 = vmatprep.subr.mxu0 0.0
  %6800 = vmatpush1.xpose.msra.mxu0 0.0
  %6801 = vmatprep.subr.mxu0 0.0
  %6802 = vmatpush1.xpose.msra.mxu0 0.0
  %6803 = vmatprep.subr.mxu0 0.0
  %6804 = vmatpush1.xpose.msra.mxu0 0.0
  %6805 = vmatprep.subr.mxu0 0.0
  %6806 = vmatpush1.xpose.msra.mxu0 0.0
  %6807 = vmatprep.subr.mxu0 0.0
  %6808 = vmatpush1.xpose.msra.mxu0 0.0
  %6809 = vmatprep.subr.mxu0 0.0
  %6810 = vmatpush1.xpose.msra.mxu0 0.0
  %6811 = vmatprep.subr.mxu0 0.0
  %6812 = vmatpush1.xpose.msra.mxu0 0.0
  %6813 = vmatprep.subr.mxu0 0.0
  %6814 = vmatpush1.xpose.msra.mxu0 0.0
  %6815 = vmatprep.subr.mxu0 0.0
  %6816 = vmatpush1.xpose.msra.mxu0 0.0
  %6817 = vmatprep.subr.mxu0 0.0
  %6818 = vmatpush1.xpose.msra.mxu0 0.0
  %6819 = vmatprep.subr.mxu0 0.0
  %6820 = vmatpush1.xpose.msra.mxu0 0.0
  %6821 = vmatprep.subr.mxu0 0.0
  %6822 = vmatpush1.xpose.msra.mxu0 0.0
  %6823 = vmatprep.subr.mxu0 0.0
  %6824 = vmatpush1.xpose.msra.mxu0 0.0
  %6825 = vmatprep.subr.mxu0 0.0
  %6826 = vmatpush1.xpose.msra.mxu0 0.0
  %6827 = vmatprep.subr.mxu0 0.0
  %6828 = vmatpush1.xpose.msra.mxu0 0.0
  %6829 = vmatprep.subr.mxu0 0.0
  %6830 = vmatpush1.xpose.msra.mxu0 0.0
  %6831 = vmatprep.subr.mxu0 0.0
  %6832 = vmatpush1.xpose.msra.mxu0 0.0
  %6833 = vmatprep.subr.mxu0 0.0
  %6834 = vmatpush1.xpose.msra.mxu0 0.0
  %6835 = vmatprep.subr.mxu0 0.0
  %6836 = vmatpush1.xpose.msra.mxu0 0.0
  %6837 = vmatprep.subr.mxu0 0.0
  %6838 = vmatpush1.xpose.msra.mxu0 0.0
  %6839 = vmatprep.subr.mxu0 0.0
  %6840 = vmatpush1.xpose.msra.mxu0 0.0
  %6841 = vmatprep.subr.mxu0 0.0
  %6842 = vmatpush1.xpose.msra.mxu0 0.0
  %6843 = vmatprep.subr.mxu0 0.0
  %6844 = vmatpush1.xpose.msra.mxu0 0.0
  %6845 = vmatprep.subr.mxu0 0.0
  %6846 = vmatpush1.xpose.msra.mxu0 0.0
  %6847 = vmatprep.mubr.f32.mxu0 0.0
  %6848 = vmatmul.mubr.f32.gmra.mrb[0].mxu0 %v6775
  %v6849 = vpop.f32.mrb[0].mxu0
  %v6850 = vadd.f32 0.0, %v6849
  %v6851 = vpop.f32.mrb[0].mxu0
  %6852 = vmatprep.mubr.f32.mxu0 0.0
  %6853 = vmatmul.mubr.f32.gmra.mrb[0].mxu0 %v6777
  %v6854 = vpop.f32.mrb[0].mxu0
  %v6855 = vadd.f32 0.0, %v6854
  %v6856 = vpop.f32.mrb[0].mxu0
  %6857 = vdwg.mxu0
  %v6858 = vmul.f32 %v6850, 0.35355338
  %v6859 = vmul.f32 %v6855, 0.35355338
  %v6860 = vadd.f32 %v6858, %v34
  %v6861 = vadd.f32 %v6859, %v35
  %v6862 = vsel %vm226, %v6860, -inf
  %6863 = vmax.xlane.f32.xlu0 %v6862
  %v6864 = vpop.xlane.xlu0 %6863
  %v6865 = vsel %vm226, %v6861, -inf
  %6866 = vmax.xlane.f32.xlu0 %v6865
  %v6867 = vpop.xlane.xlu0 %6866
  %v6868 = vsub.f32 %v6860, %v6864
  %v6869 = vsub.f32 %v6861, %v6867
  %v6870 = vmul.f32 %v6868, 1.442695
  %v6871 = vpow.pop %v6870
  %v6872 = vmul.f32 %v6869, 1.442695
  %v6873 = vpow.pop %v6872
  %v6874 = vsel %vm226, %v6871, 0.0
  %6875 = vadd.xlane.f32.xlu0 %v6874
  %v6876 = vpop.xlane.xlu0 %6875
  %v6877 = vsel %vm226, %v6873, 0.0
  %6878 = vadd.xlane.f32.xlu0 %v6877
  %v6879 = vpop.xlane.xlu0 %6878
  %6880 = vrot.lane.b32.xlu0 %v6350, 80
  %v6881 = vpop.permute.xlu0 %6880
  %6882 = vrot.lane.b32.xlu0 %v6355, 80
  %v6883 = vpop.permute.xlu0 %6882
  %v6887 = vsel %vm226, %v6871, 0
  %v6890 = vsel %vm226, %v6873, 0
  %6892 = vmatprep.subr.mxu0 0.0
  %6893 = vmatpush1.msra.mxu0 %v6881
  %6894 = vmatprep.subr.mxu0 0.0
  %6895 = vmatpush1.msra.mxu0 %v6883
  %6896 = vmatprep.subr.mxu0 0.0
  %6897 = vmatpush1.msra.mxu0 0.0
  %6898 = vmatprep.subr.mxu0 0.0
  %6899 = vmatpush1.msra.mxu0 0.0
  %6900 = vmatprep.subr.mxu0 0.0
  %6901 = vmatpush1.msra.mxu0 0.0
  %6902 = vmatprep.subr.mxu0 0.0
  %6903 = vmatpush1.msra.mxu0 0.0
  %6904 = vmatprep.subr.mxu0 0.0
  %6905 = vmatpush1.msra.mxu0 0.0
  %6906 = vmatprep.subr.mxu0 0.0
  %6907 = vmatpush1.msra.mxu0 0.0
  %6908 = vmatprep.subr.mxu0 0.0
  %6909 = vmatpush1.msra.mxu0 0.0
  %6910 = vmatprep.subr.mxu0 0.0
  %6911 = vmatpush1.msra.mxu0 0.0
  %6912 = vmatprep.subr.mxu0 0.0
  %6913 = vmatpush1.msra.mxu0 0.0
  %6914 = vmatprep.subr.mxu0 0.0
  %6915 = vmatpush1.msra.mxu0 0.0
  %6916 = vmatprep.subr.mxu0 0.0
  %6917 = vmatpush1.msra.mxu0 0.0
  %6918 = vmatprep.subr.mxu0 0.0
  %6919 = vmatpush1.msra.mxu0 0.0
  %6920 = vmatprep.subr.mxu0 0.0
  %6921 = vmatpush1.msra.mxu0 0.0
  %6922 = vmatprep.subr.mxu0 0.0
  %6923 = vmatpush1.msra.mxu0 0.0
  %6924 = vmatprep.subr.mxu0 0.0
  %6925 = vmatpush1.msra.mxu0 0.0
  %6926 = vmatprep.subr.mxu0 0.0
  %6927 = vmatpush1.msra.mxu0 0.0
  %6928 = vmatprep.subr.mxu0 0.0
  %6929 = vmatpush1.msra.mxu0 0.0
  %6930 = vmatprep.subr.mxu0 0.0
  %6931 = vmatpush1.msra.mxu0 0.0
  %6932 = vmatprep.subr.mxu0 0.0
  %6933 = vmatpush1.msra.mxu0 0.0
  %6934 = vmatprep.subr.mxu0 0.0
  %6935 = vmatpush1.msra.mxu0 0.0
  %6936 = vmatprep.subr.mxu0 0.0
  %6937 = vmatpush1.msra.mxu0 0.0
  %6938 = vmatprep.subr.mxu0 0.0
  %6939 = vmatpush1.msra.mxu0 0.0
  %6940 = vmatprep.subr.mxu0 0.0
  %6941 = vmatpush1.msra.mxu0 0.0
  %6942 = vmatprep.subr.mxu0 0.0
  %6943 = vmatpush1.msra.mxu0 0.0
  %6944 = vmatprep.subr.mxu0 0.0
  %6945 = vmatpush1.msra.mxu0 0.0
  %6946 = vmatprep.subr.mxu0 0.0
  %6947 = vmatpush1.msra.mxu0 0.0
  %6948 = vmatprep.subr.mxu0 0.0
  %6949 = vmatpush1.msra.mxu0 0.0
  %6950 = vmatprep.subr.mxu0 0.0
  %6951 = vmatpush1.msra.mxu0 0.0
  %6952 = vmatprep.subr.mxu0 0.0
  %6953 = vmatpush1.msra.mxu0 0.0
  %6954 = vmatprep.subr.mxu0 0.0
  %6955 = vmatpush1.msra.mxu0 0.0
  %6956 = vmatprep.mubr.f32.mxu0 0.0
  %6957 = vmatmul.mubr.f32.gmra.mrb[0].mxu0 %v6887
  %v6958 = vpop.f32.mrb[0].mxu0
  %v6959 = vadd.f32 0.0, %v6958
  %v6960 = vpop.f32.mrb[0].mxu0
  %6961 = vmatprep.mubr.f32.mxu0 0.0
  %6962 = vmatmul.mubr.f32.gmra.mrb[0].mxu0 %v6890
  %v6963 = vpop.f32.mrb[0].mxu0
  %v6964 = vadd.f32 0.0, %v6963
  %v6965 = vpop.f32.mrb[0].mxu0
  %6966 = vdwg.mxu0
  %v6967 = vrcp.pop %v6876
  %v6968 = vrcp.pop %v6879
  %v6969 = vmul.f32 %v6959, %v6967
  %v6970 = vmul.f32 %v6964, %v6968
  %6971 = vrot.lane.b32.xlu0 %v6266, 104
  %v6972 = vpop.permute.xlu0 %6971
  %6973 = vrot.lane.b32.xlu0 %v6271, 104
  %v6974 = vpop.permute.xlu0 %6973
  %6975 = vrot.lane.b32.xlu0 %v6350, 104
  %v6976 = vpop.permute.xlu0 %6975
  %6977 = vrot.lane.b32.xlu0 %v6355, 104
  %v6978 = vpop.permute.xlu0 %6977
  %v6979 = vsel %vm138, %v6972, 0
  %v6981 = vsel %vm138, %v6974, 0
  %v6983 = vsel %vm138, %v6976, 0
  %v6985 = vsel %vm138, %v6978, 0
  %6987 = vmatprep.subr.mxu0 0.0
  %6988 = vmatpush1.xpose.msra.mxu0 %v6983
  %6989 = vmatprep.subr.mxu0 0.0
  %6990 = vmatpush1.xpose.msra.mxu0 %v6985
  %6991 = vmatprep.subr.mxu0 0.0
  %6992 = vmatpush1.xpose.msra.mxu0 0.0
  %6993 = vmatprep.subr.mxu0 0.0
  %6994 = vmatpush1.xpose.msra.mxu0 0.0
  %6995 = vmatprep.subr.mxu0 0.0
  %6996 = vmatpush1.xpose.msra.mxu0 0.0
  %6997 = vmatprep.subr.mxu0 0.0
  %6998 = vmatpush1.xpose.msra.mxu0 0.0
  %6999 = vmatprep.subr.mxu0 0.0
  %7000 = vmatpush1.xpose.msra.mxu0 0.0
  %7001 = vmatprep.subr.mxu0 0.0
  %7002 = vmatpush1.xpose.msra.mxu0 0.0
  %7003 = vmatprep.subr.mxu0 0.0
  %7004 = vmatpush1.xpose.msra.mxu0 0.0
  %7005 = vmatprep.subr.mxu0 0.0
  %7006 = vmatpush1.xpose.msra.mxu0 0.0
  %7007 = vmatprep.subr.mxu0 0.0
  %7008 = vmatpush1.xpose.msra.mxu0 0.0
  %7009 = vmatprep.subr.mxu0 0.0
  %7010 = vmatpush1.xpose.msra.mxu0 0.0
  %7011 = vmatprep.subr.mxu0 0.0
  %7012 = vmatpush1.xpose.msra.mxu0 0.0
  %7013 = vmatprep.subr.mxu0 0.0
  %7014 = vmatpush1.xpose.msra.mxu0 0.0
  %7015 = vmatprep.subr.mxu0 0.0
  %7016 = vmatpush1.xpose.msra.mxu0 0.0
  %7017 = vmatprep.subr.mxu0 0.0
  %7018 = vmatpush1.xpose.msra.mxu0 0.0
  %7019 = vmatprep.subr.mxu0 0.0
  %7020 = vmatpush1.xpose.msra.mxu0 0.0
  %7021 = vmatprep.subr.mxu0 0.0
  %7022 = vmatpush1.xpose.msra.mxu0 0.0
  %7023 = vmatprep.subr.mxu0 0.0
  %7024 = vmatpush1.xpose.msra.mxu0 0.0
  %7025 = vmatprep.subr.mxu0 0.0
  %7026 = vmatpush1.xpose.msra.mxu0 0.0
  %7027 = vmatprep.subr.mxu0 0.0
  %7028 = vmatpush1.xpose.msra.mxu0 0.0
  %7029 = vmatprep.subr.mxu0 0.0
  %7030 = vmatpush1.xpose.msra.mxu0 0.0
  %7031 = vmatprep.subr.mxu0 0.0
  %7032 = vmatpush1.xpose.msra.mxu0 0.0
  %7033 = vmatprep.subr.mxu0 0.0
  %7034 = vmatpush1.xpose.msra.mxu0 0.0
  %7035 = vmatprep.subr.mxu0 0.0
  %7036 = vmatpush1.xpose.msra.mxu0 0.0
  %7037 = vmatprep.subr.mxu0 0.0
  %7038 = vmatpush1.xpose.msra.mxu0 0.0
  %7039 = vmatprep.subr.mxu0 0.0
  %7040 = vmatpush1.xpose.msra.mxu0 0.0
  %7041 = vmatprep.subr.mxu0 0.0
  %7042 = vmatpush1.xpose.msra.mxu0 0.0
  %7043 = vmatprep.subr.mxu0 0.0
  %7044 = vmatpush1.xpose.msra.mxu0 0.0
  %7045 = vmatprep.subr.mxu0 0.0
  %7046 = vmatpush1.xpose.msra.mxu0 0.0
  %7047 = vmatprep.subr.mxu0 0.0
  %7048 = vmatpush1.xpose.msra.mxu0 0.0
  %7049 = vmatprep.subr.mxu0 0.0
  %7050 = vmatpush1.xpose.msra.mxu0 0.0
  %7051 = vmatprep.mubr.f32.mxu0 0.0
  %7052 = vmatmul.mubr.f32.gmra.mrb[0].mxu0 %v6979
  %v7053 = vpop.f32.mrb[0].mxu0
  %v7054 = vadd.f32 0.0, %v7053
  %v7055 = vpop.f32.mrb[0].mxu0
  %7056 = vmatprep.mubr.f32.mxu0 0.0
  %7057 = vmatmul.mubr.f32.gmra.mrb[0].mxu0 %v6981
  %v7058 = vpop.f32.mrb[0].mxu0
  %v7059 = vadd.f32 0.0, %v7058
  %v7060 = vpop.f32.mrb[0].mxu0
  %7061 = vdwg.mxu0
  %v7062 = vmul.f32 %v7054, 0.35355338
  %v7063 = vmul.f32 %v7059, 0.35355338
  %v7064 = vadd.f32 %v7062, %v34
  %v7065 = vadd.f32 %v7063, %v35
  %v7066 = vsel %vm226, %v7064, -inf
  %7067 = vmax.xlane.f32.xlu0 %v7066
  %v7068 = vpop.xlane.xlu0 %7067
  %v7069 = vsel %vm226, %v7065, -inf
  %7070 = vmax.xlane.f32.xlu0 %v7069
  %v7071 = vpop.xlane.xlu0 %7070
  %v7072 = vsub.f32 %v7064, %v7068
  %v7073 = vsub.f32 %v7065, %v7071
  %v7074 = vmul.f32 %v7072, 1.442695
  %v7075 = vpow.pop %v7074
  %v7076 = vmul.f32 %v7073, 1.442695
  %v7077 = vpow.pop %v7076
  %v7078 = vsel %vm226, %v7075, 0.0
  %7079 = vadd.xlane.f32.xlu0 %v7078
  %v7080 = vpop.xlane.xlu0 %7079
  %v7081 = vsel %vm226, %v7077, 0.0
  %7082 = vadd.xlane.f32.xlu0 %v7081
  %v7083 = vpop.xlane.xlu0 %7082
  %7084 = vrot.lane.b32.xlu0 %v6350, 72
  %v7085 = vpop.permute.xlu0 %7084
  %7086 = vrot.lane.b32.xlu0 %v6355, 72
  %v7087 = vpop.permute.xlu0 %7086
  %v7091 = vsel %vm226, %v7075, 0
  %v7094 = vsel %vm226, %v7077, 0
  %7096 = vmatprep.subr.mxu0 0.0
  %7097 = vmatpush1.msra.mxu0 %v7085
  %7098 = vmatprep.subr.mxu0 0.0
  %7099 = vmatpush1.msra.mxu0 %v7087
  %7100 = vmatprep.subr.mxu0 0.0
  %7101 = vmatpush1.msra.mxu0 0.0
  %7102 = vmatprep.subr.mxu0 0.0
  %7103 = vmatpush1.msra.mxu0 0.0
  %7104 = vmatprep.subr.mxu0 0.0
  %7105 = vmatpush1.msra.mxu0 0.0
  %7106 = vmatprep.subr.mxu0 0.0
  %7107 = vmatpush1.msra.mxu0 0.0
  %7108 = vmatprep.subr.mxu0 0.0
  %7109 = vmatpush1.msra.mxu0 0.0
  %7110 = vmatprep.subr.mxu0 0.0
  %7111 = vmatpush1.msra.mxu0 0.0
  %7112 = vmatprep.subr.mxu0 0.0
  %7113 = vmatpush1.msra.mxu0 0.0
  %7114 = vmatprep.subr.mxu0 0.0
  %7115 = vmatpush1.msra.mxu0 0.0
  %7116 = vmatprep.subr.mxu0 0.0
  %7117 = vmatpush1.msra.mxu0 0.0
  %7118 = vmatprep.subr.mxu0 0.0
  %7119 = vmatpush1.msra.mxu0 0.0
  %7120 = vmatprep.subr.mxu0 0.0
  %7121 = vmatpush1.msra.mxu0 0.0
  %7122 = vmatprep.subr.mxu0 0.0
  %7123 = vmatpush1.msra.mxu0 0.0
  %7124 = vmatprep.subr.mxu0 0.0
  %7125 = vmatpush1.msra.mxu0 0.0
  %7126 = vmatprep.subr.mxu0 0.0
  %7127 = vmatpush1.msra.mxu0 0.0
  %7128 = vmatprep.subr.mxu0 0.0
  %7129 = vmatpush1.msra.mxu0 0.0
  %7130 = vmatprep.subr.mxu0 0.0
  %7131 = vmatpush1.msra.mxu0 0.0
  %7132 = vmatprep.subr.mxu0 0.0
  %7133 = vmatpush1.msra.mxu0 0.0
  %7134 = vmatprep.subr.mxu0 0.0
  %7135 = vmatpush1.msra.mxu0 0.0
  %7136 = vmatprep.subr.mxu0 0.0
  %7137 = vmatpush1.msra.mxu0 0.0
  %7138 = vmatprep.subr.mxu0 0.0
  %7139 = vmatpush1.msra.mxu0 0.0
  %7140 = vmatprep.subr.mxu0 0.0
  %7141 = vmatpush1.msra.mxu0 0.0
  %7142 = vmatprep.subr.mxu0 0.0
  %7143 = vmatpush1.msra.mxu0 0.0
  %7144 = vmatprep.subr.mxu0 0.0
  %7145 = vmatpush1.msra.mxu0 0.0
  %7146 = vmatprep.subr.mxu0 0.0
  %7147 = vmatpush1.msra.mxu0 0.0
  %7148 = vmatprep.subr.mxu0 0.0
  %7149 = vmatpush1.msra.mxu0 0.0
  %7150 = vmatprep.subr.mxu0 0.0
  %7151 = vmatpush1.msra.mxu0 0.0
  %7152 = vmatprep.subr.mxu0 0.0
  %7153 = vmatpush1.msra.mxu0 0.0
  %7154 = vmatprep.subr.mxu0 0.0
  %7155 = vmatpush1.msra.mxu0 0.0
  %7156 = vmatprep.subr.mxu0 0.0
  %7157 = vmatpush1.msra.mxu0 0.0
  %7158 = vmatprep.subr.mxu0 0.0
  %7159 = vmatpush1.msra.mxu0 0.0
  %7160 = vmatprep.mubr.f32.mxu0 0.0
  %7161 = vmatmul.mubr.f32.gmra.mrb[0].mxu0 %v7091
  %v7162 = vpop.f32.mrb[0].mxu0
  %v7163 = vadd.f32 0.0, %v7162
  %v7164 = vpop.f32.mrb[0].mxu0
  %7165 = vmatprep.mubr.f32.mxu0 0.0
  %7166 = vmatmul.mubr.f32.gmra.mrb[0].mxu0 %v7094
  %v7167 = vpop.f32.mrb[0].mxu0
  %v7168 = vadd.f32 0.0, %v7167
  %v7169 = vpop.f32.mrb[0].mxu0
  %7170 = vdwg.mxu0
  %v7171 = vrcp.pop %v7080
  %v7172 = vrcp.pop %v7083
  %v7173 = vmul.f32 %v7163, %v7171
  %v7174 = vmul.f32 %v7168, %v7172
  %7177 = vrot.lane.b32.xlu0 %v6765, 8
  %v7178 = vpop.permute.xlu0 %7177
  %7179 = vrot.lane.b32.xlu0 %v6766, 8
  %v7180 = vpop.permute.xlu0 %7179
  %7185 = vrot.lane.b32.xlu0 %v6969, 16
  %v7186 = vpop.permute.xlu0 %7185
  %7187 = vrot.lane.b32.xlu0 %v6970, 16
  %v7188 = vpop.permute.xlu0 %7187
  %7193 = vrot.lane.b32.xlu0 %v7173, 24
  %v7194 = vpop.permute.xlu0 %7193
  %7195 = vrot.lane.b32.xlu0 %v7174, 24
  %v7196 = vpop.permute.xlu0 %7195
  %v7199 = vsel %vm138, %v6561, %v7178
  %v7200 = vsel %vm138, %v6562, %v7180
  %v7201 = vsel %vm226, %v7199, %v7186
  %v7202 = vsel %vm226, %v7200, %v7188
  %v7203 = vsel %vm976, %v7201, %v7194
  %v7204 = vsel %vm976, %v7202, %v7196
  %v7205 = vlaneseq
  %v7206 = vshrl.u32 %v7205, 7
  %v7207 = vsub.s32 0, %v7206
  %v7208 = vrot.slane %v6362, %v7207
  %v7210 = vsel %vm45, %v7203, 0
  %v7213 = vsel %vm45, %v7204, 0
  %7215 = vmatprep.subr.mxu0 0.0
  %7216 = vmatpush1.msra.mxu0 %v6358
  %7217 = vmatprep.subr.mxu0 0.0
  %7218 = vmatpush1.msra.mxu0 %v6359
  %7219 = vmatprep.subr.mxu0 0.0
  %7220 = vmatpush1.msra.mxu0 %v6360
  %7221 = vmatprep.subr.mxu0 0.0
  %7222 = vmatpush1.msra.mxu0 %v6361
  %7223 = vmatprep.subr.mxu0 0.0
  %7224 = vmatpush1.msra.mxu0 0.0
  %7225 = vmatprep.subr.mxu0 0.0
  %7226 = vmatpush1.msra.mxu0 0.0
  %7227 = vmatprep.subr.mxu0 0.0
  %7228 = vmatpush1.msra.mxu0 0.0
  %7229 = vmatprep.subr.mxu0 0.0
  %7230 = vmatpush1.msra.mxu0 0.0
  %7231 = vmatprep.subr.mxu0 0.0
  %7232 = vmatpush1.msra.mxu0 0.0
  %7233 = vmatprep.subr.mxu0 0.0
  %7234 = vmatpush1.msra.mxu0 0.0
  %7235 = vmatprep.subr.mxu0 0.0
  %7236 = vmatpush1.msra.mxu0 0.0
  %7237 = vmatprep.subr.mxu0 0.0
  %7238 = vmatpush1.msra.mxu0 0.0
  %7239 = vmatprep.subr.mxu0 0.0
  %7240 = vmatpush1.msra.mxu0 0.0
  %7241 = vmatprep.subr.mxu0 0.0
  %7242 = vmatpush1.msra.mxu0 0.0
  %7243 = vmatprep.subr.mxu0 0.0
  %7244 = vmatpush1.msra.mxu0 0.0
  %7245 = vmatprep.subr.mxu0 0.0
  %7246 = vmatpush1.msra.mxu0 0.0
  %7247 = vmatprep.subr.mxu0 0.0
  %7248 = vmatpush1.msra.mxu0 0.0
  %7249 = vmatprep.subr.mxu0 0.0
  %7250 = vmatpush1.msra.mxu0 0.0
  %7251 = vmatprep.subr.mxu0 0.0
  %7252 = vmatpush1.msra.mxu0 0.0
  %7253 = vmatprep.subr.mxu0 0.0
  %7254 = vmatpush1.msra.mxu0 0.0
  %7255 = vmatprep.subr.mxu0 0.0
  %7256 = vmatpush1.msra.mxu0 0.0
  %7257 = vmatprep.subr.mxu0 0.0
  %7258 = vmatpush1.msra.mxu0 0.0
  %7259 = vmatprep.subr.mxu0 0.0
  %7260 = vmatpush1.msra.mxu0 0.0
  %7261 = vmatprep.subr.mxu0 0.0
  %7262 = vmatpush1.msra.mxu0 0.0
  %7263 = vmatprep.subr.mxu0 0.0
  %7264 = vmatpush1.msra.mxu0 0.0
  %7265 = vmatprep.subr.mxu0 0.0
  %7266 = vmatpush1.msra.mxu0 0.0
  %7267 = vmatprep.subr.mxu0 0.0
  %7268 = vmatpush1.msra.mxu0 0.0
  %7269 = vmatprep.subr.mxu0 0.0
  %7270 = vmatpush1.msra.mxu0 0.0
  %7271 = vmatprep.subr.mxu0 0.0
  %7272 = vmatpush1.msra.mxu0 0.0
  %7273 = vmatprep.subr.mxu0 0.0
  %7274 = vmatpush1.msra.mxu0 0.0
  %7275 = vmatprep.subr.mxu0 0.0
  %7276 = vmatpush1.msra.mxu0 0.0
  %7277 = vmatprep.subr.mxu0 0.0
  %7278 = vmatpush1.msra.mxu0 0.0
  %7279 = vmatprep.mubr.f32.mxu0 0.0
  %7280 = vmatmul.mubr.f32.gmra.mrb[0].mxu0 %v7210
  %v7281 = vpop.f32.mrb[0].mxu0
  %v7282 = vadd.f32 %v7208, %v7281
  %v7283 = vpop.f32.mrb[0].mxu0
  %7284 = vmatprep.mubr.f32.mxu0 0.0
  %7285 = vmatmul.mubr.f32.gmra.mrb[0].mxu0 %v7213
  %v7286 = vpop.f32.mrb[0].mxu0
  %v7287 = vadd.f32 %v7208, %v7286
  %v7288 = vpop.f32.mrb[0].mxu0
  %7289 = vdwg.mxu0
  %v7290 = vadd.f32 %v6182, %v7282
  %v7291 = vadd.f32 %v6183, %v7287
  %v7292 = vld [vmem:[%s6 + $0x26] sm:$0x1]
  %v7293 = vld [vmem:[%s6 + $0x27] sm:$0x1]
  %v7294 = vsel %vm45, %v7290, 0.0
  %7295 = vadd.xlane.f32.xlu0 %v7294
  %v7296 = vpop.xlane.xlu0 %7295
  %v7297 = vsel %vm45, %v7291, 0.0
  %7298 = vadd.xlane.f32.xlu0 %v7297
  %v7299 = vpop.xlane.xlu0 %7298
  %v7300 = vmul.f32 %v7296, %v1074
  %v7301 = vmul.f32 %v7299, %v1074
  %v7302 = vsub.f32 %v7290, %v7300
  %v7303 = vsub.f32 %v7291, %v7301
  %v7304 = vmul.f32 %v7302, %v7302
  %v7305 = vmul.f32 %v7303, %v7303
  %v7306 = vsel %vm45, %v7304, 0.0
  %7307 = vadd.xlane.f32.xlu0 %v7306
  %v7308 = vpop.xlane.xlu0 %7307
  %v7309 = vsel %vm45, %v7305, 0.0
  %7310 = vadd.xlane.f32.xlu0 %v7309
  %v7311 = vpop.xlane.xlu0 %7310
  %v7312 = vmul.f32 %v7308, %v1074
  %v7313 = vmul.f32 %v7311, %v1074
  %v7314 = vadd.f32 %v7312, 1e-05
  %v7315 = vadd.f32 %v7313, 1e-05
  %v7316 = vrsqrt.pop %v7314
  %v7317 = vrsqrt.pop %v7315
  %v7318 = vmul.f32 %v7302, %v7316
  %v7319 = vmul.f32 %v7303, %v7317
  %v7320 = vlaneseq
  %v7321 = vshrl.u32 %v7320, 7
  %v7322 = vsub.s32 0, %v7321
  %v7323 = vrot.slane %v7292, %v7322
  %v7324 = vmul.f32 %v7318, %v7323
  %v7325 = vmul.f32 %v7319, %v7323
  %v7326 = vlaneseq
  %v7327 = vshrl.u32 %v7326, 7
  %v7328 = vsub.s32 0, %v7327
  %v7329 = vrot.slane %v7293, %v7328
  %v7330 = vadd.f32 %v7324, %v7329
  %v7331 = vadd.f32 %v7325, %v7329
  %v7332 = vld [vmem:[%s5 + $0x2e0] sm:$0xff]
  %v7333 = vld [vmem:[%s5 + $0x2e8] sm:$0xff]
  %v7334 = vld [vmem:[%s5 + $0x2f0] sm:$0xff]
  %v7335 = vld [vmem:[%s5 + $0x2f8] sm:$0xff]
  %v7336 = vld [vmem:[%s6 + $0x22] sm:$0x1]
  %v7337 = vld [vmem:[%s5 + $0x300] sm:$0xff]
  %v7338 = vld [vmem:[%s5 + $0x308] sm:$0xff]
  %v7339 = vld [vmem:[%s5 + $0x310] sm:$0xff]
  %v7340 = vld [vmem:[%s5 + $0x318] sm:$0xff]
  %v7341 = vld [vmem:[%s5 + $0x320] sm:$0xff]
  %v7342 = vld [vmem:[%s5 + $0x328] sm:$0xff]
  %v7343 = vld [vmem:[%s5 + $0x330] sm:$0xff]
  %v7344 = vld [vmem:[%s5 + $0x338] sm:$0xff]
  %v7345 = vld [vmem:[%s6 + $0x23] sm:$0x1]
  %v7346 = vlaneseq
  %v7347 = vshrl.u32 %v7346, 7
  %v7348 = vsub.s32 0, %v7347
  %v7349 = vrot.slane %v7336, %v7348
  %v7351 = vsel %vm45, %v7330, 0
  %v7354 = vsel %vm45, %v7331, 0
  %7356 = vmatprep.subr.mxu0 0.0
  %7357 = vmatpush1.msra.mxu0 %v7332
  %7358 = vmatprep.subr.mxu0 0.0
  %7359 = vmatpush1.msra.mxu0 %v7333
  %7360 = vmatprep.subr.mxu0 0.0
  %7361 = vmatpush1.msra.mxu0 %v7334
  %7362 = vmatprep.subr.mxu0 0.0
  %7363 = vmatpush1.msra.mxu0 %v7335
  %7364 = vmatprep.subr.mxu0 0.0
  %7365 = vmatpush1.msra.mxu0 0.0
  %7366 = vmatprep.subr.mxu0 0.0
  %7367 = vmatpush1.msra.mxu0 0.0
  %7368 = vmatprep.subr.mxu0 0.0
  %7369 = vmatpush1.msra.mxu0 0.0
  %7370 = vmatprep.subr.mxu0 0.0
  %7371 = vmatpush1.msra.mxu0 0.0
  %7372 = vmatprep.subr.mxu0 0.0
  %7373 = vmatpush1.msra.mxu0 0.0
  %7374 = vmatprep.subr.mxu0 0.0
  %7375 = vmatpush1.msra.mxu0 0.0
  %7376 = vmatprep.subr.mxu0 0.0
  %7377 = vmatpush1.msra.mxu0 0.0
  %7378 = vmatprep.subr.mxu0 0.0
  %7379 = vmatpush1.msra.mxu0 0.0
  %7380 = vmatprep.subr.mxu0 0.0
  %7381 = vmatpush1.msra.mxu0 0.0
  %7382 = vmatprep.subr.mxu0 0.0
  %7383 = vmatpush1.msra.mxu0 0.0
  %7384 = vmatprep.subr.mxu0 0.0
  %7385 = vmatpush1.msra.mxu0 0.0
  %7386 = vmatprep.subr.mxu0 0.0
  %7387 = vmatpush1.msra.mxu0 0.0
  %7388 = vmatprep.subr.mxu0 0.0
  %7389 = vmatpush1.msra.mxu0 0.0
  %7390 = vmatprep.subr.mxu0 0.0
  %7391 = vmatpush1.msra.mxu0 0.0
  %7392 = vmatprep.subr.mxu0 0.0
  %7393 = vmatpush1.msra.mxu0 0.0
  %7394 = vmatprep.subr.mxu0 0.0
  %7395 = vmatpush1.msra.mxu0 0.0
  %7396 = vmatprep.subr.mxu0 0.0
  %7397 = vmatpush1.msra.mxu0 0.0
  %7398 = vmatprep.subr.mxu0 0.0
  %7399 = vmatpush1.msra.mxu0 0.0
  %7400 = vmatprep.subr.mxu0 0.0
  %7401 = vmatpush1.msra.mxu0 0.0
  %7402 = vmatprep.subr.mxu0 0.0
  %7403 = vmatpush1.msra.mxu0 0.0
  %7404 = vmatprep.subr.mxu0 0.0
  %7405 = vmatpush1.msra.mxu0 0.0
  %7406 = vmatprep.subr.mxu0 0.0
  %7407 = vmatpush1.msra.mxu0 0.0
  %7408 = vmatprep.subr.mxu0 0.0
  %7409 = vmatpush1.msra.mxu0 0.0
  %7410 = vmatprep.subr.mxu0 0.0
  %7411 = vmatpush1.msra.mxu0 0.0
  %7412 = vmatprep.subr.mxu0 0.0
  %7413 = vmatpush1.msra.mxu0 0.0
  %7414 = vmatprep.subr.mxu0 0.0
  %7415 = vmatpush1.msra.mxu0 0.0
  %7416 = vmatprep.subr.mxu0 0.0
  %7417 = vmatpush1.msra.mxu0 0.0
  %7418 = vmatprep.subr.mxu0 0.0
  %7419 = vmatpush1.msra.mxu0 0.0
  %7420 = vmatprep.mubr.f32.mxu0 0.0
  %7421 = vmatmul.mubr.f32.gmra.mrb[0].mxu0 %v7351
  %v7422 = vpop.f32.mrb[0].mxu0
  %v7423 = vadd.f32 %v7349, %v7422
  %v7424 = vpop.f32.mrb[0].mxu0
  %7425 = vmatprep.mubr.f32.mxu0 0.0
  %7426 = vmatmul.mubr.f32.gmra.mrb[0].mxu0 %v7354
  %v7427 = vpop.f32.mrb[0].mxu0
  %v7428 = vadd.f32 %v7349, %v7427
  %v7429 = vpop.f32.mrb[0].mxu0
  %7430 = vdwg.mxu0
  %v7431 = vmax.f32 %v7423, 0.0
  %v7432 = vmax.f32 %v7428, 0.0
  %v7433 = vlaneseq
  %v7434 = vshrl.u32 %v7433, 7
  %v7435 = vsub.s32 0, %v7434
  %v7436 = vrot.slane %v7345, %v7435
  %v7438 = vsel %vm1212, %v7431, 0
  %v7441 = vsel %vm1212, %v7432, 0
  %7443 = vmatprep.subr.mxu0 0.0
  %7444 = vmatpush1.msra.mxu0 %v7337
  %7445 = vmatprep.subr.mxu0 0.0
  %7446 = vmatpush1.msra.mxu0 %v7338
  %7447 = vmatprep.subr.mxu0 0.0
  %7448 = vmatpush1.msra.mxu0 %v7339
  %7449 = vmatprep.subr.mxu0 0.0
  %7450 = vmatpush1.msra.mxu0 %v7340
  %7451 = vmatprep.subr.mxu0 0.0
  %7452 = vmatpush1.msra.mxu0 %v7341
  %7453 = vmatprep.subr.mxu0 0.0
  %7454 = vmatpush1.msra.mxu0 %v7342
  %7455 = vmatprep.subr.mxu0 0.0
  %7456 = vmatpush1.msra.mxu0 %v7343
  %7457 = vmatprep.subr.mxu0 0.0
  %7458 = vmatpush1.msra.mxu0 %v7344
  %7459 = vmatprep.subr.mxu0 0.0
  %7460 = vmatpush1.msra.mxu0 0.0
  %7461 = vmatprep.subr.mxu0 0.0
  %7462 = vmatpush1.msra.mxu0 0.0
  %7463 = vmatprep.subr.mxu0 0.0
  %7464 = vmatpush1.msra.mxu0 0.0
  %7465 = vmatprep.subr.mxu0 0.0
  %7466 = vmatpush1.msra.mxu0 0.0
  %7467 = vmatprep.subr.mxu0 0.0
  %7468 = vmatpush1.msra.mxu0 0.0
  %7469 = vmatprep.subr.mxu0 0.0
  %7470 = vmatpush1.msra.mxu0 0.0
  %7471 = vmatprep.subr.mxu0 0.0
  %7472 = vmatpush1.msra.mxu0 0.0
  %7473 = vmatprep.subr.mxu0 0.0
  %7474 = vmatpush1.msra.mxu0 0.0
  %7475 = vmatprep.subr.mxu0 0.0
  %7476 = vmatpush1.msra.mxu0 0.0
  %7477 = vmatprep.subr.mxu0 0.0
  %7478 = vmatpush1.msra.mxu0 0.0
  %7479 = vmatprep.subr.mxu0 0.0
  %7480 = vmatpush1.msra.mxu0 0.0
  %7481 = vmatprep.subr.mxu0 0.0
  %7482 = vmatpush1.msra.mxu0 0.0
  %7483 = vmatprep.subr.mxu0 0.0
  %7484 = vmatpush1.msra.mxu0 0.0
  %7485 = vmatprep.subr.mxu0 0.0
  %7486 = vmatpush1.msra.mxu0 0.0
  %7487 = vmatprep.subr.mxu0 0.0
  %7488 = vmatpush1.msra.mxu0 0.0
  %7489 = vmatprep.subr.mxu0 0.0
  %7490 = vmatpush1.msra.mxu0 0.0
  %7491 = vmatprep.subr.mxu0 0.0
  %7492 = vmatpush1.msra.mxu0 0.0
  %7493 = vmatprep.subr.mxu0 0.0
  %7494 = vmatpush1.msra.mxu0 0.0
  %7495 = vmatprep.subr.mxu0 0.0
  %7496 = vmatpush1.msra.mxu0 0.0
  %7497 = vmatprep.subr.mxu0 0.0
  %7498 = vmatpush1.msra.mxu0 0.0
  %7499 = vmatprep.subr.mxu0 0.0
  %7500 = vmatpush1.msra.mxu0 0.0
  %7501 = vmatprep.subr.mxu0 0.0
  %7502 = vmatpush1.msra.mxu0 0.0
  %7503 = vmatprep.subr.mxu0 0.0
  %7504 = vmatpush1.msra.mxu0 0.0
  %7505 = vmatprep.subr.mxu0 0.0
  %7506 = vmatpush1.msra.mxu0 0.0
  %7507 = vmatprep.mubr.f32.mxu0 0.0
  %7508 = vmatmul.mubr.f32.gmra.mrb[0].mxu0 %v7438
  %v7509 = vpop.f32.mrb[0].mxu0
  %v7510 = vadd.f32 %v7436, %v7509
  %v7511 = vpop.f32.mrb[0].mxu0
  %7512 = vmatprep.mubr.f32.mxu0 0.0
  %7513 = vmatmul.mubr.f32.gmra.mrb[0].mxu0 %v7441
  %v7514 = vpop.f32.mrb[0].mxu0
  %v7515 = vadd.f32 %v7436, %v7514
  %v7516 = vpop.f32.mrb[0].mxu0
  %7517 = vdwg.mxu0
  %v7518 = vadd.f32 %v7330, %v7510
  %v7519 = vadd.f32 %v7331, %v7515
  %v7520 = vld [vmem:[%s6 + $0x28] sm:$0x1]
  %v7521 = vld [vmem:[%s6 + $0x29] sm:$0x1]
  %v7522 = vsel %vm45, %v7518, 0.0
  %7523 = vadd.xlane.f32.xlu0 %v7522
  %v7524 = vpop.xlane.xlu0 %7523
  %v7525 = vsel %vm45, %v7519, 0.0
  %7526 = vadd.xlane.f32.xlu0 %v7525
  %v7527 = vpop.xlane.xlu0 %7526
  %v7528 = vmul.f32 %v7524, %v1074
  %v7529 = vmul.f32 %v7527, %v1074
  %v7530 = vsub.f32 %v7518, %v7528
  %v7531 = vsub.f32 %v7519, %v7529
  %v7532 = vmul.f32 %v7530, %v7530
  %v7533 = vmul.f32 %v7531, %v7531
  %v7534 = vsel %vm45, %v7532, 0.0
  %7535 = vadd.xlane.f32.xlu0 %v7534
  %v7536 = vpop.xlane.xlu0 %7535
  %v7537 = vsel %vm45, %v7533, 0.0
  %7538 = vadd.xlane.f32.xlu0 %v7537
  %v7539 = vpop.xlane.xlu0 %7538
  %v7540 = vmul.f32 %v7536, %v1074
  %v7541 = vmul.f32 %v7539, %v1074
  %v7542 = vadd.f32 %v7540, 1e-05
  %v7543 = vadd.f32 %v7541, 1e-05
  %v7544 = vrsqrt.pop %v7542
  %v7545 = vrsqrt.pop %v7543
  %v7546 = vmul.f32 %v7530, %v7544
  %v7547 = vmul.f32 %v7531, %v7545
  %v7548 = vlaneseq
  %v7549 = vshrl.u32 %v7548, 7
  %v7550 = vsub.s32 0, %v7549
  %v7551 = vrot.slane %v7520, %v7550
  %v7552 = vmul.f32 %v7546, %v7551
  %v7553 = vmul.f32 %v7547, %v7551
  %v7554 = vlaneseq
  %v7555 = vshrl.u32 %v7554, 7
  %v7556 = vsub.s32 0, %v7555
  %v7557 = vrot.slane %v7521, %v7556
  %v7558 = vadd.f32 %v7552, %v7557
  %v7559 = vadd.f32 %v7553, %v7557
  %v7560 = vld [vmem:[%s6 + $0x2c] sm:$0x1]
  %v7561 = vld [vmem:[%s6 + $0x2d] sm:$0x1]
  %v7562 = vsel %vm45, %v7558, 0.0
  %7563 = vadd.xlane.f32.xlu0 %v7562
  %v7564 = vpop.xlane.xlu0 %7563
  %v7565 = vsel %vm45, %v7559, 0.0
  %7566 = vadd.xlane.f32.xlu0 %v7565
  %v7567 = vpop.xlane.xlu0 %7566
  %v7568 = vmul.f32 %v7564, %v1074
  %v7569 = vmul.f32 %v7567, %v1074
  %v7570 = vsub.f32 %v7558, %v7568
  %v7571 = vsub.f32 %v7559, %v7569
  %v7572 = vmul.f32 %v7570, %v7570
  %v7573 = vmul.f32 %v7571, %v7571
  %v7574 = vsel %vm45, %v7572, 0.0
  %7575 = vadd.xlane.f32.xlu0 %v7574
  %v7576 = vpop.xlane.xlu0 %7575
  %v7577 = vsel %vm45, %v7573, 0.0
  %7578 = vadd.xlane.f32.xlu0 %v7577
  %v7579 = vpop.xlane.xlu0 %7578
  %v7580 = vmul.f32 %v7576, %v1074
  %v7581 = vmul.f32 %v7579, %v1074
  %v7582 = vadd.f32 %v7580, 1e-05
  %v7583 = vadd.f32 %v7581, 1e-05
  %v7584 = vrsqrt.pop %v7582
  %v7585 = vrsqrt.pop %v7583
  %v7586 = vmul.f32 %v7570, %v7584
  %v7587 = vmul.f32 %v7571, %v7585
  %v7588 = vlaneseq
  %v7589 = vshrl.u32 %v7588, 7
  %v7590 = vsub.s32 0, %v7589
  %v7591 = vrot.slane %v7560, %v7590
  %v7592 = vmul.f32 %v7586, %v7591
  %v7593 = vmul.f32 %v7587, %v7591
  %v7594 = vlaneseq
  %v7595 = vshrl.u32 %v7594, 7
  %v7596 = vsub.s32 0, %v7595
  %v7597 = vrot.slane %v7561, %v7596
  %v7598 = vadd.f32 %v7592, %v7597
  %v7599 = vadd.f32 %v7593, %v7597
  %v7600 = vld [vmem:[%s5 + $0x340] sm:$0xff]
  %v7601 = vld [vmem:[%s5 + $0x348] sm:$0xff]
  %v7602 = vld [vmem:[%s5 + $0x350] sm:$0xff]
  %v7603 = vld [vmem:[%s5 + $0x358] sm:$0xff]
  %v7604 = vld [vmem:[%s6 + $0x2e] sm:$0x1]
  %v7605 = vlaneseq
  %v7606 = vshrl.u32 %v7605, 7
  %v7607 = vsub.s32 0, %v7606
  %v7608 = vrot.slane %v7604, %v7607
  %v7610 = vsel %vm45, %v7598, 0
  %v7613 = vsel %vm45, %v7599, 0
  %7615 = vmatprep.subr.mxu0 0.0
  %7616 = vmatpush1.msra.mxu0 %v7600
  %7617 = vmatprep.subr.mxu0 0.0
  %7618 = vmatpush1.msra.mxu0 %v7601
  %7619 = vmatprep.subr.mxu0 0.0
  %7620 = vmatpush1.msra.mxu0 %v7602
  %7621 = vmatprep.subr.mxu0 0.0
  %7622 = vmatpush1.msra.mxu0 %v7603
  %7623 = vmatprep.subr.mxu0 0.0
  %7624 = vmatpush1.msra.mxu0 0.0
  %7625 = vmatprep.subr.mxu0 0.0
  %7626 = vmatpush1.msra.mxu0 0.0
  %7627 = vmatprep.subr.mxu0 0.0
  %7628 = vmatpush1.msra.mxu0 0.0
  %7629 = vmatprep.subr.mxu0 0.0
  %7630 = vmatpush1.msra.mxu0 0.0
  %7631 = vmatprep.subr.mxu0 0.0
  %7632 = vmatpush1.msra.mxu0 0.0
  %7633 = vmatprep.subr.mxu0 0.0
  %7634 = vmatpush1.msra.mxu0 0.0
  %7635 = vmatprep.subr.mxu0 0.0
  %7636 = vmatpush1.msra.mxu0 0.0
  %7637 = vmatprep.subr.mxu0 0.0
  %7638 = vmatpush1.msra.mxu0 0.0
  %7639 = vmatprep.subr.mxu0 0.0
  %7640 = vmatpush1.msra.mxu0 0.0
  %7641 = vmatprep.subr.mxu0 0.0
  %7642 = vmatpush1.msra.mxu0 0.0
  %7643 = vmatprep.subr.mxu0 0.0
  %7644 = vmatpush1.msra.mxu0 0.0
  %7645 = vmatprep.subr.mxu0 0.0
  %7646 = vmatpush1.msra.mxu0 0.0
  %7647 = vmatprep.subr.mxu0 0.0
  %7648 = vmatpush1.msra.mxu0 0.0
  %7649 = vmatprep.subr.mxu0 0.0
  %7650 = vmatpush1.msra.mxu0 0.0
  %7651 = vmatprep.subr.mxu0 0.0
  %7652 = vmatpush1.msra.mxu0 0.0
  %7653 = vmatprep.subr.mxu0 0.0
  %7654 = vmatpush1.msra.mxu0 0.0
  %7655 = vmatprep.subr.mxu0 0.0
  %7656 = vmatpush1.msra.mxu0 0.0
  %7657 = vmatprep.subr.mxu0 0.0
  %7658 = vmatpush1.msra.mxu0 0.0
  %7659 = vmatprep.subr.mxu0 0.0
  %7660 = vmatpush1.msra.mxu0 0.0
  %7661 = vmatprep.subr.mxu0 0.0
  %7662 = vmatpush1.msra.mxu0 0.0
  %7663 = vmatprep.subr.mxu0 0.0
  %7664 = vmatpush1.msra.mxu0 0.0
  %7665 = vmatprep.subr.mxu0 0.0
  %7666 = vmatpush1.msra.mxu0 0.0
  %7667 = vmatprep.subr.mxu0 0.0
  %7668 = vmatpush1.msra.mxu0 0.0
  %7669 = vmatprep.subr.mxu0 0.0
  %7670 = vmatpush1.msra.mxu0 0.0
  %7671 = vmatprep.subr.mxu0 0.0
  %7672 = vmatpush1.msra.mxu0 0.0
  %7673 = vmatprep.subr.mxu0 0.0
  %7674 = vmatpush1.msra.mxu0 0.0
  %7675 = vmatprep.subr.mxu0 0.0
  %7676 = vmatpush1.msra.mxu0 0.0
  %7677 = vmatprep.subr.mxu0 0.0
  %7678 = vmatpush1.msra.mxu0 0.0
  %7679 = vmatprep.mubr.f32.mxu0 0.0
  %7680 = vmatmul.mubr.f32.gmra.mrb[0].mxu0 %v7610
  %v7681 = vpop.f32.mrb[0].mxu0
  %v7682 = vadd.f32 %v7608, %v7681
  %v7683 = vpop.f32.mrb[0].mxu0
  %7684 = vmatprep.mubr.f32.mxu0 0.0
  %7685 = vmatmul.mubr.f32.gmra.mrb[0].mxu0 %v7613
  %v7686 = vpop.f32.mrb[0].mxu0
  %v7687 = vadd.f32 %v7608, %v7686
  %v7688 = vpop.f32.mrb[0].mxu0
  %7689 = vdwg.mxu0
  %7690 = vst [vmem:[%s7] sm:$0xff] %v7682
  %7691 = vst [vmem:[%s7 + $0x8] sm:$0xff] %v7687
  // Predicated region
  $region30: #{seq2seq_forward.1} parent=0 // pred_check
    _
  $region31: #{seq2seq_forward.1} parent=0 // pred_check_branch
    %7693 = sbr.rel (0) target = $region33
  $region32: #{seq2seq_forward.1} parent=0 // pred_region
    _
  $region33: #{seq2seq_forward.1} parent=0 // pred_fallthru
    _
  // Predicated region
  $region34: #{seq2seq_forward.1} parent=0 // pred_check
    _
  $region35: #{seq2seq_forward.1} parent=0 // pred_check_branch
    %7695 = sbr.rel (0) target = $region37
  $region36: #{seq2seq_forward.1} parent=0 // pred_region
    _
  $region37: #{seq2seq_forward.1} parent=0 // pred_fallthru
    _

</llo_original>
